<compile_context>
chip_gen: v5e
topology: v5e:2x2
jax: 0.10.0
libtpu: 0.0.40
codegen_flags: <defaults>
</compile_context>

<pallas_src>
import functools
import math

import jax
import jax.numpy as jnp
import numpy as np
from jax.experimental import pallas as pl
from jax.experimental.pallas import tpu as pltpu


# ---------------------------------------------------------------------------
# Shared numerics helper (identical inside the kernel and the reference).
# ---------------------------------------------------------------------------
def _sigmoid(x):
    # Stable logistic; tanh has a native EUP lowering in Mosaic.
    return 0.5 * (jnp.tanh(0.5 * x) + 1.0)


# ---------------------------------------------------------------------------
# Geodesic / coordinate preprocessing (mirrors DCSLITA.forward exactly).
# TODO(synk): haversine/bearing (arcsin, atan2) and the mercator log/tan
#             min-max normalization stay in plain JAX; these transcendentals
#             have no clean Mosaic lowering and are negligible next to the
#             BiLSTM compute.
# ---------------------------------------------------------------------------
def _haversine(lon1, lat1, lon2, lat2):
    lon1, lat1, lon2, lat2 = map(jnp.deg2rad, (lon1, lat1, lon2, lat2))
    dlon = lon2 - lon1
    dlat = lat2 - lat1
    a = jnp.sin(dlat / 2) ** 2 + jnp.cos(lat1) * jnp.cos(lat2) * jnp.sin(dlon / 2) ** 2
    c = 2.0 * jnp.arcsin(jnp.sqrt(a))
    return c * 6371.0


def _bearing(lon1, lat1, lon2, lat2):
    lon1, lat1, lon2, lat2 = map(jnp.deg2rad, (lon1, lat1, lon2, lat2))
    dlon = lon2 - lon1
    y = jnp.sin(dlon) * jnp.cos(lat2)
    x = jnp.cos(lat1) * jnp.sin(lat2) - jnp.sin(lat1) * jnp.cos(lat2) * jnp.cos(dlon)
    b = jnp.rad2deg(jnp.arctan2(y, x))
    return jnp.mod(b + 360.0, 360.0)


def preprocess(x1, x2, dtime):
    """Speed/heading feature injection + normalize_coordinates of DCSLITA."""
    lat1 = x1[:, -1, 0]
    lon1 = x1[:, -1, 1]
    lat2 = x2[:, 0, 0]
    lon2 = x2[:, 0, 1]
    dist = _haversine(lon1, lat1, lon2, lat2)                       # (B,)
    brg = jnp.deg2rad(_bearing(lon1, lat1, lon2, lat2))             # (B,)
    dt = dtime.reshape(-1)
    dt = jnp.where(dt == 0, 0.001, dt)
    speeds = dist / dt * 1000.0 / 0.514444
    vx = speeds * jnp.sin(brg)
    vy = speeds * jnp.cos(brg)

    x1_trimmed = x1[:, -1:, :]                                      # (B,1,F)
    x2_first = x2[:, 0:1, :]                                        # (B,1,F)
    x2_first = x2_first.at[:, 0, 2].set(jnp.where(speeds != 0, speeds, x2_first[:, 0, 2]))
    x2_first = x2_first.at[:, 0, 4].set(jnp.where(vx != 0, vx, x2_first[:, 0, 4]))
    x2_first = x2_first.at[:, 0, 5].set(jnp.where(vy != 0, vy, x2_first[:, 0, 5]))
    # PyTorch: x2_first_point is a *view* of x2, so x2 is modified as well.
    x2 = x2.at[:, 0:1, :].set(x2_first)
    x3 = jnp.concatenate([x1_trimmed, x2_first], axis=1)            # (B,2,F)

    # ---- normalize_coordinates (mercator projection + shared min/max) ----
    R = 6378137.0

    def merc(lat_deg, lon_deg):
        east = R * jnp.deg2rad(lon_deg)
        north = R * jnp.log(jnp.tan(jnp.pi / 4 + jnp.deg2rad(lat_deg) / 2))
        return east, north

    east1, north1 = merc(x1[:, :, 0], x1[:, :, 1])
    east2, north2 = merc(x2[:, :, 0], x2[:, :, 1])
    max_e = jnp.maximum(east1.max(axis=1), east2.max(axis=1))[:, None]
    min_e = jnp.minimum(east1.min(axis=1), east2.min(axis=1))[:, None]
    max_n = jnp.maximum(north1.max(axis=1), north2.max(axis=1))[:, None]
    min_n = jnp.minimum(north1.min(axis=1), north2.min(axis=1))[:, None]
    eps = 1e-8
    d_e = max_e - min_e + eps
    d_n = max_n - min_n + eps

    x1 = x1.at[:, :, 0].set((east1 - min_e) / d_e)
    x1 = x1.at[:, :, 1].set((north1 - min_n) / d_n)
    x2 = x2.at[:, :, 0].set((east2 - min_e) / d_e)
    x2 = x2.at[:, :, 1].set((north2 - min_n) / d_n)
    east3, north3 = merc(x3[:, :, 0], x3[:, :, 1])
    # The original code swaps the mercator outputs for x3 — replicated exactly.
    x3 = x3.at[:, :, 0].set((north3 - min_e) / d_e)
    x3 = x3.at[:, :, 1].set((east3 - min_n) / d_n)
    return x1, x2, x3


# ---------------------------------------------------------------------------
# Fused kernel: 3 x BiLSTM-feature (selected time steps only) + MLP head.
#
# Input rows are time-major and concatenated over the three sequences:
#   row = (seq_offset + t) * B + b,   seq offsets: x1 -> 0, x2 -> n1, x3 -> n1+n2
# ---------------------------------------------------------------------------
def _dcslita_fused_kernel(x_ref, wih_ref, whh_f_ref, whh_b_ref, b_ih_ref,
                          w1_ref, b1_ref, w2_ref, b2_ref, out_ref,
                          *, n1, n2, batch, hidden):
    H = hidden
    B = batch

    # One fused input projection for both directions and all three sequences.
    x2d = x_ref[...]                                                # (R, F)
    gx = jnp.dot(x2d, wih_ref[...], preferred_element_type=jnp.float32) + b_ih_ref[...]
    gx_f = gx[:, 0:4 * H]                                           # lane-aligned split
    gx_b = gx[:, 4 * H:8 * H]

    whh_f = whh_f_ref[...]                                          # (H, 4H)
    whh_b = whh_b_ref[...]

    def gates(g):
        i_g = _sigmoid(g[:, 0:H])
        f_g = _sigmoid(g[:, H:2 * H])
        g_g = jnp.tanh(g[:, 2 * H:3 * H])
        o_g = _sigmoid(g[:, 3 * H:4 * H])
        return i_g, f_g, g_g, o_g

    def first_step(g_x):
        # h = c = 0: skip the recurrence matmul and the f*c term entirely.
        i_g, _, g_g, o_g = gates(g_x)
        c = i_g * g_g
        h = o_g * jnp.tanh(c)
        return h, c

    def step(g_x, h, c, whh):
        # Recurrence matmul: K = H = 256 (MXU-friendly); gate slices 128-lane aligned.
        g = g_x + jnp.dot(h, whh, preferred_element_type=jnp.float32)
        i_g, f_g, g_g, o_g = gates(g)
        c = f_g * c + i_g * g_g
        h = o_g * jnp.tanh(c)
        return h, c

    def row_f(seq_off, t):
        r = (seq_off + t) * B
        return gx_f[r:r + B, :]

    def row_b(seq_off, t):
        r = (seq_off + t) * B
        return gx_b[r:r + B, :]

    # ---- h1 = lstm_out(x1)[:, n1-1, :] ----------------------------------
    h, c = first_step(row_f(0, 0))
    for t in range(1, n1):
        h, c = step(row_f(0, t), h, c, whh_f)
    h1_f = h
    h1_b, _ = first_step(row_b(0, n1 - 1))          # first backward step

    # ---- h2 = lstm_out(x2)[:, 0, :] --------------------------------------
    h2_f, _ = first_step(row_f(n1, 0))              # first forward step
    h, c = first_step(row_b(n1, n2 - 1))
    for t in range(n2 - 2, -1, -1):
        h, c = step(row_b(n1, t), h, c, whh_b)
    h2_b = h

    # ---- h3 = lstm_out(x3)[:, 1, :]  (x3 has seq_len == 2) ---------------
    off3 = n1 + n2
    h, c = first_step(row_f(off3, 0))
    h3_f, _ = step(row_f(off3, 1), h, c, whh_f)
    h3_b, _ = first_step(row_b(off3, 1))            # first backward step

    # ---- head: |h1-h2|, |h3-h1| -> fc1 -> relu -> fc2 -> sigmoid ---------
    d1_f = jnp.abs(h1_f - h2_f)
    d1_b = jnp.abs(h1_b - h2_b)
    d2_f = jnp.abs(h3_f - h1_f)
    d2_b = jnp.abs(h3_b - h1_b)

    w1 = w1_ref[...]                                                # (4H, 512)
    y = (jnp.dot(d1_f, w1[0:H, :], preferred_element_type=jnp.float32)
         + jnp.dot(d1_b, w1[H:2 * H, :], preferred_element_type=jnp.float32)
         + jnp.dot(d2_f, w1[2 * H:3 * H, :], preferred_element_type=jnp.float32)
         + jnp.dot(d2_b, w1[3 * H:4 * H, :], preferred_element_type=jnp.float32)
         + b1_ref[...])
    y = jnp.maximum(y, 0.0)
    z = jnp.dot(y, w2_ref[...], preferred_element_type=jnp.float32) + b2_ref[...]
    out_ref[...] = _sigmoid(z).astype(out_ref.dtype)


def dcslita_forward_pallas(x1, x2, dtime, params):
    x1n, x2n, x3n = preprocess(x1, x2, dtime)
    B, N1, Fdim = x1n.shape
    N2 = x2n.shape[1]
    H = params["whh_f"].shape[0]

    # Time-major flattened rows (row = t*B + b) per sequence, concatenated so
    # the full input projection for all sequences + both directions is a
    # single MXU matmul.
    def rows(x):
        return jnp.swapaxes(x, 0, 1).reshape(-1, x.shape[-1])

    X = jnp.concatenate([rows(x1n), rows(x2n), rows(x3n)], axis=0).astype(jnp.float32)
    R = (N1 + N2 + 2) * B

    wih = jnp.concatenate([params["wih_f"], params["wih_b"]], axis=1)     # (F, 8H)
    b_ih = jnp.concatenate([params["b_f"], params["b_b"]], axis=0).reshape(1, 8 * H)
    Dh = params["w1"].shape[1]                                            # 512
    b1 = params["b1"].reshape(1, Dh)
    b2 = params["b2"].reshape(1, 1)

    kernel = functools.partial(_dcslita_fused_kernel,
                               n1=N1, n2=N2, batch=B, hidden=H)
    return pl.pallas_call(
        kernel,
        out_shape=jax.ShapeDtypeStruct((B, 1), jnp.float32),
        grid_spec=pltpu.PrefetchScalarGridSpec(
            num_scalar_prefetch=0,
            grid=(1,),
            in_specs=[
                pl.BlockSpec((R, Fdim), lambda i: (0, 0)),
                pl.BlockSpec((Fdim, 8 * H), lambda i: (0, 0)),
                pl.BlockSpec((H, 4 * H), lambda i: (0, 0)),
                pl.BlockSpec((H, 4 * H), lambda i: (0, 0)),
                pl.BlockSpec((1, 8 * H), lambda i: (0, 0)),
                pl.BlockSpec((4 * H, Dh), lambda i: (0, 0)),
                pl.BlockSpec((1, Dh), lambda i: (0, 0)),
                pl.BlockSpec((Dh, 1), lambda i: (0, 0)),
                pl.BlockSpec((1, 1), lambda i: (0, 0)),
            ],
            out_specs=pl.BlockSpec((B, 1), lambda i: (0, 0)),
        ),
        compiler_params=pltpu.CompilerParams(
            dimension_semantics=("arbitrary",),
            vmem_limit_bytes=32 * 1024 * 1024,
        ),
    )(X, wih, params["whh_f"], params["whh_b"], b_ih,
      params["w1"], b1, params["w2"], b2)


# ---------------------------------------------------------------------------
# Pure-JAX reference (full BiLSTM scan) for correctness checking.
# ---------------------------------------------------------------------------
def bilstm_feature_ref(x, params, idx):
    B, N, _ = x.shape
    H = params["whh_f"].shape[0]

    def run_dir(x_tm, wih, whh, b):
        def step(carry, x_t):
            h, c = carry
            g = x_t @ wih + b + h @ whh
            i_g = _sigmoid(g[:, 0:H])
            f_g = _sigmoid(g[:, H:2 * H])
            g_g = jnp.tanh(g[:, 2 * H:3 * H])
            o_g = _sigmoid(g[:, 3 * H:4 * H])
            c = f_g * c + i_g * g_g
            h = o_g * jnp.tanh(c)
            return (h, c), h

        init = (jnp.zeros((B, H), jnp.float32), jnp.zeros((B, H), jnp.float32))
        _, hs = jax.lax.scan(step, init, x_tm)
        return hs                                                   # (N, B, H)

    x_tm = jnp.swapaxes(x, 0, 1).astype(jnp.float32)                # (N, B, F)
    hs_f = run_dir(x_tm, params["wih_f"], params["whh_f"], params["b_f"])
    hs_b = run_dir(x_tm[::-1], params["wih_b"], params["whh_b"], params["b_b"])[::-1]
    t = idx % N
    return jnp.concatenate([hs_f[t], hs_b[t]], axis=-1)             # (B, 2H)


def dcslita_forward_reference(x1, x2, dtime, params):
    x1n, x2n, x3n = preprocess(x1, x2, dtime)
    h1 = bilstm_feature_ref(x1n, params, idx=-1)
    h2 = bilstm_feature_ref(x2n, params, idx=0)
    h3 = bilstm_feature_ref(x3n, params, idx=1)
    d1 = jnp.abs(h1 - h2)
    d2 = jnp.abs(h3 - h1)
    d = jnp.concatenate([d1, d2], axis=1)
    y = jnp.maximum(d @ params["w1"] + params["b1"], 0.0)
    z = y @ params["w2"] + params["b2"]
    return _sigmoid(z)


# ---------------------------------------------------------------------------
# Deterministic synthetic parameters (no checkpoint load)
# ---------------------------------------------------------------------------
def init_params(key, input_size, hidden):
    ks = jax.random.split(key, 10)
    H = hidden
    s_l = 1.0 / math.sqrt(H)

    def u(k, shape, s):
        return jax.random.uniform(k, shape, jnp.float32, -s, s)

    return {
        # BiLSTM weights stored pre-transposed: (in, 4H) / (H, 4H); gate order i,f,g,o.
        "wih_f": u(ks[0], (input_size, 4 * H), s_l),
        "whh_f": u(ks[1], (H, 4 * H), s_l),
        "b_f":   u(ks[2], (4 * H,), s_l),          # bias_ih + bias_hh combined
        "wih_b": u(ks[3], (input_size, 4 * H), s_l),
        "whh_b": u(ks[4], (H, 4 * H), s_l),
        "b_b":   u(ks[5], (4 * H,), s_l),
        # fc1: Linear(hidden*4 -> 512) stored input-major; fc2: Linear(512 -> 1).
        "w1": u(ks[6], (4 * H, 512), 1.0 / math.sqrt(4 * H)),
        "b1": u(ks[7], (512,), 1.0 / math.sqrt(4 * H)),
        "w2": u(ks[8], (512, 1), 1.0 / math.sqrt(512)),
        "b2": u(ks[9], (1,), 1.0 / math.sqrt(512)),
    }


if __name__ == "__main__":
    # Small shapes consistent with the module: batch=2, seq=8, features=6
    # (cols 0/1 = lat/lon, cols 2/4/5 overwritten with speed/vx/vy),
    # hidden=256 (hard-coded inside DCSLITA).
    B, N, F, H = 2, 8, 6, 256

    key = jax.random.PRNGKey(0)
    k_lat1, k_lon1, k_f1, k_lat2, k_lon2, k_f2, k_dt, k_par = jax.random.split(key, 8)

    lat1 = 30.0 + 0.05 * jax.random.uniform(k_lat1, (B, N), jnp.float32)
    lon1 = 120.0 + 0.05 * jax.random.uniform(k_lon1, (B, N), jnp.float32)
    oth1 = jax.random.normal(k_f1, (B, N, F - 2), jnp.float32)
    x1 = jnp.concatenate([lat1[..., None], lon1[..., None], oth1], axis=-1)

    lat2 = 30.02 + 0.05 * jax.random.uniform(k_lat2, (B, N), jnp.float32)
    lon2 = 120.02 + 0.05 * jax.random.uniform(k_lon2, (B, N), jnp.float32)
    oth2 = jax.random.normal(k_f2, (B, N, F - 2), jnp.float32)
    x2 = jnp.concatenate([lat2[..., None], lon2[..., None], oth2], axis=-1)

    dtime = 0.5 + jax.random.uniform(k_dt, (B, 1), jnp.float32)

    params = init_params(k_par, F, H)

    out = dcslita_forward_pallas(x1, x2, dtime, params)
    out = jax.block_until_ready(out)

    ref = dcslita_forward_reference(x1, x2, dtime, params)
    np.testing.assert_allclose(np.asarray(out), np.asarray(ref), rtol=2e-2, atol=2e-2)

    print("KERNEL_OK")
</pallas_src>

<mosaic_0001>
module attributes {stable_mosaic.version = 11 : i64} {
  func.func @_dcslita_fused_kernel(%arg0: i32, %arg1: memref<36x6xf32, #tpu.memory_space<vmem>>, %arg2: memref<6x2048xf32, #tpu.memory_space<vmem>>, %arg3: memref<256x1024xf32, #tpu.memory_space<vmem>>, %arg4: memref<256x1024xf32, #tpu.memory_space<vmem>>, %arg5: memref<1x2048xf32, #tpu.memory_space<vmem>>, %arg6: memref<1024x512xf32, #tpu.memory_space<vmem>>, %arg7: memref<1x512xf32, #tpu.memory_space<vmem>>, %arg8: memref<512x1xf32, #tpu.memory_space<vmem>>, %arg9: memref<1x1xf32, #tpu.memory_space<vmem>>, %arg10: memref<2x1xf32, #tpu.memory_space<vmem>>) attributes {dimension_semantics = [#tpu.dimension_semantics<arbitrary>], iteration_bounds = array<i64: 1>, scalar_prefetch = 0 : i64, scratch_operands = 0 : i64, tpu.core_type = #tpu.core_type<tc>, window_params = [{pipeline_mode = #tpu.pipeline_mode<synchronous>, transform_indices = @transform_0, window_bounds = array<i64: 36, 6>}, {pipeline_mode = #tpu.pipeline_mode<synchronous>, transform_indices = @transform_1, window_bounds = array<i64: 6, 2048>}, {pipeline_mode = #tpu.pipeline_mode<synchronous>, transform_indices = @transform_2, window_bounds = array<i64: 256, 1024>}, {pipeline_mode = #tpu.pipeline_mode<synchronous>, transform_indices = @transform_3, window_bounds = array<i64: 256, 1024>}, {pipeline_mode = #tpu.pipeline_mode<synchronous>, transform_indices = @transform_4, window_bounds = array<i64: 1, 2048>}, {pipeline_mode = #tpu.pipeline_mode<synchronous>, transform_indices = @transform_5, window_bounds = array<i64: 1024, 512>}, {pipeline_mode = #tpu.pipeline_mode<synchronous>, transform_indices = @transform_6, window_bounds = array<i64: 1, 512>}, {pipeline_mode = #tpu.pipeline_mode<synchronous>, transform_indices = @transform_7, window_bounds = array<i64: 512, 1>}, {pipeline_mode = #tpu.pipeline_mode<synchronous>, transform_indices = @transform_8, window_bounds = array<i64: 1, 1>}, {pipeline_mode = #tpu.pipeline_mode<synchronous>, transform_indices = @transform_9, window_bounds = array<i64: 2, 1>}]} {
    %c0 = arith.constant 0 : index
    %c0_0 = arith.constant 0 : index
    %0 = vector.load %arg1[%c0, %c0_0] : memref<36x6xf32, #tpu.memory_space<vmem>>, vector<36x6xf32>
    %c0_1 = arith.constant 0 : index
    %c0_2 = arith.constant 0 : index
    %1 = vector.load %arg2[%c0_1, %c0_2] : memref<6x2048xf32, #tpu.memory_space<vmem>>, vector<6x2048xf32>
    %cst = arith.constant dense<0.000000e+00> : vector<36x2048xf32>
    %2 = tpu.matmul %0, %1, %cst {dimension_numbers = #tpu.dot_dimension_numbers<[1], [0], [0], [1], [0, 0, 1, 1], [], []>} : vector<36x6xf32>, vector<6x2048xf32>, vector<36x2048xf32> -> vector<36x2048xf32>
    %c0_3 = arith.constant 0 : index
    %c0_4 = arith.constant 0 : index
    %3 = vector.load %arg5[%c0_3, %c0_4] : memref<1x2048xf32, #tpu.memory_space<vmem>>, vector<1x2048xf32>
    %4 = vector.broadcast %3 : vector<1x2048xf32> to vector<36x2048xf32>
    %5 = arith.addf %2, %4 : vector<36x2048xf32>
    %6 = vector.extract_strided_slice %5 {offsets = [0, 0], sizes = [36, 1024], strides = [1, 1]} : vector<36x2048xf32> to vector<36x1024xf32>
    %7 = vector.extract_strided_slice %5 {offsets = [0, 1024], sizes = [36, 1024], strides = [1, 1]} : vector<36x2048xf32> to vector<36x1024xf32>
    %c0_5 = arith.constant 0 : index
    %c0_6 = arith.constant 0 : index
    %8 = vector.load %arg3[%c0_5, %c0_6] : memref<256x1024xf32, #tpu.memory_space<vmem>>, vector<256x1024xf32>
    %c0_7 = arith.constant 0 : index
    %c0_8 = arith.constant 0 : index
    %9 = vector.load %arg4[%c0_7, %c0_8] : memref<256x1024xf32, #tpu.memory_space<vmem>>, vector<256x1024xf32>
    %10 = vector.extract_strided_slice %6 {offsets = [0, 0], sizes = [2, 1024], strides = [1, 1]} : vector<36x1024xf32> to vector<2x1024xf32>
    %11 = vector.extract_strided_slice %10 {offsets = [0, 0], sizes = [2, 256], strides = [1, 1]} : vector<2x1024xf32> to vector<2x256xf32>
    %cst_9 = arith.constant 5.000000e-01 : f32
    %12 = vector.broadcast %cst_9 : f32 to vector<2x256xf32>
    %13 = arith.mulf %12, %11 : vector<2x256xf32>
    %14 = math.tanh %13 : vector<2x256xf32>
    %cst_10 = arith.constant 1.000000e+00 : f32
    %15 = vector.broadcast %cst_10 : f32 to vector<2x256xf32>
    %16 = arith.addf %14, %15 : vector<2x256xf32>
    %cst_11 = arith.constant 5.000000e-01 : f32
    %17 = vector.broadcast %cst_11 : f32 to vector<2x256xf32>
    %18 = arith.mulf %17, %16 : vector<2x256xf32>
    %19 = vector.extract_strided_slice %10 {offsets = [0, 512], sizes = [2, 256], strides = [1, 1]} : vector<2x1024xf32> to vector<2x256xf32>
    %20 = math.tanh %19 : vector<2x256xf32>
    %21 = vector.extract_strided_slice %10 {offsets = [0, 768], sizes = [2, 256], strides = [1, 1]} : vector<2x1024xf32> to vector<2x256xf32>
    %cst_12 = arith.constant 5.000000e-01 : f32
    %22 = vector.broadcast %cst_12 : f32 to vector<2x256xf32>
    %23 = arith.mulf %22, %21 : vector<2x256xf32>
    %24 = math.tanh %23 : vector<2x256xf32>
    %cst_13 = arith.constant 1.000000e+00 : f32
    %25 = vector.broadcast %cst_13 : f32 to vector<2x256xf32>
    %26 = arith.addf %24, %25 : vector<2x256xf32>
    %cst_14 = arith.constant 5.000000e-01 : f32
    %27 = vector.broadcast %cst_14 : f32 to vector<2x256xf32>
    %28 = arith.mulf %27, %26 : vector<2x256xf32>
    %29 = arith.mulf %18, %20 : vector<2x256xf32>
    %30 = math.tanh %29 : vector<2x256xf32>
    %31 = arith.mulf %28, %30 : vector<2x256xf32>
    %32 = vector.extract_strided_slice %6 {offsets = [2, 0], sizes = [2, 1024], strides = [1, 1]} : vector<36x1024xf32> to vector<2x1024xf32>
    %cst_15 = arith.constant dense<0.000000e+00> : vector<2x1024xf32>
    %33 = tpu.matmul %31, %8, %cst_15 {dimension_numbers = #tpu.dot_dimension_numbers<[1], [0], [0], [1], [0, 0, 1, 1], [], []>} : vector<2x256xf32>, vector<256x1024xf32>, vector<2x1024xf32> -> vector<2x1024xf32>
    %34 = arith.addf %32, %33 : vector<2x1024xf32>
    %35 = vector.extract_strided_slice %34 {offsets = [0, 0], sizes = [2, 256], strides = [1, 1]} : vector<2x1024xf32> to vector<2x256xf32>
    %cst_16 = arith.constant 5.000000e-01 : f32
    %36 = vector.broadcast %cst_16 : f32 to vector<2x256xf32>
    %37 = arith.mulf %36, %35 : vector<2x256xf32>
    %38 = math.tanh %37 : vector<2x256xf32>
    %cst_17 = arith.constant 1.000000e+00 : f32
    %39 = vector.broadcast %cst_17 : f32 to vector<2x256xf32>
    %40 = arith.addf %38, %39 : vector<2x256xf32>
    %cst_18 = arith.constant 5.000000e-01 : f32
    %41 = vector.broadcast %cst_18 : f32 to vector<2x256xf32>
    %42 = arith.mulf %41, %40 : vector<2x256xf32>
    %43 = vector.extract_strided_slice %34 {offsets = [0, 256], sizes = [2, 256], strides = [1, 1]} : vector<2x1024xf32> to vector<2x256xf32>
    %cst_19 = arith.constant 5.000000e-01 : f32
    %44 = vector.broadcast %cst_19 : f32 to vector<2x256xf32>
    %45 = arith.mulf %44, %43 : vector<2x256xf32>
    %46 = math.tanh %45 : vector<2x256xf32>
    %cst_20 = arith.constant 1.000000e+00 : f32
    %47 = vector.broadcast %cst_20 : f32 to vector<2x256xf32>
    %48 = arith.addf %46, %47 : vector<2x256xf32>
    %cst_21 = arith.constant 5.000000e-01 : f32
    %49 = vector.broadcast %cst_21 : f32 to vector<2x256xf32>
    %50 = arith.mulf %49, %48 : vector<2x256xf32>
    %51 = vector.extract_strided_slice %34 {offsets = [0, 512], sizes = [2, 256], strides = [1, 1]} : vector<2x1024xf32> to vector<2x256xf32>
    %52 = math.tanh %51 : vector<2x256xf32>
    %53 = vector.extract_strided_slice %34 {offsets = [0, 768], sizes = [2, 256], strides = [1, 1]} : vector<2x1024xf32> to vector<2x256xf32>
    %cst_22 = arith.constant 5.000000e-01 : f32
    %54 = vector.broadcast %cst_22 : f32 to vector<2x256xf32>
    %55 = arith.mulf %54, %53 : vector<2x256xf32>
    %56 = math.tanh %55 : vector<2x256xf32>
    %cst_23 = arith.constant 1.000000e+00 : f32
    %57 = vector.broadcast %cst_23 : f32 to vector<2x256xf32>
    %58 = arith.addf %56, %57 : vector<2x256xf32>
    %cst_24 = arith.constant 5.000000e-01 : f32
    %59 = vector.broadcast %cst_24 : f32 to vector<2x256xf32>
    %60 = arith.mulf %59, %58 : vector<2x256xf32>
    %61 = arith.mulf %50, %29 : vector<2x256xf32>
    %62 = arith.mulf %42, %52 : vector<2x256xf32>
    %63 = arith.addf %61, %62 : vector<2x256xf32>
    %64 = math.tanh %63 : vector<2x256xf32>
    %65 = arith.mulf %60, %64 : vector<2x256xf32>
    %66 = vector.extract_strided_slice %6 {offsets = [4, 0], sizes = [2, 1024], strides = [1, 1]} : vector<36x1024xf32> to vector<2x1024xf32>
    %cst_25 = arith.constant dense<0.000000e+00> : vector<2x1024xf32>
    %67 = tpu.matmul %65, %8, %cst_25 {dimension_numbers = #tpu.dot_dimension_numbers<[1], [0], [0], [1], [0, 0, 1, 1], [], []>} : vector<2x256xf32>, vector<256x1024xf32>, vector<2x1024xf32> -> vector<2x1024xf32>
    %68 = arith.addf %66, %67 : vector<2x1024xf32>
    %69 = vector.extract_strided_slice %68 {offsets = [0, 0], sizes = [2, 256], strides = [1, 1]} : vector<2x1024xf32> to vector<2x256xf32>
    %cst_26 = arith.constant 5.000000e-01 : f32
    %70 = vector.broadcast %cst_26 : f32 to vector<2x256xf32>
    %71 = arith.mulf %70, %69 : vector<2x256xf32>
    %72 = math.tanh %71 : vector<2x256xf32>
    %cst_27 = arith.constant 1.000000e+00 : f32
    %73 = vector.broadcast %cst_27 : f32 to vector<2x256xf32>
    %74 = arith.addf %72, %73 : vector<2x256xf32>
    %cst_28 = arith.constant 5.000000e-01 : f32
    %75 = vector.broadcast %cst_28 : f32 to vector<2x256xf32>
    %76 = arith.mulf %75, %74 : vector<2x256xf32>
    %77 = vector.extract_strided_slice %68 {offsets = [0, 256], sizes = [2, 256], strides = [1, 1]} : vector<2x1024xf32> to vector<2x256xf32>
    %cst_29 = arith.constant 5.000000e-01 : f32
    %78 = vector.broadcast %cst_29 : f32 to vector<2x256xf32>
    %79 = arith.mulf %78, %77 : vector<2x256xf32>
    %80 = math.tanh %79 : vector<2x256xf32>
    %cst_30 = arith.constant 1.000000e+00 : f32
    %81 = vector.broadcast %cst_30 : f32 to vector<2x256xf32>
    %82 = arith.addf %80, %81 : vector<2x256xf32>
    %cst_31 = arith.constant 5.000000e-01 : f32
    %83 = vector.broadcast %cst_31 : f32 to vector<2x256xf32>
    %84 = arith.mulf %83, %82 : vector<2x256xf32>
    %85 = vector.extract_strided_slice %68 {offsets = [0, 512], sizes = [2, 256], strides = [1, 1]} : vector<2x1024xf32> to vector<2x256xf32>
    %86 = math.tanh %85 : vector<2x256xf32>
    %87 = vector.extract_strided_slice %68 {offsets = [0, 768], sizes = [2, 256], strides = [1, 1]} : vector<2x1024xf32> to vector<2x256xf32>
    %cst_32 = arith.constant 5.000000e-01 : f32
    %88 = vector.broadcast %cst_32 : f32 to vector<2x256xf32>
    %89 = arith.mulf %88, %87 : vector<2x256xf32>
    %90 = math.tanh %89 : vector<2x256xf32>
    %cst_33 = arith.constant 1.000000e+00 : f32
    %91 = vector.broadcast %cst_33 : f32 to vector<2x256xf32>
    %92 = arith.addf %90, %91 : vector<2x256xf32>
    %cst_34 = arith.constant 5.000000e-01 : f32
    %93 = vector.broadcast %cst_34 : f32 to vector<2x256xf32>
    %94 = arith.mulf %93, %92 : vector<2x256xf32>
    %95 = arith.mulf %84, %63 : vector<2x256xf32>
    %96 = arith.mulf %76, %86 : vector<2x256xf32>
    %97 = arith.addf %95, %96 : vector<2x256xf32>
    %98 = math.tanh %97 : vector<2x256xf32>
    %99 = arith.mulf %94, %98 : vector<2x256xf32>
    %100 = vector.extract_strided_slice %6 {offsets = [6, 0], sizes = [2, 1024], strides = [1, 1]} : vector<36x1024xf32> to vector<2x1024xf32>
    %cst_35 = arith.constant dense<0.000000e+00> : vector<2x1024xf32>
    %101 = tpu.matmul %99, %8, %cst_35 {dimension_numbers = #tpu.dot_dimension_numbers<[1], [0], [0], [1], [0, 0, 1, 1], [], []>} : vector<2x256xf32>, vector<256x1024xf32>, vector<2x1024xf32> -> vector<2x1024xf32>
    %102 = arith.addf %100, %101 : vector<2x1024xf32>
    %103 = vector.extract_strided_slice %102 {offsets = [0, 0], sizes = [2, 256], strides = [1, 1]} : vector<2x1024xf32> to vector<2x256xf32>
    %cst_36 = arith.constant 5.000000e-01 : f32
    %104 = vector.broadcast %cst_36 : f32 to vector<2x256xf32>
    %105 = arith.mulf %104, %103 : vector<2x256xf32>
    %106 = math.tanh %105 : vector<2x256xf32>
    %cst_37 = arith.constant 1.000000e+00 : f32
    %107 = vector.broadcast %cst_37 : f32 to vector<2x256xf32>
    %108 = arith.addf %106, %107 : vector<2x256xf32>
    %cst_38 = arith.constant 5.000000e-01 : f32
    %109 = vector.broadcast %cst_38 : f32 to vector<2x256xf32>
    %110 = arith.mulf %109, %108 : vector<2x256xf32>
    %111 = vector.extract_strided_slice %102 {offsets = [0, 256], sizes = [2, 256], strides = [1, 1]} : vector<2x1024xf32> to vector<2x256xf32>
    %cst_39 = arith.constant 5.000000e-01 : f32
    %112 = vector.broadcast %cst_39 : f32 to vector<2x256xf32>
    %113 = arith.mulf %112, %111 : vector<2x256xf32>
    %114 = math.tanh %113 : vector<2x256xf32>
    %cst_40 = arith.constant 1.000000e+00 : f32
    %115 = vector.broadcast %cst_40 : f32 to vector<2x256xf32>
    %116 = arith.addf %114, %115 : vector<2x256xf32>
    %cst_41 = arith.constant 5.000000e-01 : f32
    %117 = vector.broadcast %cst_41 : f32 to vector<2x256xf32>
    %118 = arith.mulf %117, %116 : vector<2x256xf32>
    %119 = vector.extract_strided_slice %102 {offsets = [0, 512], sizes = [2, 256], strides = [1, 1]} : vector<2x1024xf32> to vector<2x256xf32>
    %120 = math.tanh %119 : vector<2x256xf32>
    %121 = vector.extract_strided_slice %102 {offsets = [0, 768], sizes = [2, 256], strides = [1, 1]} : vector<2x1024xf32> to vector<2x256xf32>
    %cst_42 = arith.constant 5.000000e-01 : f32
    %122 = vector.broadcast %cst_42 : f32 to vector<2x256xf32>
    %123 = arith.mulf %122, %121 : vector<2x256xf32>
    %124 = math.tanh %123 : vector<2x256xf32>
    %cst_43 = arith.constant 1.000000e+00 : f32
    %125 = vector.broadcast %cst_43 : f32 to vector<2x256xf32>
    %126 = arith.addf %124, %125 : vector<2x256xf32>
    %cst_44 = arith.constant 5.000000e-01 : f32
    %127 = vector.broadcast %cst_44 : f32 to vector<2x256xf32>
    %128 = arith.mulf %127, %126 : vector<2x256xf32>
    %129 = arith.mulf %118, %97 : vector<2x256xf32>
    %130 = arith.mulf %110, %120 : vector<2x256xf32>
    %131 = arith.addf %129, %130 : vector<2x256xf32>
    %132 = math.tanh %131 : vector<2x256xf32>
    %133 = arith.mulf %128, %132 : vector<2x256xf32>
    %134 = vector.extract_strided_slice %6 {offsets = [8, 0], sizes = [2, 1024], strides = [1, 1]} : vector<36x1024xf32> to vector<2x1024xf32>
    %cst_45 = arith.constant dense<0.000000e+00> : vector<2x1024xf32>
    %135 = tpu.matmul %133, %8, %cst_45 {dimension_numbers = #tpu.dot_dimension_numbers<[1], [0], [0], [1], [0, 0, 1, 1], [], []>} : vector<2x256xf32>, vector<256x1024xf32>, vector<2x1024xf32> -> vector<2x1024xf32>
    %136 = arith.addf %134, %135 : vector<2x1024xf32>
    %137 = vector.extract_strided_slice %136 {offsets = [0, 0], sizes = [2, 256], strides = [1, 1]} : vector<2x1024xf32> to vector<2x256xf32>
    %cst_46 = arith.constant 5.000000e-01 : f32
    %138 = vector.broadcast %cst_46 : f32 to vector<2x256xf32>
    %139 = arith.mulf %138, %137 : vector<2x256xf32>
    %140 = math.tanh %139 : vector<2x256xf32>
    %cst_47 = arith.constant 1.000000e+00 : f32
    %141 = vector.broadcast %cst_47 : f32 to vector<2x256xf32>
    %142 = arith.addf %140, %141 : vector<2x256xf32>
    %cst_48 = arith.constant 5.000000e-01 : f32
    %143 = vector.broadcast %cst_48 : f32 to vector<2x256xf32>
    %144 = arith.mulf %143, %142 : vector<2x256xf32>
    %145 = vector.extract_strided_slice %136 {offsets = [0, 256], sizes = [2, 256], strides = [1, 1]} : vector<2x1024xf32> to vector<2x256xf32>
    %cst_49 = arith.constant 5.000000e-01 : f32
    %146 = vector.broadcast %cst_49 : f32 to vector<2x256xf32>
    %147 = arith.mulf %146, %145 : vector<2x256xf32>
    %148 = math.tanh %147 : vector<2x256xf32>
    %cst_50 = arith.constant 1.000000e+00 : f32
    %149 = vector.broadcast %cst_50 : f32 to vector<2x256xf32>
    %150 = arith.addf %148, %149 : vector<2x256xf32>
    %cst_51 = arith.constant 5.000000e-01 : f32
    %151 = vector.broadcast %cst_51 : f32 to vector<2x256xf32>
    %152 = arith.mulf %151, %150 : vector<2x256xf32>
    %153 = vector.extract_strided_slice %136 {offsets = [0, 512], sizes = [2, 256], strides = [1, 1]} : vector<2x1024xf32> to vector<2x256xf32>
    %154 = math.tanh %153 : vector<2x256xf32>
    %155 = vector.extract_strided_slice %136 {offsets = [0, 768], sizes = [2, 256], strides = [1, 1]} : vector<2x1024xf32> to vector<2x256xf32>
    %cst_52 = arith.constant 5.000000e-01 : f32
    %156 = vector.broadcast %cst_52 : f32 to vector<2x256xf32>
    %157 = arith.mulf %156, %155 : vector<2x256xf32>
    %158 = math.tanh %157 : vector<2x256xf32>
    %cst_53 = arith.constant 1.000000e+00 : f32
    %159 = vector.broadcast %cst_53 : f32 to vector<2x256xf32>
    %160 = arith.addf %158, %159 : vector<2x256xf32>
    %cst_54 = arith.constant 5.000000e-01 : f32
    %161 = vector.broadcast %cst_54 : f32 to vector<2x256xf32>
    %162 = arith.mulf %161, %160 : vector<2x256xf32>
    %163 = arith.mulf %152, %131 : vector<2x256xf32>
    %164 = arith.mulf %144, %154 : vector<2x256xf32>
    %165 = arith.addf %163, %164 : vector<2x256xf32>
    %166 = math.tanh %165 : vector<2x256xf32>
    %167 = arith.mulf %162, %166 : vector<2x256xf32>
    %168 = vector.extract_strided_slice %6 {offsets = [10, 0], sizes = [2, 1024], strides = [1, 1]} : vector<36x1024xf32> to vector<2x1024xf32>
    %cst_55 = arith.constant dense<0.000000e+00> : vector<2x1024xf32>
    %169 = tpu.matmul %167, %8, %cst_55 {dimension_numbers = #tpu.dot_dimension_numbers<[1], [0], [0], [1], [0, 0, 1, 1], [], []>} : vector<2x256xf32>, vector<256x1024xf32>, vector<2x1024xf32> -> vector<2x1024xf32>
    %170 = arith.addf %168, %169 : vector<2x1024xf32>
    %171 = vector.extract_strided_slice %170 {offsets = [0, 0], sizes = [2, 256], strides = [1, 1]} : vector<2x1024xf32> to vector<2x256xf32>
    %cst_56 = arith.constant 5.000000e-01 : f32
    %172 = vector.broadcast %cst_56 : f32 to vector<2x256xf32>
    %173 = arith.mulf %172, %171 : vector<2x256xf32>
    %174 = math.tanh %173 : vector<2x256xf32>
    %cst_57 = arith.constant 1.000000e+00 : f32
    %175 = vector.broadcast %cst_57 : f32 to vector<2x256xf32>
    %176 = arith.addf %174, %175 : vector<2x256xf32>
    %cst_58 = arith.constant 5.000000e-01 : f32
    %177 = vector.broadcast %cst_58 : f32 to vector<2x256xf32>
    %178 = arith.mulf %177, %176 : vector<2x256xf32>
    %179 = vector.extract_strided_slice %170 {offsets = [0, 256], sizes = [2, 256], strides = [1, 1]} : vector<2x1024xf32> to vector<2x256xf32>
    %cst_59 = arith.constant 5.000000e-01 : f32
    %180 = vector.broadcast %cst_59 : f32 to vector<2x256xf32>
    %181 = arith.mulf %180, %179 : vector<2x256xf32>
    %182 = math.tanh %181 : vector<2x256xf32>
    %cst_60 = arith.constant 1.000000e+00 : f32
    %183 = vector.broadcast %cst_60 : f32 to vector<2x256xf32>
    %184 = arith.addf %182, %183 : vector<2x256xf32>
    %cst_61 = arith.constant 5.000000e-01 : f32
    %185 = vector.broadcast %cst_61 : f32 to vector<2x256xf32>
    %186 = arith.mulf %185, %184 : vector<2x256xf32>
    %187 = vector.extract_strided_slice %170 {offsets = [0, 512], sizes = [2, 256], strides = [1, 1]} : vector<2x1024xf32> to vector<2x256xf32>
    %188 = math.tanh %187 : vector<2x256xf32>
    %189 = vector.extract_strided_slice %170 {offsets = [0, 768], sizes = [2, 256], strides = [1, 1]} : vector<2x1024xf32> to vector<2x256xf32>
    %cst_62 = arith.constant 5.000000e-01 : f32
    %190 = vector.broadcast %cst_62 : f32 to vector<2x256xf32>
    %191 = arith.mulf %190, %189 : vector<2x256xf32>
    %192 = math.tanh %191 : vector<2x256xf32>
    %cst_63 = arith.constant 1.000000e+00 : f32
    %193 = vector.broadcast %cst_63 : f32 to vector<2x256xf32>
    %194 = arith.addf %192, %193 : vector<2x256xf32>
    %cst_64 = arith.constant 5.000000e-01 : f32
    %195 = vector.broadcast %cst_64 : f32 to vector<2x256xf32>
    %196 = arith.mulf %195, %194 : vector<2x256xf32>
    %197 = arith.mulf %186, %165 : vector<2x256xf32>
    %198 = arith.mulf %178, %188 : vector<2x256xf32>
    %199 = arith.addf %197, %198 : vector<2x256xf32>
    %200 = math.tanh %199 : vector<2x256xf32>
    %201 = arith.mulf %196, %200 : vector<2x256xf32>
    %202 = vector.extract_strided_slice %6 {offsets = [12, 0], sizes = [2, 1024], strides = [1, 1]} : vector<36x1024xf32> to vector<2x1024xf32>
    %cst_65 = arith.constant dense<0.000000e+00> : vector<2x1024xf32>
    %203 = tpu.matmul %201, %8, %cst_65 {dimension_numbers = #tpu.dot_dimension_numbers<[1], [0], [0], [1], [0, 0, 1, 1], [], []>} : vector<2x256xf32>, vector<256x1024xf32>, vector<2x1024xf32> -> vector<2x1024xf32>
    %204 = arith.addf %202, %203 : vector<2x1024xf32>
    %205 = vector.extract_strided_slice %204 {offsets = [0, 0], sizes = [2, 256], strides = [1, 1]} : vector<2x1024xf32> to vector<2x256xf32>
    %cst_66 = arith.constant 5.000000e-01 : f32
    %206 = vector.broadcast %cst_66 : f32 to vector<2x256xf32>
    %207 = arith.mulf %206, %205 : vector<2x256xf32>
    %208 = math.tanh %207 : vector<2x256xf32>
    %cst_67 = arith.constant 1.000000e+00 : f32
    %209 = vector.broadcast %cst_67 : f32 to vector<2x256xf32>
    %210 = arith.addf %208, %209 : vector<2x256xf32>
    %cst_68 = arith.constant 5.000000e-01 : f32
    %211 = vector.broadcast %cst_68 : f32 to vector<2x256xf32>
    %212 = arith.mulf %211, %210 : vector<2x256xf32>
    %213 = vector.extract_strided_slice %204 {offsets = [0, 256], sizes = [2, 256], strides = [1, 1]} : vector<2x1024xf32> to vector<2x256xf32>
    %cst_69 = arith.constant 5.000000e-01 : f32
    %214 = vector.broadcast %cst_69 : f32 to vector<2x256xf32>
    %215 = arith.mulf %214, %213 : vector<2x256xf32>
    %216 = math.tanh %215 : vector<2x256xf32>
    %cst_70 = arith.constant 1.000000e+00 : f32
    %217 = vector.broadcast %cst_70 : f32 to vector<2x256xf32>
    %218 = arith.addf %216, %217 : vector<2x256xf32>
    %cst_71 = arith.constant 5.000000e-01 : f32
    %219 = vector.broadcast %cst_71 : f32 to vector<2x256xf32>
    %220 = arith.mulf %219, %218 : vector<2x256xf32>
    %221 = vector.extract_strided_slice %204 {offsets = [0, 512], sizes = [2, 256], strides = [1, 1]} : vector<2x1024xf32> to vector<2x256xf32>
    %222 = math.tanh %221 : vector<2x256xf32>
    %223 = vector.extract_strided_slice %204 {offsets = [0, 768], sizes = [2, 256], strides = [1, 1]} : vector<2x1024xf32> to vector<2x256xf32>
    %cst_72 = arith.constant 5.000000e-01 : f32
    %224 = vector.broadcast %cst_72 : f32 to vector<2x256xf32>
    %225 = arith.mulf %224, %223 : vector<2x256xf32>
    %226 = math.tanh %225 : vector<2x256xf32>
    %cst_73 = arith.constant 1.000000e+00 : f32
    %227 = vector.broadcast %cst_73 : f32 to vector<2x256xf32>
    %228 = arith.addf %226, %227 : vector<2x256xf32>
    %cst_74 = arith.constant 5.000000e-01 : f32
    %229 = vector.broadcast %cst_74 : f32 to vector<2x256xf32>
    %230 = arith.mulf %229, %228 : vector<2x256xf32>
    %231 = arith.mulf %220, %199 : vector<2x256xf32>
    %232 = arith.mulf %212, %222 : vector<2x256xf32>
    %233 = arith.addf %231, %232 : vector<2x256xf32>
    %234 = math.tanh %233 : vector<2x256xf32>
    %235 = arith.mulf %230, %234 : vector<2x256xf32>
    %236 = vector.extract_strided_slice %6 {offsets = [14, 0], sizes = [2, 1024], strides = [1, 1]} : vector<36x1024xf32> to vector<2x1024xf32>
    %cst_75 = arith.constant dense<0.000000e+00> : vector<2x1024xf32>
    %237 = tpu.matmul %235, %8, %cst_75 {dimension_numbers = #tpu.dot_dimension_numbers<[1], [0], [0], [1], [0, 0, 1, 1], [], []>} : vector<2x256xf32>, vector<256x1024xf32>, vector<2x1024xf32> -> vector<2x1024xf32>
    %238 = arith.addf %236, %237 : vector<2x1024xf32>
    %239 = vector.extract_strided_slice %238 {offsets = [0, 0], sizes = [2, 256], strides = [1, 1]} : vector<2x1024xf32> to vector<2x256xf32>
    %cst_76 = arith.constant 5.000000e-01 : f32
    %240 = vector.broadcast %cst_76 : f32 to vector<2x256xf32>
    %241 = arith.mulf %240, %239 : vector<2x256xf32>
    %242 = math.tanh %241 : vector<2x256xf32>
    %cst_77 = arith.constant 1.000000e+00 : f32
    %243 = vector.broadcast %cst_77 : f32 to vector<2x256xf32>
    %244 = arith.addf %242, %243 : vector<2x256xf32>
    %cst_78 = arith.constant 5.000000e-01 : f32
    %245 = vector.broadcast %cst_78 : f32 to vector<2x256xf32>
    %246 = arith.mulf %245, %244 : vector<2x256xf32>
    %247 = vector.extract_strided_slice %238 {offsets = [0, 256], sizes = [2, 256], strides = [1, 1]} : vector<2x1024xf32> to vector<2x256xf32>
    %cst_79 = arith.constant 5.000000e-01 : f32
    %248 = vector.broadcast %cst_79 : f32 to vector<2x256xf32>
    %249 = arith.mulf %248, %247 : vector<2x256xf32>
    %250 = math.tanh %249 : vector<2x256xf32>
    %cst_80 = arith.constant 1.000000e+00 : f32
    %251 = vector.broadcast %cst_80 : f32 to vector<2x256xf32>
    %252 = arith.addf %250, %251 : vector<2x256xf32>
    %cst_81 = arith.constant 5.000000e-01 : f32
    %253 = vector.broadcast %cst_81 : f32 to vector<2x256xf32>
    %254 = arith.mulf %253, %252 : vector<2x256xf32>
    %255 = vector.extract_strided_slice %238 {offsets = [0, 512], sizes = [2, 256], strides = [1, 1]} : vector<2x1024xf32> to vector<2x256xf32>
    %256 = math.tanh %255 : vector<2x256xf32>
    %257 = vector.extract_strided_slice %238 {offsets = [0, 768], sizes = [2, 256], strides = [1, 1]} : vector<2x1024xf32> to vector<2x256xf32>
    %cst_82 = arith.constant 5.000000e-01 : f32
    %258 = vector.broadcast %cst_82 : f32 to vector<2x256xf32>
    %259 = arith.mulf %258, %257 : vector<2x256xf32>
    %260 = math.tanh %259 : vector<2x256xf32>
    %cst_83 = arith.constant 1.000000e+00 : f32
    %261 = vector.broadcast %cst_83 : f32 to vector<2x256xf32>
    %262 = arith.addf %260, %261 : vector<2x256xf32>
    %cst_84 = arith.constant 5.000000e-01 : f32
    %263 = vector.broadcast %cst_84 : f32 to vector<2x256xf32>
    %264 = arith.mulf %263, %262 : vector<2x256xf32>
    %265 = arith.mulf %254, %233 : vector<2x256xf32>
    %266 = arith.mulf %246, %256 : vector<2x256xf32>
    %267 = arith.addf %265, %266 : vector<2x256xf32>
    %268 = math.tanh %267 : vector<2x256xf32>
    %269 = arith.mulf %264, %268 : vector<2x256xf32>
    %270 = vector.extract_strided_slice %7 {offsets = [14, 0], sizes = [2, 1024], strides = [1, 1]} : vector<36x1024xf32> to vector<2x1024xf32>
    %271 = vector.extract_strided_slice %270 {offsets = [0, 0], sizes = [2, 256], strides = [1, 1]} : vector<2x1024xf32> to vector<2x256xf32>
    %cst_85 = arith.constant 5.000000e-01 : f32
    %272 = vector.broadcast %cst_85 : f32 to vector<2x256xf32>
    %273 = arith.mulf %272, %271 : vector<2x256xf32>
    %274 = math.tanh %273 : vector<2x256xf32>
    %cst_86 = arith.constant 1.000000e+00 : f32
    %275 = vector.broadcast %cst_86 : f32 to vector<2x256xf32>
    %276 = arith.addf %274, %275 : vector<2x256xf32>
    %cst_87 = arith.constant 5.000000e-01 : f32
    %277 = vector.broadcast %cst_87 : f32 to vector<2x256xf32>
    %278 = arith.mulf %277, %276 : vector<2x256xf32>
    %279 = vector.extract_strided_slice %270 {offsets = [0, 512], sizes = [2, 256], strides = [1, 1]} : vector<2x1024xf32> to vector<2x256xf32>
    %280 = math.tanh %279 : vector<2x256xf32>
    %281 = vector.extract_strided_slice %270 {offsets = [0, 768], sizes = [2, 256], strides = [1, 1]} : vector<2x1024xf32> to vector<2x256xf32>
    %cst_88 = arith.constant 5.000000e-01 : f32
    %282 = vector.broadcast %cst_88 : f32 to vector<2x256xf32>
    %283 = arith.mulf %282, %281 : vector<2x256xf32>
    %284 = math.tanh %283 : vector<2x256xf32>
    %cst_89 = arith.constant 1.000000e+00 : f32
    %285 = vector.broadcast %cst_89 : f32 to vector<2x256xf32>
    %286 = arith.addf %284, %285 : vector<2x256xf32>
    %cst_90 = arith.constant 5.000000e-01 : f32
    %287 = vector.broadcast %cst_90 : f32 to vector<2x256xf32>
    %288 = arith.mulf %287, %286 : vector<2x256xf32>
    %289 = arith.mulf %278, %280 : vector<2x256xf32>
    %290 = math.tanh %289 : vector<2x256xf32>
    %291 = arith.mulf %288, %290 : vector<2x256xf32>
    %292 = vector.extract_strided_slice %6 {offsets = [16, 0], sizes = [2, 1024], strides = [1, 1]} : vector<36x1024xf32> to vector<2x1024xf32>
    %293 = vector.extract_strided_slice %292 {offsets = [0, 0], sizes = [2, 256], strides = [1, 1]} : vector<2x1024xf32> to vector<2x256xf32>
    %cst_91 = arith.constant 5.000000e-01 : f32
    %294 = vector.broadcast %cst_91 : f32 to vector<2x256xf32>
    %295 = arith.mulf %294, %293 : vector<2x256xf32>
    %296 = math.tanh %295 : vector<2x256xf32>
    %cst_92 = arith.constant 1.000000e+00 : f32
    %297 = vector.broadcast %cst_92 : f32 to vector<2x256xf32>
    %298 = arith.addf %296, %297 : vector<2x256xf32>
    %cst_93 = arith.constant 5.000000e-01 : f32
    %299 = vector.broadcast %cst_93 : f32 to vector<2x256xf32>
    %300 = arith.mulf %299, %298 : vector<2x256xf32>
    %301 = vector.extract_strided_slice %292 {offsets = [0, 512], sizes = [2, 256], strides = [1, 1]} : vector<2x1024xf32> to vector<2x256xf32>
    %302 = math.tanh %301 : vector<2x256xf32>
    %303 = vector.extract_strided_slice %292 {offsets = [0, 768], sizes = [2, 256], strides = [1, 1]} : vector<2x1024xf32> to vector<2x256xf32>
    %cst_94 = arith.constant 5.000000e-01 : f32
    %304 = vector.broadcast %cst_94 : f32 to vector<2x256xf32>
    %305 = arith.mulf %304, %303 : vector<2x256xf32>
    %306 = math.tanh %305 : vector<2x256xf32>
    %cst_95 = arith.constant 1.000000e+00 : f32
    %307 = vector.broadcast %cst_95 : f32 to vector<2x256xf32>
    %308 = arith.addf %306, %307 : vector<2x256xf32>
    %cst_96 = arith.constant 5.000000e-01 : f32
    %309 = vector.broadcast %cst_96 : f32 to vector<2x256xf32>
    %310 = arith.mulf %309, %308 : vector<2x256xf32>
    %311 = arith.mulf %300, %302 : vector<2x256xf32>
    %312 = math.tanh %311 : vector<2x256xf32>
    %313 = arith.mulf %310, %312 : vector<2x256xf32>
    %314 = vector.extract_strided_slice %7 {offsets = [30, 0], sizes = [2, 1024], strides = [1, 1]} : vector<36x1024xf32> to vector<2x1024xf32>
    %315 = vector.extract_strided_slice %314 {offsets = [0, 0], sizes = [2, 256], strides = [1, 1]} : vector<2x1024xf32> to vector<2x256xf32>
    %cst_97 = arith.constant 5.000000e-01 : f32
    %316 = vector.broadcast %cst_97 : f32 to vector<2x256xf32>
    %317 = arith.mulf %316, %315 : vector<2x256xf32>
    %318 = math.tanh %317 : vector<2x256xf32>
    %cst_98 = arith.constant 1.000000e+00 : f32
    %319 = vector.broadcast %cst_98 : f32 to vector<2x256xf32>
    %320 = arith.addf %318, %319 : vector<2x256xf32>
    %cst_99 = arith.constant 5.000000e-01 : f32
    %321 = vector.broadcast %cst_99 : f32 to vector<2x256xf32>
    %322 = arith.mulf %321, %320 : vector<2x256xf32>
    %323 = vector.extract_strided_slice %314 {offsets = [0, 512], sizes = [2, 256], strides = [1, 1]} : vector<2x1024xf32> to vector<2x256xf32>
    %324 = math.tanh %323 : vector<2x256xf32>
    %325 = vector.extract_strided_slice %314 {offsets = [0, 768], sizes = [2, 256], strides = [1, 1]} : vector<2x1024xf32> to vector<2x256xf32>
    %cst_100 = arith.constant 5.000000e-01 : f32
    %326 = vector.broadcast %cst_100 : f32 to vector<2x256xf32>
    %327 = arith.mulf %326, %325 : vector<2x256xf32>
    %328 = math.tanh %327 : vector<2x256xf32>
    %cst_101 = arith.constant 1.000000e+00 : f32
    %329 = vector.broadcast %cst_101 : f32 to vector<2x256xf32>
    %330 = arith.addf %328, %329 : vector<2x256xf32>
    %cst_102 = arith.constant 5.000000e-01 : f32
    %331 = vector.broadcast %cst_102 : f32 to vector<2x256xf32>
    %332 = arith.mulf %331, %330 : vector<2x256xf32>
    %333 = arith.mulf %322, %324 : vector<2x256xf32>
    %334 = math.tanh %333 : vector<2x256xf32>
    %335 = arith.mulf %332, %334 : vector<2x256xf32>
    %336 = vector.extract_strided_slice %7 {offsets = [28, 0], sizes = [2, 1024], strides = [1, 1]} : vector<36x1024xf32> to vector<2x1024xf32>
    %cst_103 = arith.constant dense<0.000000e+00> : vector<2x1024xf32>
    %337 = tpu.matmul %335, %9, %cst_103 {dimension_numbers = #tpu.dot_dimension_numbers<[1], [0], [0], [1], [0, 0, 1, 1], [], []>} : vector<2x256xf32>, vector<256x1024xf32>, vector<2x1024xf32> -> vector<2x1024xf32>
    %338 = arith.addf %336, %337 : vector<2x1024xf32>
    %339 = vector.extract_strided_slice %338 {offsets = [0, 0], sizes = [2, 256], strides = [1, 1]} : vector<2x1024xf32> to vector<2x256xf32>
    %cst_104 = arith.constant 5.000000e-01 : f32
    %340 = vector.broadcast %cst_104 : f32 to vector<2x256xf32>
    %341 = arith.mulf %340, %339 : vector<2x256xf32>
    %342 = math.tanh %341 : vector<2x256xf32>
    %cst_105 = arith.constant 1.000000e+00 : f32
    %343 = vector.broadcast %cst_105 : f32 to vector<2x256xf32>
    %344 = arith.addf %342, %343 : vector<2x256xf32>
    %cst_106 = arith.constant 5.000000e-01 : f32
    %345 = vector.broadcast %cst_106 : f32 to vector<2x256xf32>
    %346 = arith.mulf %345, %344 : vector<2x256xf32>
    %347 = vector.extract_strided_slice %338 {offsets = [0, 256], sizes = [2, 256], strides = [1, 1]} : vector<2x1024xf32> to vector<2x256xf32>
    %cst_107 = arith.constant 5.000000e-01 : f32
    %348 = vector.broadcast %cst_107 : f32 to vector<2x256xf32>
    %349 = arith.mulf %348, %347 : vector<2x256xf32>
    %350 = math.tanh %349 : vector<2x256xf32>
    %cst_108 = arith.constant 1.000000e+00 : f32
    %351 = vector.broadcast %cst_108 : f32 to vector<2x256xf32>
    %352 = arith.addf %350, %351 : vector<2x256xf32>
    %cst_109 = arith.constant 5.000000e-01 : f32
    %353 = vector.broadcast %cst_109 : f32 to vector<2x256xf32>
    %354 = arith.mulf %353, %352 : vector<2x256xf32>
    %355 = vector.extract_strided_slice %338 {offsets = [0, 512], sizes = [2, 256], strides = [1, 1]} : vector<2x1024xf32> to vector<2x256xf32>
    %356 = math.tanh %355 : vector<2x256xf32>
    %357 = vector.extract_strided_slice %338 {offsets = [0, 768], sizes = [2, 256], strides = [1, 1]} : vector<2x1024xf32> to vector<2x256xf32>
    %cst_110 = arith.constant 5.000000e-01 : f32
    %358 = vector.broadcast %cst_110 : f32 to vector<2x256xf32>
    %359 = arith.mulf %358, %357 : vector<2x256xf32>
    %360 = math.tanh %359 : vector<2x256xf32>
    %cst_111 = arith.constant 1.000000e+00 : f32
    %361 = vector.broadcast %cst_111 : f32 to vector<2x256xf32>
    %362 = arith.addf %360, %361 : vector<2x256xf32>
    %cst_112 = arith.constant 5.000000e-01 : f32
    %363 = vector.broadcast %cst_112 : f32 to vector<2x256xf32>
    %364 = arith.mulf %363, %362 : vector<2x256xf32>
    %365 = arith.mulf %354, %333 : vector<2x256xf32>
    %366 = arith.mulf %346, %356 : vector<2x256xf32>
    %367 = arith.addf %365, %366 : vector<2x256xf32>
    %368 = math.tanh %367 : vector<2x256xf32>
    %369 = arith.mulf %364, %368 : vector<2x256xf32>
    %370 = vector.extract_strided_slice %7 {offsets = [26, 0], sizes = [2, 1024], strides = [1, 1]} : vector<36x1024xf32> to vector<2x1024xf32>
    %cst_113 = arith.constant dense<0.000000e+00> : vector<2x1024xf32>
    %371 = tpu.matmul %369, %9, %cst_113 {dimension_numbers = #tpu.dot_dimension_numbers<[1], [0], [0], [1], [0, 0, 1, 1], [], []>} : vector<2x256xf32>, vector<256x1024xf32>, vector<2x1024xf32> -> vector<2x1024xf32>
    %372 = arith.addf %370, %371 : vector<2x1024xf32>
    %373 = vector.extract_strided_slice %372 {offsets = [0, 0], sizes = [2, 256], strides = [1, 1]} : vector<2x1024xf32> to vector<2x256xf32>
    %cst_114 = arith.constant 5.000000e-01 : f32
    %374 = vector.broadcast %cst_114 : f32 to vector<2x256xf32>
    %375 = arith.mulf %374, %373 : vector<2x256xf32>
    %376 = math.tanh %375 : vector<2x256xf32>
    %cst_115 = arith.constant 1.000000e+00 : f32
    %377 = vector.broadcast %cst_115 : f32 to vector<2x256xf32>
    %378 = arith.addf %376, %377 : vector<2x256xf32>
    %cst_116 = arith.constant 5.000000e-01 : f32
    %379 = vector.broadcast %cst_116 : f32 to vector<2x256xf32>
    %380 = arith.mulf %379, %378 : vector<2x256xf32>
    %381 = vector.extract_strided_slice %372 {offsets = [0, 256], sizes = [2, 256], strides = [1, 1]} : vector<2x1024xf32> to vector<2x256xf32>
    %cst_117 = arith.constant 5.000000e-01 : f32
    %382 = vector.broadcast %cst_117 : f32 to vector<2x256xf32>
    %383 = arith.mulf %382, %381 : vector<2x256xf32>
    %384 = math.tanh %383 : vector<2x256xf32>
    %cst_118 = arith.constant 1.000000e+00 : f32
    %385 = vector.broadcast %cst_118 : f32 to vector<2x256xf32>
    %386 = arith.addf %384, %385 : vector<2x256xf32>
    %cst_119 = arith.constant 5.000000e-01 : f32
    %387 = vector.broadcast %cst_119 : f32 to vector<2x256xf32>
    %388 = arith.mulf %387, %386 : vector<2x256xf32>
    %389 = vector.extract_strided_slice %372 {offsets = [0, 512], sizes = [2, 256], strides = [1, 1]} : vector<2x1024xf32> to vector<2x256xf32>
    %390 = math.tanh %389 : vector<2x256xf32>
    %391 = vector.extract_strided_slice %372 {offsets = [0, 768], sizes = [2, 256], strides = [1, 1]} : vector<2x1024xf32> to vector<2x256xf32>
    %cst_120 = arith.constant 5.000000e-01 : f32
    %392 = vector.broadcast %cst_120 : f32 to vector<2x256xf32>
    %393 = arith.mulf %392, %391 : vector<2x256xf32>
    %394 = math.tanh %393 : vector<2x256xf32>
    %cst_121 = arith.constant 1.000000e+00 : f32
    %395 = vector.broadcast %cst_121 : f32 to vector<2x256xf32>
    %396 = arith.addf %394, %395 : vector<2x256xf32>
    %cst_122 = arith.constant 5.000000e-01 : f32
    %397 = vector.broadcast %cst_122 : f32 to vector<2x256xf32>
    %398 = arith.mulf %397, %396 : vector<2x256xf32>
    %399 = arith.mulf %388, %367 : vector<2x256xf32>
    %400 = arith.mulf %380, %390 : vector<2x256xf32>
    %401 = arith.addf %399, %400 : vector<2x256xf32>
    %402 = math.tanh %401 : vector<2x256xf32>
    %403 = arith.mulf %398, %402 : vector<2x256xf32>
    %404 = vector.extract_strided_slice %7 {offsets = [24, 0], sizes = [2, 1024], strides = [1, 1]} : vector<36x1024xf32> to vector<2x1024xf32>
    %cst_123 = arith.constant dense<0.000000e+00> : vector<2x1024xf32>
    %405 = tpu.matmul %403, %9, %cst_123 {dimension_numbers = #tpu.dot_dimension_numbers<[1], [0], [0], [1], [0, 0, 1, 1], [], []>} : vector<2x256xf32>, vector<256x1024xf32>, vector<2x1024xf32> -> vector<2x1024xf32>
    %406 = arith.addf %404, %405 : vector<2x1024xf32>
    %407 = vector.extract_strided_slice %406 {offsets = [0, 0], sizes = [2, 256], strides = [1, 1]} : vector<2x1024xf32> to vector<2x256xf32>
    %cst_124 = arith.constant 5.000000e-01 : f32
    %408 = vector.broadcast %cst_124 : f32 to vector<2x256xf32>
    %409 = arith.mulf %408, %407 : vector<2x256xf32>
    %410 = math.tanh %409 : vector<2x256xf32>
    %cst_125 = arith.constant 1.000000e+00 : f32
    %411 = vector.broadcast %cst_125 : f32 to vector<2x256xf32>
    %412 = arith.addf %410, %411 : vector<2x256xf32>
    %cst_126 = arith.constant 5.000000e-01 : f32
    %413 = vector.broadcast %cst_126 : f32 to vector<2x256xf32>
    %414 = arith.mulf %413, %412 : vector<2x256xf32>
    %415 = vector.extract_strided_slice %406 {offsets = [0, 256], sizes = [2, 256], strides = [1, 1]} : vector<2x1024xf32> to vector<2x256xf32>
    %cst_127 = arith.constant 5.000000e-01 : f32
    %416 = vector.broadcast %cst_127 : f32 to vector<2x256xf32>
    %417 = arith.mulf %416, %415 : vector<2x256xf32>
    %418 = math.tanh %417 : vector<2x256xf32>
    %cst_128 = arith.constant 1.000000e+00 : f32
    %419 = vector.broadcast %cst_128 : f32 to vector<2x256xf32>
    %420 = arith.addf %418, %419 : vector<2x256xf32>
    %cst_129 = arith.constant 5.000000e-01 : f32
    %421 = vector.broadcast %cst_129 : f32 to vector<2x256xf32>
    %422 = arith.mulf %421, %420 : vector<2x256xf32>
    %423 = vector.extract_strided_slice %406 {offsets = [0, 512], sizes = [2, 256], strides = [1, 1]} : vector<2x1024xf32> to vector<2x256xf32>
    %424 = math.tanh %423 : vector<2x256xf32>
    %425 = vector.extract_strided_slice %406 {offsets = [0, 768], sizes = [2, 256], strides = [1, 1]} : vector<2x1024xf32> to vector<2x256xf32>
    %cst_130 = arith.constant 5.000000e-01 : f32
    %426 = vector.broadcast %cst_130 : f32 to vector<2x256xf32>
    %427 = arith.mulf %426, %425 : vector<2x256xf32>
    %428 = math.tanh %427 : vector<2x256xf32>
    %cst_131 = arith.constant 1.000000e+00 : f32
    %429 = vector.broadcast %cst_131 : f32 to vector<2x256xf32>
    %430 = arith.addf %428, %429 : vector<2x256xf32>
    %cst_132 = arith.constant 5.000000e-01 : f32
    %431 = vector.broadcast %cst_132 : f32 to vector<2x256xf32>
    %432 = arith.mulf %431, %430 : vector<2x256xf32>
    %433 = arith.mulf %422, %401 : vector<2x256xf32>
    %434 = arith.mulf %414, %424 : vector<2x256xf32>
    %435 = arith.addf %433, %434 : vector<2x256xf32>
    %436 = math.tanh %435 : vector<2x256xf32>
    %437 = arith.mulf %432, %436 : vector<2x256xf32>
    %438 = vector.extract_strided_slice %7 {offsets = [22, 0], sizes = [2, 1024], strides = [1, 1]} : vector<36x1024xf32> to vector<2x1024xf32>
    %cst_133 = arith.constant dense<0.000000e+00> : vector<2x1024xf32>
    %439 = tpu.matmul %437, %9, %cst_133 {dimension_numbers = #tpu.dot_dimension_numbers<[1], [0], [0], [1], [0, 0, 1, 1], [], []>} : vector<2x256xf32>, vector<256x1024xf32>, vector<2x1024xf32> -> vector<2x1024xf32>
    %440 = arith.addf %438, %439 : vector<2x1024xf32>
    %441 = vector.extract_strided_slice %440 {offsets = [0, 0], sizes = [2, 256], strides = [1, 1]} : vector<2x1024xf32> to vector<2x256xf32>
    %cst_134 = arith.constant 5.000000e-01 : f32
    %442 = vector.broadcast %cst_134 : f32 to vector<2x256xf32>
    %443 = arith.mulf %442, %441 : vector<2x256xf32>
    %444 = math.tanh %443 : vector<2x256xf32>
    %cst_135 = arith.constant 1.000000e+00 : f32
    %445 = vector.broadcast %cst_135 : f32 to vector<2x256xf32>
    %446 = arith.addf %444, %445 : vector<2x256xf32>
    %cst_136 = arith.constant 5.000000e-01 : f32
    %447 = vector.broadcast %cst_136 : f32 to vector<2x256xf32>
    %448 = arith.mulf %447, %446 : vector<2x256xf32>
    %449 = vector.extract_strided_slice %440 {offsets = [0, 256], sizes = [2, 256], strides = [1, 1]} : vector<2x1024xf32> to vector<2x256xf32>
    %cst_137 = arith.constant 5.000000e-01 : f32
    %450 = vector.broadcast %cst_137 : f32 to vector<2x256xf32>
    %451 = arith.mulf %450, %449 : vector<2x256xf32>
    %452 = math.tanh %451 : vector<2x256xf32>
    %cst_138 = arith.constant 1.000000e+00 : f32
    %453 = vector.broadcast %cst_138 : f32 to vector<2x256xf32>
    %454 = arith.addf %452, %453 : vector<2x256xf32>
    %cst_139 = arith.constant 5.000000e-01 : f32
    %455 = vector.broadcast %cst_139 : f32 to vector<2x256xf32>
    %456 = arith.mulf %455, %454 : vector<2x256xf32>
    %457 = vector.extract_strided_slice %440 {offsets = [0, 512], sizes = [2, 256], strides = [1, 1]} : vector<2x1024xf32> to vector<2x256xf32>
    %458 = math.tanh %457 : vector<2x256xf32>
    %459 = vector.extract_strided_slice %440 {offsets = [0, 768], sizes = [2, 256], strides = [1, 1]} : vector<2x1024xf32> to vector<2x256xf32>
    %cst_140 = arith.constant 5.000000e-01 : f32
    %460 = vector.broadcast %cst_140 : f32 to vector<2x256xf32>
    %461 = arith.mulf %460, %459 : vector<2x256xf32>
    %462 = math.tanh %461 : vector<2x256xf32>
    %cst_141 = arith.constant 1.000000e+00 : f32
    %463 = vector.broadcast %cst_141 : f32 to vector<2x256xf32>
    %464 = arith.addf %462, %463 : vector<2x256xf32>
    %cst_142 = arith.constant 5.000000e-01 : f32
    %465 = vector.broadcast %cst_142 : f32 to vector<2x256xf32>
    %466 = arith.mulf %465, %464 : vector<2x256xf32>
    %467 = arith.mulf %456, %435 : vector<2x256xf32>
    %468 = arith.mulf %448, %458 : vector<2x256xf32>
    %469 = arith.addf %467, %468 : vector<2x256xf32>
    %470 = math.tanh %469 : vector<2x256xf32>
    %471 = arith.mulf %466, %470 : vector<2x256xf32>
    %472 = vector.extract_strided_slice %7 {offsets = [20, 0], sizes = [2, 1024], strides = [1, 1]} : vector<36x1024xf32> to vector<2x1024xf32>
    %cst_143 = arith.constant dense<0.000000e+00> : vector<2x1024xf32>
    %473 = tpu.matmul %471, %9, %cst_143 {dimension_numbers = #tpu.dot_dimension_numbers<[1], [0], [0], [1], [0, 0, 1, 1], [], []>} : vector<2x256xf32>, vector<256x1024xf32>, vector<2x1024xf32> -> vector<2x1024xf32>
    %474 = arith.addf %472, %473 : vector<2x1024xf32>
    %475 = vector.extract_strided_slice %474 {offsets = [0, 0], sizes = [2, 256], strides = [1, 1]} : vector<2x1024xf32> to vector<2x256xf32>
    %cst_144 = arith.constant 5.000000e-01 : f32
    %476 = vector.broadcast %cst_144 : f32 to vector<2x256xf32>
    %477 = arith.mulf %476, %475 : vector<2x256xf32>
    %478 = math.tanh %477 : vector<2x256xf32>
    %cst_145 = arith.constant 1.000000e+00 : f32
    %479 = vector.broadcast %cst_145 : f32 to vector<2x256xf32>
    %480 = arith.addf %478, %479 : vector<2x256xf32>
    %cst_146 = arith.constant 5.000000e-01 : f32
    %481 = vector.broadcast %cst_146 : f32 to vector<2x256xf32>
    %482 = arith.mulf %481, %480 : vector<2x256xf32>
    %483 = vector.extract_strided_slice %474 {offsets = [0, 256], sizes = [2, 256], strides = [1, 1]} : vector<2x1024xf32> to vector<2x256xf32>
    %cst_147 = arith.constant 5.000000e-01 : f32
    %484 = vector.broadcast %cst_147 : f32 to vector<2x256xf32>
    %485 = arith.mulf %484, %483 : vector<2x256xf32>
    %486 = math.tanh %485 : vector<2x256xf32>
    %cst_148 = arith.constant 1.000000e+00 : f32
    %487 = vector.broadcast %cst_148 : f32 to vector<2x256xf32>
    %488 = arith.addf %486, %487 : vector<2x256xf32>
    %cst_149 = arith.constant 5.000000e-01 : f32
    %489 = vector.broadcast %cst_149 : f32 to vector<2x256xf32>
    %490 = arith.mulf %489, %488 : vector<2x256xf32>
    %491 = vector.extract_strided_slice %474 {offsets = [0, 512], sizes = [2, 256], strides = [1, 1]} : vector<2x1024xf32> to vector<2x256xf32>
    %492 = math.tanh %491 : vector<2x256xf32>
    %493 = vector.extract_strided_slice %474 {offsets = [0, 768], sizes = [2, 256], strides = [1, 1]} : vector<2x1024xf32> to vector<2x256xf32>
    %cst_150 = arith.constant 5.000000e-01 : f32
    %494 = vector.broadcast %cst_150 : f32 to vector<2x256xf32>
    %495 = arith.mulf %494, %493 : vector<2x256xf32>
    %496 = math.tanh %495 : vector<2x256xf32>
    %cst_151 = arith.constant 1.000000e+00 : f32
    %497 = vector.broadcast %cst_151 : f32 to vector<2x256xf32>
    %498 = arith.addf %496, %497 : vector<2x256xf32>
    %cst_152 = arith.constant 5.000000e-01 : f32
    %499 = vector.broadcast %cst_152 : f32 to vector<2x256xf32>
    %500 = arith.mulf %499, %498 : vector<2x256xf32>
    %501 = arith.mulf %490, %469 : vector<2x256xf32>
    %502 = arith.mulf %482, %492 : vector<2x256xf32>
    %503 = arith.addf %501, %502 : vector<2x256xf32>
    %504 = math.tanh %503 : vector<2x256xf32>
    %505 = arith.mulf %500, %504 : vector<2x256xf32>
    %506 = vector.extract_strided_slice %7 {offsets = [18, 0], sizes = [2, 1024], strides = [1, 1]} : vector<36x1024xf32> to vector<2x1024xf32>
    %cst_153 = arith.constant dense<0.000000e+00> : vector<2x1024xf32>
    %507 = tpu.matmul %505, %9, %cst_153 {dimension_numbers = #tpu.dot_dimension_numbers<[1], [0], [0], [1], [0, 0, 1, 1], [], []>} : vector<2x256xf32>, vector<256x1024xf32>, vector<2x1024xf32> -> vector<2x1024xf32>
    %508 = arith.addf %506, %507 : vector<2x1024xf32>
    %509 = vector.extract_strided_slice %508 {offsets = [0, 0], sizes = [2, 256], strides = [1, 1]} : vector<2x1024xf32> to vector<2x256xf32>
    %cst_154 = arith.constant 5.000000e-01 : f32
    %510 = vector.broadcast %cst_154 : f32 to vector<2x256xf32>
    %511 = arith.mulf %510, %509 : vector<2x256xf32>
    %512 = math.tanh %511 : vector<2x256xf32>
    %cst_155 = arith.constant 1.000000e+00 : f32
    %513 = vector.broadcast %cst_155 : f32 to vector<2x256xf32>
    %514 = arith.addf %512, %513 : vector<2x256xf32>
    %cst_156 = arith.constant 5.000000e-01 : f32
    %515 = vector.broadcast %cst_156 : f32 to vector<2x256xf32>
    %516 = arith.mulf %515, %514 : vector<2x256xf32>
    %517 = vector.extract_strided_slice %508 {offsets = [0, 256], sizes = [2, 256], strides = [1, 1]} : vector<2x1024xf32> to vector<2x256xf32>
    %cst_157 = arith.constant 5.000000e-01 : f32
    %518 = vector.broadcast %cst_157 : f32 to vector<2x256xf32>
    %519 = arith.mulf %518, %517 : vector<2x256xf32>
    %520 = math.tanh %519 : vector<2x256xf32>
    %cst_158 = arith.constant 1.000000e+00 : f32
    %521 = vector.broadcast %cst_158 : f32 to vector<2x256xf32>
    %522 = arith.addf %520, %521 : vector<2x256xf32>
    %cst_159 = arith.constant 5.000000e-01 : f32
    %523 = vector.broadcast %cst_159 : f32 to vector<2x256xf32>
    %524 = arith.mulf %523, %522 : vector<2x256xf32>
    %525 = vector.extract_strided_slice %508 {offsets = [0, 512], sizes = [2, 256], strides = [1, 1]} : vector<2x1024xf32> to vector<2x256xf32>
    %526 = math.tanh %525 : vector<2x256xf32>
    %527 = vector.extract_strided_slice %508 {offsets = [0, 768], sizes = [2, 256], strides = [1, 1]} : vector<2x1024xf32> to vector<2x256xf32>
    %cst_160 = arith.constant 5.000000e-01 : f32
    %528 = vector.broadcast %cst_160 : f32 to vector<2x256xf32>
    %529 = arith.mulf %528, %527 : vector<2x256xf32>
    %530 = math.tanh %529 : vector<2x256xf32>
    %cst_161 = arith.constant 1.000000e+00 : f32
    %531 = vector.broadcast %cst_161 : f32 to vector<2x256xf32>
    %532 = arith.addf %530, %531 : vector<2x256xf32>
    %cst_162 = arith.constant 5.000000e-01 : f32
    %533 = vector.broadcast %cst_162 : f32 to vector<2x256xf32>
    %534 = arith.mulf %533, %532 : vector<2x256xf32>
    %535 = arith.mulf %524, %503 : vector<2x256xf32>
    %536 = arith.mulf %516, %526 : vector<2x256xf32>
    %537 = arith.addf %535, %536 : vector<2x256xf32>
    %538 = math.tanh %537 : vector<2x256xf32>
    %539 = arith.mulf %534, %538 : vector<2x256xf32>
    %540 = vector.extract_strided_slice %7 {offsets = [16, 0], sizes = [2, 1024], strides = [1, 1]} : vector<36x1024xf32> to vector<2x1024xf32>
    %cst_163 = arith.constant dense<0.000000e+00> : vector<2x1024xf32>
    %541 = tpu.matmul %539, %9, %cst_163 {dimension_numbers = #tpu.dot_dimension_numbers<[1], [0], [0], [1], [0, 0, 1, 1], [], []>} : vector<2x256xf32>, vector<256x1024xf32>, vector<2x1024xf32> -> vector<2x1024xf32>
    %542 = arith.addf %540, %541 : vector<2x1024xf32>
    %543 = vector.extract_strided_slice %542 {offsets = [0, 0], sizes = [2, 256], strides = [1, 1]} : vector<2x1024xf32> to vector<2x256xf32>
    %cst_164 = arith.constant 5.000000e-01 : f32
    %544 = vector.broadcast %cst_164 : f32 to vector<2x256xf32>
    %545 = arith.mulf %544, %543 : vector<2x256xf32>
    %546 = math.tanh %545 : vector<2x256xf32>
    %cst_165 = arith.constant 1.000000e+00 : f32
    %547 = vector.broadcast %cst_165 : f32 to vector<2x256xf32>
    %548 = arith.addf %546, %547 : vector<2x256xf32>
    %cst_166 = arith.constant 5.000000e-01 : f32
    %549 = vector.broadcast %cst_166 : f32 to vector<2x256xf32>
    %550 = arith.mulf %549, %548 : vector<2x256xf32>
    %551 = vector.extract_strided_slice %542 {offsets = [0, 256], sizes = [2, 256], strides = [1, 1]} : vector<2x1024xf32> to vector<2x256xf32>
    %cst_167 = arith.constant 5.000000e-01 : f32
    %552 = vector.broadcast %cst_167 : f32 to vector<2x256xf32>
    %553 = arith.mulf %552, %551 : vector<2x256xf32>
    %554 = math.tanh %553 : vector<2x256xf32>
    %cst_168 = arith.constant 1.000000e+00 : f32
    %555 = vector.broadcast %cst_168 : f32 to vector<2x256xf32>
    %556 = arith.addf %554, %555 : vector<2x256xf32>
    %cst_169 = arith.constant 5.000000e-01 : f32
    %557 = vector.broadcast %cst_169 : f32 to vector<2x256xf32>
    %558 = arith.mulf %557, %556 : vector<2x256xf32>
    %559 = vector.extract_strided_slice %542 {offsets = [0, 512], sizes = [2, 256], strides = [1, 1]} : vector<2x1024xf32> to vector<2x256xf32>
    %560 = math.tanh %559 : vector<2x256xf32>
    %561 = vector.extract_strided_slice %542 {offsets = [0, 768], sizes = [2, 256], strides = [1, 1]} : vector<2x1024xf32> to vector<2x256xf32>
    %cst_170 = arith.constant 5.000000e-01 : f32
    %562 = vector.broadcast %cst_170 : f32 to vector<2x256xf32>
    %563 = arith.mulf %562, %561 : vector<2x256xf32>
    %564 = math.tanh %563 : vector<2x256xf32>
    %cst_171 = arith.constant 1.000000e+00 : f32
    %565 = vector.broadcast %cst_171 : f32 to vector<2x256xf32>
    %566 = arith.addf %564, %565 : vector<2x256xf32>
    %cst_172 = arith.constant 5.000000e-01 : f32
    %567 = vector.broadcast %cst_172 : f32 to vector<2x256xf32>
    %568 = arith.mulf %567, %566 : vector<2x256xf32>
    %569 = arith.mulf %558, %537 : vector<2x256xf32>
    %570 = arith.mulf %550, %560 : vector<2x256xf32>
    %571 = arith.addf %569, %570 : vector<2x256xf32>
    %572 = math.tanh %571 : vector<2x256xf32>
    %573 = arith.mulf %568, %572 : vector<2x256xf32>
    %574 = vector.extract_strided_slice %6 {offsets = [32, 0], sizes = [2, 1024], strides = [1, 1]} : vector<36x1024xf32> to vector<2x1024xf32>
    %575 = vector.extract_strided_slice %574 {offsets = [0, 0], sizes = [2, 256], strides = [1, 1]} : vector<2x1024xf32> to vector<2x256xf32>
    %cst_173 = arith.constant 5.000000e-01 : f32
    %576 = vector.broadcast %cst_173 : f32 to vector<2x256xf32>
    %577 = arith.mulf %576, %575 : vector<2x256xf32>
    %578 = math.tanh %577 : vector<2x256xf32>
    %cst_174 = arith.constant 1.000000e+00 : f32
    %579 = vector.broadcast %cst_174 : f32 to vector<2x256xf32>
    %580 = arith.addf %578, %579 : vector<2x256xf32>
    %cst_175 = arith.constant 5.000000e-01 : f32
    %581 = vector.broadcast %cst_175 : f32 to vector<2x256xf32>
    %582 = arith.mulf %581, %580 : vector<2x256xf32>
    %583 = vector.extract_strided_slice %574 {offsets = [0, 512], sizes = [2, 256], strides = [1, 1]} : vector<2x1024xf32> to vector<2x256xf32>
    %584 = math.tanh %583 : vector<2x256xf32>
    %585 = vector.extract_strided_slice %574 {offsets = [0, 768], sizes = [2, 256], strides = [1, 1]} : vector<2x1024xf32> to vector<2x256xf32>
    %cst_176 = arith.constant 5.000000e-01 : f32
    %586 = vector.broadcast %cst_176 : f32 to vector<2x256xf32>
    %587 = arith.mulf %586, %585 : vector<2x256xf32>
    %588 = math.tanh %587 : vector<2x256xf32>
    %cst_177 = arith.constant 1.000000e+00 : f32
    %589 = vector.broadcast %cst_177 : f32 to vector<2x256xf32>
    %590 = arith.addf %588, %589 : vector<2x256xf32>
    %cst_178 = arith.constant 5.000000e-01 : f32
    %591 = vector.broadcast %cst_178 : f32 to vector<2x256xf32>
    %592 = arith.mulf %591, %590 : vector<2x256xf32>
    %593 = arith.mulf %582, %584 : vector<2x256xf32>
    %594 = math.tanh %593 : vector<2x256xf32>
    %595 = arith.mulf %592, %594 : vector<2x256xf32>
    %596 = vector.extract_strided_slice %6 {offsets = [34, 0], sizes = [2, 1024], strides = [1, 1]} : vector<36x1024xf32> to vector<2x1024xf32>
    %cst_179 = arith.constant dense<0.000000e+00> : vector<2x1024xf32>
    %597 = tpu.matmul %595, %8, %cst_179 {dimension_numbers = #tpu.dot_dimension_numbers<[1], [0], [0], [1], [0, 0, 1, 1], [], []>} : vector<2x256xf32>, vector<256x1024xf32>, vector<2x1024xf32> -> vector<2x1024xf32>
    %598 = arith.addf %596, %597 : vector<2x1024xf32>
    %599 = vector.extract_strided_slice %598 {offsets = [0, 0], sizes = [2, 256], strides = [1, 1]} : vector<2x1024xf32> to vector<2x256xf32>
    %cst_180 = arith.constant 5.000000e-01 : f32
    %600 = vector.broadcast %cst_180 : f32 to vector<2x256xf32>
    %601 = arith.mulf %600, %599 : vector<2x256xf32>
    %602 = math.tanh %601 : vector<2x256xf32>
    %cst_181 = arith.constant 1.000000e+00 : f32
    %603 = vector.broadcast %cst_181 : f32 to vector<2x256xf32>
    %604 = arith.addf %602, %603 : vector<2x256xf32>
    %cst_182 = arith.constant 5.000000e-01 : f32
    %605 = vector.broadcast %cst_182 : f32 to vector<2x256xf32>
    %606 = arith.mulf %605, %604 : vector<2x256xf32>
    %607 = vector.extract_strided_slice %598 {offsets = [0, 256], sizes = [2, 256], strides = [1, 1]} : vector<2x1024xf32> to vector<2x256xf32>
    %cst_183 = arith.constant 5.000000e-01 : f32
    %608 = vector.broadcast %cst_183 : f32 to vector<2x256xf32>
    %609 = arith.mulf %608, %607 : vector<2x256xf32>
    %610 = math.tanh %609 : vector<2x256xf32>
    %cst_184 = arith.constant 1.000000e+00 : f32
    %611 = vector.broadcast %cst_184 : f32 to vector<2x256xf32>
    %612 = arith.addf %610, %611 : vector<2x256xf32>
    %cst_185 = arith.constant 5.000000e-01 : f32
    %613 = vector.broadcast %cst_185 : f32 to vector<2x256xf32>
    %614 = arith.mulf %613, %612 : vector<2x256xf32>
    %615 = vector.extract_strided_slice %598 {offsets = [0, 512], sizes = [2, 256], strides = [1, 1]} : vector<2x1024xf32> to vector<2x256xf32>
    %616 = math.tanh %615 : vector<2x256xf32>
    %617 = vector.extract_strided_slice %598 {offsets = [0, 768], sizes = [2, 256], strides = [1, 1]} : vector<2x1024xf32> to vector<2x256xf32>
    %cst_186 = arith.constant 5.000000e-01 : f32
    %618 = vector.broadcast %cst_186 : f32 to vector<2x256xf32>
    %619 = arith.mulf %618, %617 : vector<2x256xf32>
    %620 = math.tanh %619 : vector<2x256xf32>
    %cst_187 = arith.constant 1.000000e+00 : f32
    %621 = vector.broadcast %cst_187 : f32 to vector<2x256xf32>
    %622 = arith.addf %620, %621 : vector<2x256xf32>
    %cst_188 = arith.constant 5.000000e-01 : f32
    %623 = vector.broadcast %cst_188 : f32 to vector<2x256xf32>
    %624 = arith.mulf %623, %622 : vector<2x256xf32>
    %625 = arith.mulf %614, %593 : vector<2x256xf32>
    %626 = arith.mulf %606, %616 : vector<2x256xf32>
    %627 = arith.addf %625, %626 : vector<2x256xf32>
    %628 = math.tanh %627 : vector<2x256xf32>
    %629 = arith.mulf %624, %628 : vector<2x256xf32>
    %630 = vector.extract_strided_slice %7 {offsets = [34, 0], sizes = [2, 1024], strides = [1, 1]} : vector<36x1024xf32> to vector<2x1024xf32>
    %631 = vector.extract_strided_slice %630 {offsets = [0, 0], sizes = [2, 256], strides = [1, 1]} : vector<2x1024xf32> to vector<2x256xf32>
    %cst_189 = arith.constant 5.000000e-01 : f32
    %632 = vector.broadcast %cst_189 : f32 to vector<2x256xf32>
    %633 = arith.mulf %632, %631 : vector<2x256xf32>
    %634 = math.tanh %633 : vector<2x256xf32>
    %cst_190 = arith.constant 1.000000e+00 : f32
    %635 = vector.broadcast %cst_190 : f32 to vector<2x256xf32>
    %636 = arith.addf %634, %635 : vector<2x256xf32>
    %cst_191 = arith.constant 5.000000e-01 : f32
    %637 = vector.broadcast %cst_191 : f32 to vector<2x256xf32>
    %638 = arith.mulf %637, %636 : vector<2x256xf32>
    %639 = vector.extract_strided_slice %630 {offsets = [0, 512], sizes = [2, 256], strides = [1, 1]} : vector<2x1024xf32> to vector<2x256xf32>
    %640 = math.tanh %639 : vector<2x256xf32>
    %641 = vector.extract_strided_slice %630 {offsets = [0, 768], sizes = [2, 256], strides = [1, 1]} : vector<2x1024xf32> to vector<2x256xf32>
    %cst_192 = arith.constant 5.000000e-01 : f32
    %642 = vector.broadcast %cst_192 : f32 to vector<2x256xf32>
    %643 = arith.mulf %642, %641 : vector<2x256xf32>
    %644 = math.tanh %643 : vector<2x256xf32>
    %cst_193 = arith.constant 1.000000e+00 : f32
    %645 = vector.broadcast %cst_193 : f32 to vector<2x256xf32>
    %646 = arith.addf %644, %645 : vector<2x256xf32>
    %cst_194 = arith.constant 5.000000e-01 : f32
    %647 = vector.broadcast %cst_194 : f32 to vector<2x256xf32>
    %648 = arith.mulf %647, %646 : vector<2x256xf32>
    %649 = arith.mulf %638, %640 : vector<2x256xf32>
    %650 = math.tanh %649 : vector<2x256xf32>
    %651 = arith.mulf %648, %650 : vector<2x256xf32>
    %652 = arith.subf %269, %313 : vector<2x256xf32>
    %653 = math.absf %652 : vector<2x256xf32>
    %654 = arith.subf %291, %573 : vector<2x256xf32>
    %655 = math.absf %654 : vector<2x256xf32>
    %656 = arith.subf %629, %269 : vector<2x256xf32>
    %657 = math.absf %656 : vector<2x256xf32>
    %658 = arith.subf %651, %291 : vector<2x256xf32>
    %659 = math.absf %658 : vector<2x256xf32>
    %c0_195 = arith.constant 0 : index
    %c0_196 = arith.constant 0 : index
    %660 = vector.load %arg6[%c0_195, %c0_196] : memref<1024x512xf32, #tpu.memory_space<vmem>>, vector<1024x512xf32>
    %661 = vector.extract_strided_slice %660 {offsets = [0, 0], sizes = [256, 512], strides = [1, 1]} : vector<1024x512xf32> to vector<256x512xf32>
    %cst_197 = arith.constant dense<0.000000e+00> : vector<2x512xf32>
    %662 = tpu.matmul %653, %661, %cst_197 {dimension_numbers = #tpu.dot_dimension_numbers<[1], [0], [0], [1], [0, 0, 1, 1], [], []>} : vector<2x256xf32>, vector<256x512xf32>, vector<2x512xf32> -> vector<2x512xf32>
    %663 = vector.extract_strided_slice %660 {offsets = [256, 0], sizes = [256, 512], strides = [1, 1]} : vector<1024x512xf32> to vector<256x512xf32>
    %cst_198 = arith.constant dense<0.000000e+00> : vector<2x512xf32>
    %664 = tpu.matmul %655, %663, %cst_198 {dimension_numbers = #tpu.dot_dimension_numbers<[1], [0], [0], [1], [0, 0, 1, 1], [], []>} : vector<2x256xf32>, vector<256x512xf32>, vector<2x512xf32> -> vector<2x512xf32>
    %665 = arith.addf %662, %664 : vector<2x512xf32>
    %666 = vector.extract_strided_slice %660 {offsets = [512, 0], sizes = [256, 512], strides = [1, 1]} : vector<1024x512xf32> to vector<256x512xf32>
    %cst_199 = arith.constant dense<0.000000e+00> : vector<2x512xf32>
    %667 = tpu.matmul %657, %666, %cst_199 {dimension_numbers = #tpu.dot_dimension_numbers<[1], [0], [0], [1], [0, 0, 1, 1], [], []>} : vector<2x256xf32>, vector<256x512xf32>, vector<2x512xf32> -> vector<2x512xf32>
    %668 = arith.addf %665, %667 : vector<2x512xf32>
    %669 = vector.extract_strided_slice %660 {offsets = [768, 0], sizes = [256, 512], strides = [1, 1]} : vector<1024x512xf32> to vector<256x512xf32>
    %cst_200 = arith.constant dense<0.000000e+00> : vector<2x512xf32>
    %670 = tpu.matmul %659, %669, %cst_200 {dimension_numbers = #tpu.dot_dimension_numbers<[1], [0], [0], [1], [0, 0, 1, 1], [], []>} : vector<2x256xf32>, vector<256x512xf32>, vector<2x512xf32> -> vector<2x512xf32>
    %671 = arith.addf %668, %670 : vector<2x512xf32>
    %c0_201 = arith.constant 0 : index
    %c0_202 = arith.constant 0 : index
    %672 = vector.load %arg7[%c0_201, %c0_202] : memref<1x512xf32, #tpu.memory_space<vmem>>, vector<1x512xf32>
    %673 = vector.broadcast %672 : vector<1x512xf32> to vector<2x512xf32>
    %674 = arith.addf %671, %673 : vector<2x512xf32>
    %cst_203 = arith.constant 0.000000e+00 : f32
    %675 = vector.broadcast %cst_203 : f32 to vector<2x512xf32>
    %676 = arith.maximumf %674, %675 : vector<2x512xf32>
    %c0_204 = arith.constant 0 : index
    %c0_205 = arith.constant 0 : index
    %677 = vector.load %arg8[%c0_204, %c0_205] : memref<512x1xf32, #tpu.memory_space<vmem>>, vector<512x1xf32>
    %cst_206 = arith.constant dense<0.000000e+00> : vector<2x1xf32>
    %678 = tpu.matmul %676, %677, %cst_206 {dimension_numbers = #tpu.dot_dimension_numbers<[1], [0], [0], [1], [0, 0, 1, 1], [], []>} : vector<2x512xf32>, vector<512x1xf32>, vector<2x1xf32> -> vector<2x1xf32>
    %c0_207 = arith.constant 0 : index
    %c0_208 = arith.constant 0 : index
    %679 = vector.load %arg9[%c0_207, %c0_208] : memref<1x1xf32, #tpu.memory_space<vmem>>, vector<1x1xf32>
    %680 = vector.broadcast %679 : vector<1x1xf32> to vector<2x1xf32>
    %681 = arith.addf %678, %680 : vector<2x1xf32>
    %cst_209 = arith.constant 5.000000e-01 : f32
    %682 = vector.broadcast %cst_209 : f32 to vector<2x1xf32>
    %683 = arith.mulf %682, %681 : vector<2x1xf32>
    %684 = math.tanh %683 : vector<2x1xf32>
    %cst_210 = arith.constant 1.000000e+00 : f32
    %685 = vector.broadcast %cst_210 : f32 to vector<2x1xf32>
    %686 = arith.addf %684, %685 : vector<2x1xf32>
    %cst_211 = arith.constant 5.000000e-01 : f32
    %687 = vector.broadcast %cst_211 : f32 to vector<2x1xf32>
    %688 = arith.mulf %687, %686 : vector<2x1xf32>
    %c0_212 = arith.constant 0 : index
    %c0_213 = arith.constant 0 : index
    %689 = vector.load %arg10[%c0_212, %c0_213] : memref<2x1xf32, #tpu.memory_space<vmem>>, vector<2x1xf32>
    tpu.vector_store %arg10[%c0_212, %c0_213], %688 {strides = array<i32>} : memref<2x1xf32, #tpu.memory_space<vmem>>, vector<2x1xf32>,
    return
  }
  func.func @transform_0(%arg0: i32) -> (i32, i32) {
    %c0_i32 = arith.constant 0 : i32
    %c0_i32_0 = arith.constant 0 : i32
    %c0_i32_1 = arith.constant 0 : i32
    return %c0_i32, %c0_i32_0 : i32, i32
  }
  func.func @transform_1(%arg0: i32) -> (i32, i32) {
    %c0_i32 = arith.constant 0 : i32
    %c0_i32_0 = arith.constant 0 : i32
    %c0_i32_1 = arith.constant 0 : i32
    return %c0_i32, %c0_i32_0 : i32, i32
  }
  func.func @transform_2(%arg0: i32) -> (i32, i32) {
    %c0_i32 = arith.constant 0 : i32
    %c0_i32_0 = arith.constant 0 : i32
    %c0_i32_1 = arith.constant 0 : i32
    return %c0_i32, %c0_i32_0 : i32, i32
  }
  func.func @transform_3(%arg0: i32) -> (i32, i32) {
    %c0_i32 = arith.constant 0 : i32
    %c0_i32_0 = arith.constant 0 : i32
    %c0_i32_1 = arith.constant 0 : i32
    return %c0_i32, %c0_i32_0 : i32, i32
  }
  func.func @transform_4(%arg0: i32) -> (i32, i32) {
    %c0_i32 = arith.constant 0 : i32
    %c0_i32_0 = arith.constant 0 : i32
    %c0_i32_1 = arith.constant 0 : i32
    return %c0_i32, %c0_i32_0 : i32, i32
  }
  func.func @transform_5(%arg0: i32) -> (i32, i32) {
    %c0_i32 = arith.constant 0 : i32
    %c0_i32_0 = arith.constant 0 : i32
    %c0_i32_1 = arith.constant 0 : i32
    return %c0_i32, %c0_i32_0 : i32, i32
  }
  func.func @transform_6(%arg0: i32) -> (i32, i32) {
    %c0_i32 = arith.constant 0 : i32
    %c0_i32_0 = arith.constant 0 : i32
    %c0_i32_1 = arith.constant 0 : i32
    return %c0_i32, %c0_i32_0 : i32, i32
  }
  func.func @transform_7(%arg0: i32) -> (i32, i32) {
    %c0_i32 = arith.constant 0 : i32
    %c0_i32_0 = arith.constant 0 : i32
    %c0_i32_1 = arith.constant 0 : i32
    return %c0_i32, %c0_i32_0 : i32, i32
  }
  func.func @transform_8(%arg0: i32) -> (i32, i32) {
    %c0_i32 = arith.constant 0 : i32
    %c0_i32_0 = arith.constant 0 : i32
    %c0_i32_1 = arith.constant 0 : i32
    return %c0_i32, %c0_i32_0 : i32, i32
  }
  func.func @transform_9(%arg0: i32) -> (i32, i32) {
    %c0_i32 = arith.constant 0 : i32
    %c0_i32_0 = arith.constant 0 : i32
    %c0_i32_1 = arith.constant 0 : i32
    return %c0_i32, %c0_i32_0 : i32, i32
  }
}

</mosaic_0001>

<llo_original>
// kernel: tpu_custom_call.1
$region0: #{tpu_custom_call.1}
  #allocation0 [shape = 'u32[]', space=smem, size = 0x4, offset = 0x4, fixed_abs, tag = 'smem constant byte address 0x4 - core index']
  #allocation1 [shape = 'u32[72,128]{1,0:T(1,128)}', space=vmem, size = 0x9000, scoped, tag = 'internal scratch']
  #allocation2 [shape = 'f32[1,1]{1,0:T(1,128)S(1)}', space=vmem, size = 0x200, scoped, tag = 'scoped memory for tpu_custom_call.1']
  %s0 = inlined_call_operand.vmem [shape: f32[36,6], index: 0, kind: input, shape index: {}]
  %s1 = inlined_call_operand.hbm [shape: f32[6,2048], index: 1, kind: input, shape index: {}]
  %s2 = inlined_call_operand.hbm [shape: f32[256,1024], index: 2, kind: input, shape index: {}]
  %s3 = inlined_call_operand.hbm [shape: f32[256,1024], index: 3, kind: input, shape index: {}]
  %s4 = inlined_call_operand.hbm [shape: f32[1,2048], index: 4, kind: input, shape index: {}]
  %s5 = inlined_call_operand.hbm [shape: f32[1024,512], index: 5, kind: input, shape index: {}]
  %s6 = inlined_call_operand.hbm [shape: f32[1,512], index: 6, kind: input, shape index: {}]
  %s7 = inlined_call_operand.vmem [shape: f32[512,1], index: 7, kind: input, shape index: {}]
  %s8 = inlined_call_operand.<no memory space> [shape: f32[1,1], index: 8, kind: input, shape index: {}]
  %s9 = inlined_call_operand.vmem [shape: f32[2,1], index: 9, kind: output, shape index: {}]
  %s10 = sld [smem:[#allocation0]]
  $region70: #{tpu_custom_call.1} parent=0
    _
  %s12 = ssub.s32 1, %s10
  %s13 = scalar_select 0, %s12, %s10
  %v14 = vstv %s8
  %15 = vst [vmem:[#allocation2] sm:$0x1] %v14
  $region1: #{tpu_custom_call.1} parent=0
    #allocation3 [shape = 'u8[65536]{0}', space=vmem, size = 0x10000, scoped, tag = 'input window, operand 1, single buffered']
    #allocation4 [shape = 's32[1]{0}', space=sflag, size = 0x4, scoped, tag = 'scoped memory for tpu_custom_call.1']
    #allocation5 [shape = 'u8[1048576]{0}', space=vmem, size = 0x100000, scoped, tag = 'input window, operand 2, single buffered']
    #allocation6 [shape = 's32[1]{0}', space=sflag, size = 0x4, scoped, tag = 'scoped memory for tpu_custom_call.1']
    #allocation7 [shape = 'u8[1048576]{0}', space=vmem, size = 0x100000, scoped, tag = 'input window, operand 3, single buffered']
    #allocation8 [shape = 'u8[8192]{0}', space=vmem, size = 0x2000, scoped, tag = 'input window, operand 4, single buffered']
    #allocation9 [shape = 's32[1]{0}', space=sflag, size = 0x4, scoped, tag = 'scoped memory for tpu_custom_call.1']
    #allocation10 [shape = 'u8[2097152]{0}', space=vmem, size = 0x200000, scoped, tag = 'input window, operand 5, single buffered']
    #allocation11 [shape = 'u8[2048]{0}', space=vmem, size = 0x800, scoped, tag = 'input window, operand 6, single buffered']
    #allocation12 [shape = 's32[1]{0}', space=sflag, size = 0x4, scoped, tag = 'scoped memory for tpu_custom_call.1']
    %16 = vsyncpa [#allocation4], 0
    %17 = vsyncpa [#allocation6], 0
    %18 = vsyncpa [#allocation9], 0
    %19 = vsyncpa [#allocation12], 0
    // Predicated region
    $region2: #{tpu_custom_call.1} parent=1 // pred_check
      _
    $region3: #{tpu_custom_call.1} parent=1 // pred_check_branch
      %21 = sbr.rel (0) target = $region5
    $region4: #{tpu_custom_call.1} parent=1 // pred_region
      _
    $region5: #{tpu_custom_call.1} parent=1 // pred_fallthru
      _
    // Predicated region
    $region6: #{tpu_custom_call.1} parent=1 // pred_check
      _
    $region7: #{tpu_custom_call.1} parent=1 // pred_check_branch
      %23 = sbr.rel (0) target = $region9
    $region8: #{tpu_custom_call.1} parent=1 // pred_region
      %25 = vsyncadd [#allocation4], 0
      %s27 = sshll.u32 %s1, 4
      %s28 = int_to_ptr.hbm [resolvable:$true] %s27
      %s29 = sshll.u32 [#allocation3], 4
      %s30 = int_to_ptr.vmem [resolvable:$true] %s29
      %32 = dma.hbm_to_vmem [thread:$0]  %s28, 2048, %s30, [#allocation4]
    $region9: #{tpu_custom_call.1} parent=1 // pred_fallthru
      _
    // Predicated region
    $region10: #{tpu_custom_call.1} parent=1 // pred_check
      _
    $region11: #{tpu_custom_call.1} parent=1 // pred_check_branch
      %34 = sbr.rel (0) target = $region13
    $region12: #{tpu_custom_call.1} parent=1 // pred_region
      %36 = vsyncadd [#allocation6], 0
      %s37 = sshll.u32 %s2, 4
      %s38 = int_to_ptr.hbm [resolvable:$true] %s37
      %s39 = sshll.u32 [#allocation5], 4
      %s40 = int_to_ptr.vmem [resolvable:$true] %s39
      %45 = dma.hbm_to_vmem [thread:$0]  %s38, 32768, %s40, [#allocation6], 1024, 1024, 64
    $region13: #{tpu_custom_call.1} parent=1 // pred_fallthru
      _
    // Predicated region
    $region14: #{tpu_custom_call.1} parent=1 // pred_check
      _
    $region15: #{tpu_custom_call.1} parent=1 // pred_check_branch
      %47 = sbr.rel (0) target = $region17
    $region16: #{tpu_custom_call.1} parent=1 // pred_region
      %49 = vsyncadd [#allocation6], 0
      %s50 = sshll.u32 %s3, 4
      %s51 = int_to_ptr.hbm [resolvable:$true] %s50
      %s52 = sshll.u32 [#allocation7], 4
      %s53 = int_to_ptr.vmem [resolvable:$true] %s52
      %58 = dma.hbm_to_vmem [thread:$0]  %s51, 32768, %s53, [#allocation6], 1024, 1024, 64
    $region17: #{tpu_custom_call.1} parent=1 // pred_fallthru
      _
    // Predicated region
    $region18: #{tpu_custom_call.1} parent=1 // pred_check
      _
    $region19: #{tpu_custom_call.1} parent=1 // pred_check_branch
      %60 = sbr.rel (0) target = $region21
    $region20: #{tpu_custom_call.1} parent=1 // pred_region
      %62 = vsyncadd [#allocation9], 0
      %s64 = sshll.u32 %s4, 4
      %s65 = int_to_ptr.hbm [resolvable:$true] %s64
      %s66 = sshll.u32 [#allocation8], 4
      %s67 = int_to_ptr.vmem [resolvable:$true] %s66
      %69 = dma.hbm_to_vmem [thread:$0]  %s65, 256, %s67, [#allocation9]
    $region21: #{tpu_custom_call.1} parent=1 // pred_fallthru
      _
    // Predicated region
    $region22: #{tpu_custom_call.1} parent=1 // pred_check
      _
    $region23: #{tpu_custom_call.1} parent=1 // pred_check_branch
      %71 = sbr.rel (0) target = $region25
    $region24: #{tpu_custom_call.1} parent=1 // pred_region
      %73 = vsyncadd [#allocation9], 0
      %s74 = sshll.u32 %s5, 4
      %s75 = int_to_ptr.hbm [resolvable:$true] %s74
      %s76 = sshll.u32 [#allocation10], 4
      %s77 = int_to_ptr.vmem [resolvable:$true] %s76
      %82 = dma.hbm_to_vmem [thread:$0]  %s75, 65536, %s77, [#allocation9], 512, 512, 32
    $region25: #{tpu_custom_call.1} parent=1 // pred_fallthru
      _
    // Predicated region
    $region26: #{tpu_custom_call.1} parent=1 // pred_check
      _
    $region27: #{tpu_custom_call.1} parent=1 // pred_check_branch
      %84 = sbr.rel (0) target = $region29
    $region28: #{tpu_custom_call.1} parent=1 // pred_region
      %86 = vsyncadd [#allocation12], 0
      %s88 = sshll.u32 %s6, 4
      %s89 = int_to_ptr.hbm [resolvable:$true] %s88
      %s90 = sshll.u32 [#allocation11], 4
      %s91 = int_to_ptr.vmem [resolvable:$true] %s90
      %93 = dma.hbm_to_vmem [thread:$0]  %s89, 64, %s91, [#allocation12]
    $region29: #{tpu_custom_call.1} parent=1 // pred_fallthru
      _
    // Predicated region
    $region30: #{tpu_custom_call.1} parent=1 // pred_check
      _
    $region31: #{tpu_custom_call.1} parent=1 // pred_check_branch
      %95 = sbr.rel (0) target = $region33
    $region32: #{tpu_custom_call.1} parent=1 // pred_region
      _
    $region33: #{tpu_custom_call.1} parent=1 // pred_fallthru
      _
    // Predicated region
    $region34: #{tpu_custom_call.1} parent=1 // pred_check
      _
    $region35: #{tpu_custom_call.1} parent=1 // pred_check_branch
      %97 = sbr.rel (0) target = $region37
    $region36: #{tpu_custom_call.1} parent=1 // pred_region
      _
    $region37: #{tpu_custom_call.1} parent=1 // pred_fallthru
      _
    // Predicated region
    $region38: #{tpu_custom_call.1} parent=1 // pred_check
      _
    $region39: #{tpu_custom_call.1} parent=1 // pred_check_branch
      %99 = sbr.rel (0) target = $region41
    $region40: #{tpu_custom_call.1} parent=1 // pred_region
      %101 = dma.done [#allocation4], 2048
    $region41: #{tpu_custom_call.1} parent=1 // pred_fallthru
      _
    // Predicated region
    $region42: #{tpu_custom_call.1} parent=1 // pred_check
      _
    $region43: #{tpu_custom_call.1} parent=1 // pred_check_branch
      %103 = sbr.rel (0) target = $region45
    $region44: #{tpu_custom_call.1} parent=1 // pred_region
      %105 = dma.done [#allocation6], 32768
    $region45: #{tpu_custom_call.1} parent=1 // pred_fallthru
      _
    // Predicated region
    $region46: #{tpu_custom_call.1} parent=1 // pred_check
      _
    $region47: #{tpu_custom_call.1} parent=1 // pred_check_branch
      %107 = sbr.rel (0) target = $region49
    $region48: #{tpu_custom_call.1} parent=1 // pred_region
      %109 = dma.done [#allocation6], 32768
    $region49: #{tpu_custom_call.1} parent=1 // pred_fallthru
      _
    // Predicated region
    $region50: #{tpu_custom_call.1} parent=1 // pred_check
      _
    $region51: #{tpu_custom_call.1} parent=1 // pred_check_branch
      %111 = sbr.rel (0) target = $region53
    $region52: #{tpu_custom_call.1} parent=1 // pred_region
      %113 = dma.done [#allocation9], 256
    $region53: #{tpu_custom_call.1} parent=1 // pred_fallthru
      _
    // Predicated region
    $region54: #{tpu_custom_call.1} parent=1 // pred_check
      _
    $region55: #{tpu_custom_call.1} parent=1 // pred_check_branch
      %115 = sbr.rel (0) target = $region57
    $region56: #{tpu_custom_call.1} parent=1 // pred_region
      %117 = dma.done [#allocation9], 65536
    $region57: #{tpu_custom_call.1} parent=1 // pred_fallthru
      _
    // Predicated region
    $region58: #{tpu_custom_call.1} parent=1 // pred_check
      _
    $region59: #{tpu_custom_call.1} parent=1 // pred_check_branch
      %119 = sbr.rel (0) target = $region61
    $region60: #{tpu_custom_call.1} parent=1 // pred_region
      %121 = dma.done [#allocation12], 64
    $region61: #{tpu_custom_call.1} parent=1 // pred_fallthru
      _
    %v122 = vld [vmem:[%s0] sm:$0xff]
    %v123 = vld [vmem:[%s0 + $0x8] sm:$0xff]
    %v124 = vld [vmem:[%s0 + $0x10] sm:$0xff]
    %v125 = vld [vmem:[%s0 + $0x18] sm:$0xff]
    %v126 = vld [vmem:[%s0 + $0x20] sm:$0xf]
    %v127 = vld [vmem:[#allocation3] sm:$0x3f]
    %v128 = vld [vmem:[#allocation3 + $0x8] sm:$0x3f]
    %v129 = vld [vmem:[#allocation3 + $0x10] sm:$0x3f]
    %v130 = vld [vmem:[#allocation3 + $0x18] sm:$0x3f]
    %v131 = vld [vmem:[#allocation3 + $0x20] sm:$0x3f]
    %v132 = vld [vmem:[#allocation3 + $0x28] sm:$0x3f]
    %v133 = vld [vmem:[#allocation3 + $0x30] sm:$0x3f]
    %v134 = vld [vmem:[#allocation3 + $0x38] sm:$0x3f]
    %v135 = vld [vmem:[#allocation3 + $0x40] sm:$0x3f]
    %v136 = vld [vmem:[#allocation3 + $0x48] sm:$0x3f]
    %v137 = vld [vmem:[#allocation3 + $0x50] sm:$0x3f]
    %v138 = vld [vmem:[#allocation3 + $0x58] sm:$0x3f]
    %v139 = vld [vmem:[#allocation3 + $0x60] sm:$0x3f]
    %v140 = vld [vmem:[#allocation3 + $0x68] sm:$0x3f]
    %v141 = vld [vmem:[#allocation3 + $0x70] sm:$0x3f]
    %v142 = vld [vmem:[#allocation3 + $0x78] sm:$0x3f]
    %v143 = vld [vmem:[#allocation8] sm:$0xff]
    %v144 = vld [vmem:[#allocation8 + $0x8] sm:$0xff]
    %v147 = vperm.slane %v143, 0
    %v148 = vperm.slane %v143, 1
    %v149 = vperm.slane %v143, 2
    %v150 = vperm.slane %v143, 3
    %v151 = vperm.slane %v143, 4
    %v152 = vperm.slane %v143, 5
    %v153 = vperm.slane %v143, 6
    %v154 = vperm.slane %v143, 7
    %v155 = vperm.slane %v144, 0
    %v156 = vperm.slane %v144, 1
    %v157 = vperm.slane %v144, 2
    %v158 = vperm.slane %v144, 3
    %v159 = vperm.slane %v144, 4
    %v160 = vperm.slane %v144, 5
    %v161 = vperm.slane %v144, 6
    %v162 = vperm.slane %v144, 7
    %vm179 = vcmask 48128
    %v181 = vsel %vm179, %v122, 0
    %v184 = vsel %vm179, %v123, 0
    %v187 = vsel %vm179, %v124, 0
    %v190 = vsel %vm179, %v125, 0
    %v193 = vsel %vm179, %v126, 0
    %vm195 = vcmask 1045504
    %v197 = vsel %vm195, %v127, 0
    %v200 = vsel %vm195, %v128, 0
    %v203 = vsel %vm195, %v129, 0
    %v206 = vsel %vm195, %v130, 0
    %v209 = vsel %vm195, %v131, 0
    %v212 = vsel %vm195, %v132, 0
    %v215 = vsel %vm195, %v133, 0
    %v218 = vsel %vm195, %v134, 0
    %v221 = vsel %vm195, %v135, 0
    %v224 = vsel %vm195, %v136, 0
    %v227 = vsel %vm195, %v137, 0
    %v230 = vsel %vm195, %v138, 0
    %v233 = vsel %vm195, %v139, 0
    %v236 = vsel %vm195, %v140, 0
    %v239 = vsel %vm195, %v141, 0
    %v242 = vsel %vm195, %v142, 0
    %244 = vmatpush.msra.mxu0 0.0
    %245 = vmatpush.msra.mxu0 0.0
    %246 = vmatpush.msra.mxu0 0.0
    %247 = vmatpush.msra.mxu0 0.0
    %248 = vmatpush.msra.mxu0 0.0
    %249 = vmatpush.msra.mxu0 0.0
    %250 = vmatpush.msra.mxu0 0.0
    %251 = vmatpush.msra.mxu0 0.0
    %252 = vmatpush.msra.mxu0 0.0
    %253 = vmatpush.msra.mxu0 0.0
    %254 = vmatpush.msra.mxu0 0.0
    %255 = vmatpush.msra.mxu0 0.0
    %256 = vmatpush.msra.mxu0 0.0
    %257 = vmatpush.msra.mxu0 0.0
    %258 = vmatpush.msra.mxu0 0.0
    %259 = vmatpush.msra.mxu0 %v197
    %260 = vmatmul.f32.gmra.mxu0 %v181
    %v261 = vpop.f32.mrf.mxu0
    %v262 = vadd.f32 %v147, %v261
    %263 = vmatmul.f32.gmra.mxu0 %v184
    %v264 = vpop.f32.mrf.mxu0
    %v265 = vadd.f32 %v147, %v264
    %266 = vmatmul.f32.gmra.mxu0 %v187
    %v267 = vpop.f32.mrf.mxu0
    %v268 = vadd.f32 %v147, %v267
    %269 = vmatmul.f32.gmra.mxu0 %v190
    %v270 = vpop.f32.mrf.mxu0
    %271 = vmatmul.f32.gmra.mxu0 %v193
    %v272 = vpop.f32.mrf.mxu0
    %v273 = vadd.f32 %v147, %v272
    %274 = vdwg.mxu0
    %275 = vmatpush.msra.mxu0 0.0
    %276 = vmatpush.msra.mxu0 0.0
    %277 = vmatpush.msra.mxu0 0.0
    %278 = vmatpush.msra.mxu0 0.0
    %279 = vmatpush.msra.mxu0 0.0
    %280 = vmatpush.msra.mxu0 0.0
    %281 = vmatpush.msra.mxu0 0.0
    %282 = vmatpush.msra.mxu0 0.0
    %283 = vmatpush.msra.mxu0 0.0
    %284 = vmatpush.msra.mxu0 0.0
    %285 = vmatpush.msra.mxu0 0.0
    %286 = vmatpush.msra.mxu0 0.0
    %287 = vmatpush.msra.mxu0 0.0
    %288 = vmatpush.msra.mxu0 0.0
    %289 = vmatpush.msra.mxu0 0.0
    %290 = vmatpush.msra.mxu0 %v200
    %291 = vmatmul.f32.gmra.mxu0 %v181
    %v292 = vpop.f32.mrf.mxu0
    %v293 = vadd.f32 %v148, %v292
    %294 = vmatmul.f32.gmra.mxu0 %v184
    %v295 = vpop.f32.mrf.mxu0
    %v296 = vadd.f32 %v148, %v295
    %297 = vmatmul.f32.gmra.mxu0 %v187
    %v298 = vpop.f32.mrf.mxu0
    %v299 = vadd.f32 %v148, %v298
    %300 = vmatmul.f32.gmra.mxu0 %v190
    %v301 = vpop.f32.mrf.mxu0
    %302 = vmatmul.f32.gmra.mxu0 %v193
    %v303 = vpop.f32.mrf.mxu0
    %v304 = vadd.f32 %v148, %v303
    %305 = vdwg.mxu0
    %306 = vmatpush.msra.mxu0 0.0
    %307 = vmatpush.msra.mxu0 0.0
    %308 = vmatpush.msra.mxu0 0.0
    %309 = vmatpush.msra.mxu0 0.0
    %310 = vmatpush.msra.mxu0 0.0
    %311 = vmatpush.msra.mxu0 0.0
    %312 = vmatpush.msra.mxu0 0.0
    %313 = vmatpush.msra.mxu0 0.0
    %314 = vmatpush.msra.mxu0 0.0
    %315 = vmatpush.msra.mxu0 0.0
    %316 = vmatpush.msra.mxu0 0.0
    %317 = vmatpush.msra.mxu0 0.0
    %318 = vmatpush.msra.mxu0 0.0
    %319 = vmatpush.msra.mxu0 0.0
    %320 = vmatpush.msra.mxu0 0.0
    %321 = vmatpush.msra.mxu0 %v203
    %322 = vmatmul.f32.gmra.mxu0 %v181
    %v323 = vpop.f32.mrf.mxu0
    %v324 = vadd.f32 %v149, %v323
    %325 = vmatmul.f32.gmra.mxu0 %v184
    %v326 = vpop.f32.mrf.mxu0
    %v327 = vadd.f32 %v149, %v326
    %328 = vmatmul.f32.gmra.mxu0 %v187
    %v329 = vpop.f32.mrf.mxu0
    %330 = vmatmul.f32.gmra.mxu0 %v190
    %v331 = vpop.f32.mrf.mxu0
    %332 = vmatmul.f32.gmra.mxu0 %v193
    %v333 = vpop.f32.mrf.mxu0
    %v334 = vadd.f32 %v149, %v333
    %335 = vdwg.mxu0
    %336 = vmatpush.msra.mxu0 0.0
    %337 = vmatpush.msra.mxu0 0.0
    %338 = vmatpush.msra.mxu0 0.0
    %339 = vmatpush.msra.mxu0 0.0
    %340 = vmatpush.msra.mxu0 0.0
    %341 = vmatpush.msra.mxu0 0.0
    %342 = vmatpush.msra.mxu0 0.0
    %343 = vmatpush.msra.mxu0 0.0
    %344 = vmatpush.msra.mxu0 0.0
    %345 = vmatpush.msra.mxu0 0.0
    %346 = vmatpush.msra.mxu0 0.0
    %347 = vmatpush.msra.mxu0 0.0
    %348 = vmatpush.msra.mxu0 0.0
    %349 = vmatpush.msra.mxu0 0.0
    %350 = vmatpush.msra.mxu0 0.0
    %351 = vmatpush.msra.mxu0 %v206
    %352 = vmatmul.f32.gmra.mxu0 %v181
    %v353 = vpop.f32.mrf.mxu0
    %v354 = vadd.f32 %v150, %v353
    %355 = vmatmul.f32.gmra.mxu0 %v184
    %v356 = vpop.f32.mrf.mxu0
    %v357 = vadd.f32 %v150, %v356
    %358 = vmatmul.f32.gmra.mxu0 %v187
    %v359 = vpop.f32.mrf.mxu0
    %360 = vmatmul.f32.gmra.mxu0 %v190
    %v361 = vpop.f32.mrf.mxu0
    %362 = vmatmul.f32.gmra.mxu0 %v193
    %v363 = vpop.f32.mrf.mxu0
    %v364 = vadd.f32 %v150, %v363
    %365 = vdwg.mxu0
    %366 = vmatpush.msra.mxu0 0.0
    %367 = vmatpush.msra.mxu0 0.0
    %368 = vmatpush.msra.mxu0 0.0
    %369 = vmatpush.msra.mxu0 0.0
    %370 = vmatpush.msra.mxu0 0.0
    %371 = vmatpush.msra.mxu0 0.0
    %372 = vmatpush.msra.mxu0 0.0
    %373 = vmatpush.msra.mxu0 0.0
    %374 = vmatpush.msra.mxu0 0.0
    %375 = vmatpush.msra.mxu0 0.0
    %376 = vmatpush.msra.mxu0 0.0
    %377 = vmatpush.msra.mxu0 0.0
    %378 = vmatpush.msra.mxu0 0.0
    %379 = vmatpush.msra.mxu0 0.0
    %380 = vmatpush.msra.mxu0 0.0
    %381 = vmatpush.msra.mxu0 %v209
    %382 = vmatmul.f32.gmra.mxu0 %v181
    %v383 = vpop.f32.mrf.mxu0
    %v384 = vadd.f32 %v151, %v383
    %385 = vmatmul.f32.gmra.mxu0 %v184
    %v386 = vpop.f32.mrf.mxu0
    %v387 = vadd.f32 %v151, %v386
    %388 = vmatmul.f32.gmra.mxu0 %v187
    %v389 = vpop.f32.mrf.mxu0
    %v390 = vadd.f32 %v151, %v389
    %391 = vmatmul.f32.gmra.mxu0 %v190
    %v392 = vpop.f32.mrf.mxu0
    %393 = vmatmul.f32.gmra.mxu0 %v193
    %v394 = vpop.f32.mrf.mxu0
    %v395 = vadd.f32 %v151, %v394
    %396 = vdwg.mxu0
    %397 = vmatpush.msra.mxu0 0.0
    %398 = vmatpush.msra.mxu0 0.0
    %399 = vmatpush.msra.mxu0 0.0
    %400 = vmatpush.msra.mxu0 0.0
    %401 = vmatpush.msra.mxu0 0.0
    %402 = vmatpush.msra.mxu0 0.0
    %403 = vmatpush.msra.mxu0 0.0
    %404 = vmatpush.msra.mxu0 0.0
    %405 = vmatpush.msra.mxu0 0.0
    %406 = vmatpush.msra.mxu0 0.0
    %407 = vmatpush.msra.mxu0 0.0
    %408 = vmatpush.msra.mxu0 0.0
    %409 = vmatpush.msra.mxu0 0.0
    %410 = vmatpush.msra.mxu0 0.0
    %411 = vmatpush.msra.mxu0 0.0
    %412 = vmatpush.msra.mxu0 %v212
    %413 = vmatmul.f32.gmra.mxu0 %v181
    %v414 = vpop.f32.mrf.mxu0
    %v415 = vadd.f32 %v152, %v414
    %416 = vmatmul.f32.gmra.mxu0 %v184
    %v417 = vpop.f32.mrf.mxu0
    %v418 = vadd.f32 %v152, %v417
    %419 = vmatmul.f32.gmra.mxu0 %v187
    %v420 = vpop.f32.mrf.mxu0
    %v421 = vadd.f32 %v152, %v420
    %422 = vmatmul.f32.gmra.mxu0 %v190
    %v423 = vpop.f32.mrf.mxu0
    %424 = vmatmul.f32.gmra.mxu0 %v193
    %v425 = vpop.f32.mrf.mxu0
    %v426 = vadd.f32 %v152, %v425
    %427 = vdwg.mxu0
    %428 = vmatpush.msra.mxu0 0.0
    %429 = vmatpush.msra.mxu0 0.0
    %430 = vmatpush.msra.mxu0 0.0
    %431 = vmatpush.msra.mxu0 0.0
    %432 = vmatpush.msra.mxu0 0.0
    %433 = vmatpush.msra.mxu0 0.0
    %434 = vmatpush.msra.mxu0 0.0
    %435 = vmatpush.msra.mxu0 0.0
    %436 = vmatpush.msra.mxu0 0.0
    %437 = vmatpush.msra.mxu0 0.0
    %438 = vmatpush.msra.mxu0 0.0
    %439 = vmatpush.msra.mxu0 0.0
    %440 = vmatpush.msra.mxu0 0.0
    %441 = vmatpush.msra.mxu0 0.0
    %442 = vmatpush.msra.mxu0 0.0
    %443 = vmatpush.msra.mxu0 %v215
    %444 = vmatmul.f32.gmra.mxu0 %v181
    %v445 = vpop.f32.mrf.mxu0
    %v446 = vadd.f32 %v153, %v445
    %447 = vmatmul.f32.gmra.mxu0 %v184
    %v448 = vpop.f32.mrf.mxu0
    %v449 = vadd.f32 %v153, %v448
    %450 = vmatmul.f32.gmra.mxu0 %v187
    %v451 = vpop.f32.mrf.mxu0
    %v452 = vadd.f32 %v153, %v451
    %453 = vmatmul.f32.gmra.mxu0 %v190
    %v454 = vpop.f32.mrf.mxu0
    %455 = vmatmul.f32.gmra.mxu0 %v193
    %v456 = vpop.f32.mrf.mxu0
    %v457 = vadd.f32 %v153, %v456
    %458 = vdwg.mxu0
    %459 = vmatpush.msra.mxu0 0.0
    %460 = vmatpush.msra.mxu0 0.0
    %461 = vmatpush.msra.mxu0 0.0
    %462 = vmatpush.msra.mxu0 0.0
    %463 = vmatpush.msra.mxu0 0.0
    %464 = vmatpush.msra.mxu0 0.0
    %465 = vmatpush.msra.mxu0 0.0
    %466 = vmatpush.msra.mxu0 0.0
    %467 = vmatpush.msra.mxu0 0.0
    %468 = vmatpush.msra.mxu0 0.0
    %469 = vmatpush.msra.mxu0 0.0
    %470 = vmatpush.msra.mxu0 0.0
    %471 = vmatpush.msra.mxu0 0.0
    %472 = vmatpush.msra.mxu0 0.0
    %473 = vmatpush.msra.mxu0 0.0
    %474 = vmatpush.msra.mxu0 %v218
    %475 = vmatmul.f32.gmra.mxu0 %v181
    %v476 = vpop.f32.mrf.mxu0
    %v477 = vadd.f32 %v154, %v476
    %478 = vmatmul.f32.gmra.mxu0 %v184
    %v479 = vpop.f32.mrf.mxu0
    %v480 = vadd.f32 %v154, %v479
    %481 = vmatmul.f32.gmra.mxu0 %v187
    %v482 = vpop.f32.mrf.mxu0
    %v483 = vadd.f32 %v154, %v482
    %484 = vmatmul.f32.gmra.mxu0 %v190
    %v485 = vpop.f32.mrf.mxu0
    %486 = vmatmul.f32.gmra.mxu0 %v193
    %v487 = vpop.f32.mrf.mxu0
    %v488 = vadd.f32 %v154, %v487
    %489 = vdwg.mxu0
    %490 = vmatpush.msra.mxu0 0.0
    %491 = vmatpush.msra.mxu0 0.0
    %492 = vmatpush.msra.mxu0 0.0
    %493 = vmatpush.msra.mxu0 0.0
    %494 = vmatpush.msra.mxu0 0.0
    %495 = vmatpush.msra.mxu0 0.0
    %496 = vmatpush.msra.mxu0 0.0
    %497 = vmatpush.msra.mxu0 0.0
    %498 = vmatpush.msra.mxu0 0.0
    %499 = vmatpush.msra.mxu0 0.0
    %500 = vmatpush.msra.mxu0 0.0
    %501 = vmatpush.msra.mxu0 0.0
    %502 = vmatpush.msra.mxu0 0.0
    %503 = vmatpush.msra.mxu0 0.0
    %504 = vmatpush.msra.mxu0 0.0
    %505 = vmatpush.msra.mxu0 %v221
    %506 = vmatmul.f32.gmra.mxu0 %v181
    %v507 = vpop.f32.mrf.mxu0
    %508 = vmatmul.f32.gmra.mxu0 %v184
    %v509 = vpop.f32.mrf.mxu0
    %v510 = vadd.f32 %v155, %v509
    %511 = vmatmul.f32.gmra.mxu0 %v187
    %v512 = vpop.f32.mrf.mxu0
    %v513 = vadd.f32 %v155, %v512
    %514 = vmatmul.f32.gmra.mxu0 %v190
    %v515 = vpop.f32.mrf.mxu0
    %v516 = vadd.f32 %v155, %v515
    %517 = vmatmul.f32.gmra.mxu0 %v193
    %v518 = vpop.f32.mrf.mxu0
    %v519 = vadd.f32 %v155, %v518
    %520 = vdwg.mxu0
    %521 = vmatpush.msra.mxu0 0.0
    %522 = vmatpush.msra.mxu0 0.0
    %523 = vmatpush.msra.mxu0 0.0
    %524 = vmatpush.msra.mxu0 0.0
    %525 = vmatpush.msra.mxu0 0.0
    %526 = vmatpush.msra.mxu0 0.0
    %527 = vmatpush.msra.mxu0 0.0
    %528 = vmatpush.msra.mxu0 0.0
    %529 = vmatpush.msra.mxu0 0.0
    %530 = vmatpush.msra.mxu0 0.0
    %531 = vmatpush.msra.mxu0 0.0
    %532 = vmatpush.msra.mxu0 0.0
    %533 = vmatpush.msra.mxu0 0.0
    %534 = vmatpush.msra.mxu0 0.0
    %535 = vmatpush.msra.mxu0 0.0
    %536 = vmatpush.msra.mxu0 %v224
    %537 = vmatmul.f32.gmra.mxu0 %v181
    %v538 = vpop.f32.mrf.mxu0
    %539 = vmatmul.f32.gmra.mxu0 %v184
    %v540 = vpop.f32.mrf.mxu0
    %v541 = vadd.f32 %v156, %v540
    %542 = vmatmul.f32.gmra.mxu0 %v187
    %v543 = vpop.f32.mrf.mxu0
    %v544 = vadd.f32 %v156, %v543
    %545 = vmatmul.f32.gmra.mxu0 %v190
    %v546 = vpop.f32.mrf.mxu0
    %v547 = vadd.f32 %v156, %v546
    %548 = vmatmul.f32.gmra.mxu0 %v193
    %v549 = vpop.f32.mrf.mxu0
    %v550 = vadd.f32 %v156, %v549
    %551 = vdwg.mxu0
    %552 = vmatpush.msra.mxu0 0.0
    %553 = vmatpush.msra.mxu0 0.0
    %554 = vmatpush.msra.mxu0 0.0
    %555 = vmatpush.msra.mxu0 0.0
    %556 = vmatpush.msra.mxu0 0.0
    %557 = vmatpush.msra.mxu0 0.0
    %558 = vmatpush.msra.mxu0 0.0
    %559 = vmatpush.msra.mxu0 0.0
    %560 = vmatpush.msra.mxu0 0.0
    %561 = vmatpush.msra.mxu0 0.0
    %562 = vmatpush.msra.mxu0 0.0
    %563 = vmatpush.msra.mxu0 0.0
    %564 = vmatpush.msra.mxu0 0.0
    %565 = vmatpush.msra.mxu0 0.0
    %566 = vmatpush.msra.mxu0 0.0
    %567 = vmatpush.msra.mxu0 %v227
    %568 = vmatmul.f32.gmra.mxu0 %v181
    %v569 = vpop.f32.mrf.mxu0
    %570 = vmatmul.f32.gmra.mxu0 %v184
    %v571 = vpop.f32.mrf.mxu0
    %572 = vmatmul.f32.gmra.mxu0 %v187
    %v573 = vpop.f32.mrf.mxu0
    %v574 = vadd.f32 %v157, %v573
    %575 = vmatmul.f32.gmra.mxu0 %v190
    %v576 = vpop.f32.mrf.mxu0
    %v577 = vadd.f32 %v157, %v576
    %578 = vmatmul.f32.gmra.mxu0 %v193
    %v579 = vpop.f32.mrf.mxu0
    %580 = vdwg.mxu0
    %581 = vmatpush.msra.mxu0 0.0
    %582 = vmatpush.msra.mxu0 0.0
    %583 = vmatpush.msra.mxu0 0.0
    %584 = vmatpush.msra.mxu0 0.0
    %585 = vmatpush.msra.mxu0 0.0
    %586 = vmatpush.msra.mxu0 0.0
    %587 = vmatpush.msra.mxu0 0.0
    %588 = vmatpush.msra.mxu0 0.0
    %589 = vmatpush.msra.mxu0 0.0
    %590 = vmatpush.msra.mxu0 0.0
    %591 = vmatpush.msra.mxu0 0.0
    %592 = vmatpush.msra.mxu0 0.0
    %593 = vmatpush.msra.mxu0 0.0
    %594 = vmatpush.msra.mxu0 0.0
    %595 = vmatpush.msra.mxu0 0.0
    %596 = vmatpush.msra.mxu0 %v230
    %597 = vmatmul.f32.gmra.mxu0 %v181
    %v598 = vpop.f32.mrf.mxu0
    %599 = vmatmul.f32.gmra.mxu0 %v184
    %v600 = vpop.f32.mrf.mxu0
    %601 = vmatmul.f32.gmra.mxu0 %v187
    %v602 = vpop.f32.mrf.mxu0
    %v603 = vadd.f32 %v158, %v602
    %604 = vmatmul.f32.gmra.mxu0 %v190
    %v605 = vpop.f32.mrf.mxu0
    %v606 = vadd.f32 %v158, %v605
    %607 = vmatmul.f32.gmra.mxu0 %v193
    %v608 = vpop.f32.mrf.mxu0
    %609 = vdwg.mxu0
    %610 = vmatpush.msra.mxu0 0.0
    %611 = vmatpush.msra.mxu0 0.0
    %612 = vmatpush.msra.mxu0 0.0
    %613 = vmatpush.msra.mxu0 0.0
    %614 = vmatpush.msra.mxu0 0.0
    %615 = vmatpush.msra.mxu0 0.0
    %616 = vmatpush.msra.mxu0 0.0
    %617 = vmatpush.msra.mxu0 0.0
    %618 = vmatpush.msra.mxu0 0.0
    %619 = vmatpush.msra.mxu0 0.0
    %620 = vmatpush.msra.mxu0 0.0
    %621 = vmatpush.msra.mxu0 0.0
    %622 = vmatpush.msra.mxu0 0.0
    %623 = vmatpush.msra.mxu0 0.0
    %624 = vmatpush.msra.mxu0 0.0
    %625 = vmatpush.msra.mxu0 %v233
    %626 = vmatmul.f32.gmra.mxu0 %v181
    %v627 = vpop.f32.mrf.mxu0
    %628 = vmatmul.f32.gmra.mxu0 %v184
    %v629 = vpop.f32.mrf.mxu0
    %v630 = vadd.f32 %v159, %v629
    %631 = vmatmul.f32.gmra.mxu0 %v187
    %v632 = vpop.f32.mrf.mxu0
    %v633 = vadd.f32 %v159, %v632
    %634 = vmatmul.f32.gmra.mxu0 %v190
    %v635 = vpop.f32.mrf.mxu0
    %v636 = vadd.f32 %v159, %v635
    %637 = vmatmul.f32.gmra.mxu0 %v193
    %v638 = vpop.f32.mrf.mxu0
    %v639 = vadd.f32 %v159, %v638
    %640 = vdwg.mxu0
    %641 = vmatpush.msra.mxu0 0.0
    %642 = vmatpush.msra.mxu0 0.0
    %643 = vmatpush.msra.mxu0 0.0
    %644 = vmatpush.msra.mxu0 0.0
    %645 = vmatpush.msra.mxu0 0.0
    %646 = vmatpush.msra.mxu0 0.0
    %647 = vmatpush.msra.mxu0 0.0
    %648 = vmatpush.msra.mxu0 0.0
    %649 = vmatpush.msra.mxu0 0.0
    %650 = vmatpush.msra.mxu0 0.0
    %651 = vmatpush.msra.mxu0 0.0
    %652 = vmatpush.msra.mxu0 0.0
    %653 = vmatpush.msra.mxu0 0.0
    %654 = vmatpush.msra.mxu0 0.0
    %655 = vmatpush.msra.mxu0 0.0
    %656 = vmatpush.msra.mxu0 %v236
    %657 = vmatmul.f32.gmra.mxu0 %v181
    %v658 = vpop.f32.mrf.mxu0
    %659 = vmatmul.f32.gmra.mxu0 %v184
    %v660 = vpop.f32.mrf.mxu0
    %v661 = vadd.f32 %v160, %v660
    %662 = vmatmul.f32.gmra.mxu0 %v187
    %v663 = vpop.f32.mrf.mxu0
    %v664 = vadd.f32 %v160, %v663
    %665 = vmatmul.f32.gmra.mxu0 %v190
    %v666 = vpop.f32.mrf.mxu0
    %v667 = vadd.f32 %v160, %v666
    %668 = vmatmul.f32.gmra.mxu0 %v193
    %v669 = vpop.f32.mrf.mxu0
    %v670 = vadd.f32 %v160, %v669
    %671 = vdwg.mxu0
    %672 = vmatpush.msra.mxu0 0.0
    %673 = vmatpush.msra.mxu0 0.0
    %674 = vmatpush.msra.mxu0 0.0
    %675 = vmatpush.msra.mxu0 0.0
    %676 = vmatpush.msra.mxu0 0.0
    %677 = vmatpush.msra.mxu0 0.0
    %678 = vmatpush.msra.mxu0 0.0
    %679 = vmatpush.msra.mxu0 0.0
    %680 = vmatpush.msra.mxu0 0.0
    %681 = vmatpush.msra.mxu0 0.0
    %682 = vmatpush.msra.mxu0 0.0
    %683 = vmatpush.msra.mxu0 0.0
    %684 = vmatpush.msra.mxu0 0.0
    %685 = vmatpush.msra.mxu0 0.0
    %686 = vmatpush.msra.mxu0 0.0
    %687 = vmatpush.msra.mxu0 %v239
    %688 = vmatmul.f32.gmra.mxu0 %v181
    %v689 = vpop.f32.mrf.mxu0
    %690 = vmatmul.f32.gmra.mxu0 %v184
    %v691 = vpop.f32.mrf.mxu0
    %v692 = vadd.f32 %v161, %v691
    %693 = vmatmul.f32.gmra.mxu0 %v187
    %v694 = vpop.f32.mrf.mxu0
    %v695 = vadd.f32 %v161, %v694
    %696 = vmatmul.f32.gmra.mxu0 %v190
    %v697 = vpop.f32.mrf.mxu0
    %v698 = vadd.f32 %v161, %v697
    %699 = vmatmul.f32.gmra.mxu0 %v193
    %v700 = vpop.f32.mrf.mxu0
    %v701 = vadd.f32 %v161, %v700
    %702 = vdwg.mxu0
    %703 = vmatpush.msra.mxu0 0.0
    %704 = vmatpush.msra.mxu0 0.0
    %705 = vmatpush.msra.mxu0 0.0
    %706 = vmatpush.msra.mxu0 0.0
    %707 = vmatpush.msra.mxu0 0.0
    %708 = vmatpush.msra.mxu0 0.0
    %709 = vmatpush.msra.mxu0 0.0
    %710 = vmatpush.msra.mxu0 0.0
    %711 = vmatpush.msra.mxu0 0.0
    %712 = vmatpush.msra.mxu0 0.0
    %713 = vmatpush.msra.mxu0 0.0
    %714 = vmatpush.msra.mxu0 0.0
    %715 = vmatpush.msra.mxu0 0.0
    %716 = vmatpush.msra.mxu0 0.0
    %717 = vmatpush.msra.mxu0 0.0
    %718 = vmatpush.msra.mxu0 %v242
    %719 = vmatmul.f32.gmra.mxu0 %v181
    %v720 = vpop.f32.mrf.mxu0
    %721 = vmatmul.f32.gmra.mxu0 %v184
    %v722 = vpop.f32.mrf.mxu0
    %v723 = vadd.f32 %v162, %v722
    %724 = vmatmul.f32.gmra.mxu0 %v187
    %v725 = vpop.f32.mrf.mxu0
    %v726 = vadd.f32 %v162, %v725
    %727 = vmatmul.f32.gmra.mxu0 %v190
    %v728 = vpop.f32.mrf.mxu0
    %v729 = vadd.f32 %v162, %v728
    %730 = vmatmul.f32.gmra.mxu0 %v193
    %v731 = vpop.f32.mrf.mxu0
    %v732 = vadd.f32 %v162, %v731
    %733 = vdwg.mxu0
    %v734 = vld [vmem:[#allocation5] sm:$0xff]
    %v735 = vld [vmem:[#allocation5 + $0x8] sm:$0xff]
    %v736 = vld [vmem:[#allocation5 + $0x10] sm:$0xff]
    %v737 = vld [vmem:[#allocation5 + $0x18] sm:$0xff]
    %v738 = vld [vmem:[#allocation5 + $0x20] sm:$0xff]
    %v739 = vld [vmem:[#allocation5 + $0x28] sm:$0xff]
    %v740 = vld [vmem:[#allocation5 + $0x30] sm:$0xff]
    %v741 = vld [vmem:[#allocation5 + $0x38] sm:$0xff]
    %v742 = vld [vmem:[#allocation5 + $0x40] sm:$0xff]
    %v743 = vld [vmem:[#allocation5 + $0x48] sm:$0xff]
    %v744 = vld [vmem:[#allocation5 + $0x50] sm:$0xff]
    %v745 = vld [vmem:[#allocation5 + $0x58] sm:$0xff]
    %v746 = vld [vmem:[#allocation5 + $0x60] sm:$0xff]
    %v747 = vld [vmem:[#allocation5 + $0x68] sm:$0xff]
    %v748 = vld [vmem:[#allocation5 + $0x70] sm:$0xff]
    %v749 = vld [vmem:[#allocation5 + $0x78] sm:$0xff]
    %v750 = vld [vmem:[#allocation5 + $0x80] sm:$0xff]
    %v751 = vld [vmem:[#allocation5 + $0x88] sm:$0xff]
    %v752 = vld [vmem:[#allocation5 + $0x90] sm:$0xff]
    %v753 = vld [vmem:[#allocation5 + $0x98] sm:$0xff]
    %v754 = vld [vmem:[#allocation5 + $0xa0] sm:$0xff]
    %v755 = vld [vmem:[#allocation5 + $0xa8] sm:$0xff]
    %v756 = vld [vmem:[#allocation5 + $0xb0] sm:$0xff]
    %v757 = vld [vmem:[#allocation5 + $0xb8] sm:$0xff]
    %v758 = vld [vmem:[#allocation5 + $0xc0] sm:$0xff]
    %v759 = vld [vmem:[#allocation5 + $0xc8] sm:$0xff]
    %v760 = vld [vmem:[#allocation5 + $0xd0] sm:$0xff]
    %v761 = vld [vmem:[#allocation5 + $0xd8] sm:$0xff]
    %v762 = vld [vmem:[#allocation5 + $0xe0] sm:$0xff]
    %v763 = vld [vmem:[#allocation5 + $0xe8] sm:$0xff]
    %v764 = vld [vmem:[#allocation5 + $0xf0] sm:$0xff]
    %v765 = vld [vmem:[#allocation5 + $0xf8] sm:$0xff]
    %v766 = vld [vmem:[#allocation5 + $0x100] sm:$0xff]
    %v767 = vld [vmem:[#allocation5 + $0x108] sm:$0xff]
    %v768 = vld [vmem:[#allocation5 + $0x110] sm:$0xff]
    %v769 = vld [vmem:[#allocation5 + $0x118] sm:$0xff]
    %v770 = vld [vmem:[#allocation5 + $0x120] sm:$0xff]
    %v771 = vld [vmem:[#allocation5 + $0x128] sm:$0xff]
    %v772 = vld [vmem:[#allocation5 + $0x130] sm:$0xff]
    %v773 = vld [vmem:[#allocation5 + $0x138] sm:$0xff]
    %v774 = vld [vmem:[#allocation5 + $0x140] sm:$0xff]
    %v775 = vld [vmem:[#allocation5 + $0x148] sm:$0xff]
    %v776 = vld [vmem:[#allocation5 + $0x150] sm:$0xff]
    %v777 = vld [vmem:[#allocation5 + $0x158] sm:$0xff]
    %v778 = vld [vmem:[#allocation5 + $0x160] sm:$0xff]
    %v779 = vld [vmem:[#allocation5 + $0x168] sm:$0xff]
    %v780 = vld [vmem:[#allocation5 + $0x170] sm:$0xff]
    %v781 = vld [vmem:[#allocation5 + $0x178] sm:$0xff]
    %v782 = vld [vmem:[#allocation5 + $0x180] sm:$0xff]
    %v783 = vld [vmem:[#allocation5 + $0x188] sm:$0xff]
    %v784 = vld [vmem:[#allocation5 + $0x190] sm:$0xff]
    %v785 = vld [vmem:[#allocation5 + $0x198] sm:$0xff]
    %v786 = vld [vmem:[#allocation5 + $0x1a0] sm:$0xff]
    %v787 = vld [vmem:[#allocation5 + $0x1a8] sm:$0xff]
    %v788 = vld [vmem:[#allocation5 + $0x1b0] sm:$0xff]
    %v789 = vld [vmem:[#allocation5 + $0x1b8] sm:$0xff]
    %v790 = vld [vmem:[#allocation5 + $0x1c0] sm:$0xff]
    %v791 = vld [vmem:[#allocation5 + $0x1c8] sm:$0xff]
    %v792 = vld [vmem:[#allocation5 + $0x1d0] sm:$0xff]
    %v793 = vld [vmem:[#allocation5 + $0x1d8] sm:$0xff]
    %v794 = vld [vmem:[#allocation5 + $0x1e0] sm:$0xff]
    %v795 = vld [vmem:[#allocation5 + $0x1e8] sm:$0xff]
    %v796 = vld [vmem:[#allocation5 + $0x1f0] sm:$0xff]
    %v797 = vld [vmem:[#allocation5 + $0x1f8] sm:$0xff]
    %v798 = vld [vmem:[#allocation5 + $0x200] sm:$0xff]
    %v799 = vld [vmem:[#allocation5 + $0x208] sm:$0xff]
    %v800 = vld [vmem:[#allocation5 + $0x210] sm:$0xff]
    %v801 = vld [vmem:[#allocation5 + $0x218] sm:$0xff]
    %v802 = vld [vmem:[#allocation5 + $0x220] sm:$0xff]
    %v803 = vld [vmem:[#allocation5 + $0x228] sm:$0xff]
    %v804 = vld [vmem:[#allocation5 + $0x230] sm:$0xff]
    %v805 = vld [vmem:[#allocation5 + $0x238] sm:$0xff]
    %v806 = vld [vmem:[#allocation5 + $0x240] sm:$0xff]
    %v807 = vld [vmem:[#allocation5 + $0x248] sm:$0xff]
    %v808 = vld [vmem:[#allocation5 + $0x250] sm:$0xff]
    %v809 = vld [vmem:[#allocation5 + $0x258] sm:$0xff]
    %v810 = vld [vmem:[#allocation5 + $0x260] sm:$0xff]
    %v811 = vld [vmem:[#allocation5 + $0x268] sm:$0xff]
    %v812 = vld [vmem:[#allocation5 + $0x270] sm:$0xff]
    %v813 = vld [vmem:[#allocation5 + $0x278] sm:$0xff]
    %v814 = vld [vmem:[#allocation5 + $0x280] sm:$0xff]
    %v815 = vld [vmem:[#allocation5 + $0x288] sm:$0xff]
    %v816 = vld [vmem:[#allocation5 + $0x290] sm:$0xff]
    %v817 = vld [vmem:[#allocation5 + $0x298] sm:$0xff]
    %v818 = vld [vmem:[#allocation5 + $0x2a0] sm:$0xff]
    %v819 = vld [vmem:[#allocation5 + $0x2a8] sm:$0xff]
    %v820 = vld [vmem:[#allocation5 + $0x2b0] sm:$0xff]
    %v821 = vld [vmem:[#allocation5 + $0x2b8] sm:$0xff]
    %v822 = vld [vmem:[#allocation5 + $0x2c0] sm:$0xff]
    %v823 = vld [vmem:[#allocation5 + $0x2c8] sm:$0xff]
    %v824 = vld [vmem:[#allocation5 + $0x2d0] sm:$0xff]
    %v825 = vld [vmem:[#allocation5 + $0x2d8] sm:$0xff]
    %v826 = vld [vmem:[#allocation5 + $0x2e0] sm:$0xff]
    %v827 = vld [vmem:[#allocation5 + $0x2e8] sm:$0xff]
    %v828 = vld [vmem:[#allocation5 + $0x2f0] sm:$0xff]
    %v829 = vld [vmem:[#allocation5 + $0x2f8] sm:$0xff]
    %v830 = vld [vmem:[#allocation5 + $0x300] sm:$0xff]
    %v831 = vld [vmem:[#allocation5 + $0x308] sm:$0xff]
    %v832 = vld [vmem:[#allocation5 + $0x310] sm:$0xff]
    %v833 = vld [vmem:[#allocation5 + $0x318] sm:$0xff]
    %v834 = vld [vmem:[#allocation5 + $0x320] sm:$0xff]
    %v835 = vld [vmem:[#allocation5 + $0x328] sm:$0xff]
    %v836 = vld [vmem:[#allocation5 + $0x330] sm:$0xff]
    %v837 = vld [vmem:[#allocation5 + $0x338] sm:$0xff]
    %v838 = vld [vmem:[#allocation5 + $0x340] sm:$0xff]
    %v839 = vld [vmem:[#allocation5 + $0x348] sm:$0xff]
    %v840 = vld [vmem:[#allocation5 + $0x350] sm:$0xff]
    %v841 = vld [vmem:[#allocation5 + $0x358] sm:$0xff]
    %v842 = vld [vmem:[#allocation5 + $0x360] sm:$0xff]
    %v843 = vld [vmem:[#allocation5 + $0x368] sm:$0xff]
    %v844 = vld [vmem:[#allocation5 + $0x370] sm:$0xff]
    %v845 = vld [vmem:[#allocation5 + $0x378] sm:$0xff]
    %v846 = vld [vmem:[#allocation5 + $0x380] sm:$0xff]
    %v847 = vld [vmem:[#allocation5 + $0x388] sm:$0xff]
    %v848 = vld [vmem:[#allocation5 + $0x390] sm:$0xff]
    %v849 = vld [vmem:[#allocation5 + $0x398] sm:$0xff]
    %v850 = vld [vmem:[#allocation5 + $0x3a0] sm:$0xff]
    %v851 = vld [vmem:[#allocation5 + $0x3a8] sm:$0xff]
    %v852 = vld [vmem:[#allocation5 + $0x3b0] sm:$0xff]
    %v853 = vld [vmem:[#allocation5 + $0x3b8] sm:$0xff]
    %v854 = vld [vmem:[#allocation5 + $0x3c0] sm:$0xff]
    %v855 = vld [vmem:[#allocation5 + $0x3c8] sm:$0xff]
    %v856 = vld [vmem:[#allocation5 + $0x3d0] sm:$0xff]
    %v857 = vld [vmem:[#allocation5 + $0x3d8] sm:$0xff]
    %v858 = vld [vmem:[#allocation5 + $0x3e0] sm:$0xff]
    %v859 = vld [vmem:[#allocation5 + $0x3e8] sm:$0xff]
    %v860 = vld [vmem:[#allocation5 + $0x3f0] sm:$0xff]
    %v861 = vld [vmem:[#allocation5 + $0x3f8] sm:$0xff]
    %v862 = vld [vmem:[#allocation5 + $0x400] sm:$0xff]
    %v863 = vld [vmem:[#allocation5 + $0x408] sm:$0xff]
    %v864 = vld [vmem:[#allocation5 + $0x410] sm:$0xff]
    %v865 = vld [vmem:[#allocation5 + $0x418] sm:$0xff]
    %v866 = vld [vmem:[#allocation5 + $0x420] sm:$0xff]
    %v867 = vld [vmem:[#allocation5 + $0x428] sm:$0xff]
    %v868 = vld [vmem:[#allocation5 + $0x430] sm:$0xff]
    %v869 = vld [vmem:[#allocation5 + $0x438] sm:$0xff]
    %v870 = vld [vmem:[#allocation5 + $0x440] sm:$0xff]
    %v871 = vld [vmem:[#allocation5 + $0x448] sm:$0xff]
    %v872 = vld [vmem:[#allocation5 + $0x450] sm:$0xff]
    %v873 = vld [vmem:[#allocation5 + $0x458] sm:$0xff]
    %v874 = vld [vmem:[#allocation5 + $0x460] sm:$0xff]
    %v875 = vld [vmem:[#allocation5 + $0x468] sm:$0xff]
    %v876 = vld [vmem:[#allocation5 + $0x470] sm:$0xff]
    %v877 = vld [vmem:[#allocation5 + $0x478] sm:$0xff]
    %v878 = vld [vmem:[#allocation5 + $0x480] sm:$0xff]
    %v879 = vld [vmem:[#allocation5 + $0x488] sm:$0xff]
    %v880 = vld [vmem:[#allocation5 + $0x490] sm:$0xff]
    %v881 = vld [vmem:[#allocation5 + $0x498] sm:$0xff]
    %v882 = vld [vmem:[#allocation5 + $0x4a0] sm:$0xff]
    %v883 = vld [vmem:[#allocation5 + $0x4a8] sm:$0xff]
    %v884 = vld [vmem:[#allocation5 + $0x4b0] sm:$0xff]
    %v885 = vld [vmem:[#allocation5 + $0x4b8] sm:$0xff]
    %v886 = vld [vmem:[#allocation5 + $0x4c0] sm:$0xff]
    %v887 = vld [vmem:[#allocation5 + $0x4c8] sm:$0xff]
    %v888 = vld [vmem:[#allocation5 + $0x4d0] sm:$0xff]
    %v889 = vld [vmem:[#allocation5 + $0x4d8] sm:$0xff]
    %v890 = vld [vmem:[#allocation5 + $0x4e0] sm:$0xff]
    %v891 = vld [vmem:[#allocation5 + $0x4e8] sm:$0xff]
    %v892 = vld [vmem:[#allocation5 + $0x4f0] sm:$0xff]
    %v893 = vld [vmem:[#allocation5 + $0x4f8] sm:$0xff]
    %v894 = vld [vmem:[#allocation5 + $0x500] sm:$0xff]
    %v895 = vld [vmem:[#allocation5 + $0x508] sm:$0xff]
    %v896 = vld [vmem:[#allocation5 + $0x510] sm:$0xff]
    %v897 = vld [vmem:[#allocation5 + $0x518] sm:$0xff]
    %v898 = vld [vmem:[#allocation5 + $0x520] sm:$0xff]
    %v899 = vld [vmem:[#allocation5 + $0x528] sm:$0xff]
    %v900 = vld [vmem:[#allocation5 + $0x530] sm:$0xff]
    %v901 = vld [vmem:[#allocation5 + $0x538] sm:$0xff]
    %v902 = vld [vmem:[#allocation5 + $0x540] sm:$0xff]
    %v903 = vld [vmem:[#allocation5 + $0x548] sm:$0xff]
    %v904 = vld [vmem:[#allocation5 + $0x550] sm:$0xff]
    %v905 = vld [vmem:[#allocation5 + $0x558] sm:$0xff]
    %v906 = vld [vmem:[#allocation5 + $0x560] sm:$0xff]
    %v907 = vld [vmem:[#allocation5 + $0x568] sm:$0xff]
    %v908 = vld [vmem:[#allocation5 + $0x570] sm:$0xff]
    %v909 = vld [vmem:[#allocation5 + $0x578] sm:$0xff]
    %v910 = vld [vmem:[#allocation5 + $0x580] sm:$0xff]
    %v911 = vld [vmem:[#allocation5 + $0x588] sm:$0xff]
    %v912 = vld [vmem:[#allocation5 + $0x590] sm:$0xff]
    %v913 = vld [vmem:[#allocation5 + $0x598] sm:$0xff]
    %v914 = vld [vmem:[#allocation5 + $0x5a0] sm:$0xff]
    %v915 = vld [vmem:[#allocation5 + $0x5a8] sm:$0xff]
    %v916 = vld [vmem:[#allocation5 + $0x5b0] sm:$0xff]
    %v917 = vld [vmem:[#allocation5 + $0x5b8] sm:$0xff]
    %v918 = vld [vmem:[#allocation5 + $0x5c0] sm:$0xff]
    %v919 = vld [vmem:[#allocation5 + $0x5c8] sm:$0xff]
    %v920 = vld [vmem:[#allocation5 + $0x5d0] sm:$0xff]
    %v921 = vld [vmem:[#allocation5 + $0x5d8] sm:$0xff]
    %v922 = vld [vmem:[#allocation5 + $0x5e0] sm:$0xff]
    %v923 = vld [vmem:[#allocation5 + $0x5e8] sm:$0xff]
    %v924 = vld [vmem:[#allocation5 + $0x5f0] sm:$0xff]
    %v925 = vld [vmem:[#allocation5 + $0x5f8] sm:$0xff]
    %v926 = vld [vmem:[#allocation5 + $0x600] sm:$0xff]
    %v927 = vld [vmem:[#allocation5 + $0x608] sm:$0xff]
    %v928 = vld [vmem:[#allocation5 + $0x610] sm:$0xff]
    %v929 = vld [vmem:[#allocation5 + $0x618] sm:$0xff]
    %v930 = vld [vmem:[#allocation5 + $0x620] sm:$0xff]
    %v931 = vld [vmem:[#allocation5 + $0x628] sm:$0xff]
    %v932 = vld [vmem:[#allocation5 + $0x630] sm:$0xff]
    %v933 = vld [vmem:[#allocation5 + $0x638] sm:$0xff]
    %v934 = vld [vmem:[#allocation5 + $0x640] sm:$0xff]
    %v935 = vld [vmem:[#allocation5 + $0x648] sm:$0xff]
    %v936 = vld [vmem:[#allocation5 + $0x650] sm:$0xff]
    %v937 = vld [vmem:[#allocation5 + $0x658] sm:$0xff]
    %v938 = vld [vmem:[#allocation5 + $0x660] sm:$0xff]
    %v939 = vld [vmem:[#allocation5 + $0x668] sm:$0xff]
    %v940 = vld [vmem:[#allocation5 + $0x670] sm:$0xff]
    %v941 = vld [vmem:[#allocation5 + $0x678] sm:$0xff]
    %v942 = vld [vmem:[#allocation5 + $0x680] sm:$0xff]
    %v943 = vld [vmem:[#allocation5 + $0x688] sm:$0xff]
    %v944 = vld [vmem:[#allocation5 + $0x690] sm:$0xff]
    %v945 = vld [vmem:[#allocation5 + $0x698] sm:$0xff]
    %v946 = vld [vmem:[#allocation5 + $0x6a0] sm:$0xff]
    %v947 = vld [vmem:[#allocation5 + $0x6a8] sm:$0xff]
    %v948 = vld [vmem:[#allocation5 + $0x6b0] sm:$0xff]
    %v949 = vld [vmem:[#allocation5 + $0x6b8] sm:$0xff]
    %v950 = vld [vmem:[#allocation5 + $0x6c0] sm:$0xff]
    %v951 = vld [vmem:[#allocation5 + $0x6c8] sm:$0xff]
    %v952 = vld [vmem:[#allocation5 + $0x6d0] sm:$0xff]
    %v953 = vld [vmem:[#allocation5 + $0x6d8] sm:$0xff]
    %v954 = vld [vmem:[#allocation5 + $0x6e0] sm:$0xff]
    %v955 = vld [vmem:[#allocation5 + $0x6e8] sm:$0xff]
    %v956 = vld [vmem:[#allocation5 + $0x6f0] sm:$0xff]
    %v957 = vld [vmem:[#allocation5 + $0x6f8] sm:$0xff]
    %v958 = vld [vmem:[#allocation5 + $0x700] sm:$0xff]
    %v959 = vld [vmem:[#allocation5 + $0x708] sm:$0xff]
    %v960 = vld [vmem:[#allocation5 + $0x710] sm:$0xff]
    %v961 = vld [vmem:[#allocation5 + $0x718] sm:$0xff]
    %v962 = vld [vmem:[#allocation5 + $0x720] sm:$0xff]
    %v963 = vld [vmem:[#allocation5 + $0x728] sm:$0xff]
    %v964 = vld [vmem:[#allocation5 + $0x730] sm:$0xff]
    %v965 = vld [vmem:[#allocation5 + $0x738] sm:$0xff]
    %v966 = vld [vmem:[#allocation5 + $0x740] sm:$0xff]
    %v967 = vld [vmem:[#allocation5 + $0x748] sm:$0xff]
    %v968 = vld [vmem:[#allocation5 + $0x750] sm:$0xff]
    %v969 = vld [vmem:[#allocation5 + $0x758] sm:$0xff]
    %v970 = vld [vmem:[#allocation5 + $0x760] sm:$0xff]
    %v971 = vld [vmem:[#allocation5 + $0x768] sm:$0xff]
    %v972 = vld [vmem:[#allocation5 + $0x770] sm:$0xff]
    %v973 = vld [vmem:[#allocation5 + $0x778] sm:$0xff]
    %v974 = vld [vmem:[#allocation5 + $0x780] sm:$0xff]
    %v975 = vld [vmem:[#allocation5 + $0x788] sm:$0xff]
    %v976 = vld [vmem:[#allocation5 + $0x790] sm:$0xff]
    %v977 = vld [vmem:[#allocation5 + $0x798] sm:$0xff]
    %v978 = vld [vmem:[#allocation5 + $0x7a0] sm:$0xff]
    %v979 = vld [vmem:[#allocation5 + $0x7a8] sm:$0xff]
    %v980 = vld [vmem:[#allocation5 + $0x7b0] sm:$0xff]
    %v981 = vld [vmem:[#allocation5 + $0x7b8] sm:$0xff]
    %v982 = vld [vmem:[#allocation5 + $0x7c0] sm:$0xff]
    %v983 = vld [vmem:[#allocation5 + $0x7c8] sm:$0xff]
    %v984 = vld [vmem:[#allocation5 + $0x7d0] sm:$0xff]
    %v985 = vld [vmem:[#allocation5 + $0x7d8] sm:$0xff]
    %v986 = vld [vmem:[#allocation5 + $0x7e0] sm:$0xff]
    %v987 = vld [vmem:[#allocation5 + $0x7e8] sm:$0xff]
    %v988 = vld [vmem:[#allocation5 + $0x7f0] sm:$0xff]
    %v989 = vld [vmem:[#allocation5 + $0x7f8] sm:$0xff]
    %v990 = vld [vmem:[#allocation7] sm:$0xff]
    %v991 = vld [vmem:[#allocation7 + $0x8] sm:$0xff]
    %v992 = vld [vmem:[#allocation7 + $0x10] sm:$0xff]
    %v993 = vld [vmem:[#allocation7 + $0x18] sm:$0xff]
    %v994 = vld [vmem:[#allocation7 + $0x20] sm:$0xff]
    %v995 = vld [vmem:[#allocation7 + $0x28] sm:$0xff]
    %v996 = vld [vmem:[#allocation7 + $0x30] sm:$0xff]
    %v997 = vld [vmem:[#allocation7 + $0x38] sm:$0xff]
    %v998 = vld [vmem:[#allocation7 + $0x40] sm:$0xff]
    %v999 = vld [vmem:[#allocation7 + $0x48] sm:$0xff]
    %v1000 = vld [vmem:[#allocation7 + $0x50] sm:$0xff]
    %v1001 = vld [vmem:[#allocation7 + $0x58] sm:$0xff]
    %v1002 = vld [vmem:[#allocation7 + $0x60] sm:$0xff]
    %v1003 = vld [vmem:[#allocation7 + $0x68] sm:$0xff]
    %v1004 = vld [vmem:[#allocation7 + $0x70] sm:$0xff]
    %v1005 = vld [vmem:[#allocation7 + $0x78] sm:$0xff]
    %v1006 = vld [vmem:[#allocation7 + $0x80] sm:$0xff]
    %v1007 = vld [vmem:[#allocation7 + $0x88] sm:$0xff]
    %v1008 = vld [vmem:[#allocation7 + $0x90] sm:$0xff]
    %v1009 = vld [vmem:[#allocation7 + $0x98] sm:$0xff]
    %v1010 = vld [vmem:[#allocation7 + $0xa0] sm:$0xff]
    %v1011 = vld [vmem:[#allocation7 + $0xa8] sm:$0xff]
    %v1012 = vld [vmem:[#allocation7 + $0xb0] sm:$0xff]
    %v1013 = vld [vmem:[#allocation7 + $0xb8] sm:$0xff]
    %v1014 = vld [vmem:[#allocation7 + $0xc0] sm:$0xff]
    %v1015 = vld [vmem:[#allocation7 + $0xc8] sm:$0xff]
    %v1016 = vld [vmem:[#allocation7 + $0xd0] sm:$0xff]
    %v1017 = vld [vmem:[#allocation7 + $0xd8] sm:$0xff]
    %v1018 = vld [vmem:[#allocation7 + $0xe0] sm:$0xff]
    %v1019 = vld [vmem:[#allocation7 + $0xe8] sm:$0xff]
    %v1020 = vld [vmem:[#allocation7 + $0xf0] sm:$0xff]
    %v1021 = vld [vmem:[#allocation7 + $0xf8] sm:$0xff]
    %v1022 = vld [vmem:[#allocation7 + $0x100] sm:$0xff]
    %v1023 = vld [vmem:[#allocation7 + $0x108] sm:$0xff]
    %v1024 = vld [vmem:[#allocation7 + $0x110] sm:$0xff]
    %v1025 = vld [vmem:[#allocation7 + $0x118] sm:$0xff]
    %v1026 = vld [vmem:[#allocation7 + $0x120] sm:$0xff]
    %v1027 = vld [vmem:[#allocation7 + $0x128] sm:$0xff]
    %v1028 = vld [vmem:[#allocation7 + $0x130] sm:$0xff]
    %v1029 = vld [vmem:[#allocation7 + $0x138] sm:$0xff]
    %v1030 = vld [vmem:[#allocation7 + $0x140] sm:$0xff]
    %v1031 = vld [vmem:[#allocation7 + $0x148] sm:$0xff]
    %v1032 = vld [vmem:[#allocation7 + $0x150] sm:$0xff]
    %v1033 = vld [vmem:[#allocation7 + $0x158] sm:$0xff]
    %v1034 = vld [vmem:[#allocation7 + $0x160] sm:$0xff]
    %v1035 = vld [vmem:[#allocation7 + $0x168] sm:$0xff]
    %v1036 = vld [vmem:[#allocation7 + $0x170] sm:$0xff]
    %v1037 = vld [vmem:[#allocation7 + $0x178] sm:$0xff]
    %v1038 = vld [vmem:[#allocation7 + $0x180] sm:$0xff]
    %v1039 = vld [vmem:[#allocation7 + $0x188] sm:$0xff]
    %v1040 = vld [vmem:[#allocation7 + $0x190] sm:$0xff]
    %v1041 = vld [vmem:[#allocation7 + $0x198] sm:$0xff]
    %v1042 = vld [vmem:[#allocation7 + $0x1a0] sm:$0xff]
    %v1043 = vld [vmem:[#allocation7 + $0x1a8] sm:$0xff]
    %v1044 = vld [vmem:[#allocation7 + $0x1b0] sm:$0xff]
    %v1045 = vld [vmem:[#allocation7 + $0x1b8] sm:$0xff]
    %v1046 = vld [vmem:[#allocation7 + $0x1c0] sm:$0xff]
    %v1047 = vld [vmem:[#allocation7 + $0x1c8] sm:$0xff]
    %v1048 = vld [vmem:[#allocation7 + $0x1d0] sm:$0xff]
    %v1049 = vld [vmem:[#allocation7 + $0x1d8] sm:$0xff]
    %v1050 = vld [vmem:[#allocation7 + $0x1e0] sm:$0xff]
    %v1051 = vld [vmem:[#allocation7 + $0x1e8] sm:$0xff]
    %v1052 = vld [vmem:[#allocation7 + $0x1f0] sm:$0xff]
    %v1053 = vld [vmem:[#allocation7 + $0x1f8] sm:$0xff]
    %v1054 = vld [vmem:[#allocation7 + $0x200] sm:$0xff]
    %v1055 = vld [vmem:[#allocation7 + $0x208] sm:$0xff]
    %v1056 = vld [vmem:[#allocation7 + $0x210] sm:$0xff]
    %v1057 = vld [vmem:[#allocation7 + $0x218] sm:$0xff]
    %v1058 = vld [vmem:[#allocation7 + $0x220] sm:$0xff]
    %v1059 = vld [vmem:[#allocation7 + $0x228] sm:$0xff]
    %v1060 = vld [vmem:[#allocation7 + $0x230] sm:$0xff]
    %v1061 = vld [vmem:[#allocation7 + $0x238] sm:$0xff]
    %v1062 = vld [vmem:[#allocation7 + $0x240] sm:$0xff]
    %v1063 = vld [vmem:[#allocation7 + $0x248] sm:$0xff]
    %v1064 = vld [vmem:[#allocation7 + $0x250] sm:$0xff]
    %v1065 = vld [vmem:[#allocation7 + $0x258] sm:$0xff]
    %v1066 = vld [vmem:[#allocation7 + $0x260] sm:$0xff]
    %v1067 = vld [vmem:[#allocation7 + $0x268] sm:$0xff]
    %v1068 = vld [vmem:[#allocation7 + $0x270] sm:$0xff]
    %v1069 = vld [vmem:[#allocation7 + $0x278] sm:$0xff]
    %v1070 = vld [vmem:[#allocation7 + $0x280] sm:$0xff]
    %v1071 = vld [vmem:[#allocation7 + $0x288] sm:$0xff]
    %v1072 = vld [vmem:[#allocation7 + $0x290] sm:$0xff]
    %v1073 = vld [vmem:[#allocation7 + $0x298] sm:$0xff]
    %v1074 = vld [vmem:[#allocation7 + $0x2a0] sm:$0xff]
    %v1075 = vld [vmem:[#allocation7 + $0x2a8] sm:$0xff]
    %v1076 = vld [vmem:[#allocation7 + $0x2b0] sm:$0xff]
    %v1077 = vld [vmem:[#allocation7 + $0x2b8] sm:$0xff]
    %v1078 = vld [vmem:[#allocation7 + $0x2c0] sm:$0xff]
    %v1079 = vld [vmem:[#allocation7 + $0x2c8] sm:$0xff]
    %v1080 = vld [vmem:[#allocation7 + $0x2d0] sm:$0xff]
    %v1081 = vld [vmem:[#allocation7 + $0x2d8] sm:$0xff]
    %v1082 = vld [vmem:[#allocation7 + $0x2e0] sm:$0xff]
    %v1083 = vld [vmem:[#allocation7 + $0x2e8] sm:$0xff]
    %v1084 = vld [vmem:[#allocation7 + $0x2f0] sm:$0xff]
    %v1085 = vld [vmem:[#allocation7 + $0x2f8] sm:$0xff]
    %v1086 = vld [vmem:[#allocation7 + $0x300] sm:$0xff]
    %v1087 = vld [vmem:[#allocation7 + $0x308] sm:$0xff]
    %v1088 = vld [vmem:[#allocation7 + $0x310] sm:$0xff]
    %v1089 = vld [vmem:[#allocation7 + $0x318] sm:$0xff]
    %v1090 = vld [vmem:[#allocation7 + $0x320] sm:$0xff]
    %v1091 = vld [vmem:[#allocation7 + $0x328] sm:$0xff]
    %v1092 = vld [vmem:[#allocation7 + $0x330] sm:$0xff]
    %v1093 = vld [vmem:[#allocation7 + $0x338] sm:$0xff]
    %v1094 = vld [vmem:[#allocation7 + $0x340] sm:$0xff]
    %v1095 = vld [vmem:[#allocation7 + $0x348] sm:$0xff]
    %v1096 = vld [vmem:[#allocation7 + $0x350] sm:$0xff]
    %v1097 = vld [vmem:[#allocation7 + $0x358] sm:$0xff]
    %v1098 = vld [vmem:[#allocation7 + $0x360] sm:$0xff]
    %v1099 = vld [vmem:[#allocation7 + $0x368] sm:$0xff]
    %v1100 = vld [vmem:[#allocation7 + $0x370] sm:$0xff]
    %v1101 = vld [vmem:[#allocation7 + $0x378] sm:$0xff]
    %v1102 = vld [vmem:[#allocation7 + $0x380] sm:$0xff]
    %v1103 = vld [vmem:[#allocation7 + $0x388] sm:$0xff]
    %v1104 = vld [vmem:[#allocation7 + $0x390] sm:$0xff]
    %v1105 = vld [vmem:[#allocation7 + $0x398] sm:$0xff]
    %v1106 = vld [vmem:[#allocation7 + $0x3a0] sm:$0xff]
    %v1107 = vld [vmem:[#allocation7 + $0x3a8] sm:$0xff]
    %v1108 = vld [vmem:[#allocation7 + $0x3b0] sm:$0xff]
    %v1109 = vld [vmem:[#allocation7 + $0x3b8] sm:$0xff]
    %v1110 = vld [vmem:[#allocation7 + $0x3c0] sm:$0xff]
    %v1111 = vld [vmem:[#allocation7 + $0x3c8] sm:$0xff]
    %v1112 = vld [vmem:[#allocation7 + $0x3d0] sm:$0xff]
    %v1113 = vld [vmem:[#allocation7 + $0x3d8] sm:$0xff]
    %v1114 = vld [vmem:[#allocation7 + $0x3e0] sm:$0xff]
    %v1115 = vld [vmem:[#allocation7 + $0x3e8] sm:$0xff]
    %v1116 = vld [vmem:[#allocation7 + $0x3f0] sm:$0xff]
    %v1117 = vld [vmem:[#allocation7 + $0x3f8] sm:$0xff]
    %v1118 = vld [vmem:[#allocation7 + $0x400] sm:$0xff]
    %v1119 = vld [vmem:[#allocation7 + $0x408] sm:$0xff]
    %v1120 = vld [vmem:[#allocation7 + $0x410] sm:$0xff]
    %v1121 = vld [vmem:[#allocation7 + $0x418] sm:$0xff]
    %v1122 = vld [vmem:[#allocation7 + $0x420] sm:$0xff]
    %v1123 = vld [vmem:[#allocation7 + $0x428] sm:$0xff]
    %v1124 = vld [vmem:[#allocation7 + $0x430] sm:$0xff]
    %v1125 = vld [vmem:[#allocation7 + $0x438] sm:$0xff]
    %v1126 = vld [vmem:[#allocation7 + $0x440] sm:$0xff]
    %v1127 = vld [vmem:[#allocation7 + $0x448] sm:$0xff]
    %v1128 = vld [vmem:[#allocation7 + $0x450] sm:$0xff]
    %v1129 = vld [vmem:[#allocation7 + $0x458] sm:$0xff]
    %v1130 = vld [vmem:[#allocation7 + $0x460] sm:$0xff]
    %v1131 = vld [vmem:[#allocation7 + $0x468] sm:$0xff]
    %v1132 = vld [vmem:[#allocation7 + $0x470] sm:$0xff]
    %v1133 = vld [vmem:[#allocation7 + $0x478] sm:$0xff]
    %v1134 = vld [vmem:[#allocation7 + $0x480] sm:$0xff]
    %v1135 = vld [vmem:[#allocation7 + $0x488] sm:$0xff]
    %v1136 = vld [vmem:[#allocation7 + $0x490] sm:$0xff]
    %v1137 = vld [vmem:[#allocation7 + $0x498] sm:$0xff]
    %v1138 = vld [vmem:[#allocation7 + $0x4a0] sm:$0xff]
    %v1139 = vld [vmem:[#allocation7 + $0x4a8] sm:$0xff]
    %v1140 = vld [vmem:[#allocation7 + $0x4b0] sm:$0xff]
    %v1141 = vld [vmem:[#allocation7 + $0x4b8] sm:$0xff]
    %v1142 = vld [vmem:[#allocation7 + $0x4c0] sm:$0xff]
    %v1143 = vld [vmem:[#allocation7 + $0x4c8] sm:$0xff]
    %v1144 = vld [vmem:[#allocation7 + $0x4d0] sm:$0xff]
    %v1145 = vld [vmem:[#allocation7 + $0x4d8] sm:$0xff]
    %v1146 = vld [vmem:[#allocation7 + $0x4e0] sm:$0xff]
    %v1147 = vld [vmem:[#allocation7 + $0x4e8] sm:$0xff]
    %v1148 = vld [vmem:[#allocation7 + $0x4f0] sm:$0xff]
    %v1149 = vld [vmem:[#allocation7 + $0x4f8] sm:$0xff]
    %v1150 = vld [vmem:[#allocation7 + $0x500] sm:$0xff]
    %v1151 = vld [vmem:[#allocation7 + $0x508] sm:$0xff]
    %v1152 = vld [vmem:[#allocation7 + $0x510] sm:$0xff]
    %v1153 = vld [vmem:[#allocation7 + $0x518] sm:$0xff]
    %v1154 = vld [vmem:[#allocation7 + $0x520] sm:$0xff]
    %v1155 = vld [vmem:[#allocation7 + $0x528] sm:$0xff]
    %v1156 = vld [vmem:[#allocation7 + $0x530] sm:$0xff]
    %v1157 = vld [vmem:[#allocation7 + $0x538] sm:$0xff]
    %v1158 = vld [vmem:[#allocation7 + $0x540] sm:$0xff]
    %v1159 = vld [vmem:[#allocation7 + $0x548] sm:$0xff]
    %v1160 = vld [vmem:[#allocation7 + $0x550] sm:$0xff]
    %v1161 = vld [vmem:[#allocation7 + $0x558] sm:$0xff]
    %v1162 = vld [vmem:[#allocation7 + $0x560] sm:$0xff]
    %v1163 = vld [vmem:[#allocation7 + $0x568] sm:$0xff]
    %v1164 = vld [vmem:[#allocation7 + $0x570] sm:$0xff]
    %v1165 = vld [vmem:[#allocation7 + $0x578] sm:$0xff]
    %v1166 = vld [vmem:[#allocation7 + $0x580] sm:$0xff]
    %v1167 = vld [vmem:[#allocation7 + $0x588] sm:$0xff]
    %v1168 = vld [vmem:[#allocation7 + $0x590] sm:$0xff]
    %v1169 = vld [vmem:[#allocation7 + $0x598] sm:$0xff]
    %v1170 = vld [vmem:[#allocation7 + $0x5a0] sm:$0xff]
    %v1171 = vld [vmem:[#allocation7 + $0x5a8] sm:$0xff]
    %v1172 = vld [vmem:[#allocation7 + $0x5b0] sm:$0xff]
    %v1173 = vld [vmem:[#allocation7 + $0x5b8] sm:$0xff]
    %v1174 = vld [vmem:[#allocation7 + $0x5c0] sm:$0xff]
    %v1175 = vld [vmem:[#allocation7 + $0x5c8] sm:$0xff]
    %v1176 = vld [vmem:[#allocation7 + $0x5d0] sm:$0xff]
    %v1177 = vld [vmem:[#allocation7 + $0x5d8] sm:$0xff]
    %v1178 = vld [vmem:[#allocation7 + $0x5e0] sm:$0xff]
    %v1179 = vld [vmem:[#allocation7 + $0x5e8] sm:$0xff]
    %v1180 = vld [vmem:[#allocation7 + $0x5f0] sm:$0xff]
    %v1181 = vld [vmem:[#allocation7 + $0x5f8] sm:$0xff]
    %v1182 = vld [vmem:[#allocation7 + $0x600] sm:$0xff]
    %v1183 = vld [vmem:[#allocation7 + $0x608] sm:$0xff]
    %v1184 = vld [vmem:[#allocation7 + $0x610] sm:$0xff]
    %v1185 = vld [vmem:[#allocation7 + $0x618] sm:$0xff]
    %v1186 = vld [vmem:[#allocation7 + $0x620] sm:$0xff]
    %v1187 = vld [vmem:[#allocation7 + $0x628] sm:$0xff]
    %v1188 = vld [vmem:[#allocation7 + $0x630] sm:$0xff]
    %v1189 = vld [vmem:[#allocation7 + $0x638] sm:$0xff]
    %v1190 = vld [vmem:[#allocation7 + $0x640] sm:$0xff]
    %v1191 = vld [vmem:[#allocation7 + $0x648] sm:$0xff]
    %v1192 = vld [vmem:[#allocation7 + $0x650] sm:$0xff]
    %v1193 = vld [vmem:[#allocation7 + $0x658] sm:$0xff]
    %v1194 = vld [vmem:[#allocation7 + $0x660] sm:$0xff]
    %v1195 = vld [vmem:[#allocation7 + $0x668] sm:$0xff]
    %v1196 = vld [vmem:[#allocation7 + $0x670] sm:$0xff]
    %v1197 = vld [vmem:[#allocation7 + $0x678] sm:$0xff]
    %v1198 = vld [vmem:[#allocation7 + $0x680] sm:$0xff]
    %v1199 = vld [vmem:[#allocation7 + $0x688] sm:$0xff]
    %v1200 = vld [vmem:[#allocation7 + $0x690] sm:$0xff]
    %v1201 = vld [vmem:[#allocation7 + $0x698] sm:$0xff]
    %v1202 = vld [vmem:[#allocation7 + $0x6a0] sm:$0xff]
    %v1203 = vld [vmem:[#allocation7 + $0x6a8] sm:$0xff]
    %v1204 = vld [vmem:[#allocation7 + $0x6b0] sm:$0xff]
    %v1205 = vld [vmem:[#allocation7 + $0x6b8] sm:$0xff]
    %v1206 = vld [vmem:[#allocation7 + $0x6c0] sm:$0xff]
    %v1207 = vld [vmem:[#allocation7 + $0x6c8] sm:$0xff]
    %v1208 = vld [vmem:[#allocation7 + $0x6d0] sm:$0xff]
    %v1209 = vld [vmem:[#allocation7 + $0x6d8] sm:$0xff]
    %v1210 = vld [vmem:[#allocation7 + $0x6e0] sm:$0xff]
    %v1211 = vld [vmem:[#allocation7 + $0x6e8] sm:$0xff]
    %v1212 = vld [vmem:[#allocation7 + $0x6f0] sm:$0xff]
    %v1213 = vld [vmem:[#allocation7 + $0x6f8] sm:$0xff]
    %v1214 = vld [vmem:[#allocation7 + $0x700] sm:$0xff]
    %v1215 = vld [vmem:[#allocation7 + $0x708] sm:$0xff]
    %v1216 = vld [vmem:[#allocation7 + $0x710] sm:$0xff]
    %v1217 = vld [vmem:[#allocation7 + $0x718] sm:$0xff]
    %v1218 = vld [vmem:[#allocation7 + $0x720] sm:$0xff]
    %v1219 = vld [vmem:[#allocation7 + $0x728] sm:$0xff]
    %v1220 = vld [vmem:[#allocation7 + $0x730] sm:$0xff]
    %v1221 = vld [vmem:[#allocation7 + $0x738] sm:$0xff]
    %v1222 = vld [vmem:[#allocation7 + $0x740] sm:$0xff]
    %v1223 = vld [vmem:[#allocation7 + $0x748] sm:$0xff]
    %v1224 = vld [vmem:[#allocation7 + $0x750] sm:$0xff]
    %v1225 = vld [vmem:[#allocation7 + $0x758] sm:$0xff]
    %v1226 = vld [vmem:[#allocation7 + $0x760] sm:$0xff]
    %v1227 = vld [vmem:[#allocation7 + $0x768] sm:$0xff]
    %v1228 = vld [vmem:[#allocation7 + $0x770] sm:$0xff]
    %v1229 = vld [vmem:[#allocation7 + $0x778] sm:$0xff]
    %v1230 = vld [vmem:[#allocation7 + $0x780] sm:$0xff]
    %v1231 = vld [vmem:[#allocation7 + $0x788] sm:$0xff]
    %v1232 = vld [vmem:[#allocation7 + $0x790] sm:$0xff]
    %v1233 = vld [vmem:[#allocation7 + $0x798] sm:$0xff]
    %v1234 = vld [vmem:[#allocation7 + $0x7a0] sm:$0xff]
    %v1235 = vld [vmem:[#allocation7 + $0x7a8] sm:$0xff]
    %v1236 = vld [vmem:[#allocation7 + $0x7b0] sm:$0xff]
    %v1237 = vld [vmem:[#allocation7 + $0x7b8] sm:$0xff]
    %v1238 = vld [vmem:[#allocation7 + $0x7c0] sm:$0xff]
    %v1239 = vld [vmem:[#allocation7 + $0x7c8] sm:$0xff]
    %v1240 = vld [vmem:[#allocation7 + $0x7d0] sm:$0xff]
    %v1241 = vld [vmem:[#allocation7 + $0x7d8] sm:$0xff]
    %v1242 = vld [vmem:[#allocation7 + $0x7e0] sm:$0xff]
    %v1243 = vld [vmem:[#allocation7 + $0x7e8] sm:$0xff]
    %v1244 = vld [vmem:[#allocation7 + $0x7f0] sm:$0xff]
    %v1245 = vld [vmem:[#allocation7 + $0x7f8] sm:$0xff]
    %v1246 = vmul.f32 %v262, 0.5
    %v1247 = vmul.f32 %v293, 0.5
    %v1248 = vtanh.pop %v1246
    %v1249 = vtanh.pop %v1247
    %v1250 = vadd.f32 %v1248, 1.0
    %v1251 = vadd.f32 %v1249, 1.0
    %v1252 = vmul.f32 %v1250, 0.5
    %v1253 = vmul.f32 %v1251, 0.5
    %v1254 = vtanh.pop %v384
    %v1255 = vtanh.pop %v415
    %v1256 = vmul.f32 %v446, 0.5
    %v1257 = vmul.f32 %v477, 0.5
    %v1258 = vtanh.pop %v1256
    %v1259 = vtanh.pop %v1257
    %v1260 = vadd.f32 %v1258, 1.0
    %v1261 = vadd.f32 %v1259, 1.0
    %v1262 = vmul.f32 %v1260, 0.5
    %v1263 = vmul.f32 %v1261, 0.5
    %v1264 = vmul.f32 %v1252, %v1254
    %v1265 = vmul.f32 %v1253, %v1255
    %v1266 = vtanh.pop %v1264
    %v1267 = vtanh.pop %v1265
    %v1268 = vmul.f32 %v1262, %v1266
    %v1269 = vmul.f32 %v1263, %v1267
    %1270 = vmatpush.msra.mxu0 %v854
    %1271 = vmatpush.msra.mxu0 %v846
    %1272 = vmatpush.msra.mxu0 %v838
    %1273 = vmatpush.msra.mxu0 %v830
    %1274 = vmatpush.msra.mxu0 %v822
    %1275 = vmatpush.msra.mxu0 %v814
    %1276 = vmatpush.msra.mxu0 %v806
    %1277 = vmatpush.msra.mxu0 %v798
    %1278 = vmatpush.msra.mxu0 %v790
    %1279 = vmatpush.msra.mxu0 %v782
    %1280 = vmatpush.msra.mxu0 %v774
    %1281 = vmatpush.msra.mxu0 %v766
    %1282 = vmatpush.msra.mxu0 %v758
    %1283 = vmatpush.msra.mxu0 %v750
    %1284 = vmatpush.msra.mxu0 %v742
    %1285 = vmatpush.msra.mxu0 %v734
    %1286 = vmatmul.f32.gmra.mxu0 %v1268
    %v1287 = vpop.f32.mrf.mxu0
    %v1288 = vadd.f32 0.0, %v1287
    %1289 = vdwg.mxu0
    %1290 = vmatpush.msra.mxu0 %v982
    %1291 = vmatpush.msra.mxu0 %v974
    %1292 = vmatpush.msra.mxu0 %v966
    %1293 = vmatpush.msra.mxu0 %v958
    %1294 = vmatpush.msra.mxu0 %v950
    %1295 = vmatpush.msra.mxu0 %v942
    %1296 = vmatpush.msra.mxu0 %v934
    %1297 = vmatpush.msra.mxu0 %v926
    %1298 = vmatpush.msra.mxu0 %v918
    %1299 = vmatpush.msra.mxu0 %v910
    %1300 = vmatpush.msra.mxu0 %v902
    %1301 = vmatpush.msra.mxu0 %v894
    %1302 = vmatpush.msra.mxu0 %v886
    %1303 = vmatpush.msra.mxu0 %v878
    %1304 = vmatpush.msra.mxu0 %v870
    %1305 = vmatpush.msra.mxu0 %v862
    %1306 = vmatmul.f32.gmra.mxu0 %v1269
    %v1307 = vpop.f32.mrf.mxu0
    %v1308 = vadd.f32 %v1288, %v1307
    %1309 = vdwg.mxu0
    %1310 = vmatpush.msra.mxu0 %v855
    %1311 = vmatpush.msra.mxu0 %v847
    %1312 = vmatpush.msra.mxu0 %v839
    %1313 = vmatpush.msra.mxu0 %v831
    %1314 = vmatpush.msra.mxu0 %v823
    %1315 = vmatpush.msra.mxu0 %v815
    %1316 = vmatpush.msra.mxu0 %v807
    %1317 = vmatpush.msra.mxu0 %v799
    %1318 = vmatpush.msra.mxu0 %v791
    %1319 = vmatpush.msra.mxu0 %v783
    %1320 = vmatpush.msra.mxu0 %v775
    %1321 = vmatpush.msra.mxu0 %v767
    %1322 = vmatpush.msra.mxu0 %v759
    %1323 = vmatpush.msra.mxu0 %v751
    %1324 = vmatpush.msra.mxu0 %v743
    %1325 = vmatpush.msra.mxu0 %v735
    %1326 = vmatmul.f32.gmra.mxu0 %v1268
    %v1327 = vpop.f32.mrf.mxu0
    %v1328 = vadd.f32 0.0, %v1327
    %1329 = vdwg.mxu0
    %1330 = vmatpush.msra.mxu0 %v983
    %1331 = vmatpush.msra.mxu0 %v975
    %1332 = vmatpush.msra.mxu0 %v967
    %1333 = vmatpush.msra.mxu0 %v959
    %1334 = vmatpush.msra.mxu0 %v951
    %1335 = vmatpush.msra.mxu0 %v943
    %1336 = vmatpush.msra.mxu0 %v935
    %1337 = vmatpush.msra.mxu0 %v927
    %1338 = vmatpush.msra.mxu0 %v919
    %1339 = vmatpush.msra.mxu0 %v911
    %1340 = vmatpush.msra.mxu0 %v903
    %1341 = vmatpush.msra.mxu0 %v895
    %1342 = vmatpush.msra.mxu0 %v887
    %1343 = vmatpush.msra.mxu0 %v879
    %1344 = vmatpush.msra.mxu0 %v871
    %1345 = vmatpush.msra.mxu0 %v863
    %1346 = vmatmul.f32.gmra.mxu0 %v1269
    %v1347 = vpop.f32.mrf.mxu0
    %v1348 = vadd.f32 %v1328, %v1347
    %1349 = vdwg.mxu0
    %1350 = vmatpush.msra.mxu0 %v856
    %1351 = vmatpush.msra.mxu0 %v848
    %1352 = vmatpush.msra.mxu0 %v840
    %1353 = vmatpush.msra.mxu0 %v832
    %1354 = vmatpush.msra.mxu0 %v824
    %1355 = vmatpush.msra.mxu0 %v816
    %1356 = vmatpush.msra.mxu0 %v808
    %1357 = vmatpush.msra.mxu0 %v800
    %1358 = vmatpush.msra.mxu0 %v792
    %1359 = vmatpush.msra.mxu0 %v784
    %1360 = vmatpush.msra.mxu0 %v776
    %1361 = vmatpush.msra.mxu0 %v768
    %1362 = vmatpush.msra.mxu0 %v760
    %1363 = vmatpush.msra.mxu0 %v752
    %1364 = vmatpush.msra.mxu0 %v744
    %1365 = vmatpush.msra.mxu0 %v736
    %1366 = vmatmul.f32.gmra.mxu0 %v1268
    %v1367 = vpop.f32.mrf.mxu0
    %v1368 = vadd.f32 0.0, %v1367
    %1369 = vdwg.mxu0
    %1370 = vmatpush.msra.mxu0 %v984
    %1371 = vmatpush.msra.mxu0 %v976
    %1372 = vmatpush.msra.mxu0 %v968
    %1373 = vmatpush.msra.mxu0 %v960
    %1374 = vmatpush.msra.mxu0 %v952
    %1375 = vmatpush.msra.mxu0 %v944
    %1376 = vmatpush.msra.mxu0 %v936
    %1377 = vmatpush.msra.mxu0 %v928
    %1378 = vmatpush.msra.mxu0 %v920
    %1379 = vmatpush.msra.mxu0 %v912
    %1380 = vmatpush.msra.mxu0 %v904
    %1381 = vmatpush.msra.mxu0 %v896
    %1382 = vmatpush.msra.mxu0 %v888
    %1383 = vmatpush.msra.mxu0 %v880
    %1384 = vmatpush.msra.mxu0 %v872
    %1385 = vmatpush.msra.mxu0 %v864
    %1386 = vmatmul.f32.gmra.mxu0 %v1269
    %v1387 = vpop.f32.mrf.mxu0
    %v1388 = vadd.f32 %v1368, %v1387
    %1389 = vdwg.mxu0
    %1390 = vmatpush.msra.mxu0 %v857
    %1391 = vmatpush.msra.mxu0 %v849
    %1392 = vmatpush.msra.mxu0 %v841
    %1393 = vmatpush.msra.mxu0 %v833
    %1394 = vmatpush.msra.mxu0 %v825
    %1395 = vmatpush.msra.mxu0 %v817
    %1396 = vmatpush.msra.mxu0 %v809
    %1397 = vmatpush.msra.mxu0 %v801
    %1398 = vmatpush.msra.mxu0 %v793
    %1399 = vmatpush.msra.mxu0 %v785
    %1400 = vmatpush.msra.mxu0 %v777
    %1401 = vmatpush.msra.mxu0 %v769
    %1402 = vmatpush.msra.mxu0 %v761
    %1403 = vmatpush.msra.mxu0 %v753
    %1404 = vmatpush.msra.mxu0 %v745
    %1405 = vmatpush.msra.mxu0 %v737
    %1406 = vmatmul.f32.gmra.mxu0 %v1268
    %v1407 = vpop.f32.mrf.mxu0
    %v1408 = vadd.f32 0.0, %v1407
    %1409 = vdwg.mxu0
    %1410 = vmatpush.msra.mxu0 %v985
    %1411 = vmatpush.msra.mxu0 %v977
    %1412 = vmatpush.msra.mxu0 %v969
    %1413 = vmatpush.msra.mxu0 %v961
    %1414 = vmatpush.msra.mxu0 %v953
    %1415 = vmatpush.msra.mxu0 %v945
    %1416 = vmatpush.msra.mxu0 %v937
    %1417 = vmatpush.msra.mxu0 %v929
    %1418 = vmatpush.msra.mxu0 %v921
    %1419 = vmatpush.msra.mxu0 %v913
    %1420 = vmatpush.msra.mxu0 %v905
    %1421 = vmatpush.msra.mxu0 %v897
    %1422 = vmatpush.msra.mxu0 %v889
    %1423 = vmatpush.msra.mxu0 %v881
    %1424 = vmatpush.msra.mxu0 %v873
    %1425 = vmatpush.msra.mxu0 %v865
    %1426 = vmatmul.f32.gmra.mxu0 %v1269
    %v1427 = vpop.f32.mrf.mxu0
    %v1428 = vadd.f32 %v1408, %v1427
    %1429 = vdwg.mxu0
    %1430 = vmatpush.msra.mxu0 %v858
    %1431 = vmatpush.msra.mxu0 %v850
    %1432 = vmatpush.msra.mxu0 %v842
    %1433 = vmatpush.msra.mxu0 %v834
    %1434 = vmatpush.msra.mxu0 %v826
    %1435 = vmatpush.msra.mxu0 %v818
    %1436 = vmatpush.msra.mxu0 %v810
    %1437 = vmatpush.msra.mxu0 %v802
    %1438 = vmatpush.msra.mxu0 %v794
    %1439 = vmatpush.msra.mxu0 %v786
    %1440 = vmatpush.msra.mxu0 %v778
    %1441 = vmatpush.msra.mxu0 %v770
    %1442 = vmatpush.msra.mxu0 %v762
    %1443 = vmatpush.msra.mxu0 %v754
    %1444 = vmatpush.msra.mxu0 %v746
    %1445 = vmatpush.msra.mxu0 %v738
    %1446 = vmatmul.f32.gmra.mxu0 %v1268
    %v1447 = vpop.f32.mrf.mxu0
    %v1448 = vadd.f32 0.0, %v1447
    %1449 = vdwg.mxu0
    %1450 = vmatpush.msra.mxu0 %v986
    %1451 = vmatpush.msra.mxu0 %v978
    %1452 = vmatpush.msra.mxu0 %v970
    %1453 = vmatpush.msra.mxu0 %v962
    %1454 = vmatpush.msra.mxu0 %v954
    %1455 = vmatpush.msra.mxu0 %v946
    %1456 = vmatpush.msra.mxu0 %v938
    %1457 = vmatpush.msra.mxu0 %v930
    %1458 = vmatpush.msra.mxu0 %v922
    %1459 = vmatpush.msra.mxu0 %v914
    %1460 = vmatpush.msra.mxu0 %v906
    %1461 = vmatpush.msra.mxu0 %v898
    %1462 = vmatpush.msra.mxu0 %v890
    %1463 = vmatpush.msra.mxu0 %v882
    %1464 = vmatpush.msra.mxu0 %v874
    %1465 = vmatpush.msra.mxu0 %v866
    %1466 = vmatmul.f32.gmra.mxu0 %v1269
    %v1467 = vpop.f32.mrf.mxu0
    %v1468 = vadd.f32 %v1448, %v1467
    %1469 = vdwg.mxu0
    %1470 = vmatpush.msra.mxu0 %v859
    %1471 = vmatpush.msra.mxu0 %v851
    %1472 = vmatpush.msra.mxu0 %v843
    %1473 = vmatpush.msra.mxu0 %v835
    %1474 = vmatpush.msra.mxu0 %v827
    %1475 = vmatpush.msra.mxu0 %v819
    %1476 = vmatpush.msra.mxu0 %v811
    %1477 = vmatpush.msra.mxu0 %v803
    %1478 = vmatpush.msra.mxu0 %v795
    %1479 = vmatpush.msra.mxu0 %v787
    %1480 = vmatpush.msra.mxu0 %v779
    %1481 = vmatpush.msra.mxu0 %v771
    %1482 = vmatpush.msra.mxu0 %v763
    %1483 = vmatpush.msra.mxu0 %v755
    %1484 = vmatpush.msra.mxu0 %v747
    %1485 = vmatpush.msra.mxu0 %v739
    %1486 = vmatmul.f32.gmra.mxu0 %v1268
    %v1487 = vpop.f32.mrf.mxu0
    %v1488 = vadd.f32 0.0, %v1487
    %1489 = vdwg.mxu0
    %1490 = vmatpush.msra.mxu0 %v987
    %1491 = vmatpush.msra.mxu0 %v979
    %1492 = vmatpush.msra.mxu0 %v971
    %1493 = vmatpush.msra.mxu0 %v963
    %1494 = vmatpush.msra.mxu0 %v955
    %1495 = vmatpush.msra.mxu0 %v947
    %1496 = vmatpush.msra.mxu0 %v939
    %1497 = vmatpush.msra.mxu0 %v931
    %1498 = vmatpush.msra.mxu0 %v923
    %1499 = vmatpush.msra.mxu0 %v915
    %1500 = vmatpush.msra.mxu0 %v907
    %1501 = vmatpush.msra.mxu0 %v899
    %1502 = vmatpush.msra.mxu0 %v891
    %1503 = vmatpush.msra.mxu0 %v883
    %1504 = vmatpush.msra.mxu0 %v875
    %1505 = vmatpush.msra.mxu0 %v867
    %1506 = vmatmul.f32.gmra.mxu0 %v1269
    %v1507 = vpop.f32.mrf.mxu0
    %v1508 = vadd.f32 %v1488, %v1507
    %1509 = vdwg.mxu0
    %1510 = vmatpush.msra.mxu0 %v860
    %1511 = vmatpush.msra.mxu0 %v852
    %1512 = vmatpush.msra.mxu0 %v844
    %1513 = vmatpush.msra.mxu0 %v836
    %1514 = vmatpush.msra.mxu0 %v828
    %1515 = vmatpush.msra.mxu0 %v820
    %1516 = vmatpush.msra.mxu0 %v812
    %1517 = vmatpush.msra.mxu0 %v804
    %1518 = vmatpush.msra.mxu0 %v796
    %1519 = vmatpush.msra.mxu0 %v788
    %1520 = vmatpush.msra.mxu0 %v780
    %1521 = vmatpush.msra.mxu0 %v772
    %1522 = vmatpush.msra.mxu0 %v764
    %1523 = vmatpush.msra.mxu0 %v756
    %1524 = vmatpush.msra.mxu0 %v748
    %1525 = vmatpush.msra.mxu0 %v740
    %1526 = vmatmul.f32.gmra.mxu0 %v1268
    %v1527 = vpop.f32.mrf.mxu0
    %v1528 = vadd.f32 0.0, %v1527
    %1529 = vdwg.mxu0
    %1530 = vmatpush.msra.mxu0 %v988
    %1531 = vmatpush.msra.mxu0 %v980
    %1532 = vmatpush.msra.mxu0 %v972
    %1533 = vmatpush.msra.mxu0 %v964
    %1534 = vmatpush.msra.mxu0 %v956
    %1535 = vmatpush.msra.mxu0 %v948
    %1536 = vmatpush.msra.mxu0 %v940
    %1537 = vmatpush.msra.mxu0 %v932
    %1538 = vmatpush.msra.mxu0 %v924
    %1539 = vmatpush.msra.mxu0 %v916
    %1540 = vmatpush.msra.mxu0 %v908
    %1541 = vmatpush.msra.mxu0 %v900
    %1542 = vmatpush.msra.mxu0 %v892
    %1543 = vmatpush.msra.mxu0 %v884
    %1544 = vmatpush.msra.mxu0 %v876
    %1545 = vmatpush.msra.mxu0 %v868
    %1546 = vmatmul.f32.gmra.mxu0 %v1269
    %v1547 = vpop.f32.mrf.mxu0
    %v1548 = vadd.f32 %v1528, %v1547
    %1549 = vdwg.mxu0
    %1550 = vmatpush.msra.mxu0 %v861
    %1551 = vmatpush.msra.mxu0 %v853
    %1552 = vmatpush.msra.mxu0 %v845
    %1553 = vmatpush.msra.mxu0 %v837
    %1554 = vmatpush.msra.mxu0 %v829
    %1555 = vmatpush.msra.mxu0 %v821
    %1556 = vmatpush.msra.mxu0 %v813
    %1557 = vmatpush.msra.mxu0 %v805
    %1558 = vmatpush.msra.mxu0 %v797
    %1559 = vmatpush.msra.mxu0 %v789
    %1560 = vmatpush.msra.mxu0 %v781
    %1561 = vmatpush.msra.mxu0 %v773
    %1562 = vmatpush.msra.mxu0 %v765
    %1563 = vmatpush.msra.mxu0 %v757
    %1564 = vmatpush.msra.mxu0 %v749
    %1565 = vmatpush.msra.mxu0 %v741
    %1566 = vmatmul.f32.gmra.mxu0 %v1268
    %v1567 = vpop.f32.mrf.mxu0
    %v1568 = vadd.f32 0.0, %v1567
    %1569 = vdwg.mxu0
    %1570 = vmatpush.msra.mxu0 %v989
    %1571 = vmatpush.msra.mxu0 %v981
    %1572 = vmatpush.msra.mxu0 %v973
    %1573 = vmatpush.msra.mxu0 %v965
    %1574 = vmatpush.msra.mxu0 %v957
    %1575 = vmatpush.msra.mxu0 %v949
    %1576 = vmatpush.msra.mxu0 %v941
    %1577 = vmatpush.msra.mxu0 %v933
    %1578 = vmatpush.msra.mxu0 %v925
    %1579 = vmatpush.msra.mxu0 %v917
    %1580 = vmatpush.msra.mxu0 %v909
    %1581 = vmatpush.msra.mxu0 %v901
    %1582 = vmatpush.msra.mxu0 %v893
    %1583 = vmatpush.msra.mxu0 %v885
    %1584 = vmatpush.msra.mxu0 %v877
    %1585 = vmatpush.msra.mxu0 %v869
    %1586 = vmatmul.f32.gmra.mxu0 %v1269
    %v1587 = vpop.f32.mrf.mxu0
    %v1588 = vadd.f32 %v1568, %v1587
    %1589 = vdwg.mxu0
    %v1598 = vrot.slane %v1308, 6
    %v1599 = vrot.slane %v1348, 6
    %v1600 = vrot.slane %v1388, 6
    %v1601 = vrot.slane %v1428, 6
    %v1602 = vrot.slane %v1468, 6
    %v1603 = vrot.slane %v1508, 6
    %v1604 = vrot.slane %v1548, 6
    %v1605 = vrot.slane %v1588, 6
    %v1614 = vadd.f32 %v262, %v1598
    %v1615 = vadd.f32 %v293, %v1599
    %v1616 = vadd.f32 %v324, %v1600
    %v1617 = vadd.f32 %v354, %v1601
    %v1618 = vadd.f32 %v384, %v1602
    %v1619 = vadd.f32 %v415, %v1603
    %v1620 = vadd.f32 %v446, %v1604
    %v1621 = vadd.f32 %v477, %v1605
    %v1622 = vmul.f32 %v1614, 0.5
    %v1623 = vmul.f32 %v1615, 0.5
    %v1624 = vtanh.pop %v1622
    %v1625 = vtanh.pop %v1623
    %v1626 = vadd.f32 %v1624, 1.0
    %v1627 = vadd.f32 %v1625, 1.0
    %v1628 = vmul.f32 %v1626, 0.5
    %v1629 = vmul.f32 %v1627, 0.5
    %v1630 = vmul.f32 %v1616, 0.5
    %v1631 = vmul.f32 %v1617, 0.5
    %v1632 = vtanh.pop %v1630
    %v1633 = vtanh.pop %v1631
    %v1634 = vadd.f32 %v1632, 1.0
    %v1635 = vadd.f32 %v1633, 1.0
    %v1636 = vmul.f32 %v1634, 0.5
    %v1637 = vmul.f32 %v1635, 0.5
    %v1638 = vtanh.pop %v1618
    %v1639 = vtanh.pop %v1619
    %v1640 = vmul.f32 %v1620, 0.5
    %v1641 = vmul.f32 %v1621, 0.5
    %v1642 = vtanh.pop %v1640
    %v1643 = vtanh.pop %v1641
    %v1644 = vadd.f32 %v1642, 1.0
    %v1645 = vadd.f32 %v1643, 1.0
    %v1646 = vmul.f32 %v1644, 0.5
    %v1647 = vmul.f32 %v1645, 0.5
    %v1650 = vrot.slane %v1264, 6
    %v1651 = vrot.slane %v1265, 6
    %v1654 = vmul.f32 %v1636, %v1650
    %v1655 = vmul.f32 %v1637, %v1651
    %v1656 = vmul.f32 %v1628, %v1638
    %v1657 = vmul.f32 %v1629, %v1639
    %v1658 = vadd.f32 %v1654, %v1656
    %v1659 = vadd.f32 %v1655, %v1657
    %v1660 = vtanh.pop %v1658
    %v1661 = vtanh.pop %v1659
    %v1662 = vmul.f32 %v1646, %v1660
    %v1663 = vmul.f32 %v1647, %v1661
    %v1666 = vrot.slane %v1662, 2
    %v1667 = vrot.slane %v1663, 2
    %1670 = vmatpush.msra.mxu0 %v854
    %1671 = vmatpush.msra.mxu0 %v846
    %1672 = vmatpush.msra.mxu0 %v838
    %1673 = vmatpush.msra.mxu0 %v830
    %1674 = vmatpush.msra.mxu0 %v822
    %1675 = vmatpush.msra.mxu0 %v814
    %1676 = vmatpush.msra.mxu0 %v806
    %1677 = vmatpush.msra.mxu0 %v798
    %1678 = vmatpush.msra.mxu0 %v790
    %1679 = vmatpush.msra.mxu0 %v782
    %1680 = vmatpush.msra.mxu0 %v774
    %1681 = vmatpush.msra.mxu0 %v766
    %1682 = vmatpush.msra.mxu0 %v758
    %1683 = vmatpush.msra.mxu0 %v750
    %1684 = vmatpush.msra.mxu0 %v742
    %1685 = vmatpush.msra.mxu0 %v734
    %1686 = vmatmul.f32.gmra.mxu0 %v1666
    %v1687 = vpop.f32.mrf.mxu0
    %v1688 = vadd.f32 0.0, %v1687
    %1689 = vdwg.mxu0
    %1690 = vmatpush.msra.mxu0 %v982
    %1691 = vmatpush.msra.mxu0 %v974
    %1692 = vmatpush.msra.mxu0 %v966
    %1693 = vmatpush.msra.mxu0 %v958
    %1694 = vmatpush.msra.mxu0 %v950
    %1695 = vmatpush.msra.mxu0 %v942
    %1696 = vmatpush.msra.mxu0 %v934
    %1697 = vmatpush.msra.mxu0 %v926
    %1698 = vmatpush.msra.mxu0 %v918
    %1699 = vmatpush.msra.mxu0 %v910
    %1700 = vmatpush.msra.mxu0 %v902
    %1701 = vmatpush.msra.mxu0 %v894
    %1702 = vmatpush.msra.mxu0 %v886
    %1703 = vmatpush.msra.mxu0 %v878
    %1704 = vmatpush.msra.mxu0 %v870
    %1705 = vmatpush.msra.mxu0 %v862
    %1706 = vmatmul.f32.gmra.mxu0 %v1667
    %v1707 = vpop.f32.mrf.mxu0
    %v1708 = vadd.f32 %v1688, %v1707
    %1709 = vdwg.mxu0
    %1710 = vmatpush.msra.mxu0 %v855
    %1711 = vmatpush.msra.mxu0 %v847
    %1712 = vmatpush.msra.mxu0 %v839
    %1713 = vmatpush.msra.mxu0 %v831
    %1714 = vmatpush.msra.mxu0 %v823
    %1715 = vmatpush.msra.mxu0 %v815
    %1716 = vmatpush.msra.mxu0 %v807
    %1717 = vmatpush.msra.mxu0 %v799
    %1718 = vmatpush.msra.mxu0 %v791
    %1719 = vmatpush.msra.mxu0 %v783
    %1720 = vmatpush.msra.mxu0 %v775
    %1721 = vmatpush.msra.mxu0 %v767
    %1722 = vmatpush.msra.mxu0 %v759
    %1723 = vmatpush.msra.mxu0 %v751
    %1724 = vmatpush.msra.mxu0 %v743
    %1725 = vmatpush.msra.mxu0 %v735
    %1726 = vmatmul.f32.gmra.mxu0 %v1666
    %v1727 = vpop.f32.mrf.mxu0
    %v1728 = vadd.f32 0.0, %v1727
    %1729 = vdwg.mxu0
    %1730 = vmatpush.msra.mxu0 %v983
    %1731 = vmatpush.msra.mxu0 %v975
    %1732 = vmatpush.msra.mxu0 %v967
    %1733 = vmatpush.msra.mxu0 %v959
    %1734 = vmatpush.msra.mxu0 %v951
    %1735 = vmatpush.msra.mxu0 %v943
    %1736 = vmatpush.msra.mxu0 %v935
    %1737 = vmatpush.msra.mxu0 %v927
    %1738 = vmatpush.msra.mxu0 %v919
    %1739 = vmatpush.msra.mxu0 %v911
    %1740 = vmatpush.msra.mxu0 %v903
    %1741 = vmatpush.msra.mxu0 %v895
    %1742 = vmatpush.msra.mxu0 %v887
    %1743 = vmatpush.msra.mxu0 %v879
    %1744 = vmatpush.msra.mxu0 %v871
    %1745 = vmatpush.msra.mxu0 %v863
    %1746 = vmatmul.f32.gmra.mxu0 %v1667
    %v1747 = vpop.f32.mrf.mxu0
    %v1748 = vadd.f32 %v1728, %v1747
    %1749 = vdwg.mxu0
    %1750 = vmatpush.msra.mxu0 %v856
    %1751 = vmatpush.msra.mxu0 %v848
    %1752 = vmatpush.msra.mxu0 %v840
    %1753 = vmatpush.msra.mxu0 %v832
    %1754 = vmatpush.msra.mxu0 %v824
    %1755 = vmatpush.msra.mxu0 %v816
    %1756 = vmatpush.msra.mxu0 %v808
    %1757 = vmatpush.msra.mxu0 %v800
    %1758 = vmatpush.msra.mxu0 %v792
    %1759 = vmatpush.msra.mxu0 %v784
    %1760 = vmatpush.msra.mxu0 %v776
    %1761 = vmatpush.msra.mxu0 %v768
    %1762 = vmatpush.msra.mxu0 %v760
    %1763 = vmatpush.msra.mxu0 %v752
    %1764 = vmatpush.msra.mxu0 %v744
    %1765 = vmatpush.msra.mxu0 %v736
    %1766 = vmatmul.f32.gmra.mxu0 %v1666
    %v1767 = vpop.f32.mrf.mxu0
    %v1768 = vadd.f32 0.0, %v1767
    %1769 = vdwg.mxu0
    %1770 = vmatpush.msra.mxu0 %v984
    %1771 = vmatpush.msra.mxu0 %v976
    %1772 = vmatpush.msra.mxu0 %v968
    %1773 = vmatpush.msra.mxu0 %v960
    %1774 = vmatpush.msra.mxu0 %v952
    %1775 = vmatpush.msra.mxu0 %v944
    %1776 = vmatpush.msra.mxu0 %v936
    %1777 = vmatpush.msra.mxu0 %v928
    %1778 = vmatpush.msra.mxu0 %v920
    %1779 = vmatpush.msra.mxu0 %v912
    %1780 = vmatpush.msra.mxu0 %v904
    %1781 = vmatpush.msra.mxu0 %v896
    %1782 = vmatpush.msra.mxu0 %v888
    %1783 = vmatpush.msra.mxu0 %v880
    %1784 = vmatpush.msra.mxu0 %v872
    %1785 = vmatpush.msra.mxu0 %v864
    %1786 = vmatmul.f32.gmra.mxu0 %v1667
    %v1787 = vpop.f32.mrf.mxu0
    %v1788 = vadd.f32 %v1768, %v1787
    %1789 = vdwg.mxu0
    %1790 = vmatpush.msra.mxu0 %v857
    %1791 = vmatpush.msra.mxu0 %v849
    %1792 = vmatpush.msra.mxu0 %v841
    %1793 = vmatpush.msra.mxu0 %v833
    %1794 = vmatpush.msra.mxu0 %v825
    %1795 = vmatpush.msra.mxu0 %v817
    %1796 = vmatpush.msra.mxu0 %v809
    %1797 = vmatpush.msra.mxu0 %v801
    %1798 = vmatpush.msra.mxu0 %v793
    %1799 = vmatpush.msra.mxu0 %v785
    %1800 = vmatpush.msra.mxu0 %v777
    %1801 = vmatpush.msra.mxu0 %v769
    %1802 = vmatpush.msra.mxu0 %v761
    %1803 = vmatpush.msra.mxu0 %v753
    %1804 = vmatpush.msra.mxu0 %v745
    %1805 = vmatpush.msra.mxu0 %v737
    %1806 = vmatmul.f32.gmra.mxu0 %v1666
    %v1807 = vpop.f32.mrf.mxu0
    %v1808 = vadd.f32 0.0, %v1807
    %1809 = vdwg.mxu0
    %1810 = vmatpush.msra.mxu0 %v985
    %1811 = vmatpush.msra.mxu0 %v977
    %1812 = vmatpush.msra.mxu0 %v969
    %1813 = vmatpush.msra.mxu0 %v961
    %1814 = vmatpush.msra.mxu0 %v953
    %1815 = vmatpush.msra.mxu0 %v945
    %1816 = vmatpush.msra.mxu0 %v937
    %1817 = vmatpush.msra.mxu0 %v929
    %1818 = vmatpush.msra.mxu0 %v921
    %1819 = vmatpush.msra.mxu0 %v913
    %1820 = vmatpush.msra.mxu0 %v905
    %1821 = vmatpush.msra.mxu0 %v897
    %1822 = vmatpush.msra.mxu0 %v889
    %1823 = vmatpush.msra.mxu0 %v881
    %1824 = vmatpush.msra.mxu0 %v873
    %1825 = vmatpush.msra.mxu0 %v865
    %1826 = vmatmul.f32.gmra.mxu0 %v1667
    %v1827 = vpop.f32.mrf.mxu0
    %v1828 = vadd.f32 %v1808, %v1827
    %1829 = vdwg.mxu0
    %1830 = vmatpush.msra.mxu0 %v858
    %1831 = vmatpush.msra.mxu0 %v850
    %1832 = vmatpush.msra.mxu0 %v842
    %1833 = vmatpush.msra.mxu0 %v834
    %1834 = vmatpush.msra.mxu0 %v826
    %1835 = vmatpush.msra.mxu0 %v818
    %1836 = vmatpush.msra.mxu0 %v810
    %1837 = vmatpush.msra.mxu0 %v802
    %1838 = vmatpush.msra.mxu0 %v794
    %1839 = vmatpush.msra.mxu0 %v786
    %1840 = vmatpush.msra.mxu0 %v778
    %1841 = vmatpush.msra.mxu0 %v770
    %1842 = vmatpush.msra.mxu0 %v762
    %1843 = vmatpush.msra.mxu0 %v754
    %1844 = vmatpush.msra.mxu0 %v746
    %1845 = vmatpush.msra.mxu0 %v738
    %1846 = vmatmul.f32.gmra.mxu0 %v1666
    %v1847 = vpop.f32.mrf.mxu0
    %v1848 = vadd.f32 0.0, %v1847
    %1849 = vdwg.mxu0
    %1850 = vmatpush.msra.mxu0 %v986
    %1851 = vmatpush.msra.mxu0 %v978
    %1852 = vmatpush.msra.mxu0 %v970
    %1853 = vmatpush.msra.mxu0 %v962
    %1854 = vmatpush.msra.mxu0 %v954
    %1855 = vmatpush.msra.mxu0 %v946
    %1856 = vmatpush.msra.mxu0 %v938
    %1857 = vmatpush.msra.mxu0 %v930
    %1858 = vmatpush.msra.mxu0 %v922
    %1859 = vmatpush.msra.mxu0 %v914
    %1860 = vmatpush.msra.mxu0 %v906
    %1861 = vmatpush.msra.mxu0 %v898
    %1862 = vmatpush.msra.mxu0 %v890
    %1863 = vmatpush.msra.mxu0 %v882
    %1864 = vmatpush.msra.mxu0 %v874
    %1865 = vmatpush.msra.mxu0 %v866
    %1866 = vmatmul.f32.gmra.mxu0 %v1667
    %v1867 = vpop.f32.mrf.mxu0
    %v1868 = vadd.f32 %v1848, %v1867
    %1869 = vdwg.mxu0
    %1870 = vmatpush.msra.mxu0 %v859
    %1871 = vmatpush.msra.mxu0 %v851
    %1872 = vmatpush.msra.mxu0 %v843
    %1873 = vmatpush.msra.mxu0 %v835
    %1874 = vmatpush.msra.mxu0 %v827
    %1875 = vmatpush.msra.mxu0 %v819
    %1876 = vmatpush.msra.mxu0 %v811
    %1877 = vmatpush.msra.mxu0 %v803
    %1878 = vmatpush.msra.mxu0 %v795
    %1879 = vmatpush.msra.mxu0 %v787
    %1880 = vmatpush.msra.mxu0 %v779
    %1881 = vmatpush.msra.mxu0 %v771
    %1882 = vmatpush.msra.mxu0 %v763
    %1883 = vmatpush.msra.mxu0 %v755
    %1884 = vmatpush.msra.mxu0 %v747
    %1885 = vmatpush.msra.mxu0 %v739
    %1886 = vmatmul.f32.gmra.mxu0 %v1666
    %v1887 = vpop.f32.mrf.mxu0
    %v1888 = vadd.f32 0.0, %v1887
    %1889 = vdwg.mxu0
    %1890 = vmatpush.msra.mxu0 %v987
    %1891 = vmatpush.msra.mxu0 %v979
    %1892 = vmatpush.msra.mxu0 %v971
    %1893 = vmatpush.msra.mxu0 %v963
    %1894 = vmatpush.msra.mxu0 %v955
    %1895 = vmatpush.msra.mxu0 %v947
    %1896 = vmatpush.msra.mxu0 %v939
    %1897 = vmatpush.msra.mxu0 %v931
    %1898 = vmatpush.msra.mxu0 %v923
    %1899 = vmatpush.msra.mxu0 %v915
    %1900 = vmatpush.msra.mxu0 %v907
    %1901 = vmatpush.msra.mxu0 %v899
    %1902 = vmatpush.msra.mxu0 %v891
    %1903 = vmatpush.msra.mxu0 %v883
    %1904 = vmatpush.msra.mxu0 %v875
    %1905 = vmatpush.msra.mxu0 %v867
    %1906 = vmatmul.f32.gmra.mxu0 %v1667
    %v1907 = vpop.f32.mrf.mxu0
    %v1908 = vadd.f32 %v1888, %v1907
    %1909 = vdwg.mxu0
    %1910 = vmatpush.msra.mxu0 %v860
    %1911 = vmatpush.msra.mxu0 %v852
    %1912 = vmatpush.msra.mxu0 %v844
    %1913 = vmatpush.msra.mxu0 %v836
    %1914 = vmatpush.msra.mxu0 %v828
    %1915 = vmatpush.msra.mxu0 %v820
    %1916 = vmatpush.msra.mxu0 %v812
    %1917 = vmatpush.msra.mxu0 %v804
    %1918 = vmatpush.msra.mxu0 %v796
    %1919 = vmatpush.msra.mxu0 %v788
    %1920 = vmatpush.msra.mxu0 %v780
    %1921 = vmatpush.msra.mxu0 %v772
    %1922 = vmatpush.msra.mxu0 %v764
    %1923 = vmatpush.msra.mxu0 %v756
    %1924 = vmatpush.msra.mxu0 %v748
    %1925 = vmatpush.msra.mxu0 %v740
    %1926 = vmatmul.f32.gmra.mxu0 %v1666
    %v1927 = vpop.f32.mrf.mxu0
    %v1928 = vadd.f32 0.0, %v1927
    %1929 = vdwg.mxu0
    %1930 = vmatpush.msra.mxu0 %v988
    %1931 = vmatpush.msra.mxu0 %v980
    %1932 = vmatpush.msra.mxu0 %v972
    %1933 = vmatpush.msra.mxu0 %v964
    %1934 = vmatpush.msra.mxu0 %v956
    %1935 = vmatpush.msra.mxu0 %v948
    %1936 = vmatpush.msra.mxu0 %v940
    %1937 = vmatpush.msra.mxu0 %v932
    %1938 = vmatpush.msra.mxu0 %v924
    %1939 = vmatpush.msra.mxu0 %v916
    %1940 = vmatpush.msra.mxu0 %v908
    %1941 = vmatpush.msra.mxu0 %v900
    %1942 = vmatpush.msra.mxu0 %v892
    %1943 = vmatpush.msra.mxu0 %v884
    %1944 = vmatpush.msra.mxu0 %v876
    %1945 = vmatpush.msra.mxu0 %v868
    %1946 = vmatmul.f32.gmra.mxu0 %v1667
    %v1947 = vpop.f32.mrf.mxu0
    %v1948 = vadd.f32 %v1928, %v1947
    %1949 = vdwg.mxu0
    %1950 = vmatpush.msra.mxu0 %v861
    %1951 = vmatpush.msra.mxu0 %v853
    %1952 = vmatpush.msra.mxu0 %v845
    %1953 = vmatpush.msra.mxu0 %v837
    %1954 = vmatpush.msra.mxu0 %v829
    %1955 = vmatpush.msra.mxu0 %v821
    %1956 = vmatpush.msra.mxu0 %v813
    %1957 = vmatpush.msra.mxu0 %v805
    %1958 = vmatpush.msra.mxu0 %v797
    %1959 = vmatpush.msra.mxu0 %v789
    %1960 = vmatpush.msra.mxu0 %v781
    %1961 = vmatpush.msra.mxu0 %v773
    %1962 = vmatpush.msra.mxu0 %v765
    %1963 = vmatpush.msra.mxu0 %v757
    %1964 = vmatpush.msra.mxu0 %v749
    %1965 = vmatpush.msra.mxu0 %v741
    %1966 = vmatmul.f32.gmra.mxu0 %v1666
    %v1967 = vpop.f32.mrf.mxu0
    %v1968 = vadd.f32 0.0, %v1967
    %1969 = vdwg.mxu0
    %1970 = vmatpush.msra.mxu0 %v989
    %1971 = vmatpush.msra.mxu0 %v981
    %1972 = vmatpush.msra.mxu0 %v973
    %1973 = vmatpush.msra.mxu0 %v965
    %1974 = vmatpush.msra.mxu0 %v957
    %1975 = vmatpush.msra.mxu0 %v949
    %1976 = vmatpush.msra.mxu0 %v941
    %1977 = vmatpush.msra.mxu0 %v933
    %1978 = vmatpush.msra.mxu0 %v925
    %1979 = vmatpush.msra.mxu0 %v917
    %1980 = vmatpush.msra.mxu0 %v909
    %1981 = vmatpush.msra.mxu0 %v901
    %1982 = vmatpush.msra.mxu0 %v893
    %1983 = vmatpush.msra.mxu0 %v885
    %1984 = vmatpush.msra.mxu0 %v877
    %1985 = vmatpush.msra.mxu0 %v869
    %1986 = vmatmul.f32.gmra.mxu0 %v1667
    %v1987 = vpop.f32.mrf.mxu0
    %v1988 = vadd.f32 %v1968, %v1987
    %1989 = vdwg.mxu0
    %v1998 = vrot.slane %v1708, 4
    %v1999 = vrot.slane %v1748, 4
    %v2000 = vrot.slane %v1788, 4
    %v2001 = vrot.slane %v1828, 4
    %v2002 = vrot.slane %v1868, 4
    %v2003 = vrot.slane %v1908, 4
    %v2004 = vrot.slane %v1948, 4
    %v2005 = vrot.slane %v1988, 4
    %v2014 = vadd.f32 %v262, %v1998
    %v2015 = vadd.f32 %v293, %v1999
    %v2016 = vadd.f32 %v324, %v2000
    %v2017 = vadd.f32 %v354, %v2001
    %v2018 = vadd.f32 %v384, %v2002
    %v2019 = vadd.f32 %v415, %v2003
    %v2020 = vadd.f32 %v446, %v2004
    %v2021 = vadd.f32 %v477, %v2005
    %v2022 = vmul.f32 %v2014, 0.5
    %v2023 = vmul.f32 %v2015, 0.5
    %v2024 = vtanh.pop %v2022
    %v2025 = vtanh.pop %v2023
    %v2026 = vadd.f32 %v2024, 1.0
    %v2027 = vadd.f32 %v2025, 1.0
    %v2028 = vmul.f32 %v2026, 0.5
    %v2029 = vmul.f32 %v2027, 0.5
    %v2030 = vmul.f32 %v2016, 0.5
    %v2031 = vmul.f32 %v2017, 0.5
    %v2032 = vtanh.pop %v2030
    %v2033 = vtanh.pop %v2031
    %v2034 = vadd.f32 %v2032, 1.0
    %v2035 = vadd.f32 %v2033, 1.0
    %v2036 = vmul.f32 %v2034, 0.5
    %v2037 = vmul.f32 %v2035, 0.5
    %v2038 = vtanh.pop %v2018
    %v2039 = vtanh.pop %v2019
    %v2040 = vmul.f32 %v2020, 0.5
    %v2041 = vmul.f32 %v2021, 0.5
    %v2042 = vtanh.pop %v2040
    %v2043 = vtanh.pop %v2041
    %v2044 = vadd.f32 %v2042, 1.0
    %v2045 = vadd.f32 %v2043, 1.0
    %v2046 = vmul.f32 %v2044, 0.5
    %v2047 = vmul.f32 %v2045, 0.5
    %v2050 = vrot.slane %v1658, 6
    %v2051 = vrot.slane %v1659, 6
    %v2054 = vmul.f32 %v2036, %v2050
    %v2055 = vmul.f32 %v2037, %v2051
    %v2056 = vmul.f32 %v2028, %v2038
    %v2057 = vmul.f32 %v2029, %v2039
    %v2058 = vadd.f32 %v2054, %v2056
    %v2059 = vadd.f32 %v2055, %v2057
    %v2060 = vtanh.pop %v2058
    %v2061 = vtanh.pop %v2059
    %v2062 = vmul.f32 %v2046, %v2060
    %v2063 = vmul.f32 %v2047, %v2061
    %v2066 = vrot.slane %v2062, 4
    %v2067 = vrot.slane %v2063, 4
    %2070 = vmatpush.msra.mxu0 %v854
    %2071 = vmatpush.msra.mxu0 %v846
    %2072 = vmatpush.msra.mxu0 %v838
    %2073 = vmatpush.msra.mxu0 %v830
    %2074 = vmatpush.msra.mxu0 %v822
    %2075 = vmatpush.msra.mxu0 %v814
    %2076 = vmatpush.msra.mxu0 %v806
    %2077 = vmatpush.msra.mxu0 %v798
    %2078 = vmatpush.msra.mxu0 %v790
    %2079 = vmatpush.msra.mxu0 %v782
    %2080 = vmatpush.msra.mxu0 %v774
    %2081 = vmatpush.msra.mxu0 %v766
    %2082 = vmatpush.msra.mxu0 %v758
    %2083 = vmatpush.msra.mxu0 %v750
    %2084 = vmatpush.msra.mxu0 %v742
    %2085 = vmatpush.msra.mxu0 %v734
    %2086 = vmatmul.f32.gmra.mxu0 %v2066
    %v2087 = vpop.f32.mrf.mxu0
    %v2088 = vadd.f32 0.0, %v2087
    %2089 = vdwg.mxu0
    %2090 = vmatpush.msra.mxu0 %v982
    %2091 = vmatpush.msra.mxu0 %v974
    %2092 = vmatpush.msra.mxu0 %v966
    %2093 = vmatpush.msra.mxu0 %v958
    %2094 = vmatpush.msra.mxu0 %v950
    %2095 = vmatpush.msra.mxu0 %v942
    %2096 = vmatpush.msra.mxu0 %v934
    %2097 = vmatpush.msra.mxu0 %v926
    %2098 = vmatpush.msra.mxu0 %v918
    %2099 = vmatpush.msra.mxu0 %v910
    %2100 = vmatpush.msra.mxu0 %v902
    %2101 = vmatpush.msra.mxu0 %v894
    %2102 = vmatpush.msra.mxu0 %v886
    %2103 = vmatpush.msra.mxu0 %v878
    %2104 = vmatpush.msra.mxu0 %v870
    %2105 = vmatpush.msra.mxu0 %v862
    %2106 = vmatmul.f32.gmra.mxu0 %v2067
    %v2107 = vpop.f32.mrf.mxu0
    %v2108 = vadd.f32 %v2088, %v2107
    %2109 = vdwg.mxu0
    %2110 = vmatpush.msra.mxu0 %v855
    %2111 = vmatpush.msra.mxu0 %v847
    %2112 = vmatpush.msra.mxu0 %v839
    %2113 = vmatpush.msra.mxu0 %v831
    %2114 = vmatpush.msra.mxu0 %v823
    %2115 = vmatpush.msra.mxu0 %v815
    %2116 = vmatpush.msra.mxu0 %v807
    %2117 = vmatpush.msra.mxu0 %v799
    %2118 = vmatpush.msra.mxu0 %v791
    %2119 = vmatpush.msra.mxu0 %v783
    %2120 = vmatpush.msra.mxu0 %v775
    %2121 = vmatpush.msra.mxu0 %v767
    %2122 = vmatpush.msra.mxu0 %v759
    %2123 = vmatpush.msra.mxu0 %v751
    %2124 = vmatpush.msra.mxu0 %v743
    %2125 = vmatpush.msra.mxu0 %v735
    %2126 = vmatmul.f32.gmra.mxu0 %v2066
    %v2127 = vpop.f32.mrf.mxu0
    %v2128 = vadd.f32 0.0, %v2127
    %2129 = vdwg.mxu0
    %2130 = vmatpush.msra.mxu0 %v983
    %2131 = vmatpush.msra.mxu0 %v975
    %2132 = vmatpush.msra.mxu0 %v967
    %2133 = vmatpush.msra.mxu0 %v959
    %2134 = vmatpush.msra.mxu0 %v951
    %2135 = vmatpush.msra.mxu0 %v943
    %2136 = vmatpush.msra.mxu0 %v935
    %2137 = vmatpush.msra.mxu0 %v927
    %2138 = vmatpush.msra.mxu0 %v919
    %2139 = vmatpush.msra.mxu0 %v911
    %2140 = vmatpush.msra.mxu0 %v903
    %2141 = vmatpush.msra.mxu0 %v895
    %2142 = vmatpush.msra.mxu0 %v887
    %2143 = vmatpush.msra.mxu0 %v879
    %2144 = vmatpush.msra.mxu0 %v871
    %2145 = vmatpush.msra.mxu0 %v863
    %2146 = vmatmul.f32.gmra.mxu0 %v2067
    %v2147 = vpop.f32.mrf.mxu0
    %v2148 = vadd.f32 %v2128, %v2147
    %2149 = vdwg.mxu0
    %2150 = vmatpush.msra.mxu0 %v856
    %2151 = vmatpush.msra.mxu0 %v848
    %2152 = vmatpush.msra.mxu0 %v840
    %2153 = vmatpush.msra.mxu0 %v832
    %2154 = vmatpush.msra.mxu0 %v824
    %2155 = vmatpush.msra.mxu0 %v816
    %2156 = vmatpush.msra.mxu0 %v808
    %2157 = vmatpush.msra.mxu0 %v800
    %2158 = vmatpush.msra.mxu0 %v792
    %2159 = vmatpush.msra.mxu0 %v784
    %2160 = vmatpush.msra.mxu0 %v776
    %2161 = vmatpush.msra.mxu0 %v768
    %2162 = vmatpush.msra.mxu0 %v760
    %2163 = vmatpush.msra.mxu0 %v752
    %2164 = vmatpush.msra.mxu0 %v744
    %2165 = vmatpush.msra.mxu0 %v736
    %2166 = vmatmul.f32.gmra.mxu0 %v2066
    %v2167 = vpop.f32.mrf.mxu0
    %v2168 = vadd.f32 0.0, %v2167
    %2169 = vdwg.mxu0
    %2170 = vmatpush.msra.mxu0 %v984
    %2171 = vmatpush.msra.mxu0 %v976
    %2172 = vmatpush.msra.mxu0 %v968
    %2173 = vmatpush.msra.mxu0 %v960
    %2174 = vmatpush.msra.mxu0 %v952
    %2175 = vmatpush.msra.mxu0 %v944
    %2176 = vmatpush.msra.mxu0 %v936
    %2177 = vmatpush.msra.mxu0 %v928
    %2178 = vmatpush.msra.mxu0 %v920
    %2179 = vmatpush.msra.mxu0 %v912
    %2180 = vmatpush.msra.mxu0 %v904
    %2181 = vmatpush.msra.mxu0 %v896
    %2182 = vmatpush.msra.mxu0 %v888
    %2183 = vmatpush.msra.mxu0 %v880
    %2184 = vmatpush.msra.mxu0 %v872
    %2185 = vmatpush.msra.mxu0 %v864
    %2186 = vmatmul.f32.gmra.mxu0 %v2067
    %v2187 = vpop.f32.mrf.mxu0
    %v2188 = vadd.f32 %v2168, %v2187
    %2189 = vdwg.mxu0
    %2190 = vmatpush.msra.mxu0 %v857
    %2191 = vmatpush.msra.mxu0 %v849
    %2192 = vmatpush.msra.mxu0 %v841
    %2193 = vmatpush.msra.mxu0 %v833
    %2194 = vmatpush.msra.mxu0 %v825
    %2195 = vmatpush.msra.mxu0 %v817
    %2196 = vmatpush.msra.mxu0 %v809
    %2197 = vmatpush.msra.mxu0 %v801
    %2198 = vmatpush.msra.mxu0 %v793
    %2199 = vmatpush.msra.mxu0 %v785
    %2200 = vmatpush.msra.mxu0 %v777
    %2201 = vmatpush.msra.mxu0 %v769
    %2202 = vmatpush.msra.mxu0 %v761
    %2203 = vmatpush.msra.mxu0 %v753
    %2204 = vmatpush.msra.mxu0 %v745
    %2205 = vmatpush.msra.mxu0 %v737
    %2206 = vmatmul.f32.gmra.mxu0 %v2066
    %v2207 = vpop.f32.mrf.mxu0
    %v2208 = vadd.f32 0.0, %v2207
    %2209 = vdwg.mxu0
    %2210 = vmatpush.msra.mxu0 %v985
    %2211 = vmatpush.msra.mxu0 %v977
    %2212 = vmatpush.msra.mxu0 %v969
    %2213 = vmatpush.msra.mxu0 %v961
    %2214 = vmatpush.msra.mxu0 %v953
    %2215 = vmatpush.msra.mxu0 %v945
    %2216 = vmatpush.msra.mxu0 %v937
    %2217 = vmatpush.msra.mxu0 %v929
    %2218 = vmatpush.msra.mxu0 %v921
    %2219 = vmatpush.msra.mxu0 %v913
    %2220 = vmatpush.msra.mxu0 %v905
    %2221 = vmatpush.msra.mxu0 %v897
    %2222 = vmatpush.msra.mxu0 %v889
    %2223 = vmatpush.msra.mxu0 %v881
    %2224 = vmatpush.msra.mxu0 %v873
    %2225 = vmatpush.msra.mxu0 %v865
    %2226 = vmatmul.f32.gmra.mxu0 %v2067
    %v2227 = vpop.f32.mrf.mxu0
    %v2228 = vadd.f32 %v2208, %v2227
    %2229 = vdwg.mxu0
    %2230 = vmatpush.msra.mxu0 %v858
    %2231 = vmatpush.msra.mxu0 %v850
    %2232 = vmatpush.msra.mxu0 %v842
    %2233 = vmatpush.msra.mxu0 %v834
    %2234 = vmatpush.msra.mxu0 %v826
    %2235 = vmatpush.msra.mxu0 %v818
    %2236 = vmatpush.msra.mxu0 %v810
    %2237 = vmatpush.msra.mxu0 %v802
    %2238 = vmatpush.msra.mxu0 %v794
    %2239 = vmatpush.msra.mxu0 %v786
    %2240 = vmatpush.msra.mxu0 %v778
    %2241 = vmatpush.msra.mxu0 %v770
    %2242 = vmatpush.msra.mxu0 %v762
    %2243 = vmatpush.msra.mxu0 %v754
    %2244 = vmatpush.msra.mxu0 %v746
    %2245 = vmatpush.msra.mxu0 %v738
    %2246 = vmatmul.f32.gmra.mxu0 %v2066
    %v2247 = vpop.f32.mrf.mxu0
    %v2248 = vadd.f32 0.0, %v2247
    %2249 = vdwg.mxu0
    %2250 = vmatpush.msra.mxu0 %v986
    %2251 = vmatpush.msra.mxu0 %v978
    %2252 = vmatpush.msra.mxu0 %v970
    %2253 = vmatpush.msra.mxu0 %v962
    %2254 = vmatpush.msra.mxu0 %v954
    %2255 = vmatpush.msra.mxu0 %v946
    %2256 = vmatpush.msra.mxu0 %v938
    %2257 = vmatpush.msra.mxu0 %v930
    %2258 = vmatpush.msra.mxu0 %v922
    %2259 = vmatpush.msra.mxu0 %v914
    %2260 = vmatpush.msra.mxu0 %v906
    %2261 = vmatpush.msra.mxu0 %v898
    %2262 = vmatpush.msra.mxu0 %v890
    %2263 = vmatpush.msra.mxu0 %v882
    %2264 = vmatpush.msra.mxu0 %v874
    %2265 = vmatpush.msra.mxu0 %v866
    %2266 = vmatmul.f32.gmra.mxu0 %v2067
    %v2267 = vpop.f32.mrf.mxu0
    %v2268 = vadd.f32 %v2248, %v2267
    %2269 = vdwg.mxu0
    %2270 = vmatpush.msra.mxu0 %v859
    %2271 = vmatpush.msra.mxu0 %v851
    %2272 = vmatpush.msra.mxu0 %v843
    %2273 = vmatpush.msra.mxu0 %v835
    %2274 = vmatpush.msra.mxu0 %v827
    %2275 = vmatpush.msra.mxu0 %v819
    %2276 = vmatpush.msra.mxu0 %v811
    %2277 = vmatpush.msra.mxu0 %v803
    %2278 = vmatpush.msra.mxu0 %v795
    %2279 = vmatpush.msra.mxu0 %v787
    %2280 = vmatpush.msra.mxu0 %v779
    %2281 = vmatpush.msra.mxu0 %v771
    %2282 = vmatpush.msra.mxu0 %v763
    %2283 = vmatpush.msra.mxu0 %v755
    %2284 = vmatpush.msra.mxu0 %v747
    %2285 = vmatpush.msra.mxu0 %v739
    %2286 = vmatmul.f32.gmra.mxu0 %v2066
    %v2287 = vpop.f32.mrf.mxu0
    %v2288 = vadd.f32 0.0, %v2287
    %2289 = vdwg.mxu0
    %2290 = vmatpush.msra.mxu0 %v987
    %2291 = vmatpush.msra.mxu0 %v979
    %2292 = vmatpush.msra.mxu0 %v971
    %2293 = vmatpush.msra.mxu0 %v963
    %2294 = vmatpush.msra.mxu0 %v955
    %2295 = vmatpush.msra.mxu0 %v947
    %2296 = vmatpush.msra.mxu0 %v939
    %2297 = vmatpush.msra.mxu0 %v931
    %2298 = vmatpush.msra.mxu0 %v923
    %2299 = vmatpush.msra.mxu0 %v915
    %2300 = vmatpush.msra.mxu0 %v907
    %2301 = vmatpush.msra.mxu0 %v899
    %2302 = vmatpush.msra.mxu0 %v891
    %2303 = vmatpush.msra.mxu0 %v883
    %2304 = vmatpush.msra.mxu0 %v875
    %2305 = vmatpush.msra.mxu0 %v867
    %2306 = vmatmul.f32.gmra.mxu0 %v2067
    %v2307 = vpop.f32.mrf.mxu0
    %v2308 = vadd.f32 %v2288, %v2307
    %2309 = vdwg.mxu0
    %2310 = vmatpush.msra.mxu0 %v860
    %2311 = vmatpush.msra.mxu0 %v852
    %2312 = vmatpush.msra.mxu0 %v844
    %2313 = vmatpush.msra.mxu0 %v836
    %2314 = vmatpush.msra.mxu0 %v828
    %2315 = vmatpush.msra.mxu0 %v820
    %2316 = vmatpush.msra.mxu0 %v812
    %2317 = vmatpush.msra.mxu0 %v804
    %2318 = vmatpush.msra.mxu0 %v796
    %2319 = vmatpush.msra.mxu0 %v788
    %2320 = vmatpush.msra.mxu0 %v780
    %2321 = vmatpush.msra.mxu0 %v772
    %2322 = vmatpush.msra.mxu0 %v764
    %2323 = vmatpush.msra.mxu0 %v756
    %2324 = vmatpush.msra.mxu0 %v748
    %2325 = vmatpush.msra.mxu0 %v740
    %2326 = vmatmul.f32.gmra.mxu0 %v2066
    %v2327 = vpop.f32.mrf.mxu0
    %v2328 = vadd.f32 0.0, %v2327
    %2329 = vdwg.mxu0
    %2330 = vmatpush.msra.mxu0 %v988
    %2331 = vmatpush.msra.mxu0 %v980
    %2332 = vmatpush.msra.mxu0 %v972
    %2333 = vmatpush.msra.mxu0 %v964
    %2334 = vmatpush.msra.mxu0 %v956
    %2335 = vmatpush.msra.mxu0 %v948
    %2336 = vmatpush.msra.mxu0 %v940
    %2337 = vmatpush.msra.mxu0 %v932
    %2338 = vmatpush.msra.mxu0 %v924
    %2339 = vmatpush.msra.mxu0 %v916
    %2340 = vmatpush.msra.mxu0 %v908
    %2341 = vmatpush.msra.mxu0 %v900
    %2342 = vmatpush.msra.mxu0 %v892
    %2343 = vmatpush.msra.mxu0 %v884
    %2344 = vmatpush.msra.mxu0 %v876
    %2345 = vmatpush.msra.mxu0 %v868
    %2346 = vmatmul.f32.gmra.mxu0 %v2067
    %v2347 = vpop.f32.mrf.mxu0
    %v2348 = vadd.f32 %v2328, %v2347
    %2349 = vdwg.mxu0
    %2350 = vmatpush.msra.mxu0 %v861
    %2351 = vmatpush.msra.mxu0 %v853
    %2352 = vmatpush.msra.mxu0 %v845
    %2353 = vmatpush.msra.mxu0 %v837
    %2354 = vmatpush.msra.mxu0 %v829
    %2355 = vmatpush.msra.mxu0 %v821
    %2356 = vmatpush.msra.mxu0 %v813
    %2357 = vmatpush.msra.mxu0 %v805
    %2358 = vmatpush.msra.mxu0 %v797
    %2359 = vmatpush.msra.mxu0 %v789
    %2360 = vmatpush.msra.mxu0 %v781
    %2361 = vmatpush.msra.mxu0 %v773
    %2362 = vmatpush.msra.mxu0 %v765
    %2363 = vmatpush.msra.mxu0 %v757
    %2364 = vmatpush.msra.mxu0 %v749
    %2365 = vmatpush.msra.mxu0 %v741
    %2366 = vmatmul.f32.gmra.mxu0 %v2066
    %v2367 = vpop.f32.mrf.mxu0
    %v2368 = vadd.f32 0.0, %v2367
    %2369 = vdwg.mxu0
    %2370 = vmatpush.msra.mxu0 %v989
    %2371 = vmatpush.msra.mxu0 %v981
    %2372 = vmatpush.msra.mxu0 %v973
    %2373 = vmatpush.msra.mxu0 %v965
    %2374 = vmatpush.msra.mxu0 %v957
    %2375 = vmatpush.msra.mxu0 %v949
    %2376 = vmatpush.msra.mxu0 %v941
    %2377 = vmatpush.msra.mxu0 %v933
    %2378 = vmatpush.msra.mxu0 %v925
    %2379 = vmatpush.msra.mxu0 %v917
    %2380 = vmatpush.msra.mxu0 %v909
    %2381 = vmatpush.msra.mxu0 %v901
    %2382 = vmatpush.msra.mxu0 %v893
    %2383 = vmatpush.msra.mxu0 %v885
    %2384 = vmatpush.msra.mxu0 %v877
    %2385 = vmatpush.msra.mxu0 %v869
    %2386 = vmatmul.f32.gmra.mxu0 %v2067
    %v2387 = vpop.f32.mrf.mxu0
    %v2388 = vadd.f32 %v2368, %v2387
    %2389 = vdwg.mxu0
    %v2398 = vrot.slane %v2108, 2
    %v2399 = vrot.slane %v2148, 2
    %v2400 = vrot.slane %v2188, 2
    %v2401 = vrot.slane %v2228, 2
    %v2402 = vrot.slane %v2268, 2
    %v2403 = vrot.slane %v2308, 2
    %v2404 = vrot.slane %v2348, 2
    %v2405 = vrot.slane %v2388, 2
    %v2414 = vadd.f32 %v262, %v2398
    %v2415 = vadd.f32 %v293, %v2399
    %v2416 = vadd.f32 %v324, %v2400
    %v2417 = vadd.f32 %v354, %v2401
    %v2418 = vadd.f32 %v384, %v2402
    %v2419 = vadd.f32 %v415, %v2403
    %v2420 = vadd.f32 %v446, %v2404
    %v2421 = vadd.f32 %v477, %v2405
    %v2422 = vmul.f32 %v2414, 0.5
    %v2423 = vmul.f32 %v2415, 0.5
    %v2424 = vtanh.pop %v2422
    %v2425 = vtanh.pop %v2423
    %v2426 = vadd.f32 %v2424, 1.0
    %v2427 = vadd.f32 %v2425, 1.0
    %v2428 = vmul.f32 %v2426, 0.5
    %v2429 = vmul.f32 %v2427, 0.5
    %v2430 = vmul.f32 %v2416, 0.5
    %v2431 = vmul.f32 %v2417, 0.5
    %v2432 = vtanh.pop %v2430
    %v2433 = vtanh.pop %v2431
    %v2434 = vadd.f32 %v2432, 1.0
    %v2435 = vadd.f32 %v2433, 1.0
    %v2436 = vmul.f32 %v2434, 0.5
    %v2437 = vmul.f32 %v2435, 0.5
    %v2438 = vtanh.pop %v2418
    %v2439 = vtanh.pop %v2419
    %v2440 = vmul.f32 %v2420, 0.5
    %v2441 = vmul.f32 %v2421, 0.5
    %v2442 = vtanh.pop %v2440
    %v2443 = vtanh.pop %v2441
    %v2444 = vadd.f32 %v2442, 1.0
    %v2445 = vadd.f32 %v2443, 1.0
    %v2446 = vmul.f32 %v2444, 0.5
    %v2447 = vmul.f32 %v2445, 0.5
    %v2450 = vrot.slane %v2058, 6
    %v2451 = vrot.slane %v2059, 6
    %v2454 = vmul.f32 %v2436, %v2450
    %v2455 = vmul.f32 %v2437, %v2451
    %v2456 = vmul.f32 %v2428, %v2438
    %v2457 = vmul.f32 %v2429, %v2439
    %v2458 = vadd.f32 %v2454, %v2456
    %v2459 = vadd.f32 %v2455, %v2457
    %v2460 = vtanh.pop %v2458
    %v2461 = vtanh.pop %v2459
    %v2462 = vmul.f32 %v2446, %v2460
    %v2463 = vmul.f32 %v2447, %v2461
    %v2466 = vrot.slane %v2462, 6
    %v2467 = vrot.slane %v2463, 6
    %2470 = vmatpush.msra.mxu0 %v854
    %2471 = vmatpush.msra.mxu0 %v846
    %2472 = vmatpush.msra.mxu0 %v838
    %2473 = vmatpush.msra.mxu0 %v830
    %2474 = vmatpush.msra.mxu0 %v822
    %2475 = vmatpush.msra.mxu0 %v814
    %2476 = vmatpush.msra.mxu0 %v806
    %2477 = vmatpush.msra.mxu0 %v798
    %2478 = vmatpush.msra.mxu0 %v790
    %2479 = vmatpush.msra.mxu0 %v782
    %2480 = vmatpush.msra.mxu0 %v774
    %2481 = vmatpush.msra.mxu0 %v766
    %2482 = vmatpush.msra.mxu0 %v758
    %2483 = vmatpush.msra.mxu0 %v750
    %2484 = vmatpush.msra.mxu0 %v742
    %2485 = vmatpush.msra.mxu0 %v734
    %2486 = vmatmul.f32.gmra.mxu0 %v2466
    %v2487 = vpop.f32.mrf.mxu0
    %v2488 = vadd.f32 0.0, %v2487
    %2489 = vdwg.mxu0
    %2490 = vmatpush.msra.mxu0 %v982
    %2491 = vmatpush.msra.mxu0 %v974
    %2492 = vmatpush.msra.mxu0 %v966
    %2493 = vmatpush.msra.mxu0 %v958
    %2494 = vmatpush.msra.mxu0 %v950
    %2495 = vmatpush.msra.mxu0 %v942
    %2496 = vmatpush.msra.mxu0 %v934
    %2497 = vmatpush.msra.mxu0 %v926
    %2498 = vmatpush.msra.mxu0 %v918
    %2499 = vmatpush.msra.mxu0 %v910
    %2500 = vmatpush.msra.mxu0 %v902
    %2501 = vmatpush.msra.mxu0 %v894
    %2502 = vmatpush.msra.mxu0 %v886
    %2503 = vmatpush.msra.mxu0 %v878
    %2504 = vmatpush.msra.mxu0 %v870
    %2505 = vmatpush.msra.mxu0 %v862
    %2506 = vmatmul.f32.gmra.mxu0 %v2467
    %v2507 = vpop.f32.mrf.mxu0
    %v2508 = vadd.f32 %v2488, %v2507
    %2509 = vdwg.mxu0
    %2510 = vmatpush.msra.mxu0 %v855
    %2511 = vmatpush.msra.mxu0 %v847
    %2512 = vmatpush.msra.mxu0 %v839
    %2513 = vmatpush.msra.mxu0 %v831
    %2514 = vmatpush.msra.mxu0 %v823
    %2515 = vmatpush.msra.mxu0 %v815
    %2516 = vmatpush.msra.mxu0 %v807
    %2517 = vmatpush.msra.mxu0 %v799
    %2518 = vmatpush.msra.mxu0 %v791
    %2519 = vmatpush.msra.mxu0 %v783
    %2520 = vmatpush.msra.mxu0 %v775
    %2521 = vmatpush.msra.mxu0 %v767
    %2522 = vmatpush.msra.mxu0 %v759
    %2523 = vmatpush.msra.mxu0 %v751
    %2524 = vmatpush.msra.mxu0 %v743
    %2525 = vmatpush.msra.mxu0 %v735
    %2526 = vmatmul.f32.gmra.mxu0 %v2466
    %v2527 = vpop.f32.mrf.mxu0
    %v2528 = vadd.f32 0.0, %v2527
    %2529 = vdwg.mxu0
    %2530 = vmatpush.msra.mxu0 %v983
    %2531 = vmatpush.msra.mxu0 %v975
    %2532 = vmatpush.msra.mxu0 %v967
    %2533 = vmatpush.msra.mxu0 %v959
    %2534 = vmatpush.msra.mxu0 %v951
    %2535 = vmatpush.msra.mxu0 %v943
    %2536 = vmatpush.msra.mxu0 %v935
    %2537 = vmatpush.msra.mxu0 %v927
    %2538 = vmatpush.msra.mxu0 %v919
    %2539 = vmatpush.msra.mxu0 %v911
    %2540 = vmatpush.msra.mxu0 %v903
    %2541 = vmatpush.msra.mxu0 %v895
    %2542 = vmatpush.msra.mxu0 %v887
    %2543 = vmatpush.msra.mxu0 %v879
    %2544 = vmatpush.msra.mxu0 %v871
    %2545 = vmatpush.msra.mxu0 %v863
    %2546 = vmatmul.f32.gmra.mxu0 %v2467
    %v2547 = vpop.f32.mrf.mxu0
    %v2548 = vadd.f32 %v2528, %v2547
    %2549 = vdwg.mxu0
    %2550 = vmatpush.msra.mxu0 %v856
    %2551 = vmatpush.msra.mxu0 %v848
    %2552 = vmatpush.msra.mxu0 %v840
    %2553 = vmatpush.msra.mxu0 %v832
    %2554 = vmatpush.msra.mxu0 %v824
    %2555 = vmatpush.msra.mxu0 %v816
    %2556 = vmatpush.msra.mxu0 %v808
    %2557 = vmatpush.msra.mxu0 %v800
    %2558 = vmatpush.msra.mxu0 %v792
    %2559 = vmatpush.msra.mxu0 %v784
    %2560 = vmatpush.msra.mxu0 %v776
    %2561 = vmatpush.msra.mxu0 %v768
    %2562 = vmatpush.msra.mxu0 %v760
    %2563 = vmatpush.msra.mxu0 %v752
    %2564 = vmatpush.msra.mxu0 %v744
    %2565 = vmatpush.msra.mxu0 %v736
    %2566 = vmatmul.f32.gmra.mxu0 %v2466
    %v2567 = vpop.f32.mrf.mxu0
    %v2568 = vadd.f32 0.0, %v2567
    %2569 = vdwg.mxu0
    %2570 = vmatpush.msra.mxu0 %v984
    %2571 = vmatpush.msra.mxu0 %v976
    %2572 = vmatpush.msra.mxu0 %v968
    %2573 = vmatpush.msra.mxu0 %v960
    %2574 = vmatpush.msra.mxu0 %v952
    %2575 = vmatpush.msra.mxu0 %v944
    %2576 = vmatpush.msra.mxu0 %v936
    %2577 = vmatpush.msra.mxu0 %v928
    %2578 = vmatpush.msra.mxu0 %v920
    %2579 = vmatpush.msra.mxu0 %v912
    %2580 = vmatpush.msra.mxu0 %v904
    %2581 = vmatpush.msra.mxu0 %v896
    %2582 = vmatpush.msra.mxu0 %v888
    %2583 = vmatpush.msra.mxu0 %v880
    %2584 = vmatpush.msra.mxu0 %v872
    %2585 = vmatpush.msra.mxu0 %v864
    %2586 = vmatmul.f32.gmra.mxu0 %v2467
    %v2587 = vpop.f32.mrf.mxu0
    %v2588 = vadd.f32 %v2568, %v2587
    %2589 = vdwg.mxu0
    %2590 = vmatpush.msra.mxu0 %v857
    %2591 = vmatpush.msra.mxu0 %v849
    %2592 = vmatpush.msra.mxu0 %v841
    %2593 = vmatpush.msra.mxu0 %v833
    %2594 = vmatpush.msra.mxu0 %v825
    %2595 = vmatpush.msra.mxu0 %v817
    %2596 = vmatpush.msra.mxu0 %v809
    %2597 = vmatpush.msra.mxu0 %v801
    %2598 = vmatpush.msra.mxu0 %v793
    %2599 = vmatpush.msra.mxu0 %v785
    %2600 = vmatpush.msra.mxu0 %v777
    %2601 = vmatpush.msra.mxu0 %v769
    %2602 = vmatpush.msra.mxu0 %v761
    %2603 = vmatpush.msra.mxu0 %v753
    %2604 = vmatpush.msra.mxu0 %v745
    %2605 = vmatpush.msra.mxu0 %v737
    %2606 = vmatmul.f32.gmra.mxu0 %v2466
    %v2607 = vpop.f32.mrf.mxu0
    %v2608 = vadd.f32 0.0, %v2607
    %2609 = vdwg.mxu0
    %2610 = vmatpush.msra.mxu0 %v985
    %2611 = vmatpush.msra.mxu0 %v977
    %2612 = vmatpush.msra.mxu0 %v969
    %2613 = vmatpush.msra.mxu0 %v961
    %2614 = vmatpush.msra.mxu0 %v953
    %2615 = vmatpush.msra.mxu0 %v945
    %2616 = vmatpush.msra.mxu0 %v937
    %2617 = vmatpush.msra.mxu0 %v929
    %2618 = vmatpush.msra.mxu0 %v921
    %2619 = vmatpush.msra.mxu0 %v913
    %2620 = vmatpush.msra.mxu0 %v905
    %2621 = vmatpush.msra.mxu0 %v897
    %2622 = vmatpush.msra.mxu0 %v889
    %2623 = vmatpush.msra.mxu0 %v881
    %2624 = vmatpush.msra.mxu0 %v873
    %2625 = vmatpush.msra.mxu0 %v865
    %2626 = vmatmul.f32.gmra.mxu0 %v2467
    %v2627 = vpop.f32.mrf.mxu0
    %v2628 = vadd.f32 %v2608, %v2627
    %2629 = vdwg.mxu0
    %2630 = vmatpush.msra.mxu0 %v858
    %2631 = vmatpush.msra.mxu0 %v850
    %2632 = vmatpush.msra.mxu0 %v842
    %2633 = vmatpush.msra.mxu0 %v834
    %2634 = vmatpush.msra.mxu0 %v826
    %2635 = vmatpush.msra.mxu0 %v818
    %2636 = vmatpush.msra.mxu0 %v810
    %2637 = vmatpush.msra.mxu0 %v802
    %2638 = vmatpush.msra.mxu0 %v794
    %2639 = vmatpush.msra.mxu0 %v786
    %2640 = vmatpush.msra.mxu0 %v778
    %2641 = vmatpush.msra.mxu0 %v770
    %2642 = vmatpush.msra.mxu0 %v762
    %2643 = vmatpush.msra.mxu0 %v754
    %2644 = vmatpush.msra.mxu0 %v746
    %2645 = vmatpush.msra.mxu0 %v738
    %2646 = vmatmul.f32.gmra.mxu0 %v2466
    %v2647 = vpop.f32.mrf.mxu0
    %v2648 = vadd.f32 0.0, %v2647
    %2649 = vdwg.mxu0
    %2650 = vmatpush.msra.mxu0 %v986
    %2651 = vmatpush.msra.mxu0 %v978
    %2652 = vmatpush.msra.mxu0 %v970
    %2653 = vmatpush.msra.mxu0 %v962
    %2654 = vmatpush.msra.mxu0 %v954
    %2655 = vmatpush.msra.mxu0 %v946
    %2656 = vmatpush.msra.mxu0 %v938
    %2657 = vmatpush.msra.mxu0 %v930
    %2658 = vmatpush.msra.mxu0 %v922
    %2659 = vmatpush.msra.mxu0 %v914
    %2660 = vmatpush.msra.mxu0 %v906
    %2661 = vmatpush.msra.mxu0 %v898
    %2662 = vmatpush.msra.mxu0 %v890
    %2663 = vmatpush.msra.mxu0 %v882
    %2664 = vmatpush.msra.mxu0 %v874
    %2665 = vmatpush.msra.mxu0 %v866
    %2666 = vmatmul.f32.gmra.mxu0 %v2467
    %v2667 = vpop.f32.mrf.mxu0
    %v2668 = vadd.f32 %v2648, %v2667
    %2669 = vdwg.mxu0
    %2670 = vmatpush.msra.mxu0 %v859
    %2671 = vmatpush.msra.mxu0 %v851
    %2672 = vmatpush.msra.mxu0 %v843
    %2673 = vmatpush.msra.mxu0 %v835
    %2674 = vmatpush.msra.mxu0 %v827
    %2675 = vmatpush.msra.mxu0 %v819
    %2676 = vmatpush.msra.mxu0 %v811
    %2677 = vmatpush.msra.mxu0 %v803
    %2678 = vmatpush.msra.mxu0 %v795
    %2679 = vmatpush.msra.mxu0 %v787
    %2680 = vmatpush.msra.mxu0 %v779
    %2681 = vmatpush.msra.mxu0 %v771
    %2682 = vmatpush.msra.mxu0 %v763
    %2683 = vmatpush.msra.mxu0 %v755
    %2684 = vmatpush.msra.mxu0 %v747
    %2685 = vmatpush.msra.mxu0 %v739
    %2686 = vmatmul.f32.gmra.mxu0 %v2466
    %v2687 = vpop.f32.mrf.mxu0
    %v2688 = vadd.f32 0.0, %v2687
    %2689 = vdwg.mxu0
    %2690 = vmatpush.msra.mxu0 %v987
    %2691 = vmatpush.msra.mxu0 %v979
    %2692 = vmatpush.msra.mxu0 %v971
    %2693 = vmatpush.msra.mxu0 %v963
    %2694 = vmatpush.msra.mxu0 %v955
    %2695 = vmatpush.msra.mxu0 %v947
    %2696 = vmatpush.msra.mxu0 %v939
    %2697 = vmatpush.msra.mxu0 %v931
    %2698 = vmatpush.msra.mxu0 %v923
    %2699 = vmatpush.msra.mxu0 %v915
    %2700 = vmatpush.msra.mxu0 %v907
    %2701 = vmatpush.msra.mxu0 %v899
    %2702 = vmatpush.msra.mxu0 %v891
    %2703 = vmatpush.msra.mxu0 %v883
    %2704 = vmatpush.msra.mxu0 %v875
    %2705 = vmatpush.msra.mxu0 %v867
    %2706 = vmatmul.f32.gmra.mxu0 %v2467
    %v2707 = vpop.f32.mrf.mxu0
    %v2708 = vadd.f32 %v2688, %v2707
    %2709 = vdwg.mxu0
    %2710 = vmatpush.msra.mxu0 %v860
    %2711 = vmatpush.msra.mxu0 %v852
    %2712 = vmatpush.msra.mxu0 %v844
    %2713 = vmatpush.msra.mxu0 %v836
    %2714 = vmatpush.msra.mxu0 %v828
    %2715 = vmatpush.msra.mxu0 %v820
    %2716 = vmatpush.msra.mxu0 %v812
    %2717 = vmatpush.msra.mxu0 %v804
    %2718 = vmatpush.msra.mxu0 %v796
    %2719 = vmatpush.msra.mxu0 %v788
    %2720 = vmatpush.msra.mxu0 %v780
    %2721 = vmatpush.msra.mxu0 %v772
    %2722 = vmatpush.msra.mxu0 %v764
    %2723 = vmatpush.msra.mxu0 %v756
    %2724 = vmatpush.msra.mxu0 %v748
    %2725 = vmatpush.msra.mxu0 %v740
    %2726 = vmatmul.f32.gmra.mxu0 %v2466
    %v2727 = vpop.f32.mrf.mxu0
    %v2728 = vadd.f32 0.0, %v2727
    %2729 = vdwg.mxu0
    %2730 = vmatpush.msra.mxu0 %v988
    %2731 = vmatpush.msra.mxu0 %v980
    %2732 = vmatpush.msra.mxu0 %v972
    %2733 = vmatpush.msra.mxu0 %v964
    %2734 = vmatpush.msra.mxu0 %v956
    %2735 = vmatpush.msra.mxu0 %v948
    %2736 = vmatpush.msra.mxu0 %v940
    %2737 = vmatpush.msra.mxu0 %v932
    %2738 = vmatpush.msra.mxu0 %v924
    %2739 = vmatpush.msra.mxu0 %v916
    %2740 = vmatpush.msra.mxu0 %v908
    %2741 = vmatpush.msra.mxu0 %v900
    %2742 = vmatpush.msra.mxu0 %v892
    %2743 = vmatpush.msra.mxu0 %v884
    %2744 = vmatpush.msra.mxu0 %v876
    %2745 = vmatpush.msra.mxu0 %v868
    %2746 = vmatmul.f32.gmra.mxu0 %v2467
    %v2747 = vpop.f32.mrf.mxu0
    %v2748 = vadd.f32 %v2728, %v2747
    %2749 = vdwg.mxu0
    %2750 = vmatpush.msra.mxu0 %v861
    %2751 = vmatpush.msra.mxu0 %v853
    %2752 = vmatpush.msra.mxu0 %v845
    %2753 = vmatpush.msra.mxu0 %v837
    %2754 = vmatpush.msra.mxu0 %v829
    %2755 = vmatpush.msra.mxu0 %v821
    %2756 = vmatpush.msra.mxu0 %v813
    %2757 = vmatpush.msra.mxu0 %v805
    %2758 = vmatpush.msra.mxu0 %v797
    %2759 = vmatpush.msra.mxu0 %v789
    %2760 = vmatpush.msra.mxu0 %v781
    %2761 = vmatpush.msra.mxu0 %v773
    %2762 = vmatpush.msra.mxu0 %v765
    %2763 = vmatpush.msra.mxu0 %v757
    %2764 = vmatpush.msra.mxu0 %v749
    %2765 = vmatpush.msra.mxu0 %v741
    %2766 = vmatmul.f32.gmra.mxu0 %v2466
    %v2767 = vpop.f32.mrf.mxu0
    %v2768 = vadd.f32 0.0, %v2767
    %2769 = vdwg.mxu0
    %2770 = vmatpush.msra.mxu0 %v989
    %2771 = vmatpush.msra.mxu0 %v981
    %2772 = vmatpush.msra.mxu0 %v973
    %2773 = vmatpush.msra.mxu0 %v965
    %2774 = vmatpush.msra.mxu0 %v957
    %2775 = vmatpush.msra.mxu0 %v949
    %2776 = vmatpush.msra.mxu0 %v941
    %2777 = vmatpush.msra.mxu0 %v933
    %2778 = vmatpush.msra.mxu0 %v925
    %2779 = vmatpush.msra.mxu0 %v917
    %2780 = vmatpush.msra.mxu0 %v909
    %2781 = vmatpush.msra.mxu0 %v901
    %2782 = vmatpush.msra.mxu0 %v893
    %2783 = vmatpush.msra.mxu0 %v885
    %2784 = vmatpush.msra.mxu0 %v877
    %2785 = vmatpush.msra.mxu0 %v869
    %2786 = vmatmul.f32.gmra.mxu0 %v2467
    %v2787 = vpop.f32.mrf.mxu0
    %v2788 = vadd.f32 %v2768, %v2787
    %2789 = vdwg.mxu0
    %v2790 = vadd.f32 %v265, %v2508
    %v2791 = vadd.f32 %v296, %v2548
    %v2792 = vadd.f32 %v327, %v2588
    %v2793 = vadd.f32 %v357, %v2628
    %v2794 = vadd.f32 %v387, %v2668
    %v2795 = vadd.f32 %v418, %v2708
    %v2796 = vadd.f32 %v449, %v2748
    %v2797 = vadd.f32 %v480, %v2788
    %v2798 = vmul.f32 %v2790, 0.5
    %v2799 = vmul.f32 %v2791, 0.5
    %v2800 = vtanh.pop %v2798
    %v2801 = vtanh.pop %v2799
    %v2802 = vadd.f32 %v2800, 1.0
    %v2803 = vadd.f32 %v2801, 1.0
    %v2804 = vmul.f32 %v2802, 0.5
    %v2805 = vmul.f32 %v2803, 0.5
    %v2806 = vmul.f32 %v2792, 0.5
    %v2807 = vmul.f32 %v2793, 0.5
    %v2808 = vtanh.pop %v2806
    %v2809 = vtanh.pop %v2807
    %v2810 = vadd.f32 %v2808, 1.0
    %v2811 = vadd.f32 %v2809, 1.0
    %v2812 = vmul.f32 %v2810, 0.5
    %v2813 = vmul.f32 %v2811, 0.5
    %v2814 = vtanh.pop %v2794
    %v2815 = vtanh.pop %v2795
    %v2816 = vmul.f32 %v2796, 0.5
    %v2817 = vmul.f32 %v2797, 0.5
    %v2818 = vtanh.pop %v2816
    %v2819 = vtanh.pop %v2817
    %v2820 = vadd.f32 %v2818, 1.0
    %v2821 = vadd.f32 %v2819, 1.0
    %v2822 = vmul.f32 %v2820, 0.5
    %v2823 = vmul.f32 %v2821, 0.5
    %v2826 = vrot.slane %v2458, 6
    %v2827 = vrot.slane %v2459, 6
    %v2830 = vmul.f32 %v2812, %v2826
    %v2831 = vmul.f32 %v2813, %v2827
    %v2832 = vmul.f32 %v2804, %v2814
    %v2833 = vmul.f32 %v2805, %v2815
    %v2834 = vadd.f32 %v2830, %v2832
    %v2835 = vadd.f32 %v2831, %v2833
    %v2836 = vtanh.pop %v2834
    %v2837 = vtanh.pop %v2835
    %v2838 = vmul.f32 %v2822, %v2836
    %v2839 = vmul.f32 %v2823, %v2837
    %2840 = vmatpush.msra.mxu0 %v854
    %2841 = vmatpush.msra.mxu0 %v846
    %2842 = vmatpush.msra.mxu0 %v838
    %2843 = vmatpush.msra.mxu0 %v830
    %2844 = vmatpush.msra.mxu0 %v822
    %2845 = vmatpush.msra.mxu0 %v814
    %2846 = vmatpush.msra.mxu0 %v806
    %2847 = vmatpush.msra.mxu0 %v798
    %2848 = vmatpush.msra.mxu0 %v790
    %2849 = vmatpush.msra.mxu0 %v782
    %2850 = vmatpush.msra.mxu0 %v774
    %2851 = vmatpush.msra.mxu0 %v766
    %2852 = vmatpush.msra.mxu0 %v758
    %2853 = vmatpush.msra.mxu0 %v750
    %2854 = vmatpush.msra.mxu0 %v742
    %2855 = vmatpush.msra.mxu0 %v734
    %2856 = vmatmul.f32.gmra.mxu0 %v2838
    %v2857 = vpop.f32.mrf.mxu0
    %v2858 = vadd.f32 0.0, %v2857
    %2859 = vdwg.mxu0
    %2860 = vmatpush.msra.mxu0 %v982
    %2861 = vmatpush.msra.mxu0 %v974
    %2862 = vmatpush.msra.mxu0 %v966
    %2863 = vmatpush.msra.mxu0 %v958
    %2864 = vmatpush.msra.mxu0 %v950
    %2865 = vmatpush.msra.mxu0 %v942
    %2866 = vmatpush.msra.mxu0 %v934
    %2867 = vmatpush.msra.mxu0 %v926
    %2868 = vmatpush.msra.mxu0 %v918
    %2869 = vmatpush.msra.mxu0 %v910
    %2870 = vmatpush.msra.mxu0 %v902
    %2871 = vmatpush.msra.mxu0 %v894
    %2872 = vmatpush.msra.mxu0 %v886
    %2873 = vmatpush.msra.mxu0 %v878
    %2874 = vmatpush.msra.mxu0 %v870
    %2875 = vmatpush.msra.mxu0 %v862
    %2876 = vmatmul.f32.gmra.mxu0 %v2839
    %v2877 = vpop.f32.mrf.mxu0
    %v2878 = vadd.f32 %v2858, %v2877
    %2879 = vdwg.mxu0
    %2880 = vmatpush.msra.mxu0 %v855
    %2881 = vmatpush.msra.mxu0 %v847
    %2882 = vmatpush.msra.mxu0 %v839
    %2883 = vmatpush.msra.mxu0 %v831
    %2884 = vmatpush.msra.mxu0 %v823
    %2885 = vmatpush.msra.mxu0 %v815
    %2886 = vmatpush.msra.mxu0 %v807
    %2887 = vmatpush.msra.mxu0 %v799
    %2888 = vmatpush.msra.mxu0 %v791
    %2889 = vmatpush.msra.mxu0 %v783
    %2890 = vmatpush.msra.mxu0 %v775
    %2891 = vmatpush.msra.mxu0 %v767
    %2892 = vmatpush.msra.mxu0 %v759
    %2893 = vmatpush.msra.mxu0 %v751
    %2894 = vmatpush.msra.mxu0 %v743
    %2895 = vmatpush.msra.mxu0 %v735
    %2896 = vmatmul.f32.gmra.mxu0 %v2838
    %v2897 = vpop.f32.mrf.mxu0
    %v2898 = vadd.f32 0.0, %v2897
    %2899 = vdwg.mxu0
    %2900 = vmatpush.msra.mxu0 %v983
    %2901 = vmatpush.msra.mxu0 %v975
    %2902 = vmatpush.msra.mxu0 %v967
    %2903 = vmatpush.msra.mxu0 %v959
    %2904 = vmatpush.msra.mxu0 %v951
    %2905 = vmatpush.msra.mxu0 %v943
    %2906 = vmatpush.msra.mxu0 %v935
    %2907 = vmatpush.msra.mxu0 %v927
    %2908 = vmatpush.msra.mxu0 %v919
    %2909 = vmatpush.msra.mxu0 %v911
    %2910 = vmatpush.msra.mxu0 %v903
    %2911 = vmatpush.msra.mxu0 %v895
    %2912 = vmatpush.msra.mxu0 %v887
    %2913 = vmatpush.msra.mxu0 %v879
    %2914 = vmatpush.msra.mxu0 %v871
    %2915 = vmatpush.msra.mxu0 %v863
    %2916 = vmatmul.f32.gmra.mxu0 %v2839
    %v2917 = vpop.f32.mrf.mxu0
    %v2918 = vadd.f32 %v2898, %v2917
    %2919 = vdwg.mxu0
    %2920 = vmatpush.msra.mxu0 %v856
    %2921 = vmatpush.msra.mxu0 %v848
    %2922 = vmatpush.msra.mxu0 %v840
    %2923 = vmatpush.msra.mxu0 %v832
    %2924 = vmatpush.msra.mxu0 %v824
    %2925 = vmatpush.msra.mxu0 %v816
    %2926 = vmatpush.msra.mxu0 %v808
    %2927 = vmatpush.msra.mxu0 %v800
    %2928 = vmatpush.msra.mxu0 %v792
    %2929 = vmatpush.msra.mxu0 %v784
    %2930 = vmatpush.msra.mxu0 %v776
    %2931 = vmatpush.msra.mxu0 %v768
    %2932 = vmatpush.msra.mxu0 %v760
    %2933 = vmatpush.msra.mxu0 %v752
    %2934 = vmatpush.msra.mxu0 %v744
    %2935 = vmatpush.msra.mxu0 %v736
    %2936 = vmatmul.f32.gmra.mxu0 %v2838
    %v2937 = vpop.f32.mrf.mxu0
    %v2938 = vadd.f32 0.0, %v2937
    %2939 = vdwg.mxu0
    %2940 = vmatpush.msra.mxu0 %v984
    %2941 = vmatpush.msra.mxu0 %v976
    %2942 = vmatpush.msra.mxu0 %v968
    %2943 = vmatpush.msra.mxu0 %v960
    %2944 = vmatpush.msra.mxu0 %v952
    %2945 = vmatpush.msra.mxu0 %v944
    %2946 = vmatpush.msra.mxu0 %v936
    %2947 = vmatpush.msra.mxu0 %v928
    %2948 = vmatpush.msra.mxu0 %v920
    %2949 = vmatpush.msra.mxu0 %v912
    %2950 = vmatpush.msra.mxu0 %v904
    %2951 = vmatpush.msra.mxu0 %v896
    %2952 = vmatpush.msra.mxu0 %v888
    %2953 = vmatpush.msra.mxu0 %v880
    %2954 = vmatpush.msra.mxu0 %v872
    %2955 = vmatpush.msra.mxu0 %v864
    %2956 = vmatmul.f32.gmra.mxu0 %v2839
    %v2957 = vpop.f32.mrf.mxu0
    %v2958 = vadd.f32 %v2938, %v2957
    %2959 = vdwg.mxu0
    %2960 = vmatpush.msra.mxu0 %v857
    %2961 = vmatpush.msra.mxu0 %v849
    %2962 = vmatpush.msra.mxu0 %v841
    %2963 = vmatpush.msra.mxu0 %v833
    %2964 = vmatpush.msra.mxu0 %v825
    %2965 = vmatpush.msra.mxu0 %v817
    %2966 = vmatpush.msra.mxu0 %v809
    %2967 = vmatpush.msra.mxu0 %v801
    %2968 = vmatpush.msra.mxu0 %v793
    %2969 = vmatpush.msra.mxu0 %v785
    %2970 = vmatpush.msra.mxu0 %v777
    %2971 = vmatpush.msra.mxu0 %v769
    %2972 = vmatpush.msra.mxu0 %v761
    %2973 = vmatpush.msra.mxu0 %v753
    %2974 = vmatpush.msra.mxu0 %v745
    %2975 = vmatpush.msra.mxu0 %v737
    %2976 = vmatmul.f32.gmra.mxu0 %v2838
    %v2977 = vpop.f32.mrf.mxu0
    %v2978 = vadd.f32 0.0, %v2977
    %2979 = vdwg.mxu0
    %2980 = vmatpush.msra.mxu0 %v985
    %2981 = vmatpush.msra.mxu0 %v977
    %2982 = vmatpush.msra.mxu0 %v969
    %2983 = vmatpush.msra.mxu0 %v961
    %2984 = vmatpush.msra.mxu0 %v953
    %2985 = vmatpush.msra.mxu0 %v945
    %2986 = vmatpush.msra.mxu0 %v937
    %2987 = vmatpush.msra.mxu0 %v929
    %2988 = vmatpush.msra.mxu0 %v921
    %2989 = vmatpush.msra.mxu0 %v913
    %2990 = vmatpush.msra.mxu0 %v905
    %2991 = vmatpush.msra.mxu0 %v897
    %2992 = vmatpush.msra.mxu0 %v889
    %2993 = vmatpush.msra.mxu0 %v881
    %2994 = vmatpush.msra.mxu0 %v873
    %2995 = vmatpush.msra.mxu0 %v865
    %2996 = vmatmul.f32.gmra.mxu0 %v2839
    %v2997 = vpop.f32.mrf.mxu0
    %v2998 = vadd.f32 %v2978, %v2997
    %2999 = vdwg.mxu0
    %3000 = vmatpush.msra.mxu0 %v858
    %3001 = vmatpush.msra.mxu0 %v850
    %3002 = vmatpush.msra.mxu0 %v842
    %3003 = vmatpush.msra.mxu0 %v834
    %3004 = vmatpush.msra.mxu0 %v826
    %3005 = vmatpush.msra.mxu0 %v818
    %3006 = vmatpush.msra.mxu0 %v810
    %3007 = vmatpush.msra.mxu0 %v802
    %3008 = vmatpush.msra.mxu0 %v794
    %3009 = vmatpush.msra.mxu0 %v786
    %3010 = vmatpush.msra.mxu0 %v778
    %3011 = vmatpush.msra.mxu0 %v770
    %3012 = vmatpush.msra.mxu0 %v762
    %3013 = vmatpush.msra.mxu0 %v754
    %3014 = vmatpush.msra.mxu0 %v746
    %3015 = vmatpush.msra.mxu0 %v738
    %3016 = vmatmul.f32.gmra.mxu0 %v2838
    %v3017 = vpop.f32.mrf.mxu0
    %v3018 = vadd.f32 0.0, %v3017
    %3019 = vdwg.mxu0
    %3020 = vmatpush.msra.mxu0 %v986
    %3021 = vmatpush.msra.mxu0 %v978
    %3022 = vmatpush.msra.mxu0 %v970
    %3023 = vmatpush.msra.mxu0 %v962
    %3024 = vmatpush.msra.mxu0 %v954
    %3025 = vmatpush.msra.mxu0 %v946
    %3026 = vmatpush.msra.mxu0 %v938
    %3027 = vmatpush.msra.mxu0 %v930
    %3028 = vmatpush.msra.mxu0 %v922
    %3029 = vmatpush.msra.mxu0 %v914
    %3030 = vmatpush.msra.mxu0 %v906
    %3031 = vmatpush.msra.mxu0 %v898
    %3032 = vmatpush.msra.mxu0 %v890
    %3033 = vmatpush.msra.mxu0 %v882
    %3034 = vmatpush.msra.mxu0 %v874
    %3035 = vmatpush.msra.mxu0 %v866
    %3036 = vmatmul.f32.gmra.mxu0 %v2839
    %v3037 = vpop.f32.mrf.mxu0
    %v3038 = vadd.f32 %v3018, %v3037
    %3039 = vdwg.mxu0
    %3040 = vmatpush.msra.mxu0 %v859
    %3041 = vmatpush.msra.mxu0 %v851
    %3042 = vmatpush.msra.mxu0 %v843
    %3043 = vmatpush.msra.mxu0 %v835
    %3044 = vmatpush.msra.mxu0 %v827
    %3045 = vmatpush.msra.mxu0 %v819
    %3046 = vmatpush.msra.mxu0 %v811
    %3047 = vmatpush.msra.mxu0 %v803
    %3048 = vmatpush.msra.mxu0 %v795
    %3049 = vmatpush.msra.mxu0 %v787
    %3050 = vmatpush.msra.mxu0 %v779
    %3051 = vmatpush.msra.mxu0 %v771
    %3052 = vmatpush.msra.mxu0 %v763
    %3053 = vmatpush.msra.mxu0 %v755
    %3054 = vmatpush.msra.mxu0 %v747
    %3055 = vmatpush.msra.mxu0 %v739
    %3056 = vmatmul.f32.gmra.mxu0 %v2838
    %v3057 = vpop.f32.mrf.mxu0
    %v3058 = vadd.f32 0.0, %v3057
    %3059 = vdwg.mxu0
    %3060 = vmatpush.msra.mxu0 %v987
    %3061 = vmatpush.msra.mxu0 %v979
    %3062 = vmatpush.msra.mxu0 %v971
    %3063 = vmatpush.msra.mxu0 %v963
    %3064 = vmatpush.msra.mxu0 %v955
    %3065 = vmatpush.msra.mxu0 %v947
    %3066 = vmatpush.msra.mxu0 %v939
    %3067 = vmatpush.msra.mxu0 %v931
    %3068 = vmatpush.msra.mxu0 %v923
    %3069 = vmatpush.msra.mxu0 %v915
    %3070 = vmatpush.msra.mxu0 %v907
    %3071 = vmatpush.msra.mxu0 %v899
    %3072 = vmatpush.msra.mxu0 %v891
    %3073 = vmatpush.msra.mxu0 %v883
    %3074 = vmatpush.msra.mxu0 %v875
    %3075 = vmatpush.msra.mxu0 %v867
    %3076 = vmatmul.f32.gmra.mxu0 %v2839
    %v3077 = vpop.f32.mrf.mxu0
    %v3078 = vadd.f32 %v3058, %v3077
    %3079 = vdwg.mxu0
    %3080 = vmatpush.msra.mxu0 %v860
    %3081 = vmatpush.msra.mxu0 %v852
    %3082 = vmatpush.msra.mxu0 %v844
    %3083 = vmatpush.msra.mxu0 %v836
    %3084 = vmatpush.msra.mxu0 %v828
    %3085 = vmatpush.msra.mxu0 %v820
    %3086 = vmatpush.msra.mxu0 %v812
    %3087 = vmatpush.msra.mxu0 %v804
    %3088 = vmatpush.msra.mxu0 %v796
    %3089 = vmatpush.msra.mxu0 %v788
    %3090 = vmatpush.msra.mxu0 %v780
    %3091 = vmatpush.msra.mxu0 %v772
    %3092 = vmatpush.msra.mxu0 %v764
    %3093 = vmatpush.msra.mxu0 %v756
    %3094 = vmatpush.msra.mxu0 %v748
    %3095 = vmatpush.msra.mxu0 %v740
    %3096 = vmatmul.f32.gmra.mxu0 %v2838
    %v3097 = vpop.f32.mrf.mxu0
    %v3098 = vadd.f32 0.0, %v3097
    %3099 = vdwg.mxu0
    %3100 = vmatpush.msra.mxu0 %v988
    %3101 = vmatpush.msra.mxu0 %v980
    %3102 = vmatpush.msra.mxu0 %v972
    %3103 = vmatpush.msra.mxu0 %v964
    %3104 = vmatpush.msra.mxu0 %v956
    %3105 = vmatpush.msra.mxu0 %v948
    %3106 = vmatpush.msra.mxu0 %v940
    %3107 = vmatpush.msra.mxu0 %v932
    %3108 = vmatpush.msra.mxu0 %v924
    %3109 = vmatpush.msra.mxu0 %v916
    %3110 = vmatpush.msra.mxu0 %v908
    %3111 = vmatpush.msra.mxu0 %v900
    %3112 = vmatpush.msra.mxu0 %v892
    %3113 = vmatpush.msra.mxu0 %v884
    %3114 = vmatpush.msra.mxu0 %v876
    %3115 = vmatpush.msra.mxu0 %v868
    %3116 = vmatmul.f32.gmra.mxu0 %v2839
    %v3117 = vpop.f32.mrf.mxu0
    %v3118 = vadd.f32 %v3098, %v3117
    %3119 = vdwg.mxu0
    %3120 = vmatpush.msra.mxu0 %v861
    %3121 = vmatpush.msra.mxu0 %v853
    %3122 = vmatpush.msra.mxu0 %v845
    %3123 = vmatpush.msra.mxu0 %v837
    %3124 = vmatpush.msra.mxu0 %v829
    %3125 = vmatpush.msra.mxu0 %v821
    %3126 = vmatpush.msra.mxu0 %v813
    %3127 = vmatpush.msra.mxu0 %v805
    %3128 = vmatpush.msra.mxu0 %v797
    %3129 = vmatpush.msra.mxu0 %v789
    %3130 = vmatpush.msra.mxu0 %v781
    %3131 = vmatpush.msra.mxu0 %v773
    %3132 = vmatpush.msra.mxu0 %v765
    %3133 = vmatpush.msra.mxu0 %v757
    %3134 = vmatpush.msra.mxu0 %v749
    %3135 = vmatpush.msra.mxu0 %v741
    %3136 = vmatmul.f32.gmra.mxu0 %v2838
    %v3137 = vpop.f32.mrf.mxu0
    %v3138 = vadd.f32 0.0, %v3137
    %3139 = vdwg.mxu0
    %3140 = vmatpush.msra.mxu0 %v989
    %3141 = vmatpush.msra.mxu0 %v981
    %3142 = vmatpush.msra.mxu0 %v973
    %3143 = vmatpush.msra.mxu0 %v965
    %3144 = vmatpush.msra.mxu0 %v957
    %3145 = vmatpush.msra.mxu0 %v949
    %3146 = vmatpush.msra.mxu0 %v941
    %3147 = vmatpush.msra.mxu0 %v933
    %3148 = vmatpush.msra.mxu0 %v925
    %3149 = vmatpush.msra.mxu0 %v917
    %3150 = vmatpush.msra.mxu0 %v909
    %3151 = vmatpush.msra.mxu0 %v901
    %3152 = vmatpush.msra.mxu0 %v893
    %3153 = vmatpush.msra.mxu0 %v885
    %3154 = vmatpush.msra.mxu0 %v877
    %3155 = vmatpush.msra.mxu0 %v869
    %3156 = vmatmul.f32.gmra.mxu0 %v2839
    %v3157 = vpop.f32.mrf.mxu0
    %v3158 = vadd.f32 %v3138, %v3157
    %3159 = vdwg.mxu0
    %v3168 = vrot.slane %v2878, 6
    %v3169 = vrot.slane %v2918, 6
    %v3170 = vrot.slane %v2958, 6
    %v3171 = vrot.slane %v2998, 6
    %v3172 = vrot.slane %v3038, 6
    %v3173 = vrot.slane %v3078, 6
    %v3174 = vrot.slane %v3118, 6
    %v3175 = vrot.slane %v3158, 6
    %v3184 = vadd.f32 %v265, %v3168
    %v3185 = vadd.f32 %v296, %v3169
    %v3186 = vadd.f32 %v327, %v3170
    %v3187 = vadd.f32 %v357, %v3171
    %v3188 = vadd.f32 %v387, %v3172
    %v3189 = vadd.f32 %v418, %v3173
    %v3190 = vadd.f32 %v449, %v3174
    %v3191 = vadd.f32 %v480, %v3175
    %v3192 = vmul.f32 %v3184, 0.5
    %v3193 = vmul.f32 %v3185, 0.5
    %v3194 = vtanh.pop %v3192
    %v3195 = vtanh.pop %v3193
    %v3196 = vadd.f32 %v3194, 1.0
    %v3197 = vadd.f32 %v3195, 1.0
    %v3198 = vmul.f32 %v3196, 0.5
    %v3199 = vmul.f32 %v3197, 0.5
    %v3200 = vmul.f32 %v3186, 0.5
    %v3201 = vmul.f32 %v3187, 0.5
    %v3202 = vtanh.pop %v3200
    %v3203 = vtanh.pop %v3201
    %v3204 = vadd.f32 %v3202, 1.0
    %v3205 = vadd.f32 %v3203, 1.0
    %v3206 = vmul.f32 %v3204, 0.5
    %v3207 = vmul.f32 %v3205, 0.5
    %v3208 = vtanh.pop %v3188
    %v3209 = vtanh.pop %v3189
    %v3210 = vmul.f32 %v3190, 0.5
    %v3211 = vmul.f32 %v3191, 0.5
    %v3212 = vtanh.pop %v3210
    %v3213 = vtanh.pop %v3211
    %v3214 = vadd.f32 %v3212, 1.0
    %v3215 = vadd.f32 %v3213, 1.0
    %v3216 = vmul.f32 %v3214, 0.5
    %v3217 = vmul.f32 %v3215, 0.5
    %v3220 = vrot.slane %v2834, 6
    %v3221 = vrot.slane %v2835, 6
    %v3224 = vmul.f32 %v3206, %v3220
    %v3225 = vmul.f32 %v3207, %v3221
    %v3226 = vmul.f32 %v3198, %v3208
    %v3227 = vmul.f32 %v3199, %v3209
    %v3228 = vadd.f32 %v3224, %v3226
    %v3229 = vadd.f32 %v3225, %v3227
    %v3230 = vtanh.pop %v3228
    %v3231 = vtanh.pop %v3229
    %v3232 = vmul.f32 %v3216, %v3230
    %v3233 = vmul.f32 %v3217, %v3231
    %v3236 = vrot.slane %v3232, 2
    %v3237 = vrot.slane %v3233, 2
    %3240 = vmatpush.msra.mxu0 %v854
    %3241 = vmatpush.msra.mxu0 %v846
    %3242 = vmatpush.msra.mxu0 %v838
    %3243 = vmatpush.msra.mxu0 %v830
    %3244 = vmatpush.msra.mxu0 %v822
    %3245 = vmatpush.msra.mxu0 %v814
    %3246 = vmatpush.msra.mxu0 %v806
    %3247 = vmatpush.msra.mxu0 %v798
    %3248 = vmatpush.msra.mxu0 %v790
    %3249 = vmatpush.msra.mxu0 %v782
    %3250 = vmatpush.msra.mxu0 %v774
    %3251 = vmatpush.msra.mxu0 %v766
    %3252 = vmatpush.msra.mxu0 %v758
    %3253 = vmatpush.msra.mxu0 %v750
    %3254 = vmatpush.msra.mxu0 %v742
    %3255 = vmatpush.msra.mxu0 %v734
    %3256 = vmatmul.f32.gmra.mxu0 %v3236
    %v3257 = vpop.f32.mrf.mxu0
    %v3258 = vadd.f32 0.0, %v3257
    %3259 = vdwg.mxu0
    %3260 = vmatpush.msra.mxu0 %v982
    %3261 = vmatpush.msra.mxu0 %v974
    %3262 = vmatpush.msra.mxu0 %v966
    %3263 = vmatpush.msra.mxu0 %v958
    %3264 = vmatpush.msra.mxu0 %v950
    %3265 = vmatpush.msra.mxu0 %v942
    %3266 = vmatpush.msra.mxu0 %v934
    %3267 = vmatpush.msra.mxu0 %v926
    %3268 = vmatpush.msra.mxu0 %v918
    %3269 = vmatpush.msra.mxu0 %v910
    %3270 = vmatpush.msra.mxu0 %v902
    %3271 = vmatpush.msra.mxu0 %v894
    %3272 = vmatpush.msra.mxu0 %v886
    %3273 = vmatpush.msra.mxu0 %v878
    %3274 = vmatpush.msra.mxu0 %v870
    %3275 = vmatpush.msra.mxu0 %v862
    %3276 = vmatmul.f32.gmra.mxu0 %v3237
    %v3277 = vpop.f32.mrf.mxu0
    %v3278 = vadd.f32 %v3258, %v3277
    %3279 = vdwg.mxu0
    %3280 = vmatpush.msra.mxu0 %v855
    %3281 = vmatpush.msra.mxu0 %v847
    %3282 = vmatpush.msra.mxu0 %v839
    %3283 = vmatpush.msra.mxu0 %v831
    %3284 = vmatpush.msra.mxu0 %v823
    %3285 = vmatpush.msra.mxu0 %v815
    %3286 = vmatpush.msra.mxu0 %v807
    %3287 = vmatpush.msra.mxu0 %v799
    %3288 = vmatpush.msra.mxu0 %v791
    %3289 = vmatpush.msra.mxu0 %v783
    %3290 = vmatpush.msra.mxu0 %v775
    %3291 = vmatpush.msra.mxu0 %v767
    %3292 = vmatpush.msra.mxu0 %v759
    %3293 = vmatpush.msra.mxu0 %v751
    %3294 = vmatpush.msra.mxu0 %v743
    %3295 = vmatpush.msra.mxu0 %v735
    %3296 = vmatmul.f32.gmra.mxu0 %v3236
    %v3297 = vpop.f32.mrf.mxu0
    %v3298 = vadd.f32 0.0, %v3297
    %3299 = vdwg.mxu0
    %3300 = vmatpush.msra.mxu0 %v983
    %3301 = vmatpush.msra.mxu0 %v975
    %3302 = vmatpush.msra.mxu0 %v967
    %3303 = vmatpush.msra.mxu0 %v959
    %3304 = vmatpush.msra.mxu0 %v951
    %3305 = vmatpush.msra.mxu0 %v943
    %3306 = vmatpush.msra.mxu0 %v935
    %3307 = vmatpush.msra.mxu0 %v927
    %3308 = vmatpush.msra.mxu0 %v919
    %3309 = vmatpush.msra.mxu0 %v911
    %3310 = vmatpush.msra.mxu0 %v903
    %3311 = vmatpush.msra.mxu0 %v895
    %3312 = vmatpush.msra.mxu0 %v887
    %3313 = vmatpush.msra.mxu0 %v879
    %3314 = vmatpush.msra.mxu0 %v871
    %3315 = vmatpush.msra.mxu0 %v863
    %3316 = vmatmul.f32.gmra.mxu0 %v3237
    %v3317 = vpop.f32.mrf.mxu0
    %v3318 = vadd.f32 %v3298, %v3317
    %3319 = vdwg.mxu0
    %3320 = vmatpush.msra.mxu0 %v856
    %3321 = vmatpush.msra.mxu0 %v848
    %3322 = vmatpush.msra.mxu0 %v840
    %3323 = vmatpush.msra.mxu0 %v832
    %3324 = vmatpush.msra.mxu0 %v824
    %3325 = vmatpush.msra.mxu0 %v816
    %3326 = vmatpush.msra.mxu0 %v808
    %3327 = vmatpush.msra.mxu0 %v800
    %3328 = vmatpush.msra.mxu0 %v792
    %3329 = vmatpush.msra.mxu0 %v784
    %3330 = vmatpush.msra.mxu0 %v776
    %3331 = vmatpush.msra.mxu0 %v768
    %3332 = vmatpush.msra.mxu0 %v760
    %3333 = vmatpush.msra.mxu0 %v752
    %3334 = vmatpush.msra.mxu0 %v744
    %3335 = vmatpush.msra.mxu0 %v736
    %3336 = vmatmul.f32.gmra.mxu0 %v3236
    %v3337 = vpop.f32.mrf.mxu0
    %v3338 = vadd.f32 0.0, %v3337
    %3339 = vdwg.mxu0
    %3340 = vmatpush.msra.mxu0 %v984
    %3341 = vmatpush.msra.mxu0 %v976
    %3342 = vmatpush.msra.mxu0 %v968
    %3343 = vmatpush.msra.mxu0 %v960
    %3344 = vmatpush.msra.mxu0 %v952
    %3345 = vmatpush.msra.mxu0 %v944
    %3346 = vmatpush.msra.mxu0 %v936
    %3347 = vmatpush.msra.mxu0 %v928
    %3348 = vmatpush.msra.mxu0 %v920
    %3349 = vmatpush.msra.mxu0 %v912
    %3350 = vmatpush.msra.mxu0 %v904
    %3351 = vmatpush.msra.mxu0 %v896
    %3352 = vmatpush.msra.mxu0 %v888
    %3353 = vmatpush.msra.mxu0 %v880
    %3354 = vmatpush.msra.mxu0 %v872
    %3355 = vmatpush.msra.mxu0 %v864
    %3356 = vmatmul.f32.gmra.mxu0 %v3237
    %v3357 = vpop.f32.mrf.mxu0
    %v3358 = vadd.f32 %v3338, %v3357
    %3359 = vdwg.mxu0
    %3360 = vmatpush.msra.mxu0 %v857
    %3361 = vmatpush.msra.mxu0 %v849
    %3362 = vmatpush.msra.mxu0 %v841
    %3363 = vmatpush.msra.mxu0 %v833
    %3364 = vmatpush.msra.mxu0 %v825
    %3365 = vmatpush.msra.mxu0 %v817
    %3366 = vmatpush.msra.mxu0 %v809
    %3367 = vmatpush.msra.mxu0 %v801
    %3368 = vmatpush.msra.mxu0 %v793
    %3369 = vmatpush.msra.mxu0 %v785
    %3370 = vmatpush.msra.mxu0 %v777
    %3371 = vmatpush.msra.mxu0 %v769
    %3372 = vmatpush.msra.mxu0 %v761
    %3373 = vmatpush.msra.mxu0 %v753
    %3374 = vmatpush.msra.mxu0 %v745
    %3375 = vmatpush.msra.mxu0 %v737
    %3376 = vmatmul.f32.gmra.mxu0 %v3236
    %v3377 = vpop.f32.mrf.mxu0
    %v3378 = vadd.f32 0.0, %v3377
    %3379 = vdwg.mxu0
    %3380 = vmatpush.msra.mxu0 %v985
    %3381 = vmatpush.msra.mxu0 %v977
    %3382 = vmatpush.msra.mxu0 %v969
    %3383 = vmatpush.msra.mxu0 %v961
    %3384 = vmatpush.msra.mxu0 %v953
    %3385 = vmatpush.msra.mxu0 %v945
    %3386 = vmatpush.msra.mxu0 %v937
    %3387 = vmatpush.msra.mxu0 %v929
    %3388 = vmatpush.msra.mxu0 %v921
    %3389 = vmatpush.msra.mxu0 %v913
    %3390 = vmatpush.msra.mxu0 %v905
    %3391 = vmatpush.msra.mxu0 %v897
    %3392 = vmatpush.msra.mxu0 %v889
    %3393 = vmatpush.msra.mxu0 %v881
    %3394 = vmatpush.msra.mxu0 %v873
    %3395 = vmatpush.msra.mxu0 %v865
    %3396 = vmatmul.f32.gmra.mxu0 %v3237
    %v3397 = vpop.f32.mrf.mxu0
    %v3398 = vadd.f32 %v3378, %v3397
    %3399 = vdwg.mxu0
    %3400 = vmatpush.msra.mxu0 %v858
    %3401 = vmatpush.msra.mxu0 %v850
    %3402 = vmatpush.msra.mxu0 %v842
    %3403 = vmatpush.msra.mxu0 %v834
    %3404 = vmatpush.msra.mxu0 %v826
    %3405 = vmatpush.msra.mxu0 %v818
    %3406 = vmatpush.msra.mxu0 %v810
    %3407 = vmatpush.msra.mxu0 %v802
    %3408 = vmatpush.msra.mxu0 %v794
    %3409 = vmatpush.msra.mxu0 %v786
    %3410 = vmatpush.msra.mxu0 %v778
    %3411 = vmatpush.msra.mxu0 %v770
    %3412 = vmatpush.msra.mxu0 %v762
    %3413 = vmatpush.msra.mxu0 %v754
    %3414 = vmatpush.msra.mxu0 %v746
    %3415 = vmatpush.msra.mxu0 %v738
    %3416 = vmatmul.f32.gmra.mxu0 %v3236
    %v3417 = vpop.f32.mrf.mxu0
    %v3418 = vadd.f32 0.0, %v3417
    %3419 = vdwg.mxu0
    %3420 = vmatpush.msra.mxu0 %v986
    %3421 = vmatpush.msra.mxu0 %v978
    %3422 = vmatpush.msra.mxu0 %v970
    %3423 = vmatpush.msra.mxu0 %v962
    %3424 = vmatpush.msra.mxu0 %v954
    %3425 = vmatpush.msra.mxu0 %v946
    %3426 = vmatpush.msra.mxu0 %v938
    %3427 = vmatpush.msra.mxu0 %v930
    %3428 = vmatpush.msra.mxu0 %v922
    %3429 = vmatpush.msra.mxu0 %v914
    %3430 = vmatpush.msra.mxu0 %v906
    %3431 = vmatpush.msra.mxu0 %v898
    %3432 = vmatpush.msra.mxu0 %v890
    %3433 = vmatpush.msra.mxu0 %v882
    %3434 = vmatpush.msra.mxu0 %v874
    %3435 = vmatpush.msra.mxu0 %v866
    %3436 = vmatmul.f32.gmra.mxu0 %v3237
    %v3437 = vpop.f32.mrf.mxu0
    %v3438 = vadd.f32 %v3418, %v3437
    %3439 = vdwg.mxu0
    %3440 = vmatpush.msra.mxu0 %v859
    %3441 = vmatpush.msra.mxu0 %v851
    %3442 = vmatpush.msra.mxu0 %v843
    %3443 = vmatpush.msra.mxu0 %v835
    %3444 = vmatpush.msra.mxu0 %v827
    %3445 = vmatpush.msra.mxu0 %v819
    %3446 = vmatpush.msra.mxu0 %v811
    %3447 = vmatpush.msra.mxu0 %v803
    %3448 = vmatpush.msra.mxu0 %v795
    %3449 = vmatpush.msra.mxu0 %v787
    %3450 = vmatpush.msra.mxu0 %v779
    %3451 = vmatpush.msra.mxu0 %v771
    %3452 = vmatpush.msra.mxu0 %v763
    %3453 = vmatpush.msra.mxu0 %v755
    %3454 = vmatpush.msra.mxu0 %v747
    %3455 = vmatpush.msra.mxu0 %v739
    %3456 = vmatmul.f32.gmra.mxu0 %v3236
    %v3457 = vpop.f32.mrf.mxu0
    %v3458 = vadd.f32 0.0, %v3457
    %3459 = vdwg.mxu0
    %3460 = vmatpush.msra.mxu0 %v987
    %3461 = vmatpush.msra.mxu0 %v979
    %3462 = vmatpush.msra.mxu0 %v971
    %3463 = vmatpush.msra.mxu0 %v963
    %3464 = vmatpush.msra.mxu0 %v955
    %3465 = vmatpush.msra.mxu0 %v947
    %3466 = vmatpush.msra.mxu0 %v939
    %3467 = vmatpush.msra.mxu0 %v931
    %3468 = vmatpush.msra.mxu0 %v923
    %3469 = vmatpush.msra.mxu0 %v915
    %3470 = vmatpush.msra.mxu0 %v907
    %3471 = vmatpush.msra.mxu0 %v899
    %3472 = vmatpush.msra.mxu0 %v891
    %3473 = vmatpush.msra.mxu0 %v883
    %3474 = vmatpush.msra.mxu0 %v875
    %3475 = vmatpush.msra.mxu0 %v867
    %3476 = vmatmul.f32.gmra.mxu0 %v3237
    %v3477 = vpop.f32.mrf.mxu0
    %v3478 = vadd.f32 %v3458, %v3477
    %3479 = vdwg.mxu0
    %3480 = vmatpush.msra.mxu0 %v860
    %3481 = vmatpush.msra.mxu0 %v852
    %3482 = vmatpush.msra.mxu0 %v844
    %3483 = vmatpush.msra.mxu0 %v836
    %3484 = vmatpush.msra.mxu0 %v828
    %3485 = vmatpush.msra.mxu0 %v820
    %3486 = vmatpush.msra.mxu0 %v812
    %3487 = vmatpush.msra.mxu0 %v804
    %3488 = vmatpush.msra.mxu0 %v796
    %3489 = vmatpush.msra.mxu0 %v788
    %3490 = vmatpush.msra.mxu0 %v780
    %3491 = vmatpush.msra.mxu0 %v772
    %3492 = vmatpush.msra.mxu0 %v764
    %3493 = vmatpush.msra.mxu0 %v756
    %3494 = vmatpush.msra.mxu0 %v748
    %3495 = vmatpush.msra.mxu0 %v740
    %3496 = vmatmul.f32.gmra.mxu0 %v3236
    %v3497 = vpop.f32.mrf.mxu0
    %v3498 = vadd.f32 0.0, %v3497
    %3499 = vdwg.mxu0
    %3500 = vmatpush.msra.mxu0 %v988
    %3501 = vmatpush.msra.mxu0 %v980
    %3502 = vmatpush.msra.mxu0 %v972
    %3503 = vmatpush.msra.mxu0 %v964
    %3504 = vmatpush.msra.mxu0 %v956
    %3505 = vmatpush.msra.mxu0 %v948
    %3506 = vmatpush.msra.mxu0 %v940
    %3507 = vmatpush.msra.mxu0 %v932
    %3508 = vmatpush.msra.mxu0 %v924
    %3509 = vmatpush.msra.mxu0 %v916
    %3510 = vmatpush.msra.mxu0 %v908
    %3511 = vmatpush.msra.mxu0 %v900
    %3512 = vmatpush.msra.mxu0 %v892
    %3513 = vmatpush.msra.mxu0 %v884
    %3514 = vmatpush.msra.mxu0 %v876
    %3515 = vmatpush.msra.mxu0 %v868
    %3516 = vmatmul.f32.gmra.mxu0 %v3237
    %v3517 = vpop.f32.mrf.mxu0
    %v3518 = vadd.f32 %v3498, %v3517
    %3519 = vdwg.mxu0
    %3520 = vmatpush.msra.mxu0 %v861
    %3521 = vmatpush.msra.mxu0 %v853
    %3522 = vmatpush.msra.mxu0 %v845
    %3523 = vmatpush.msra.mxu0 %v837
    %3524 = vmatpush.msra.mxu0 %v829
    %3525 = vmatpush.msra.mxu0 %v821
    %3526 = vmatpush.msra.mxu0 %v813
    %3527 = vmatpush.msra.mxu0 %v805
    %3528 = vmatpush.msra.mxu0 %v797
    %3529 = vmatpush.msra.mxu0 %v789
    %3530 = vmatpush.msra.mxu0 %v781
    %3531 = vmatpush.msra.mxu0 %v773
    %3532 = vmatpush.msra.mxu0 %v765
    %3533 = vmatpush.msra.mxu0 %v757
    %3534 = vmatpush.msra.mxu0 %v749
    %3535 = vmatpush.msra.mxu0 %v741
    %3536 = vmatmul.f32.gmra.mxu0 %v3236
    %v3537 = vpop.f32.mrf.mxu0
    %v3538 = vadd.f32 0.0, %v3537
    %3539 = vdwg.mxu0
    %3540 = vmatpush.msra.mxu0 %v989
    %3541 = vmatpush.msra.mxu0 %v981
    %3542 = vmatpush.msra.mxu0 %v973
    %3543 = vmatpush.msra.mxu0 %v965
    %3544 = vmatpush.msra.mxu0 %v957
    %3545 = vmatpush.msra.mxu0 %v949
    %3546 = vmatpush.msra.mxu0 %v941
    %3547 = vmatpush.msra.mxu0 %v933
    %3548 = vmatpush.msra.mxu0 %v925
    %3549 = vmatpush.msra.mxu0 %v917
    %3550 = vmatpush.msra.mxu0 %v909
    %3551 = vmatpush.msra.mxu0 %v901
    %3552 = vmatpush.msra.mxu0 %v893
    %3553 = vmatpush.msra.mxu0 %v885
    %3554 = vmatpush.msra.mxu0 %v877
    %3555 = vmatpush.msra.mxu0 %v869
    %3556 = vmatmul.f32.gmra.mxu0 %v3237
    %v3557 = vpop.f32.mrf.mxu0
    %v3558 = vadd.f32 %v3538, %v3557
    %3559 = vdwg.mxu0
    %v3568 = vrot.slane %v3278, 4
    %v3569 = vrot.slane %v3318, 4
    %v3570 = vrot.slane %v3358, 4
    %v3571 = vrot.slane %v3398, 4
    %v3572 = vrot.slane %v3438, 4
    %v3573 = vrot.slane %v3478, 4
    %v3574 = vrot.slane %v3518, 4
    %v3575 = vrot.slane %v3558, 4
    %v3584 = vadd.f32 %v265, %v3568
    %v3585 = vadd.f32 %v296, %v3569
    %v3586 = vadd.f32 %v327, %v3570
    %v3587 = vadd.f32 %v357, %v3571
    %v3588 = vadd.f32 %v387, %v3572
    %v3589 = vadd.f32 %v418, %v3573
    %v3590 = vadd.f32 %v449, %v3574
    %v3591 = vadd.f32 %v480, %v3575
    %v3592 = vmul.f32 %v3584, 0.5
    %v3593 = vmul.f32 %v3585, 0.5
    %v3594 = vtanh.pop %v3592
    %v3595 = vtanh.pop %v3593
    %v3596 = vadd.f32 %v3594, 1.0
    %v3597 = vadd.f32 %v3595, 1.0
    %v3598 = vmul.f32 %v3596, 0.5
    %v3599 = vmul.f32 %v3597, 0.5
    %v3600 = vmul.f32 %v3586, 0.5
    %v3601 = vmul.f32 %v3587, 0.5
    %v3602 = vtanh.pop %v3600
    %v3603 = vtanh.pop %v3601
    %v3604 = vadd.f32 %v3602, 1.0
    %v3605 = vadd.f32 %v3603, 1.0
    %v3606 = vmul.f32 %v3604, 0.5
    %v3607 = vmul.f32 %v3605, 0.5
    %v3608 = vtanh.pop %v3588
    %v3609 = vtanh.pop %v3589
    %v3610 = vmul.f32 %v3590, 0.5
    %v3611 = vmul.f32 %v3591, 0.5
    %v3612 = vtanh.pop %v3610
    %v3613 = vtanh.pop %v3611
    %v3614 = vadd.f32 %v3612, 1.0
    %v3615 = vadd.f32 %v3613, 1.0
    %v3616 = vmul.f32 %v3614, 0.5
    %v3617 = vmul.f32 %v3615, 0.5
    %v3620 = vrot.slane %v3228, 6
    %v3621 = vrot.slane %v3229, 6
    %v3624 = vmul.f32 %v3606, %v3620
    %v3625 = vmul.f32 %v3607, %v3621
    %v3626 = vmul.f32 %v3598, %v3608
    %v3627 = vmul.f32 %v3599, %v3609
    %v3628 = vadd.f32 %v3624, %v3626
    %v3629 = vadd.f32 %v3625, %v3627
    %v3630 = vtanh.pop %v3628
    %v3631 = vtanh.pop %v3629
    %v3632 = vmul.f32 %v3616, %v3630
    %v3633 = vmul.f32 %v3617, %v3631
    %v3636 = vrot.slane %v3632, 4
    %v3637 = vrot.slane %v3633, 4
    %3640 = vmatpush.msra.mxu0 %v854
    %3641 = vmatpush.msra.mxu0 %v846
    %3642 = vmatpush.msra.mxu0 %v838
    %3643 = vmatpush.msra.mxu0 %v830
    %3644 = vmatpush.msra.mxu0 %v822
    %3645 = vmatpush.msra.mxu0 %v814
    %3646 = vmatpush.msra.mxu0 %v806
    %3647 = vmatpush.msra.mxu0 %v798
    %3648 = vmatpush.msra.mxu0 %v790
    %3649 = vmatpush.msra.mxu0 %v782
    %3650 = vmatpush.msra.mxu0 %v774
    %3651 = vmatpush.msra.mxu0 %v766
    %3652 = vmatpush.msra.mxu0 %v758
    %3653 = vmatpush.msra.mxu0 %v750
    %3654 = vmatpush.msra.mxu0 %v742
    %3655 = vmatpush.msra.mxu0 %v734
    %3656 = vmatmul.f32.gmra.mxu0 %v3636
    %v3657 = vpop.f32.mrf.mxu0
    %v3658 = vadd.f32 0.0, %v3657
    %3659 = vdwg.mxu0
    %3660 = vmatpush.msra.mxu0 %v982
    %3661 = vmatpush.msra.mxu0 %v974
    %3662 = vmatpush.msra.mxu0 %v966
    %3663 = vmatpush.msra.mxu0 %v958
    %3664 = vmatpush.msra.mxu0 %v950
    %3665 = vmatpush.msra.mxu0 %v942
    %3666 = vmatpush.msra.mxu0 %v934
    %3667 = vmatpush.msra.mxu0 %v926
    %3668 = vmatpush.msra.mxu0 %v918
    %3669 = vmatpush.msra.mxu0 %v910
    %3670 = vmatpush.msra.mxu0 %v902
    %3671 = vmatpush.msra.mxu0 %v894
    %3672 = vmatpush.msra.mxu0 %v886
    %3673 = vmatpush.msra.mxu0 %v878
    %3674 = vmatpush.msra.mxu0 %v870
    %3675 = vmatpush.msra.mxu0 %v862
    %3676 = vmatmul.f32.gmra.mxu0 %v3637
    %v3677 = vpop.f32.mrf.mxu0
    %v3678 = vadd.f32 %v3658, %v3677
    %3679 = vdwg.mxu0
    %3680 = vmatpush.msra.mxu0 %v855
    %3681 = vmatpush.msra.mxu0 %v847
    %3682 = vmatpush.msra.mxu0 %v839
    %3683 = vmatpush.msra.mxu0 %v831
    %3684 = vmatpush.msra.mxu0 %v823
    %3685 = vmatpush.msra.mxu0 %v815
    %3686 = vmatpush.msra.mxu0 %v807
    %3687 = vmatpush.msra.mxu0 %v799
    %3688 = vmatpush.msra.mxu0 %v791
    %3689 = vmatpush.msra.mxu0 %v783
    %3690 = vmatpush.msra.mxu0 %v775
    %3691 = vmatpush.msra.mxu0 %v767
    %3692 = vmatpush.msra.mxu0 %v759
    %3693 = vmatpush.msra.mxu0 %v751
    %3694 = vmatpush.msra.mxu0 %v743
    %3695 = vmatpush.msra.mxu0 %v735
    %3696 = vmatmul.f32.gmra.mxu0 %v3636
    %v3697 = vpop.f32.mrf.mxu0
    %v3698 = vadd.f32 0.0, %v3697
    %3699 = vdwg.mxu0
    %3700 = vmatpush.msra.mxu0 %v983
    %3701 = vmatpush.msra.mxu0 %v975
    %3702 = vmatpush.msra.mxu0 %v967
    %3703 = vmatpush.msra.mxu0 %v959
    %3704 = vmatpush.msra.mxu0 %v951
    %3705 = vmatpush.msra.mxu0 %v943
    %3706 = vmatpush.msra.mxu0 %v935
    %3707 = vmatpush.msra.mxu0 %v927
    %3708 = vmatpush.msra.mxu0 %v919
    %3709 = vmatpush.msra.mxu0 %v911
    %3710 = vmatpush.msra.mxu0 %v903
    %3711 = vmatpush.msra.mxu0 %v895
    %3712 = vmatpush.msra.mxu0 %v887
    %3713 = vmatpush.msra.mxu0 %v879
    %3714 = vmatpush.msra.mxu0 %v871
    %3715 = vmatpush.msra.mxu0 %v863
    %3716 = vmatmul.f32.gmra.mxu0 %v3637
    %v3717 = vpop.f32.mrf.mxu0
    %v3718 = vadd.f32 %v3698, %v3717
    %3719 = vdwg.mxu0
    %3720 = vmatpush.msra.mxu0 %v856
    %3721 = vmatpush.msra.mxu0 %v848
    %3722 = vmatpush.msra.mxu0 %v840
    %3723 = vmatpush.msra.mxu0 %v832
    %3724 = vmatpush.msra.mxu0 %v824
    %3725 = vmatpush.msra.mxu0 %v816
    %3726 = vmatpush.msra.mxu0 %v808
    %3727 = vmatpush.msra.mxu0 %v800
    %3728 = vmatpush.msra.mxu0 %v792
    %3729 = vmatpush.msra.mxu0 %v784
    %3730 = vmatpush.msra.mxu0 %v776
    %3731 = vmatpush.msra.mxu0 %v768
    %3732 = vmatpush.msra.mxu0 %v760
    %3733 = vmatpush.msra.mxu0 %v752
    %3734 = vmatpush.msra.mxu0 %v744
    %3735 = vmatpush.msra.mxu0 %v736
    %3736 = vmatmul.f32.gmra.mxu0 %v3636
    %v3737 = vpop.f32.mrf.mxu0
    %v3738 = vadd.f32 0.0, %v3737
    %3739 = vdwg.mxu0
    %3740 = vmatpush.msra.mxu0 %v984
    %3741 = vmatpush.msra.mxu0 %v976
    %3742 = vmatpush.msra.mxu0 %v968
    %3743 = vmatpush.msra.mxu0 %v960
    %3744 = vmatpush.msra.mxu0 %v952
    %3745 = vmatpush.msra.mxu0 %v944
    %3746 = vmatpush.msra.mxu0 %v936
    %3747 = vmatpush.msra.mxu0 %v928
    %3748 = vmatpush.msra.mxu0 %v920
    %3749 = vmatpush.msra.mxu0 %v912
    %3750 = vmatpush.msra.mxu0 %v904
    %3751 = vmatpush.msra.mxu0 %v896
    %3752 = vmatpush.msra.mxu0 %v888
    %3753 = vmatpush.msra.mxu0 %v880
    %3754 = vmatpush.msra.mxu0 %v872
    %3755 = vmatpush.msra.mxu0 %v864
    %3756 = vmatmul.f32.gmra.mxu0 %v3637
    %v3757 = vpop.f32.mrf.mxu0
    %v3758 = vadd.f32 %v3738, %v3757
    %3759 = vdwg.mxu0
    %3760 = vmatpush.msra.mxu0 %v857
    %3761 = vmatpush.msra.mxu0 %v849
    %3762 = vmatpush.msra.mxu0 %v841
    %3763 = vmatpush.msra.mxu0 %v833
    %3764 = vmatpush.msra.mxu0 %v825
    %3765 = vmatpush.msra.mxu0 %v817
    %3766 = vmatpush.msra.mxu0 %v809
    %3767 = vmatpush.msra.mxu0 %v801
    %3768 = vmatpush.msra.mxu0 %v793
    %3769 = vmatpush.msra.mxu0 %v785
    %3770 = vmatpush.msra.mxu0 %v777
    %3771 = vmatpush.msra.mxu0 %v769
    %3772 = vmatpush.msra.mxu0 %v761
    %3773 = vmatpush.msra.mxu0 %v753
    %3774 = vmatpush.msra.mxu0 %v745
    %3775 = vmatpush.msra.mxu0 %v737
    %3776 = vmatmul.f32.gmra.mxu0 %v3636
    %v3777 = vpop.f32.mrf.mxu0
    %v3778 = vadd.f32 0.0, %v3777
    %3779 = vdwg.mxu0
    %3780 = vmatpush.msra.mxu0 %v985
    %3781 = vmatpush.msra.mxu0 %v977
    %3782 = vmatpush.msra.mxu0 %v969
    %3783 = vmatpush.msra.mxu0 %v961
    %3784 = vmatpush.msra.mxu0 %v953
    %3785 = vmatpush.msra.mxu0 %v945
    %3786 = vmatpush.msra.mxu0 %v937
    %3787 = vmatpush.msra.mxu0 %v929
    %3788 = vmatpush.msra.mxu0 %v921
    %3789 = vmatpush.msra.mxu0 %v913
    %3790 = vmatpush.msra.mxu0 %v905
    %3791 = vmatpush.msra.mxu0 %v897
    %3792 = vmatpush.msra.mxu0 %v889
    %3793 = vmatpush.msra.mxu0 %v881
    %3794 = vmatpush.msra.mxu0 %v873
    %3795 = vmatpush.msra.mxu0 %v865
    %3796 = vmatmul.f32.gmra.mxu0 %v3637
    %v3797 = vpop.f32.mrf.mxu0
    %v3798 = vadd.f32 %v3778, %v3797
    %3799 = vdwg.mxu0
    %3800 = vmatpush.msra.mxu0 %v858
    %3801 = vmatpush.msra.mxu0 %v850
    %3802 = vmatpush.msra.mxu0 %v842
    %3803 = vmatpush.msra.mxu0 %v834
    %3804 = vmatpush.msra.mxu0 %v826
    %3805 = vmatpush.msra.mxu0 %v818
    %3806 = vmatpush.msra.mxu0 %v810
    %3807 = vmatpush.msra.mxu0 %v802
    %3808 = vmatpush.msra.mxu0 %v794
    %3809 = vmatpush.msra.mxu0 %v786
    %3810 = vmatpush.msra.mxu0 %v778
    %3811 = vmatpush.msra.mxu0 %v770
    %3812 = vmatpush.msra.mxu0 %v762
    %3813 = vmatpush.msra.mxu0 %v754
    %3814 = vmatpush.msra.mxu0 %v746
    %3815 = vmatpush.msra.mxu0 %v738
    %3816 = vmatmul.f32.gmra.mxu0 %v3636
    %v3817 = vpop.f32.mrf.mxu0
    %v3818 = vadd.f32 0.0, %v3817
    %3819 = vdwg.mxu0
    %3820 = vmatpush.msra.mxu0 %v986
    %3821 = vmatpush.msra.mxu0 %v978
    %3822 = vmatpush.msra.mxu0 %v970
    %3823 = vmatpush.msra.mxu0 %v962
    %3824 = vmatpush.msra.mxu0 %v954
    %3825 = vmatpush.msra.mxu0 %v946
    %3826 = vmatpush.msra.mxu0 %v938
    %3827 = vmatpush.msra.mxu0 %v930
    %3828 = vmatpush.msra.mxu0 %v922
    %3829 = vmatpush.msra.mxu0 %v914
    %3830 = vmatpush.msra.mxu0 %v906
    %3831 = vmatpush.msra.mxu0 %v898
    %3832 = vmatpush.msra.mxu0 %v890
    %3833 = vmatpush.msra.mxu0 %v882
    %3834 = vmatpush.msra.mxu0 %v874
    %3835 = vmatpush.msra.mxu0 %v866
    %3836 = vmatmul.f32.gmra.mxu0 %v3637
    %v3837 = vpop.f32.mrf.mxu0
    %v3838 = vadd.f32 %v3818, %v3837
    %3839 = vdwg.mxu0
    %3840 = vmatpush.msra.mxu0 %v859
    %3841 = vmatpush.msra.mxu0 %v851
    %3842 = vmatpush.msra.mxu0 %v843
    %3843 = vmatpush.msra.mxu0 %v835
    %3844 = vmatpush.msra.mxu0 %v827
    %3845 = vmatpush.msra.mxu0 %v819
    %3846 = vmatpush.msra.mxu0 %v811
    %3847 = vmatpush.msra.mxu0 %v803
    %3848 = vmatpush.msra.mxu0 %v795
    %3849 = vmatpush.msra.mxu0 %v787
    %3850 = vmatpush.msra.mxu0 %v779
    %3851 = vmatpush.msra.mxu0 %v771
    %3852 = vmatpush.msra.mxu0 %v763
    %3853 = vmatpush.msra.mxu0 %v755
    %3854 = vmatpush.msra.mxu0 %v747
    %3855 = vmatpush.msra.mxu0 %v739
    %3856 = vmatmul.f32.gmra.mxu0 %v3636
    %v3857 = vpop.f32.mrf.mxu0
    %v3858 = vadd.f32 0.0, %v3857
    %3859 = vdwg.mxu0
    %3860 = vmatpush.msra.mxu0 %v987
    %3861 = vmatpush.msra.mxu0 %v979
    %3862 = vmatpush.msra.mxu0 %v971
    %3863 = vmatpush.msra.mxu0 %v963
    %3864 = vmatpush.msra.mxu0 %v955
    %3865 = vmatpush.msra.mxu0 %v947
    %3866 = vmatpush.msra.mxu0 %v939
    %3867 = vmatpush.msra.mxu0 %v931
    %3868 = vmatpush.msra.mxu0 %v923
    %3869 = vmatpush.msra.mxu0 %v915
    %3870 = vmatpush.msra.mxu0 %v907
    %3871 = vmatpush.msra.mxu0 %v899
    %3872 = vmatpush.msra.mxu0 %v891
    %3873 = vmatpush.msra.mxu0 %v883
    %3874 = vmatpush.msra.mxu0 %v875
    %3875 = vmatpush.msra.mxu0 %v867
    %3876 = vmatmul.f32.gmra.mxu0 %v3637
    %v3877 = vpop.f32.mrf.mxu0
    %v3878 = vadd.f32 %v3858, %v3877
    %3879 = vdwg.mxu0
    %3880 = vmatpush.msra.mxu0 %v860
    %3881 = vmatpush.msra.mxu0 %v852
    %3882 = vmatpush.msra.mxu0 %v844
    %3883 = vmatpush.msra.mxu0 %v836
    %3884 = vmatpush.msra.mxu0 %v828
    %3885 = vmatpush.msra.mxu0 %v820
    %3886 = vmatpush.msra.mxu0 %v812
    %3887 = vmatpush.msra.mxu0 %v804
    %3888 = vmatpush.msra.mxu0 %v796
    %3889 = vmatpush.msra.mxu0 %v788
    %3890 = vmatpush.msra.mxu0 %v780
    %3891 = vmatpush.msra.mxu0 %v772
    %3892 = vmatpush.msra.mxu0 %v764
    %3893 = vmatpush.msra.mxu0 %v756
    %3894 = vmatpush.msra.mxu0 %v748
    %3895 = vmatpush.msra.mxu0 %v740
    %3896 = vmatmul.f32.gmra.mxu0 %v3636
    %v3897 = vpop.f32.mrf.mxu0
    %v3898 = vadd.f32 0.0, %v3897
    %3899 = vdwg.mxu0
    %3900 = vmatpush.msra.mxu0 %v988
    %3901 = vmatpush.msra.mxu0 %v980
    %3902 = vmatpush.msra.mxu0 %v972
    %3903 = vmatpush.msra.mxu0 %v964
    %3904 = vmatpush.msra.mxu0 %v956
    %3905 = vmatpush.msra.mxu0 %v948
    %3906 = vmatpush.msra.mxu0 %v940
    %3907 = vmatpush.msra.mxu0 %v932
    %3908 = vmatpush.msra.mxu0 %v924
    %3909 = vmatpush.msra.mxu0 %v916
    %3910 = vmatpush.msra.mxu0 %v908
    %3911 = vmatpush.msra.mxu0 %v900
    %3912 = vmatpush.msra.mxu0 %v892
    %3913 = vmatpush.msra.mxu0 %v884
    %3914 = vmatpush.msra.mxu0 %v876
    %3915 = vmatpush.msra.mxu0 %v868
    %3916 = vmatmul.f32.gmra.mxu0 %v3637
    %v3917 = vpop.f32.mrf.mxu0
    %v3918 = vadd.f32 %v3898, %v3917
    %3919 = vdwg.mxu0
    %3920 = vmatpush.msra.mxu0 %v861
    %3921 = vmatpush.msra.mxu0 %v853
    %3922 = vmatpush.msra.mxu0 %v845
    %3923 = vmatpush.msra.mxu0 %v837
    %3924 = vmatpush.msra.mxu0 %v829
    %3925 = vmatpush.msra.mxu0 %v821
    %3926 = vmatpush.msra.mxu0 %v813
    %3927 = vmatpush.msra.mxu0 %v805
    %3928 = vmatpush.msra.mxu0 %v797
    %3929 = vmatpush.msra.mxu0 %v789
    %3930 = vmatpush.msra.mxu0 %v781
    %3931 = vmatpush.msra.mxu0 %v773
    %3932 = vmatpush.msra.mxu0 %v765
    %3933 = vmatpush.msra.mxu0 %v757
    %3934 = vmatpush.msra.mxu0 %v749
    %3935 = vmatpush.msra.mxu0 %v741
    %3936 = vmatmul.f32.gmra.mxu0 %v3636
    %v3937 = vpop.f32.mrf.mxu0
    %v3938 = vadd.f32 0.0, %v3937
    %3939 = vdwg.mxu0
    %3940 = vmatpush.msra.mxu0 %v989
    %3941 = vmatpush.msra.mxu0 %v981
    %3942 = vmatpush.msra.mxu0 %v973
    %3943 = vmatpush.msra.mxu0 %v965
    %3944 = vmatpush.msra.mxu0 %v957
    %3945 = vmatpush.msra.mxu0 %v949
    %3946 = vmatpush.msra.mxu0 %v941
    %3947 = vmatpush.msra.mxu0 %v933
    %3948 = vmatpush.msra.mxu0 %v925
    %3949 = vmatpush.msra.mxu0 %v917
    %3950 = vmatpush.msra.mxu0 %v909
    %3951 = vmatpush.msra.mxu0 %v901
    %3952 = vmatpush.msra.mxu0 %v893
    %3953 = vmatpush.msra.mxu0 %v885
    %3954 = vmatpush.msra.mxu0 %v877
    %3955 = vmatpush.msra.mxu0 %v869
    %3956 = vmatmul.f32.gmra.mxu0 %v3637
    %v3957 = vpop.f32.mrf.mxu0
    %v3958 = vadd.f32 %v3938, %v3957
    %3959 = vdwg.mxu0
    %v3968 = vrot.slane %v3678, 2
    %v3969 = vrot.slane %v3718, 2
    %v3970 = vrot.slane %v3758, 2
    %v3971 = vrot.slane %v3798, 2
    %v3972 = vrot.slane %v3838, 2
    %v3973 = vrot.slane %v3878, 2
    %v3974 = vrot.slane %v3918, 2
    %v3975 = vrot.slane %v3958, 2
    %v3984 = vadd.f32 %v265, %v3968
    %v3985 = vadd.f32 %v296, %v3969
    %v3986 = vadd.f32 %v327, %v3970
    %v3987 = vadd.f32 %v357, %v3971
    %v3988 = vadd.f32 %v387, %v3972
    %v3989 = vadd.f32 %v418, %v3973
    %v3990 = vadd.f32 %v449, %v3974
    %v3991 = vadd.f32 %v480, %v3975
    %v3992 = vmul.f32 %v3984, 0.5
    %v3993 = vmul.f32 %v3985, 0.5
    %v3994 = vtanh.pop %v3992
    %v3995 = vtanh.pop %v3993
    %v3996 = vadd.f32 %v3994, 1.0
    %v3997 = vadd.f32 %v3995, 1.0
    %v3998 = vmul.f32 %v3996, 0.5
    %v3999 = vmul.f32 %v3997, 0.5
    %v4000 = vmul.f32 %v3986, 0.5
    %v4001 = vmul.f32 %v3987, 0.5
    %v4002 = vtanh.pop %v4000
    %v4003 = vtanh.pop %v4001
    %v4004 = vadd.f32 %v4002, 1.0
    %v4005 = vadd.f32 %v4003, 1.0
    %v4006 = vmul.f32 %v4004, 0.5
    %v4007 = vmul.f32 %v4005, 0.5
    %v4008 = vtanh.pop %v3988
    %v4009 = vtanh.pop %v3989
    %v4010 = vmul.f32 %v3990, 0.5
    %v4011 = vmul.f32 %v3991, 0.5
    %v4012 = vtanh.pop %v4010
    %v4013 = vtanh.pop %v4011
    %v4014 = vadd.f32 %v4012, 1.0
    %v4015 = vadd.f32 %v4013, 1.0
    %v4016 = vmul.f32 %v4014, 0.5
    %v4017 = vmul.f32 %v4015, 0.5
    %v4020 = vrot.slane %v3628, 6
    %v4021 = vrot.slane %v3629, 6
    %v4024 = vmul.f32 %v4006, %v4020
    %v4025 = vmul.f32 %v4007, %v4021
    %v4026 = vmul.f32 %v3998, %v4008
    %v4027 = vmul.f32 %v3999, %v4009
    %v4028 = vadd.f32 %v4024, %v4026
    %v4029 = vadd.f32 %v4025, %v4027
    %v4030 = vtanh.pop %v4028
    %v4031 = vtanh.pop %v4029
    %v4032 = vmul.f32 %v4016, %v4030
    %v4033 = vmul.f32 %v4017, %v4031
    %v4034 = vmul.f32 %v510, 0.5
    %v4035 = vmul.f32 %v541, 0.5
    %v4036 = vtanh.pop %v4034
    %v4037 = vtanh.pop %v4035
    %v4038 = vadd.f32 %v4036, 1.0
    %v4039 = vadd.f32 %v4037, 1.0
    %v4040 = vmul.f32 %v4038, 0.5
    %v4041 = vmul.f32 %v4039, 0.5
    %v4042 = vtanh.pop %v630
    %v4043 = vtanh.pop %v661
    %v4044 = vmul.f32 %v692, 0.5
    %v4045 = vmul.f32 %v723, 0.5
    %v4046 = vtanh.pop %v4044
    %v4047 = vtanh.pop %v4045
    %v4048 = vadd.f32 %v4046, 1.0
    %v4049 = vadd.f32 %v4047, 1.0
    %v4050 = vmul.f32 %v4048, 0.5
    %v4051 = vmul.f32 %v4049, 0.5
    %v4052 = vmul.f32 %v4040, %v4042
    %v4053 = vmul.f32 %v4041, %v4043
    %v4054 = vtanh.pop %v4052
    %v4055 = vtanh.pop %v4053
    %v4056 = vmul.f32 %v4050, %v4054
    %v4057 = vmul.f32 %v4051, %v4055
    %v4058 = vmul.f32 %v268, 0.5
    %v4059 = vmul.f32 %v299, 0.5
    %v4060 = vtanh.pop %v4058
    %v4061 = vtanh.pop %v4059
    %v4062 = vadd.f32 %v4060, 1.0
    %v4063 = vadd.f32 %v4061, 1.0
    %v4064 = vmul.f32 %v4062, 0.5
    %v4065 = vmul.f32 %v4063, 0.5
    %v4066 = vtanh.pop %v390
    %v4067 = vtanh.pop %v421
    %v4068 = vmul.f32 %v452, 0.5
    %v4069 = vmul.f32 %v483, 0.5
    %v4070 = vtanh.pop %v4068
    %v4071 = vtanh.pop %v4069
    %v4072 = vadd.f32 %v4070, 1.0
    %v4073 = vadd.f32 %v4071, 1.0
    %v4074 = vmul.f32 %v4072, 0.5
    %v4075 = vmul.f32 %v4073, 0.5
    %v4076 = vmul.f32 %v4064, %v4066
    %v4077 = vmul.f32 %v4065, %v4067
    %v4078 = vtanh.pop %v4076
    %v4079 = vtanh.pop %v4077
    %v4080 = vmul.f32 %v4074, %v4078
    %v4081 = vmul.f32 %v4075, %v4079
    %v4082 = vmul.f32 %v516, 0.5
    %v4083 = vmul.f32 %v547, 0.5
    %v4084 = vtanh.pop %v4082
    %v4085 = vtanh.pop %v4083
    %v4086 = vadd.f32 %v4084, 1.0
    %v4087 = vadd.f32 %v4085, 1.0
    %v4088 = vmul.f32 %v4086, 0.5
    %v4089 = vmul.f32 %v4087, 0.5
    %v4090 = vtanh.pop %v636
    %v4091 = vtanh.pop %v667
    %v4092 = vmul.f32 %v698, 0.5
    %v4093 = vmul.f32 %v729, 0.5
    %v4094 = vtanh.pop %v4092
    %v4095 = vtanh.pop %v4093
    %v4096 = vadd.f32 %v4094, 1.0
    %v4097 = vadd.f32 %v4095, 1.0
    %v4098 = vmul.f32 %v4096, 0.5
    %v4099 = vmul.f32 %v4097, 0.5
    %v4100 = vmul.f32 %v4088, %v4090
    %v4101 = vmul.f32 %v4089, %v4091
    %v4102 = vtanh.pop %v4100
    %v4103 = vtanh.pop %v4101
    %v4104 = vmul.f32 %v4098, %v4102
    %v4105 = vmul.f32 %v4099, %v4103
    %v4108 = vrot.slane %v4104, 6
    %v4109 = vrot.slane %v4105, 6
    %4112 = vmatpush.msra.mxu0 %v1110
    %4113 = vmatpush.msra.mxu0 %v1102
    %4114 = vmatpush.msra.mxu0 %v1094
    %4115 = vmatpush.msra.mxu0 %v1086
    %4116 = vmatpush.msra.mxu0 %v1078
    %4117 = vmatpush.msra.mxu0 %v1070
    %4118 = vmatpush.msra.mxu0 %v1062
    %4119 = vmatpush.msra.mxu0 %v1054
    %4120 = vmatpush.msra.mxu0 %v1046
    %4121 = vmatpush.msra.mxu0 %v1038
    %4122 = vmatpush.msra.mxu0 %v1030
    %4123 = vmatpush.msra.mxu0 %v1022
    %4124 = vmatpush.msra.mxu0 %v1014
    %4125 = vmatpush.msra.mxu0 %v1006
    %4126 = vmatpush.msra.mxu0 %v998
    %4127 = vmatpush.msra.mxu0 %v990
    %4128 = vmatmul.f32.gmra.mxu0 %v4108
    %v4129 = vpop.f32.mrf.mxu0
    %v4130 = vadd.f32 0.0, %v4129
    %4131 = vdwg.mxu0
    %4132 = vmatpush.msra.mxu0 %v1238
    %4133 = vmatpush.msra.mxu0 %v1230
    %4134 = vmatpush.msra.mxu0 %v1222
    %4135 = vmatpush.msra.mxu0 %v1214
    %4136 = vmatpush.msra.mxu0 %v1206
    %4137 = vmatpush.msra.mxu0 %v1198
    %4138 = vmatpush.msra.mxu0 %v1190
    %4139 = vmatpush.msra.mxu0 %v1182
    %4140 = vmatpush.msra.mxu0 %v1174
    %4141 = vmatpush.msra.mxu0 %v1166
    %4142 = vmatpush.msra.mxu0 %v1158
    %4143 = vmatpush.msra.mxu0 %v1150
    %4144 = vmatpush.msra.mxu0 %v1142
    %4145 = vmatpush.msra.mxu0 %v1134
    %4146 = vmatpush.msra.mxu0 %v1126
    %4147 = vmatpush.msra.mxu0 %v1118
    %4148 = vmatmul.f32.gmra.mxu0 %v4109
    %v4149 = vpop.f32.mrf.mxu0
    %v4150 = vadd.f32 %v4130, %v4149
    %4151 = vdwg.mxu0
    %4152 = vmatpush.msra.mxu0 %v1111
    %4153 = vmatpush.msra.mxu0 %v1103
    %4154 = vmatpush.msra.mxu0 %v1095
    %4155 = vmatpush.msra.mxu0 %v1087
    %4156 = vmatpush.msra.mxu0 %v1079
    %4157 = vmatpush.msra.mxu0 %v1071
    %4158 = vmatpush.msra.mxu0 %v1063
    %4159 = vmatpush.msra.mxu0 %v1055
    %4160 = vmatpush.msra.mxu0 %v1047
    %4161 = vmatpush.msra.mxu0 %v1039
    %4162 = vmatpush.msra.mxu0 %v1031
    %4163 = vmatpush.msra.mxu0 %v1023
    %4164 = vmatpush.msra.mxu0 %v1015
    %4165 = vmatpush.msra.mxu0 %v1007
    %4166 = vmatpush.msra.mxu0 %v999
    %4167 = vmatpush.msra.mxu0 %v991
    %4168 = vmatmul.f32.gmra.mxu0 %v4108
    %v4169 = vpop.f32.mrf.mxu0
    %v4170 = vadd.f32 0.0, %v4169
    %4171 = vdwg.mxu0
    %4172 = vmatpush.msra.mxu0 %v1239
    %4173 = vmatpush.msra.mxu0 %v1231
    %4174 = vmatpush.msra.mxu0 %v1223
    %4175 = vmatpush.msra.mxu0 %v1215
    %4176 = vmatpush.msra.mxu0 %v1207
    %4177 = vmatpush.msra.mxu0 %v1199
    %4178 = vmatpush.msra.mxu0 %v1191
    %4179 = vmatpush.msra.mxu0 %v1183
    %4180 = vmatpush.msra.mxu0 %v1175
    %4181 = vmatpush.msra.mxu0 %v1167
    %4182 = vmatpush.msra.mxu0 %v1159
    %4183 = vmatpush.msra.mxu0 %v1151
    %4184 = vmatpush.msra.mxu0 %v1143
    %4185 = vmatpush.msra.mxu0 %v1135
    %4186 = vmatpush.msra.mxu0 %v1127
    %4187 = vmatpush.msra.mxu0 %v1119
    %4188 = vmatmul.f32.gmra.mxu0 %v4109
    %v4189 = vpop.f32.mrf.mxu0
    %v4190 = vadd.f32 %v4170, %v4189
    %4191 = vdwg.mxu0
    %4192 = vmatpush.msra.mxu0 %v1112
    %4193 = vmatpush.msra.mxu0 %v1104
    %4194 = vmatpush.msra.mxu0 %v1096
    %4195 = vmatpush.msra.mxu0 %v1088
    %4196 = vmatpush.msra.mxu0 %v1080
    %4197 = vmatpush.msra.mxu0 %v1072
    %4198 = vmatpush.msra.mxu0 %v1064
    %4199 = vmatpush.msra.mxu0 %v1056
    %4200 = vmatpush.msra.mxu0 %v1048
    %4201 = vmatpush.msra.mxu0 %v1040
    %4202 = vmatpush.msra.mxu0 %v1032
    %4203 = vmatpush.msra.mxu0 %v1024
    %4204 = vmatpush.msra.mxu0 %v1016
    %4205 = vmatpush.msra.mxu0 %v1008
    %4206 = vmatpush.msra.mxu0 %v1000
    %4207 = vmatpush.msra.mxu0 %v992
    %4208 = vmatmul.f32.gmra.mxu0 %v4108
    %v4209 = vpop.f32.mrf.mxu0
    %v4210 = vadd.f32 0.0, %v4209
    %4211 = vdwg.mxu0
    %4212 = vmatpush.msra.mxu0 %v1240
    %4213 = vmatpush.msra.mxu0 %v1232
    %4214 = vmatpush.msra.mxu0 %v1224
    %4215 = vmatpush.msra.mxu0 %v1216
    %4216 = vmatpush.msra.mxu0 %v1208
    %4217 = vmatpush.msra.mxu0 %v1200
    %4218 = vmatpush.msra.mxu0 %v1192
    %4219 = vmatpush.msra.mxu0 %v1184
    %4220 = vmatpush.msra.mxu0 %v1176
    %4221 = vmatpush.msra.mxu0 %v1168
    %4222 = vmatpush.msra.mxu0 %v1160
    %4223 = vmatpush.msra.mxu0 %v1152
    %4224 = vmatpush.msra.mxu0 %v1144
    %4225 = vmatpush.msra.mxu0 %v1136
    %4226 = vmatpush.msra.mxu0 %v1128
    %4227 = vmatpush.msra.mxu0 %v1120
    %4228 = vmatmul.f32.gmra.mxu0 %v4109
    %v4229 = vpop.f32.mrf.mxu0
    %v4230 = vadd.f32 %v4210, %v4229
    %4231 = vdwg.mxu0
    %4232 = vmatpush.msra.mxu0 %v1113
    %4233 = vmatpush.msra.mxu0 %v1105
    %4234 = vmatpush.msra.mxu0 %v1097
    %4235 = vmatpush.msra.mxu0 %v1089
    %4236 = vmatpush.msra.mxu0 %v1081
    %4237 = vmatpush.msra.mxu0 %v1073
    %4238 = vmatpush.msra.mxu0 %v1065
    %4239 = vmatpush.msra.mxu0 %v1057
    %4240 = vmatpush.msra.mxu0 %v1049
    %4241 = vmatpush.msra.mxu0 %v1041
    %4242 = vmatpush.msra.mxu0 %v1033
    %4243 = vmatpush.msra.mxu0 %v1025
    %4244 = vmatpush.msra.mxu0 %v1017
    %4245 = vmatpush.msra.mxu0 %v1009
    %4246 = vmatpush.msra.mxu0 %v1001
    %4247 = vmatpush.msra.mxu0 %v993
    %4248 = vmatmul.f32.gmra.mxu0 %v4108
    %v4249 = vpop.f32.mrf.mxu0
    %v4250 = vadd.f32 0.0, %v4249
    %4251 = vdwg.mxu0
    %4252 = vmatpush.msra.mxu0 %v1241
    %4253 = vmatpush.msra.mxu0 %v1233
    %4254 = vmatpush.msra.mxu0 %v1225
    %4255 = vmatpush.msra.mxu0 %v1217
    %4256 = vmatpush.msra.mxu0 %v1209
    %4257 = vmatpush.msra.mxu0 %v1201
    %4258 = vmatpush.msra.mxu0 %v1193
    %4259 = vmatpush.msra.mxu0 %v1185
    %4260 = vmatpush.msra.mxu0 %v1177
    %4261 = vmatpush.msra.mxu0 %v1169
    %4262 = vmatpush.msra.mxu0 %v1161
    %4263 = vmatpush.msra.mxu0 %v1153
    %4264 = vmatpush.msra.mxu0 %v1145
    %4265 = vmatpush.msra.mxu0 %v1137
    %4266 = vmatpush.msra.mxu0 %v1129
    %4267 = vmatpush.msra.mxu0 %v1121
    %4268 = vmatmul.f32.gmra.mxu0 %v4109
    %v4269 = vpop.f32.mrf.mxu0
    %v4270 = vadd.f32 %v4250, %v4269
    %4271 = vdwg.mxu0
    %4272 = vmatpush.msra.mxu0 %v1114
    %4273 = vmatpush.msra.mxu0 %v1106
    %4274 = vmatpush.msra.mxu0 %v1098
    %4275 = vmatpush.msra.mxu0 %v1090
    %4276 = vmatpush.msra.mxu0 %v1082
    %4277 = vmatpush.msra.mxu0 %v1074
    %4278 = vmatpush.msra.mxu0 %v1066
    %4279 = vmatpush.msra.mxu0 %v1058
    %4280 = vmatpush.msra.mxu0 %v1050
    %4281 = vmatpush.msra.mxu0 %v1042
    %4282 = vmatpush.msra.mxu0 %v1034
    %4283 = vmatpush.msra.mxu0 %v1026
    %4284 = vmatpush.msra.mxu0 %v1018
    %4285 = vmatpush.msra.mxu0 %v1010
    %4286 = vmatpush.msra.mxu0 %v1002
    %4287 = vmatpush.msra.mxu0 %v994
    %4288 = vmatmul.f32.gmra.mxu0 %v4108
    %v4289 = vpop.f32.mrf.mxu0
    %v4290 = vadd.f32 0.0, %v4289
    %4291 = vdwg.mxu0
    %4292 = vmatpush.msra.mxu0 %v1242
    %4293 = vmatpush.msra.mxu0 %v1234
    %4294 = vmatpush.msra.mxu0 %v1226
    %4295 = vmatpush.msra.mxu0 %v1218
    %4296 = vmatpush.msra.mxu0 %v1210
    %4297 = vmatpush.msra.mxu0 %v1202
    %4298 = vmatpush.msra.mxu0 %v1194
    %4299 = vmatpush.msra.mxu0 %v1186
    %4300 = vmatpush.msra.mxu0 %v1178
    %4301 = vmatpush.msra.mxu0 %v1170
    %4302 = vmatpush.msra.mxu0 %v1162
    %4303 = vmatpush.msra.mxu0 %v1154
    %4304 = vmatpush.msra.mxu0 %v1146
    %4305 = vmatpush.msra.mxu0 %v1138
    %4306 = vmatpush.msra.mxu0 %v1130
    %4307 = vmatpush.msra.mxu0 %v1122
    %4308 = vmatmul.f32.gmra.mxu0 %v4109
    %v4309 = vpop.f32.mrf.mxu0
    %v4310 = vadd.f32 %v4290, %v4309
    %4311 = vdwg.mxu0
    %4312 = vmatpush.msra.mxu0 %v1115
    %4313 = vmatpush.msra.mxu0 %v1107
    %4314 = vmatpush.msra.mxu0 %v1099
    %4315 = vmatpush.msra.mxu0 %v1091
    %4316 = vmatpush.msra.mxu0 %v1083
    %4317 = vmatpush.msra.mxu0 %v1075
    %4318 = vmatpush.msra.mxu0 %v1067
    %4319 = vmatpush.msra.mxu0 %v1059
    %4320 = vmatpush.msra.mxu0 %v1051
    %4321 = vmatpush.msra.mxu0 %v1043
    %4322 = vmatpush.msra.mxu0 %v1035
    %4323 = vmatpush.msra.mxu0 %v1027
    %4324 = vmatpush.msra.mxu0 %v1019
    %4325 = vmatpush.msra.mxu0 %v1011
    %4326 = vmatpush.msra.mxu0 %v1003
    %4327 = vmatpush.msra.mxu0 %v995
    %4328 = vmatmul.f32.gmra.mxu0 %v4108
    %v4329 = vpop.f32.mrf.mxu0
    %v4330 = vadd.f32 0.0, %v4329
    %4331 = vdwg.mxu0
    %4332 = vmatpush.msra.mxu0 %v1243
    %4333 = vmatpush.msra.mxu0 %v1235
    %4334 = vmatpush.msra.mxu0 %v1227
    %4335 = vmatpush.msra.mxu0 %v1219
    %4336 = vmatpush.msra.mxu0 %v1211
    %4337 = vmatpush.msra.mxu0 %v1203
    %4338 = vmatpush.msra.mxu0 %v1195
    %4339 = vmatpush.msra.mxu0 %v1187
    %4340 = vmatpush.msra.mxu0 %v1179
    %4341 = vmatpush.msra.mxu0 %v1171
    %4342 = vmatpush.msra.mxu0 %v1163
    %4343 = vmatpush.msra.mxu0 %v1155
    %4344 = vmatpush.msra.mxu0 %v1147
    %4345 = vmatpush.msra.mxu0 %v1139
    %4346 = vmatpush.msra.mxu0 %v1131
    %4347 = vmatpush.msra.mxu0 %v1123
    %4348 = vmatmul.f32.gmra.mxu0 %v4109
    %v4349 = vpop.f32.mrf.mxu0
    %v4350 = vadd.f32 %v4330, %v4349
    %4351 = vdwg.mxu0
    %4352 = vmatpush.msra.mxu0 %v1116
    %4353 = vmatpush.msra.mxu0 %v1108
    %4354 = vmatpush.msra.mxu0 %v1100
    %4355 = vmatpush.msra.mxu0 %v1092
    %4356 = vmatpush.msra.mxu0 %v1084
    %4357 = vmatpush.msra.mxu0 %v1076
    %4358 = vmatpush.msra.mxu0 %v1068
    %4359 = vmatpush.msra.mxu0 %v1060
    %4360 = vmatpush.msra.mxu0 %v1052
    %4361 = vmatpush.msra.mxu0 %v1044
    %4362 = vmatpush.msra.mxu0 %v1036
    %4363 = vmatpush.msra.mxu0 %v1028
    %4364 = vmatpush.msra.mxu0 %v1020
    %4365 = vmatpush.msra.mxu0 %v1012
    %4366 = vmatpush.msra.mxu0 %v1004
    %4367 = vmatpush.msra.mxu0 %v996
    %4368 = vmatmul.f32.gmra.mxu0 %v4108
    %v4369 = vpop.f32.mrf.mxu0
    %v4370 = vadd.f32 0.0, %v4369
    %4371 = vdwg.mxu0
    %4372 = vmatpush.msra.mxu0 %v1244
    %4373 = vmatpush.msra.mxu0 %v1236
    %4374 = vmatpush.msra.mxu0 %v1228
    %4375 = vmatpush.msra.mxu0 %v1220
    %4376 = vmatpush.msra.mxu0 %v1212
    %4377 = vmatpush.msra.mxu0 %v1204
    %4378 = vmatpush.msra.mxu0 %v1196
    %4379 = vmatpush.msra.mxu0 %v1188
    %4380 = vmatpush.msra.mxu0 %v1180
    %4381 = vmatpush.msra.mxu0 %v1172
    %4382 = vmatpush.msra.mxu0 %v1164
    %4383 = vmatpush.msra.mxu0 %v1156
    %4384 = vmatpush.msra.mxu0 %v1148
    %4385 = vmatpush.msra.mxu0 %v1140
    %4386 = vmatpush.msra.mxu0 %v1132
    %4387 = vmatpush.msra.mxu0 %v1124
    %4388 = vmatmul.f32.gmra.mxu0 %v4109
    %v4389 = vpop.f32.mrf.mxu0
    %v4390 = vadd.f32 %v4370, %v4389
    %4391 = vdwg.mxu0
    %4392 = vmatpush.msra.mxu0 %v1117
    %4393 = vmatpush.msra.mxu0 %v1109
    %4394 = vmatpush.msra.mxu0 %v1101
    %4395 = vmatpush.msra.mxu0 %v1093
    %4396 = vmatpush.msra.mxu0 %v1085
    %4397 = vmatpush.msra.mxu0 %v1077
    %4398 = vmatpush.msra.mxu0 %v1069
    %4399 = vmatpush.msra.mxu0 %v1061
    %4400 = vmatpush.msra.mxu0 %v1053
    %4401 = vmatpush.msra.mxu0 %v1045
    %4402 = vmatpush.msra.mxu0 %v1037
    %4403 = vmatpush.msra.mxu0 %v1029
    %4404 = vmatpush.msra.mxu0 %v1021
    %4405 = vmatpush.msra.mxu0 %v1013
    %4406 = vmatpush.msra.mxu0 %v1005
    %4407 = vmatpush.msra.mxu0 %v997
    %4408 = vmatmul.f32.gmra.mxu0 %v4108
    %v4409 = vpop.f32.mrf.mxu0
    %v4410 = vadd.f32 0.0, %v4409
    %4411 = vdwg.mxu0
    %4412 = vmatpush.msra.mxu0 %v1245
    %4413 = vmatpush.msra.mxu0 %v1237
    %4414 = vmatpush.msra.mxu0 %v1229
    %4415 = vmatpush.msra.mxu0 %v1221
    %4416 = vmatpush.msra.mxu0 %v1213
    %4417 = vmatpush.msra.mxu0 %v1205
    %4418 = vmatpush.msra.mxu0 %v1197
    %4419 = vmatpush.msra.mxu0 %v1189
    %4420 = vmatpush.msra.mxu0 %v1181
    %4421 = vmatpush.msra.mxu0 %v1173
    %4422 = vmatpush.msra.mxu0 %v1165
    %4423 = vmatpush.msra.mxu0 %v1157
    %4424 = vmatpush.msra.mxu0 %v1149
    %4425 = vmatpush.msra.mxu0 %v1141
    %4426 = vmatpush.msra.mxu0 %v1133
    %4427 = vmatpush.msra.mxu0 %v1125
    %4428 = vmatmul.f32.gmra.mxu0 %v4109
    %v4429 = vpop.f32.mrf.mxu0
    %v4430 = vadd.f32 %v4410, %v4429
    %4431 = vdwg.mxu0
    %v4440 = vrot.slane %v4150, 4
    %v4441 = vrot.slane %v4190, 4
    %v4442 = vrot.slane %v4230, 4
    %v4443 = vrot.slane %v4270, 4
    %v4444 = vrot.slane %v4310, 4
    %v4445 = vrot.slane %v4350, 4
    %v4446 = vrot.slane %v4390, 4
    %v4447 = vrot.slane %v4430, 4
    %v4456 = vadd.f32 %v516, %v4440
    %v4457 = vadd.f32 %v547, %v4441
    %v4458 = vadd.f32 %v577, %v4442
    %v4459 = vadd.f32 %v606, %v4443
    %v4460 = vadd.f32 %v636, %v4444
    %v4461 = vadd.f32 %v667, %v4445
    %v4462 = vadd.f32 %v698, %v4446
    %v4463 = vadd.f32 %v729, %v4447
    %v4464 = vmul.f32 %v4456, 0.5
    %v4465 = vmul.f32 %v4457, 0.5
    %v4466 = vtanh.pop %v4464
    %v4467 = vtanh.pop %v4465
    %v4468 = vadd.f32 %v4466, 1.0
    %v4469 = vadd.f32 %v4467, 1.0
    %v4470 = vmul.f32 %v4468, 0.5
    %v4471 = vmul.f32 %v4469, 0.5
    %v4472 = vmul.f32 %v4458, 0.5
    %v4473 = vmul.f32 %v4459, 0.5
    %v4474 = vtanh.pop %v4472
    %v4475 = vtanh.pop %v4473
    %v4476 = vadd.f32 %v4474, 1.0
    %v4477 = vadd.f32 %v4475, 1.0
    %v4478 = vmul.f32 %v4476, 0.5
    %v4479 = vmul.f32 %v4477, 0.5
    %v4480 = vtanh.pop %v4460
    %v4481 = vtanh.pop %v4461
    %v4482 = vmul.f32 %v4462, 0.5
    %v4483 = vmul.f32 %v4463, 0.5
    %v4484 = vtanh.pop %v4482
    %v4485 = vtanh.pop %v4483
    %v4486 = vadd.f32 %v4484, 1.0
    %v4487 = vadd.f32 %v4485, 1.0
    %v4488 = vmul.f32 %v4486, 0.5
    %v4489 = vmul.f32 %v4487, 0.5
    %v4492 = vrot.slane %v4100, 2
    %v4493 = vrot.slane %v4101, 2
    %v4496 = vmul.f32 %v4478, %v4492
    %v4497 = vmul.f32 %v4479, %v4493
    %v4498 = vmul.f32 %v4470, %v4480
    %v4499 = vmul.f32 %v4471, %v4481
    %v4500 = vadd.f32 %v4496, %v4498
    %v4501 = vadd.f32 %v4497, %v4499
    %v4502 = vtanh.pop %v4500
    %v4503 = vtanh.pop %v4501
    %v4504 = vmul.f32 %v4488, %v4502
    %v4505 = vmul.f32 %v4489, %v4503
    %v4508 = vrot.slane %v4504, 4
    %v4509 = vrot.slane %v4505, 4
    %4512 = vmatpush.msra.mxu0 %v1110
    %4513 = vmatpush.msra.mxu0 %v1102
    %4514 = vmatpush.msra.mxu0 %v1094
    %4515 = vmatpush.msra.mxu0 %v1086
    %4516 = vmatpush.msra.mxu0 %v1078
    %4517 = vmatpush.msra.mxu0 %v1070
    %4518 = vmatpush.msra.mxu0 %v1062
    %4519 = vmatpush.msra.mxu0 %v1054
    %4520 = vmatpush.msra.mxu0 %v1046
    %4521 = vmatpush.msra.mxu0 %v1038
    %4522 = vmatpush.msra.mxu0 %v1030
    %4523 = vmatpush.msra.mxu0 %v1022
    %4524 = vmatpush.msra.mxu0 %v1014
    %4525 = vmatpush.msra.mxu0 %v1006
    %4526 = vmatpush.msra.mxu0 %v998
    %4527 = vmatpush.msra.mxu0 %v990
    %4528 = vmatmul.f32.gmra.mxu0 %v4508
    %v4529 = vpop.f32.mrf.mxu0
    %v4530 = vadd.f32 0.0, %v4529
    %4531 = vdwg.mxu0
    %4532 = vmatpush.msra.mxu0 %v1238
    %4533 = vmatpush.msra.mxu0 %v1230
    %4534 = vmatpush.msra.mxu0 %v1222
    %4535 = vmatpush.msra.mxu0 %v1214
    %4536 = vmatpush.msra.mxu0 %v1206
    %4537 = vmatpush.msra.mxu0 %v1198
    %4538 = vmatpush.msra.mxu0 %v1190
    %4539 = vmatpush.msra.mxu0 %v1182
    %4540 = vmatpush.msra.mxu0 %v1174
    %4541 = vmatpush.msra.mxu0 %v1166
    %4542 = vmatpush.msra.mxu0 %v1158
    %4543 = vmatpush.msra.mxu0 %v1150
    %4544 = vmatpush.msra.mxu0 %v1142
    %4545 = vmatpush.msra.mxu0 %v1134
    %4546 = vmatpush.msra.mxu0 %v1126
    %4547 = vmatpush.msra.mxu0 %v1118
    %4548 = vmatmul.f32.gmra.mxu0 %v4509
    %v4549 = vpop.f32.mrf.mxu0
    %v4550 = vadd.f32 %v4530, %v4549
    %4551 = vdwg.mxu0
    %4552 = vmatpush.msra.mxu0 %v1111
    %4553 = vmatpush.msra.mxu0 %v1103
    %4554 = vmatpush.msra.mxu0 %v1095
    %4555 = vmatpush.msra.mxu0 %v1087
    %4556 = vmatpush.msra.mxu0 %v1079
    %4557 = vmatpush.msra.mxu0 %v1071
    %4558 = vmatpush.msra.mxu0 %v1063
    %4559 = vmatpush.msra.mxu0 %v1055
    %4560 = vmatpush.msra.mxu0 %v1047
    %4561 = vmatpush.msra.mxu0 %v1039
    %4562 = vmatpush.msra.mxu0 %v1031
    %4563 = vmatpush.msra.mxu0 %v1023
    %4564 = vmatpush.msra.mxu0 %v1015
    %4565 = vmatpush.msra.mxu0 %v1007
    %4566 = vmatpush.msra.mxu0 %v999
    %4567 = vmatpush.msra.mxu0 %v991
    %4568 = vmatmul.f32.gmra.mxu0 %v4508
    %v4569 = vpop.f32.mrf.mxu0
    %v4570 = vadd.f32 0.0, %v4569
    %4571 = vdwg.mxu0
    %4572 = vmatpush.msra.mxu0 %v1239
    %4573 = vmatpush.msra.mxu0 %v1231
    %4574 = vmatpush.msra.mxu0 %v1223
    %4575 = vmatpush.msra.mxu0 %v1215
    %4576 = vmatpush.msra.mxu0 %v1207
    %4577 = vmatpush.msra.mxu0 %v1199
    %4578 = vmatpush.msra.mxu0 %v1191
    %4579 = vmatpush.msra.mxu0 %v1183
    %4580 = vmatpush.msra.mxu0 %v1175
    %4581 = vmatpush.msra.mxu0 %v1167
    %4582 = vmatpush.msra.mxu0 %v1159
    %4583 = vmatpush.msra.mxu0 %v1151
    %4584 = vmatpush.msra.mxu0 %v1143
    %4585 = vmatpush.msra.mxu0 %v1135
    %4586 = vmatpush.msra.mxu0 %v1127
    %4587 = vmatpush.msra.mxu0 %v1119
    %4588 = vmatmul.f32.gmra.mxu0 %v4509
    %v4589 = vpop.f32.mrf.mxu0
    %v4590 = vadd.f32 %v4570, %v4589
    %4591 = vdwg.mxu0
    %4592 = vmatpush.msra.mxu0 %v1112
    %4593 = vmatpush.msra.mxu0 %v1104
    %4594 = vmatpush.msra.mxu0 %v1096
    %4595 = vmatpush.msra.mxu0 %v1088
    %4596 = vmatpush.msra.mxu0 %v1080
    %4597 = vmatpush.msra.mxu0 %v1072
    %4598 = vmatpush.msra.mxu0 %v1064
    %4599 = vmatpush.msra.mxu0 %v1056
    %4600 = vmatpush.msra.mxu0 %v1048
    %4601 = vmatpush.msra.mxu0 %v1040
    %4602 = vmatpush.msra.mxu0 %v1032
    %4603 = vmatpush.msra.mxu0 %v1024
    %4604 = vmatpush.msra.mxu0 %v1016
    %4605 = vmatpush.msra.mxu0 %v1008
    %4606 = vmatpush.msra.mxu0 %v1000
    %4607 = vmatpush.msra.mxu0 %v992
    %4608 = vmatmul.f32.gmra.mxu0 %v4508
    %v4609 = vpop.f32.mrf.mxu0
    %v4610 = vadd.f32 0.0, %v4609
    %4611 = vdwg.mxu0
    %4612 = vmatpush.msra.mxu0 %v1240
    %4613 = vmatpush.msra.mxu0 %v1232
    %4614 = vmatpush.msra.mxu0 %v1224
    %4615 = vmatpush.msra.mxu0 %v1216
    %4616 = vmatpush.msra.mxu0 %v1208
    %4617 = vmatpush.msra.mxu0 %v1200
    %4618 = vmatpush.msra.mxu0 %v1192
    %4619 = vmatpush.msra.mxu0 %v1184
    %4620 = vmatpush.msra.mxu0 %v1176
    %4621 = vmatpush.msra.mxu0 %v1168
    %4622 = vmatpush.msra.mxu0 %v1160
    %4623 = vmatpush.msra.mxu0 %v1152
    %4624 = vmatpush.msra.mxu0 %v1144
    %4625 = vmatpush.msra.mxu0 %v1136
    %4626 = vmatpush.msra.mxu0 %v1128
    %4627 = vmatpush.msra.mxu0 %v1120
    %4628 = vmatmul.f32.gmra.mxu0 %v4509
    %v4629 = vpop.f32.mrf.mxu0
    %v4630 = vadd.f32 %v4610, %v4629
    %4631 = vdwg.mxu0
    %4632 = vmatpush.msra.mxu0 %v1113
    %4633 = vmatpush.msra.mxu0 %v1105
    %4634 = vmatpush.msra.mxu0 %v1097
    %4635 = vmatpush.msra.mxu0 %v1089
    %4636 = vmatpush.msra.mxu0 %v1081
    %4637 = vmatpush.msra.mxu0 %v1073
    %4638 = vmatpush.msra.mxu0 %v1065
    %4639 = vmatpush.msra.mxu0 %v1057
    %4640 = vmatpush.msra.mxu0 %v1049
    %4641 = vmatpush.msra.mxu0 %v1041
    %4642 = vmatpush.msra.mxu0 %v1033
    %4643 = vmatpush.msra.mxu0 %v1025
    %4644 = vmatpush.msra.mxu0 %v1017
    %4645 = vmatpush.msra.mxu0 %v1009
    %4646 = vmatpush.msra.mxu0 %v1001
    %4647 = vmatpush.msra.mxu0 %v993
    %4648 = vmatmul.f32.gmra.mxu0 %v4508
    %v4649 = vpop.f32.mrf.mxu0
    %v4650 = vadd.f32 0.0, %v4649
    %4651 = vdwg.mxu0
    %4652 = vmatpush.msra.mxu0 %v1241
    %4653 = vmatpush.msra.mxu0 %v1233
    %4654 = vmatpush.msra.mxu0 %v1225
    %4655 = vmatpush.msra.mxu0 %v1217
    %4656 = vmatpush.msra.mxu0 %v1209
    %4657 = vmatpush.msra.mxu0 %v1201
    %4658 = vmatpush.msra.mxu0 %v1193
    %4659 = vmatpush.msra.mxu0 %v1185
    %4660 = vmatpush.msra.mxu0 %v1177
    %4661 = vmatpush.msra.mxu0 %v1169
    %4662 = vmatpush.msra.mxu0 %v1161
    %4663 = vmatpush.msra.mxu0 %v1153
    %4664 = vmatpush.msra.mxu0 %v1145
    %4665 = vmatpush.msra.mxu0 %v1137
    %4666 = vmatpush.msra.mxu0 %v1129
    %4667 = vmatpush.msra.mxu0 %v1121
    %4668 = vmatmul.f32.gmra.mxu0 %v4509
    %v4669 = vpop.f32.mrf.mxu0
    %v4670 = vadd.f32 %v4650, %v4669
    %4671 = vdwg.mxu0
    %4672 = vmatpush.msra.mxu0 %v1114
    %4673 = vmatpush.msra.mxu0 %v1106
    %4674 = vmatpush.msra.mxu0 %v1098
    %4675 = vmatpush.msra.mxu0 %v1090
    %4676 = vmatpush.msra.mxu0 %v1082
    %4677 = vmatpush.msra.mxu0 %v1074
    %4678 = vmatpush.msra.mxu0 %v1066
    %4679 = vmatpush.msra.mxu0 %v1058
    %4680 = vmatpush.msra.mxu0 %v1050
    %4681 = vmatpush.msra.mxu0 %v1042
    %4682 = vmatpush.msra.mxu0 %v1034
    %4683 = vmatpush.msra.mxu0 %v1026
    %4684 = vmatpush.msra.mxu0 %v1018
    %4685 = vmatpush.msra.mxu0 %v1010
    %4686 = vmatpush.msra.mxu0 %v1002
    %4687 = vmatpush.msra.mxu0 %v994
    %4688 = vmatmul.f32.gmra.mxu0 %v4508
    %v4689 = vpop.f32.mrf.mxu0
    %v4690 = vadd.f32 0.0, %v4689
    %4691 = vdwg.mxu0
    %4692 = vmatpush.msra.mxu0 %v1242
    %4693 = vmatpush.msra.mxu0 %v1234
    %4694 = vmatpush.msra.mxu0 %v1226
    %4695 = vmatpush.msra.mxu0 %v1218
    %4696 = vmatpush.msra.mxu0 %v1210
    %4697 = vmatpush.msra.mxu0 %v1202
    %4698 = vmatpush.msra.mxu0 %v1194
    %4699 = vmatpush.msra.mxu0 %v1186
    %4700 = vmatpush.msra.mxu0 %v1178
    %4701 = vmatpush.msra.mxu0 %v1170
    %4702 = vmatpush.msra.mxu0 %v1162
    %4703 = vmatpush.msra.mxu0 %v1154
    %4704 = vmatpush.msra.mxu0 %v1146
    %4705 = vmatpush.msra.mxu0 %v1138
    %4706 = vmatpush.msra.mxu0 %v1130
    %4707 = vmatpush.msra.mxu0 %v1122
    %4708 = vmatmul.f32.gmra.mxu0 %v4509
    %v4709 = vpop.f32.mrf.mxu0
    %v4710 = vadd.f32 %v4690, %v4709
    %4711 = vdwg.mxu0
    %4712 = vmatpush.msra.mxu0 %v1115
    %4713 = vmatpush.msra.mxu0 %v1107
    %4714 = vmatpush.msra.mxu0 %v1099
    %4715 = vmatpush.msra.mxu0 %v1091
    %4716 = vmatpush.msra.mxu0 %v1083
    %4717 = vmatpush.msra.mxu0 %v1075
    %4718 = vmatpush.msra.mxu0 %v1067
    %4719 = vmatpush.msra.mxu0 %v1059
    %4720 = vmatpush.msra.mxu0 %v1051
    %4721 = vmatpush.msra.mxu0 %v1043
    %4722 = vmatpush.msra.mxu0 %v1035
    %4723 = vmatpush.msra.mxu0 %v1027
    %4724 = vmatpush.msra.mxu0 %v1019
    %4725 = vmatpush.msra.mxu0 %v1011
    %4726 = vmatpush.msra.mxu0 %v1003
    %4727 = vmatpush.msra.mxu0 %v995
    %4728 = vmatmul.f32.gmra.mxu0 %v4508
    %v4729 = vpop.f32.mrf.mxu0
    %v4730 = vadd.f32 0.0, %v4729
    %4731 = vdwg.mxu0
    %4732 = vmatpush.msra.mxu0 %v1243
    %4733 = vmatpush.msra.mxu0 %v1235
    %4734 = vmatpush.msra.mxu0 %v1227
    %4735 = vmatpush.msra.mxu0 %v1219
    %4736 = vmatpush.msra.mxu0 %v1211
    %4737 = vmatpush.msra.mxu0 %v1203
    %4738 = vmatpush.msra.mxu0 %v1195
    %4739 = vmatpush.msra.mxu0 %v1187
    %4740 = vmatpush.msra.mxu0 %v1179
    %4741 = vmatpush.msra.mxu0 %v1171
    %4742 = vmatpush.msra.mxu0 %v1163
    %4743 = vmatpush.msra.mxu0 %v1155
    %4744 = vmatpush.msra.mxu0 %v1147
    %4745 = vmatpush.msra.mxu0 %v1139
    %4746 = vmatpush.msra.mxu0 %v1131
    %4747 = vmatpush.msra.mxu0 %v1123
    %4748 = vmatmul.f32.gmra.mxu0 %v4509
    %v4749 = vpop.f32.mrf.mxu0
    %v4750 = vadd.f32 %v4730, %v4749
    %4751 = vdwg.mxu0
    %4752 = vmatpush.msra.mxu0 %v1116
    %4753 = vmatpush.msra.mxu0 %v1108
    %4754 = vmatpush.msra.mxu0 %v1100
    %4755 = vmatpush.msra.mxu0 %v1092
    %4756 = vmatpush.msra.mxu0 %v1084
    %4757 = vmatpush.msra.mxu0 %v1076
    %4758 = vmatpush.msra.mxu0 %v1068
    %4759 = vmatpush.msra.mxu0 %v1060
    %4760 = vmatpush.msra.mxu0 %v1052
    %4761 = vmatpush.msra.mxu0 %v1044
    %4762 = vmatpush.msra.mxu0 %v1036
    %4763 = vmatpush.msra.mxu0 %v1028
    %4764 = vmatpush.msra.mxu0 %v1020
    %4765 = vmatpush.msra.mxu0 %v1012
    %4766 = vmatpush.msra.mxu0 %v1004
    %4767 = vmatpush.msra.mxu0 %v996
    %4768 = vmatmul.f32.gmra.mxu0 %v4508
    %v4769 = vpop.f32.mrf.mxu0
    %v4770 = vadd.f32 0.0, %v4769
    %4771 = vdwg.mxu0
    %4772 = vmatpush.msra.mxu0 %v1244
    %4773 = vmatpush.msra.mxu0 %v1236
    %4774 = vmatpush.msra.mxu0 %v1228
    %4775 = vmatpush.msra.mxu0 %v1220
    %4776 = vmatpush.msra.mxu0 %v1212
    %4777 = vmatpush.msra.mxu0 %v1204
    %4778 = vmatpush.msra.mxu0 %v1196
    %4779 = vmatpush.msra.mxu0 %v1188
    %4780 = vmatpush.msra.mxu0 %v1180
    %4781 = vmatpush.msra.mxu0 %v1172
    %4782 = vmatpush.msra.mxu0 %v1164
    %4783 = vmatpush.msra.mxu0 %v1156
    %4784 = vmatpush.msra.mxu0 %v1148
    %4785 = vmatpush.msra.mxu0 %v1140
    %4786 = vmatpush.msra.mxu0 %v1132
    %4787 = vmatpush.msra.mxu0 %v1124
    %4788 = vmatmul.f32.gmra.mxu0 %v4509
    %v4789 = vpop.f32.mrf.mxu0
    %v4790 = vadd.f32 %v4770, %v4789
    %4791 = vdwg.mxu0
    %4792 = vmatpush.msra.mxu0 %v1117
    %4793 = vmatpush.msra.mxu0 %v1109
    %4794 = vmatpush.msra.mxu0 %v1101
    %4795 = vmatpush.msra.mxu0 %v1093
    %4796 = vmatpush.msra.mxu0 %v1085
    %4797 = vmatpush.msra.mxu0 %v1077
    %4798 = vmatpush.msra.mxu0 %v1069
    %4799 = vmatpush.msra.mxu0 %v1061
    %4800 = vmatpush.msra.mxu0 %v1053
    %4801 = vmatpush.msra.mxu0 %v1045
    %4802 = vmatpush.msra.mxu0 %v1037
    %4803 = vmatpush.msra.mxu0 %v1029
    %4804 = vmatpush.msra.mxu0 %v1021
    %4805 = vmatpush.msra.mxu0 %v1013
    %4806 = vmatpush.msra.mxu0 %v1005
    %4807 = vmatpush.msra.mxu0 %v997
    %4808 = vmatmul.f32.gmra.mxu0 %v4508
    %v4809 = vpop.f32.mrf.mxu0
    %v4810 = vadd.f32 0.0, %v4809
    %4811 = vdwg.mxu0
    %4812 = vmatpush.msra.mxu0 %v1245
    %4813 = vmatpush.msra.mxu0 %v1237
    %4814 = vmatpush.msra.mxu0 %v1229
    %4815 = vmatpush.msra.mxu0 %v1221
    %4816 = vmatpush.msra.mxu0 %v1213
    %4817 = vmatpush.msra.mxu0 %v1205
    %4818 = vmatpush.msra.mxu0 %v1197
    %4819 = vmatpush.msra.mxu0 %v1189
    %4820 = vmatpush.msra.mxu0 %v1181
    %4821 = vmatpush.msra.mxu0 %v1173
    %4822 = vmatpush.msra.mxu0 %v1165
    %4823 = vmatpush.msra.mxu0 %v1157
    %4824 = vmatpush.msra.mxu0 %v1149
    %4825 = vmatpush.msra.mxu0 %v1141
    %4826 = vmatpush.msra.mxu0 %v1133
    %4827 = vmatpush.msra.mxu0 %v1125
    %4828 = vmatmul.f32.gmra.mxu0 %v4509
    %v4829 = vpop.f32.mrf.mxu0
    %v4830 = vadd.f32 %v4810, %v4829
    %4831 = vdwg.mxu0
    %v4840 = vrot.slane %v4550, 6
    %v4841 = vrot.slane %v4590, 6
    %v4842 = vrot.slane %v4630, 6
    %v4843 = vrot.slane %v4670, 6
    %v4844 = vrot.slane %v4710, 6
    %v4845 = vrot.slane %v4750, 6
    %v4846 = vrot.slane %v4790, 6
    %v4847 = vrot.slane %v4830, 6
    %v4856 = vadd.f32 %v516, %v4840
    %v4857 = vadd.f32 %v547, %v4841
    %v4858 = vadd.f32 %v577, %v4842
    %v4859 = vadd.f32 %v606, %v4843
    %v4860 = vadd.f32 %v636, %v4844
    %v4861 = vadd.f32 %v667, %v4845
    %v4862 = vadd.f32 %v698, %v4846
    %v4863 = vadd.f32 %v729, %v4847
    %v4864 = vmul.f32 %v4856, 0.5
    %v4865 = vmul.f32 %v4857, 0.5
    %v4866 = vtanh.pop %v4864
    %v4867 = vtanh.pop %v4865
    %v4868 = vadd.f32 %v4866, 1.0
    %v4869 = vadd.f32 %v4867, 1.0
    %v4870 = vmul.f32 %v4868, 0.5
    %v4871 = vmul.f32 %v4869, 0.5
    %v4872 = vmul.f32 %v4858, 0.5
    %v4873 = vmul.f32 %v4859, 0.5
    %v4874 = vtanh.pop %v4872
    %v4875 = vtanh.pop %v4873
    %v4876 = vadd.f32 %v4874, 1.0
    %v4877 = vadd.f32 %v4875, 1.0
    %v4878 = vmul.f32 %v4876, 0.5
    %v4879 = vmul.f32 %v4877, 0.5
    %v4880 = vtanh.pop %v4860
    %v4881 = vtanh.pop %v4861
    %v4882 = vmul.f32 %v4862, 0.5
    %v4883 = vmul.f32 %v4863, 0.5
    %v4884 = vtanh.pop %v4882
    %v4885 = vtanh.pop %v4883
    %v4886 = vadd.f32 %v4884, 1.0
    %v4887 = vadd.f32 %v4885, 1.0
    %v4888 = vmul.f32 %v4886, 0.5
    %v4889 = vmul.f32 %v4887, 0.5
    %v4892 = vrot.slane %v4500, 2
    %v4893 = vrot.slane %v4501, 2
    %v4896 = vmul.f32 %v4878, %v4892
    %v4897 = vmul.f32 %v4879, %v4893
    %v4898 = vmul.f32 %v4870, %v4880
    %v4899 = vmul.f32 %v4871, %v4881
    %v4900 = vadd.f32 %v4896, %v4898
    %v4901 = vadd.f32 %v4897, %v4899
    %v4902 = vtanh.pop %v4900
    %v4903 = vtanh.pop %v4901
    %v4904 = vmul.f32 %v4888, %v4902
    %v4905 = vmul.f32 %v4889, %v4903
    %v4908 = vrot.slane %v4904, 2
    %v4909 = vrot.slane %v4905, 2
    %4912 = vmatpush.msra.mxu0 %v1110
    %4913 = vmatpush.msra.mxu0 %v1102
    %4914 = vmatpush.msra.mxu0 %v1094
    %4915 = vmatpush.msra.mxu0 %v1086
    %4916 = vmatpush.msra.mxu0 %v1078
    %4917 = vmatpush.msra.mxu0 %v1070
    %4918 = vmatpush.msra.mxu0 %v1062
    %4919 = vmatpush.msra.mxu0 %v1054
    %4920 = vmatpush.msra.mxu0 %v1046
    %4921 = vmatpush.msra.mxu0 %v1038
    %4922 = vmatpush.msra.mxu0 %v1030
    %4923 = vmatpush.msra.mxu0 %v1022
    %4924 = vmatpush.msra.mxu0 %v1014
    %4925 = vmatpush.msra.mxu0 %v1006
    %4926 = vmatpush.msra.mxu0 %v998
    %4927 = vmatpush.msra.mxu0 %v990
    %4928 = vmatmul.f32.gmra.mxu0 %v4908
    %v4929 = vpop.f32.mrf.mxu0
    %v4930 = vadd.f32 0.0, %v4929
    %4931 = vdwg.mxu0
    %4932 = vmatpush.msra.mxu0 %v1238
    %4933 = vmatpush.msra.mxu0 %v1230
    %4934 = vmatpush.msra.mxu0 %v1222
    %4935 = vmatpush.msra.mxu0 %v1214
    %4936 = vmatpush.msra.mxu0 %v1206
    %4937 = vmatpush.msra.mxu0 %v1198
    %4938 = vmatpush.msra.mxu0 %v1190
    %4939 = vmatpush.msra.mxu0 %v1182
    %4940 = vmatpush.msra.mxu0 %v1174
    %4941 = vmatpush.msra.mxu0 %v1166
    %4942 = vmatpush.msra.mxu0 %v1158
    %4943 = vmatpush.msra.mxu0 %v1150
    %4944 = vmatpush.msra.mxu0 %v1142
    %4945 = vmatpush.msra.mxu0 %v1134
    %4946 = vmatpush.msra.mxu0 %v1126
    %4947 = vmatpush.msra.mxu0 %v1118
    %4948 = vmatmul.f32.gmra.mxu0 %v4909
    %v4949 = vpop.f32.mrf.mxu0
    %v4950 = vadd.f32 %v4930, %v4949
    %4951 = vdwg.mxu0
    %4952 = vmatpush.msra.mxu0 %v1111
    %4953 = vmatpush.msra.mxu0 %v1103
    %4954 = vmatpush.msra.mxu0 %v1095
    %4955 = vmatpush.msra.mxu0 %v1087
    %4956 = vmatpush.msra.mxu0 %v1079
    %4957 = vmatpush.msra.mxu0 %v1071
    %4958 = vmatpush.msra.mxu0 %v1063
    %4959 = vmatpush.msra.mxu0 %v1055
    %4960 = vmatpush.msra.mxu0 %v1047
    %4961 = vmatpush.msra.mxu0 %v1039
    %4962 = vmatpush.msra.mxu0 %v1031
    %4963 = vmatpush.msra.mxu0 %v1023
    %4964 = vmatpush.msra.mxu0 %v1015
    %4965 = vmatpush.msra.mxu0 %v1007
    %4966 = vmatpush.msra.mxu0 %v999
    %4967 = vmatpush.msra.mxu0 %v991
    %4968 = vmatmul.f32.gmra.mxu0 %v4908
    %v4969 = vpop.f32.mrf.mxu0
    %v4970 = vadd.f32 0.0, %v4969
    %4971 = vdwg.mxu0
    %4972 = vmatpush.msra.mxu0 %v1239
    %4973 = vmatpush.msra.mxu0 %v1231
    %4974 = vmatpush.msra.mxu0 %v1223
    %4975 = vmatpush.msra.mxu0 %v1215
    %4976 = vmatpush.msra.mxu0 %v1207
    %4977 = vmatpush.msra.mxu0 %v1199
    %4978 = vmatpush.msra.mxu0 %v1191
    %4979 = vmatpush.msra.mxu0 %v1183
    %4980 = vmatpush.msra.mxu0 %v1175
    %4981 = vmatpush.msra.mxu0 %v1167
    %4982 = vmatpush.msra.mxu0 %v1159
    %4983 = vmatpush.msra.mxu0 %v1151
    %4984 = vmatpush.msra.mxu0 %v1143
    %4985 = vmatpush.msra.mxu0 %v1135
    %4986 = vmatpush.msra.mxu0 %v1127
    %4987 = vmatpush.msra.mxu0 %v1119
    %4988 = vmatmul.f32.gmra.mxu0 %v4909
    %v4989 = vpop.f32.mrf.mxu0
    %v4990 = vadd.f32 %v4970, %v4989
    %4991 = vdwg.mxu0
    %4992 = vmatpush.msra.mxu0 %v1112
    %4993 = vmatpush.msra.mxu0 %v1104
    %4994 = vmatpush.msra.mxu0 %v1096
    %4995 = vmatpush.msra.mxu0 %v1088
    %4996 = vmatpush.msra.mxu0 %v1080
    %4997 = vmatpush.msra.mxu0 %v1072
    %4998 = vmatpush.msra.mxu0 %v1064
    %4999 = vmatpush.msra.mxu0 %v1056
    %5000 = vmatpush.msra.mxu0 %v1048
    %5001 = vmatpush.msra.mxu0 %v1040
    %5002 = vmatpush.msra.mxu0 %v1032
    %5003 = vmatpush.msra.mxu0 %v1024
    %5004 = vmatpush.msra.mxu0 %v1016
    %5005 = vmatpush.msra.mxu0 %v1008
    %5006 = vmatpush.msra.mxu0 %v1000
    %5007 = vmatpush.msra.mxu0 %v992
    %5008 = vmatmul.f32.gmra.mxu0 %v4908
    %v5009 = vpop.f32.mrf.mxu0
    %v5010 = vadd.f32 0.0, %v5009
    %5011 = vdwg.mxu0
    %5012 = vmatpush.msra.mxu0 %v1240
    %5013 = vmatpush.msra.mxu0 %v1232
    %5014 = vmatpush.msra.mxu0 %v1224
    %5015 = vmatpush.msra.mxu0 %v1216
    %5016 = vmatpush.msra.mxu0 %v1208
    %5017 = vmatpush.msra.mxu0 %v1200
    %5018 = vmatpush.msra.mxu0 %v1192
    %5019 = vmatpush.msra.mxu0 %v1184
    %5020 = vmatpush.msra.mxu0 %v1176
    %5021 = vmatpush.msra.mxu0 %v1168
    %5022 = vmatpush.msra.mxu0 %v1160
    %5023 = vmatpush.msra.mxu0 %v1152
    %5024 = vmatpush.msra.mxu0 %v1144
    %5025 = vmatpush.msra.mxu0 %v1136
    %5026 = vmatpush.msra.mxu0 %v1128
    %5027 = vmatpush.msra.mxu0 %v1120
    %5028 = vmatmul.f32.gmra.mxu0 %v4909
    %v5029 = vpop.f32.mrf.mxu0
    %v5030 = vadd.f32 %v5010, %v5029
    %5031 = vdwg.mxu0
    %5032 = vmatpush.msra.mxu0 %v1113
    %5033 = vmatpush.msra.mxu0 %v1105
    %5034 = vmatpush.msra.mxu0 %v1097
    %5035 = vmatpush.msra.mxu0 %v1089
    %5036 = vmatpush.msra.mxu0 %v1081
    %5037 = vmatpush.msra.mxu0 %v1073
    %5038 = vmatpush.msra.mxu0 %v1065
    %5039 = vmatpush.msra.mxu0 %v1057
    %5040 = vmatpush.msra.mxu0 %v1049
    %5041 = vmatpush.msra.mxu0 %v1041
    %5042 = vmatpush.msra.mxu0 %v1033
    %5043 = vmatpush.msra.mxu0 %v1025
    %5044 = vmatpush.msra.mxu0 %v1017
    %5045 = vmatpush.msra.mxu0 %v1009
    %5046 = vmatpush.msra.mxu0 %v1001
    %5047 = vmatpush.msra.mxu0 %v993
    %5048 = vmatmul.f32.gmra.mxu0 %v4908
    %v5049 = vpop.f32.mrf.mxu0
    %v5050 = vadd.f32 0.0, %v5049
    %5051 = vdwg.mxu0
    %5052 = vmatpush.msra.mxu0 %v1241
    %5053 = vmatpush.msra.mxu0 %v1233
    %5054 = vmatpush.msra.mxu0 %v1225
    %5055 = vmatpush.msra.mxu0 %v1217
    %5056 = vmatpush.msra.mxu0 %v1209
    %5057 = vmatpush.msra.mxu0 %v1201
    %5058 = vmatpush.msra.mxu0 %v1193
    %5059 = vmatpush.msra.mxu0 %v1185
    %5060 = vmatpush.msra.mxu0 %v1177
    %5061 = vmatpush.msra.mxu0 %v1169
    %5062 = vmatpush.msra.mxu0 %v1161
    %5063 = vmatpush.msra.mxu0 %v1153
    %5064 = vmatpush.msra.mxu0 %v1145
    %5065 = vmatpush.msra.mxu0 %v1137
    %5066 = vmatpush.msra.mxu0 %v1129
    %5067 = vmatpush.msra.mxu0 %v1121
    %5068 = vmatmul.f32.gmra.mxu0 %v4909
    %v5069 = vpop.f32.mrf.mxu0
    %v5070 = vadd.f32 %v5050, %v5069
    %5071 = vdwg.mxu0
    %5072 = vmatpush.msra.mxu0 %v1114
    %5073 = vmatpush.msra.mxu0 %v1106
    %5074 = vmatpush.msra.mxu0 %v1098
    %5075 = vmatpush.msra.mxu0 %v1090
    %5076 = vmatpush.msra.mxu0 %v1082
    %5077 = vmatpush.msra.mxu0 %v1074
    %5078 = vmatpush.msra.mxu0 %v1066
    %5079 = vmatpush.msra.mxu0 %v1058
    %5080 = vmatpush.msra.mxu0 %v1050
    %5081 = vmatpush.msra.mxu0 %v1042
    %5082 = vmatpush.msra.mxu0 %v1034
    %5083 = vmatpush.msra.mxu0 %v1026
    %5084 = vmatpush.msra.mxu0 %v1018
    %5085 = vmatpush.msra.mxu0 %v1010
    %5086 = vmatpush.msra.mxu0 %v1002
    %5087 = vmatpush.msra.mxu0 %v994
    %5088 = vmatmul.f32.gmra.mxu0 %v4908
    %v5089 = vpop.f32.mrf.mxu0
    %v5090 = vadd.f32 0.0, %v5089
    %5091 = vdwg.mxu0
    %5092 = vmatpush.msra.mxu0 %v1242
    %5093 = vmatpush.msra.mxu0 %v1234
    %5094 = vmatpush.msra.mxu0 %v1226
    %5095 = vmatpush.msra.mxu0 %v1218
    %5096 = vmatpush.msra.mxu0 %v1210
    %5097 = vmatpush.msra.mxu0 %v1202
    %5098 = vmatpush.msra.mxu0 %v1194
    %5099 = vmatpush.msra.mxu0 %v1186
    %5100 = vmatpush.msra.mxu0 %v1178
    %5101 = vmatpush.msra.mxu0 %v1170
    %5102 = vmatpush.msra.mxu0 %v1162
    %5103 = vmatpush.msra.mxu0 %v1154
    %5104 = vmatpush.msra.mxu0 %v1146
    %5105 = vmatpush.msra.mxu0 %v1138
    %5106 = vmatpush.msra.mxu0 %v1130
    %5107 = vmatpush.msra.mxu0 %v1122
    %5108 = vmatmul.f32.gmra.mxu0 %v4909
    %v5109 = vpop.f32.mrf.mxu0
    %v5110 = vadd.f32 %v5090, %v5109
    %5111 = vdwg.mxu0
    %5112 = vmatpush.msra.mxu0 %v1115
    %5113 = vmatpush.msra.mxu0 %v1107
    %5114 = vmatpush.msra.mxu0 %v1099
    %5115 = vmatpush.msra.mxu0 %v1091
    %5116 = vmatpush.msra.mxu0 %v1083
    %5117 = vmatpush.msra.mxu0 %v1075
    %5118 = vmatpush.msra.mxu0 %v1067
    %5119 = vmatpush.msra.mxu0 %v1059
    %5120 = vmatpush.msra.mxu0 %v1051
    %5121 = vmatpush.msra.mxu0 %v1043
    %5122 = vmatpush.msra.mxu0 %v1035
    %5123 = vmatpush.msra.mxu0 %v1027
    %5124 = vmatpush.msra.mxu0 %v1019
    %5125 = vmatpush.msra.mxu0 %v1011
    %5126 = vmatpush.msra.mxu0 %v1003
    %5127 = vmatpush.msra.mxu0 %v995
    %5128 = vmatmul.f32.gmra.mxu0 %v4908
    %v5129 = vpop.f32.mrf.mxu0
    %v5130 = vadd.f32 0.0, %v5129
    %5131 = vdwg.mxu0
    %5132 = vmatpush.msra.mxu0 %v1243
    %5133 = vmatpush.msra.mxu0 %v1235
    %5134 = vmatpush.msra.mxu0 %v1227
    %5135 = vmatpush.msra.mxu0 %v1219
    %5136 = vmatpush.msra.mxu0 %v1211
    %5137 = vmatpush.msra.mxu0 %v1203
    %5138 = vmatpush.msra.mxu0 %v1195
    %5139 = vmatpush.msra.mxu0 %v1187
    %5140 = vmatpush.msra.mxu0 %v1179
    %5141 = vmatpush.msra.mxu0 %v1171
    %5142 = vmatpush.msra.mxu0 %v1163
    %5143 = vmatpush.msra.mxu0 %v1155
    %5144 = vmatpush.msra.mxu0 %v1147
    %5145 = vmatpush.msra.mxu0 %v1139
    %5146 = vmatpush.msra.mxu0 %v1131
    %5147 = vmatpush.msra.mxu0 %v1123
    %5148 = vmatmul.f32.gmra.mxu0 %v4909
    %v5149 = vpop.f32.mrf.mxu0
    %v5150 = vadd.f32 %v5130, %v5149
    %5151 = vdwg.mxu0
    %5152 = vmatpush.msra.mxu0 %v1116
    %5153 = vmatpush.msra.mxu0 %v1108
    %5154 = vmatpush.msra.mxu0 %v1100
    %5155 = vmatpush.msra.mxu0 %v1092
    %5156 = vmatpush.msra.mxu0 %v1084
    %5157 = vmatpush.msra.mxu0 %v1076
    %5158 = vmatpush.msra.mxu0 %v1068
    %5159 = vmatpush.msra.mxu0 %v1060
    %5160 = vmatpush.msra.mxu0 %v1052
    %5161 = vmatpush.msra.mxu0 %v1044
    %5162 = vmatpush.msra.mxu0 %v1036
    %5163 = vmatpush.msra.mxu0 %v1028
    %5164 = vmatpush.msra.mxu0 %v1020
    %5165 = vmatpush.msra.mxu0 %v1012
    %5166 = vmatpush.msra.mxu0 %v1004
    %5167 = vmatpush.msra.mxu0 %v996
    %5168 = vmatmul.f32.gmra.mxu0 %v4908
    %v5169 = vpop.f32.mrf.mxu0
    %v5170 = vadd.f32 0.0, %v5169
    %5171 = vdwg.mxu0
    %5172 = vmatpush.msra.mxu0 %v1244
    %5173 = vmatpush.msra.mxu0 %v1236
    %5174 = vmatpush.msra.mxu0 %v1228
    %5175 = vmatpush.msra.mxu0 %v1220
    %5176 = vmatpush.msra.mxu0 %v1212
    %5177 = vmatpush.msra.mxu0 %v1204
    %5178 = vmatpush.msra.mxu0 %v1196
    %5179 = vmatpush.msra.mxu0 %v1188
    %5180 = vmatpush.msra.mxu0 %v1180
    %5181 = vmatpush.msra.mxu0 %v1172
    %5182 = vmatpush.msra.mxu0 %v1164
    %5183 = vmatpush.msra.mxu0 %v1156
    %5184 = vmatpush.msra.mxu0 %v1148
    %5185 = vmatpush.msra.mxu0 %v1140
    %5186 = vmatpush.msra.mxu0 %v1132
    %5187 = vmatpush.msra.mxu0 %v1124
    %5188 = vmatmul.f32.gmra.mxu0 %v4909
    %v5189 = vpop.f32.mrf.mxu0
    %v5190 = vadd.f32 %v5170, %v5189
    %5191 = vdwg.mxu0
    %5192 = vmatpush.msra.mxu0 %v1117
    %5193 = vmatpush.msra.mxu0 %v1109
    %5194 = vmatpush.msra.mxu0 %v1101
    %5195 = vmatpush.msra.mxu0 %v1093
    %5196 = vmatpush.msra.mxu0 %v1085
    %5197 = vmatpush.msra.mxu0 %v1077
    %5198 = vmatpush.msra.mxu0 %v1069
    %5199 = vmatpush.msra.mxu0 %v1061
    %5200 = vmatpush.msra.mxu0 %v1053
    %5201 = vmatpush.msra.mxu0 %v1045
    %5202 = vmatpush.msra.mxu0 %v1037
    %5203 = vmatpush.msra.mxu0 %v1029
    %5204 = vmatpush.msra.mxu0 %v1021
    %5205 = vmatpush.msra.mxu0 %v1013
    %5206 = vmatpush.msra.mxu0 %v1005
    %5207 = vmatpush.msra.mxu0 %v997
    %5208 = vmatmul.f32.gmra.mxu0 %v4908
    %v5209 = vpop.f32.mrf.mxu0
    %v5210 = vadd.f32 0.0, %v5209
    %5211 = vdwg.mxu0
    %5212 = vmatpush.msra.mxu0 %v1245
    %5213 = vmatpush.msra.mxu0 %v1237
    %5214 = vmatpush.msra.mxu0 %v1229
    %5215 = vmatpush.msra.mxu0 %v1221
    %5216 = vmatpush.msra.mxu0 %v1213
    %5217 = vmatpush.msra.mxu0 %v1205
    %5218 = vmatpush.msra.mxu0 %v1197
    %5219 = vmatpush.msra.mxu0 %v1189
    %5220 = vmatpush.msra.mxu0 %v1181
    %5221 = vmatpush.msra.mxu0 %v1173
    %5222 = vmatpush.msra.mxu0 %v1165
    %5223 = vmatpush.msra.mxu0 %v1157
    %5224 = vmatpush.msra.mxu0 %v1149
    %5225 = vmatpush.msra.mxu0 %v1141
    %5226 = vmatpush.msra.mxu0 %v1133
    %5227 = vmatpush.msra.mxu0 %v1125
    %5228 = vmatmul.f32.gmra.mxu0 %v4909
    %v5229 = vpop.f32.mrf.mxu0
    %v5230 = vadd.f32 %v5210, %v5229
    %5231 = vdwg.mxu0
    %v5232 = vadd.f32 %v516, %v4950
    %v5233 = vadd.f32 %v547, %v4990
    %v5234 = vadd.f32 %v577, %v5030
    %v5235 = vadd.f32 %v606, %v5070
    %v5236 = vadd.f32 %v636, %v5110
    %v5237 = vadd.f32 %v667, %v5150
    %v5238 = vadd.f32 %v698, %v5190
    %v5239 = vadd.f32 %v729, %v5230
    %v5240 = vmul.f32 %v5232, 0.5
    %v5241 = vmul.f32 %v5233, 0.5
    %v5242 = vtanh.pop %v5240
    %v5243 = vtanh.pop %v5241
    %v5244 = vadd.f32 %v5242, 1.0
    %v5245 = vadd.f32 %v5243, 1.0
    %v5246 = vmul.f32 %v5244, 0.5
    %v5247 = vmul.f32 %v5245, 0.5
    %v5248 = vmul.f32 %v5234, 0.5
    %v5249 = vmul.f32 %v5235, 0.5
    %v5250 = vtanh.pop %v5248
    %v5251 = vtanh.pop %v5249
    %v5252 = vadd.f32 %v5250, 1.0
    %v5253 = vadd.f32 %v5251, 1.0
    %v5254 = vmul.f32 %v5252, 0.5
    %v5255 = vmul.f32 %v5253, 0.5
    %v5256 = vtanh.pop %v5236
    %v5257 = vtanh.pop %v5237
    %v5258 = vmul.f32 %v5238, 0.5
    %v5259 = vmul.f32 %v5239, 0.5
    %v5260 = vtanh.pop %v5258
    %v5261 = vtanh.pop %v5259
    %v5262 = vadd.f32 %v5260, 1.0
    %v5263 = vadd.f32 %v5261, 1.0
    %v5264 = vmul.f32 %v5262, 0.5
    %v5265 = vmul.f32 %v5263, 0.5
    %v5268 = vrot.slane %v4900, 2
    %v5269 = vrot.slane %v4901, 2
    %v5272 = vmul.f32 %v5254, %v5268
    %v5273 = vmul.f32 %v5255, %v5269
    %v5274 = vmul.f32 %v5246, %v5256
    %v5275 = vmul.f32 %v5247, %v5257
    %v5276 = vadd.f32 %v5272, %v5274
    %v5277 = vadd.f32 %v5273, %v5275
    %v5278 = vtanh.pop %v5276
    %v5279 = vtanh.pop %v5277
    %v5280 = vmul.f32 %v5264, %v5278
    %v5281 = vmul.f32 %v5265, %v5279
    %5282 = vmatpush.msra.mxu0 %v1110
    %5283 = vmatpush.msra.mxu0 %v1102
    %5284 = vmatpush.msra.mxu0 %v1094
    %5285 = vmatpush.msra.mxu0 %v1086
    %5286 = vmatpush.msra.mxu0 %v1078
    %5287 = vmatpush.msra.mxu0 %v1070
    %5288 = vmatpush.msra.mxu0 %v1062
    %5289 = vmatpush.msra.mxu0 %v1054
    %5290 = vmatpush.msra.mxu0 %v1046
    %5291 = vmatpush.msra.mxu0 %v1038
    %5292 = vmatpush.msra.mxu0 %v1030
    %5293 = vmatpush.msra.mxu0 %v1022
    %5294 = vmatpush.msra.mxu0 %v1014
    %5295 = vmatpush.msra.mxu0 %v1006
    %5296 = vmatpush.msra.mxu0 %v998
    %5297 = vmatpush.msra.mxu0 %v990
    %5298 = vmatmul.f32.gmra.mxu0 %v5280
    %v5299 = vpop.f32.mrf.mxu0
    %v5300 = vadd.f32 0.0, %v5299
    %5301 = vdwg.mxu0
    %5302 = vmatpush.msra.mxu0 %v1238
    %5303 = vmatpush.msra.mxu0 %v1230
    %5304 = vmatpush.msra.mxu0 %v1222
    %5305 = vmatpush.msra.mxu0 %v1214
    %5306 = vmatpush.msra.mxu0 %v1206
    %5307 = vmatpush.msra.mxu0 %v1198
    %5308 = vmatpush.msra.mxu0 %v1190
    %5309 = vmatpush.msra.mxu0 %v1182
    %5310 = vmatpush.msra.mxu0 %v1174
    %5311 = vmatpush.msra.mxu0 %v1166
    %5312 = vmatpush.msra.mxu0 %v1158
    %5313 = vmatpush.msra.mxu0 %v1150
    %5314 = vmatpush.msra.mxu0 %v1142
    %5315 = vmatpush.msra.mxu0 %v1134
    %5316 = vmatpush.msra.mxu0 %v1126
    %5317 = vmatpush.msra.mxu0 %v1118
    %5318 = vmatmul.f32.gmra.mxu0 %v5281
    %v5319 = vpop.f32.mrf.mxu0
    %v5320 = vadd.f32 %v5300, %v5319
    %5321 = vdwg.mxu0
    %5322 = vmatpush.msra.mxu0 %v1111
    %5323 = vmatpush.msra.mxu0 %v1103
    %5324 = vmatpush.msra.mxu0 %v1095
    %5325 = vmatpush.msra.mxu0 %v1087
    %5326 = vmatpush.msra.mxu0 %v1079
    %5327 = vmatpush.msra.mxu0 %v1071
    %5328 = vmatpush.msra.mxu0 %v1063
    %5329 = vmatpush.msra.mxu0 %v1055
    %5330 = vmatpush.msra.mxu0 %v1047
    %5331 = vmatpush.msra.mxu0 %v1039
    %5332 = vmatpush.msra.mxu0 %v1031
    %5333 = vmatpush.msra.mxu0 %v1023
    %5334 = vmatpush.msra.mxu0 %v1015
    %5335 = vmatpush.msra.mxu0 %v1007
    %5336 = vmatpush.msra.mxu0 %v999
    %5337 = vmatpush.msra.mxu0 %v991
    %5338 = vmatmul.f32.gmra.mxu0 %v5280
    %v5339 = vpop.f32.mrf.mxu0
    %v5340 = vadd.f32 0.0, %v5339
    %5341 = vdwg.mxu0
    %5342 = vmatpush.msra.mxu0 %v1239
    %5343 = vmatpush.msra.mxu0 %v1231
    %5344 = vmatpush.msra.mxu0 %v1223
    %5345 = vmatpush.msra.mxu0 %v1215
    %5346 = vmatpush.msra.mxu0 %v1207
    %5347 = vmatpush.msra.mxu0 %v1199
    %5348 = vmatpush.msra.mxu0 %v1191
    %5349 = vmatpush.msra.mxu0 %v1183
    %5350 = vmatpush.msra.mxu0 %v1175
    %5351 = vmatpush.msra.mxu0 %v1167
    %5352 = vmatpush.msra.mxu0 %v1159
    %5353 = vmatpush.msra.mxu0 %v1151
    %5354 = vmatpush.msra.mxu0 %v1143
    %5355 = vmatpush.msra.mxu0 %v1135
    %5356 = vmatpush.msra.mxu0 %v1127
    %5357 = vmatpush.msra.mxu0 %v1119
    %5358 = vmatmul.f32.gmra.mxu0 %v5281
    %v5359 = vpop.f32.mrf.mxu0
    %v5360 = vadd.f32 %v5340, %v5359
    %5361 = vdwg.mxu0
    %5362 = vmatpush.msra.mxu0 %v1112
    %5363 = vmatpush.msra.mxu0 %v1104
    %5364 = vmatpush.msra.mxu0 %v1096
    %5365 = vmatpush.msra.mxu0 %v1088
    %5366 = vmatpush.msra.mxu0 %v1080
    %5367 = vmatpush.msra.mxu0 %v1072
    %5368 = vmatpush.msra.mxu0 %v1064
    %5369 = vmatpush.msra.mxu0 %v1056
    %5370 = vmatpush.msra.mxu0 %v1048
    %5371 = vmatpush.msra.mxu0 %v1040
    %5372 = vmatpush.msra.mxu0 %v1032
    %5373 = vmatpush.msra.mxu0 %v1024
    %5374 = vmatpush.msra.mxu0 %v1016
    %5375 = vmatpush.msra.mxu0 %v1008
    %5376 = vmatpush.msra.mxu0 %v1000
    %5377 = vmatpush.msra.mxu0 %v992
    %5378 = vmatmul.f32.gmra.mxu0 %v5280
    %v5379 = vpop.f32.mrf.mxu0
    %v5380 = vadd.f32 0.0, %v5379
    %5381 = vdwg.mxu0
    %5382 = vmatpush.msra.mxu0 %v1240
    %5383 = vmatpush.msra.mxu0 %v1232
    %5384 = vmatpush.msra.mxu0 %v1224
    %5385 = vmatpush.msra.mxu0 %v1216
    %5386 = vmatpush.msra.mxu0 %v1208
    %5387 = vmatpush.msra.mxu0 %v1200
    %5388 = vmatpush.msra.mxu0 %v1192
    %5389 = vmatpush.msra.mxu0 %v1184
    %5390 = vmatpush.msra.mxu0 %v1176
    %5391 = vmatpush.msra.mxu0 %v1168
    %5392 = vmatpush.msra.mxu0 %v1160
    %5393 = vmatpush.msra.mxu0 %v1152
    %5394 = vmatpush.msra.mxu0 %v1144
    %5395 = vmatpush.msra.mxu0 %v1136
    %5396 = vmatpush.msra.mxu0 %v1128
    %5397 = vmatpush.msra.mxu0 %v1120
    %5398 = vmatmul.f32.gmra.mxu0 %v5281
    %v5399 = vpop.f32.mrf.mxu0
    %v5400 = vadd.f32 %v5380, %v5399
    %5401 = vdwg.mxu0
    %5402 = vmatpush.msra.mxu0 %v1113
    %5403 = vmatpush.msra.mxu0 %v1105
    %5404 = vmatpush.msra.mxu0 %v1097
    %5405 = vmatpush.msra.mxu0 %v1089
    %5406 = vmatpush.msra.mxu0 %v1081
    %5407 = vmatpush.msra.mxu0 %v1073
    %5408 = vmatpush.msra.mxu0 %v1065
    %5409 = vmatpush.msra.mxu0 %v1057
    %5410 = vmatpush.msra.mxu0 %v1049
    %5411 = vmatpush.msra.mxu0 %v1041
    %5412 = vmatpush.msra.mxu0 %v1033
    %5413 = vmatpush.msra.mxu0 %v1025
    %5414 = vmatpush.msra.mxu0 %v1017
    %5415 = vmatpush.msra.mxu0 %v1009
    %5416 = vmatpush.msra.mxu0 %v1001
    %5417 = vmatpush.msra.mxu0 %v993
    %5418 = vmatmul.f32.gmra.mxu0 %v5280
    %v5419 = vpop.f32.mrf.mxu0
    %v5420 = vadd.f32 0.0, %v5419
    %5421 = vdwg.mxu0
    %5422 = vmatpush.msra.mxu0 %v1241
    %5423 = vmatpush.msra.mxu0 %v1233
    %5424 = vmatpush.msra.mxu0 %v1225
    %5425 = vmatpush.msra.mxu0 %v1217
    %5426 = vmatpush.msra.mxu0 %v1209
    %5427 = vmatpush.msra.mxu0 %v1201
    %5428 = vmatpush.msra.mxu0 %v1193
    %5429 = vmatpush.msra.mxu0 %v1185
    %5430 = vmatpush.msra.mxu0 %v1177
    %5431 = vmatpush.msra.mxu0 %v1169
    %5432 = vmatpush.msra.mxu0 %v1161
    %5433 = vmatpush.msra.mxu0 %v1153
    %5434 = vmatpush.msra.mxu0 %v1145
    %5435 = vmatpush.msra.mxu0 %v1137
    %5436 = vmatpush.msra.mxu0 %v1129
    %5437 = vmatpush.msra.mxu0 %v1121
    %5438 = vmatmul.f32.gmra.mxu0 %v5281
    %v5439 = vpop.f32.mrf.mxu0
    %v5440 = vadd.f32 %v5420, %v5439
    %5441 = vdwg.mxu0
    %5442 = vmatpush.msra.mxu0 %v1114
    %5443 = vmatpush.msra.mxu0 %v1106
    %5444 = vmatpush.msra.mxu0 %v1098
    %5445 = vmatpush.msra.mxu0 %v1090
    %5446 = vmatpush.msra.mxu0 %v1082
    %5447 = vmatpush.msra.mxu0 %v1074
    %5448 = vmatpush.msra.mxu0 %v1066
    %5449 = vmatpush.msra.mxu0 %v1058
    %5450 = vmatpush.msra.mxu0 %v1050
    %5451 = vmatpush.msra.mxu0 %v1042
    %5452 = vmatpush.msra.mxu0 %v1034
    %5453 = vmatpush.msra.mxu0 %v1026
    %5454 = vmatpush.msra.mxu0 %v1018
    %5455 = vmatpush.msra.mxu0 %v1010
    %5456 = vmatpush.msra.mxu0 %v1002
    %5457 = vmatpush.msra.mxu0 %v994
    %5458 = vmatmul.f32.gmra.mxu0 %v5280
    %v5459 = vpop.f32.mrf.mxu0
    %v5460 = vadd.f32 0.0, %v5459
    %5461 = vdwg.mxu0
    %5462 = vmatpush.msra.mxu0 %v1242
    %5463 = vmatpush.msra.mxu0 %v1234
    %5464 = vmatpush.msra.mxu0 %v1226
    %5465 = vmatpush.msra.mxu0 %v1218
    %5466 = vmatpush.msra.mxu0 %v1210
    %5467 = vmatpush.msra.mxu0 %v1202
    %5468 = vmatpush.msra.mxu0 %v1194
    %5469 = vmatpush.msra.mxu0 %v1186
    %5470 = vmatpush.msra.mxu0 %v1178
    %5471 = vmatpush.msra.mxu0 %v1170
    %5472 = vmatpush.msra.mxu0 %v1162
    %5473 = vmatpush.msra.mxu0 %v1154
    %5474 = vmatpush.msra.mxu0 %v1146
    %5475 = vmatpush.msra.mxu0 %v1138
    %5476 = vmatpush.msra.mxu0 %v1130
    %5477 = vmatpush.msra.mxu0 %v1122
    %5478 = vmatmul.f32.gmra.mxu0 %v5281
    %v5479 = vpop.f32.mrf.mxu0
    %v5480 = vadd.f32 %v5460, %v5479
    %5481 = vdwg.mxu0
    %5482 = vmatpush.msra.mxu0 %v1115
    %5483 = vmatpush.msra.mxu0 %v1107
    %5484 = vmatpush.msra.mxu0 %v1099
    %5485 = vmatpush.msra.mxu0 %v1091
    %5486 = vmatpush.msra.mxu0 %v1083
    %5487 = vmatpush.msra.mxu0 %v1075
    %5488 = vmatpush.msra.mxu0 %v1067
    %5489 = vmatpush.msra.mxu0 %v1059
    %5490 = vmatpush.msra.mxu0 %v1051
    %5491 = vmatpush.msra.mxu0 %v1043
    %5492 = vmatpush.msra.mxu0 %v1035
    %5493 = vmatpush.msra.mxu0 %v1027
    %5494 = vmatpush.msra.mxu0 %v1019
    %5495 = vmatpush.msra.mxu0 %v1011
    %5496 = vmatpush.msra.mxu0 %v1003
    %5497 = vmatpush.msra.mxu0 %v995
    %5498 = vmatmul.f32.gmra.mxu0 %v5280
    %v5499 = vpop.f32.mrf.mxu0
    %v5500 = vadd.f32 0.0, %v5499
    %5501 = vdwg.mxu0
    %5502 = vmatpush.msra.mxu0 %v1243
    %5503 = vmatpush.msra.mxu0 %v1235
    %5504 = vmatpush.msra.mxu0 %v1227
    %5505 = vmatpush.msra.mxu0 %v1219
    %5506 = vmatpush.msra.mxu0 %v1211
    %5507 = vmatpush.msra.mxu0 %v1203
    %5508 = vmatpush.msra.mxu0 %v1195
    %5509 = vmatpush.msra.mxu0 %v1187
    %5510 = vmatpush.msra.mxu0 %v1179
    %5511 = vmatpush.msra.mxu0 %v1171
    %5512 = vmatpush.msra.mxu0 %v1163
    %5513 = vmatpush.msra.mxu0 %v1155
    %5514 = vmatpush.msra.mxu0 %v1147
    %5515 = vmatpush.msra.mxu0 %v1139
    %5516 = vmatpush.msra.mxu0 %v1131
    %5517 = vmatpush.msra.mxu0 %v1123
    %5518 = vmatmul.f32.gmra.mxu0 %v5281
    %v5519 = vpop.f32.mrf.mxu0
    %v5520 = vadd.f32 %v5500, %v5519
    %5521 = vdwg.mxu0
    %5522 = vmatpush.msra.mxu0 %v1116
    %5523 = vmatpush.msra.mxu0 %v1108
    %5524 = vmatpush.msra.mxu0 %v1100
    %5525 = vmatpush.msra.mxu0 %v1092
    %5526 = vmatpush.msra.mxu0 %v1084
    %5527 = vmatpush.msra.mxu0 %v1076
    %5528 = vmatpush.msra.mxu0 %v1068
    %5529 = vmatpush.msra.mxu0 %v1060
    %5530 = vmatpush.msra.mxu0 %v1052
    %5531 = vmatpush.msra.mxu0 %v1044
    %5532 = vmatpush.msra.mxu0 %v1036
    %5533 = vmatpush.msra.mxu0 %v1028
    %5534 = vmatpush.msra.mxu0 %v1020
    %5535 = vmatpush.msra.mxu0 %v1012
    %5536 = vmatpush.msra.mxu0 %v1004
    %5537 = vmatpush.msra.mxu0 %v996
    %5538 = vmatmul.f32.gmra.mxu0 %v5280
    %v5539 = vpop.f32.mrf.mxu0
    %v5540 = vadd.f32 0.0, %v5539
    %5541 = vdwg.mxu0
    %5542 = vmatpush.msra.mxu0 %v1244
    %5543 = vmatpush.msra.mxu0 %v1236
    %5544 = vmatpush.msra.mxu0 %v1228
    %5545 = vmatpush.msra.mxu0 %v1220
    %5546 = vmatpush.msra.mxu0 %v1212
    %5547 = vmatpush.msra.mxu0 %v1204
    %5548 = vmatpush.msra.mxu0 %v1196
    %5549 = vmatpush.msra.mxu0 %v1188
    %5550 = vmatpush.msra.mxu0 %v1180
    %5551 = vmatpush.msra.mxu0 %v1172
    %5552 = vmatpush.msra.mxu0 %v1164
    %5553 = vmatpush.msra.mxu0 %v1156
    %5554 = vmatpush.msra.mxu0 %v1148
    %5555 = vmatpush.msra.mxu0 %v1140
    %5556 = vmatpush.msra.mxu0 %v1132
    %5557 = vmatpush.msra.mxu0 %v1124
    %5558 = vmatmul.f32.gmra.mxu0 %v5281
    %v5559 = vpop.f32.mrf.mxu0
    %v5560 = vadd.f32 %v5540, %v5559
    %5561 = vdwg.mxu0
    %5562 = vmatpush.msra.mxu0 %v1117
    %5563 = vmatpush.msra.mxu0 %v1109
    %5564 = vmatpush.msra.mxu0 %v1101
    %5565 = vmatpush.msra.mxu0 %v1093
    %5566 = vmatpush.msra.mxu0 %v1085
    %5567 = vmatpush.msra.mxu0 %v1077
    %5568 = vmatpush.msra.mxu0 %v1069
    %5569 = vmatpush.msra.mxu0 %v1061
    %5570 = vmatpush.msra.mxu0 %v1053
    %5571 = vmatpush.msra.mxu0 %v1045
    %5572 = vmatpush.msra.mxu0 %v1037
    %5573 = vmatpush.msra.mxu0 %v1029
    %5574 = vmatpush.msra.mxu0 %v1021
    %5575 = vmatpush.msra.mxu0 %v1013
    %5576 = vmatpush.msra.mxu0 %v1005
    %5577 = vmatpush.msra.mxu0 %v997
    %5578 = vmatmul.f32.gmra.mxu0 %v5280
    %v5579 = vpop.f32.mrf.mxu0
    %v5580 = vadd.f32 0.0, %v5579
    %5581 = vdwg.mxu0
    %5582 = vmatpush.msra.mxu0 %v1245
    %5583 = vmatpush.msra.mxu0 %v1237
    %5584 = vmatpush.msra.mxu0 %v1229
    %5585 = vmatpush.msra.mxu0 %v1221
    %5586 = vmatpush.msra.mxu0 %v1213
    %5587 = vmatpush.msra.mxu0 %v1205
    %5588 = vmatpush.msra.mxu0 %v1197
    %5589 = vmatpush.msra.mxu0 %v1189
    %5590 = vmatpush.msra.mxu0 %v1181
    %5591 = vmatpush.msra.mxu0 %v1173
    %5592 = vmatpush.msra.mxu0 %v1165
    %5593 = vmatpush.msra.mxu0 %v1157
    %5594 = vmatpush.msra.mxu0 %v1149
    %5595 = vmatpush.msra.mxu0 %v1141
    %5596 = vmatpush.msra.mxu0 %v1133
    %5597 = vmatpush.msra.mxu0 %v1125
    %5598 = vmatmul.f32.gmra.mxu0 %v5281
    %v5599 = vpop.f32.mrf.mxu0
    %v5600 = vadd.f32 %v5580, %v5599
    %5601 = vdwg.mxu0
    %v5610 = vrot.slane %v5320, 2
    %v5611 = vrot.slane %v5360, 2
    %v5612 = vrot.slane %v5400, 2
    %v5613 = vrot.slane %v5440, 2
    %v5614 = vrot.slane %v5480, 2
    %v5615 = vrot.slane %v5520, 2
    %v5616 = vrot.slane %v5560, 2
    %v5617 = vrot.slane %v5600, 2
    %v5626 = vadd.f32 %v513, %v5610
    %v5627 = vadd.f32 %v544, %v5611
    %v5628 = vadd.f32 %v574, %v5612
    %v5629 = vadd.f32 %v603, %v5613
    %v5630 = vadd.f32 %v633, %v5614
    %v5631 = vadd.f32 %v664, %v5615
    %v5632 = vadd.f32 %v695, %v5616
    %v5633 = vadd.f32 %v726, %v5617
    %v5634 = vmul.f32 %v5626, 0.5
    %v5635 = vmul.f32 %v5627, 0.5
    %v5636 = vtanh.pop %v5634
    %v5637 = vtanh.pop %v5635
    %v5638 = vadd.f32 %v5636, 1.0
    %v5639 = vadd.f32 %v5637, 1.0
    %v5640 = vmul.f32 %v5638, 0.5
    %v5641 = vmul.f32 %v5639, 0.5
    %v5642 = vmul.f32 %v5628, 0.5
    %v5643 = vmul.f32 %v5629, 0.5
    %v5644 = vtanh.pop %v5642
    %v5645 = vtanh.pop %v5643
    %v5646 = vadd.f32 %v5644, 1.0
    %v5647 = vadd.f32 %v5645, 1.0
    %v5648 = vmul.f32 %v5646, 0.5
    %v5649 = vmul.f32 %v5647, 0.5
    %v5650 = vtanh.pop %v5630
    %v5651 = vtanh.pop %v5631
    %v5652 = vmul.f32 %v5632, 0.5
    %v5653 = vmul.f32 %v5633, 0.5
    %v5654 = vtanh.pop %v5652
    %v5655 = vtanh.pop %v5653
    %v5656 = vadd.f32 %v5654, 1.0
    %v5657 = vadd.f32 %v5655, 1.0
    %v5658 = vmul.f32 %v5656, 0.5
    %v5659 = vmul.f32 %v5657, 0.5
    %v5662 = vrot.slane %v5276, 2
    %v5663 = vrot.slane %v5277, 2
    %v5666 = vmul.f32 %v5648, %v5662
    %v5667 = vmul.f32 %v5649, %v5663
    %v5668 = vmul.f32 %v5640, %v5650
    %v5669 = vmul.f32 %v5641, %v5651
    %v5670 = vadd.f32 %v5666, %v5668
    %v5671 = vadd.f32 %v5667, %v5669
    %v5672 = vtanh.pop %v5670
    %v5673 = vtanh.pop %v5671
    %v5674 = vmul.f32 %v5658, %v5672
    %v5675 = vmul.f32 %v5659, %v5673
    %v5678 = vrot.slane %v5674, 6
    %v5679 = vrot.slane %v5675, 6
    %5682 = vmatpush.msra.mxu0 %v1110
    %5683 = vmatpush.msra.mxu0 %v1102
    %5684 = vmatpush.msra.mxu0 %v1094
    %5685 = vmatpush.msra.mxu0 %v1086
    %5686 = vmatpush.msra.mxu0 %v1078
    %5687 = vmatpush.msra.mxu0 %v1070
    %5688 = vmatpush.msra.mxu0 %v1062
    %5689 = vmatpush.msra.mxu0 %v1054
    %5690 = vmatpush.msra.mxu0 %v1046
    %5691 = vmatpush.msra.mxu0 %v1038
    %5692 = vmatpush.msra.mxu0 %v1030
    %5693 = vmatpush.msra.mxu0 %v1022
    %5694 = vmatpush.msra.mxu0 %v1014
    %5695 = vmatpush.msra.mxu0 %v1006
    %5696 = vmatpush.msra.mxu0 %v998
    %5697 = vmatpush.msra.mxu0 %v990
    %5698 = vmatmul.f32.gmra.mxu0 %v5678
    %v5699 = vpop.f32.mrf.mxu0
    %v5700 = vadd.f32 0.0, %v5699
    %5701 = vdwg.mxu0
    %5702 = vmatpush.msra.mxu0 %v1238
    %5703 = vmatpush.msra.mxu0 %v1230
    %5704 = vmatpush.msra.mxu0 %v1222
    %5705 = vmatpush.msra.mxu0 %v1214
    %5706 = vmatpush.msra.mxu0 %v1206
    %5707 = vmatpush.msra.mxu0 %v1198
    %5708 = vmatpush.msra.mxu0 %v1190
    %5709 = vmatpush.msra.mxu0 %v1182
    %5710 = vmatpush.msra.mxu0 %v1174
    %5711 = vmatpush.msra.mxu0 %v1166
    %5712 = vmatpush.msra.mxu0 %v1158
    %5713 = vmatpush.msra.mxu0 %v1150
    %5714 = vmatpush.msra.mxu0 %v1142
    %5715 = vmatpush.msra.mxu0 %v1134
    %5716 = vmatpush.msra.mxu0 %v1126
    %5717 = vmatpush.msra.mxu0 %v1118
    %5718 = vmatmul.f32.gmra.mxu0 %v5679
    %v5719 = vpop.f32.mrf.mxu0
    %v5720 = vadd.f32 %v5700, %v5719
    %5721 = vdwg.mxu0
    %5722 = vmatpush.msra.mxu0 %v1111
    %5723 = vmatpush.msra.mxu0 %v1103
    %5724 = vmatpush.msra.mxu0 %v1095
    %5725 = vmatpush.msra.mxu0 %v1087
    %5726 = vmatpush.msra.mxu0 %v1079
    %5727 = vmatpush.msra.mxu0 %v1071
    %5728 = vmatpush.msra.mxu0 %v1063
    %5729 = vmatpush.msra.mxu0 %v1055
    %5730 = vmatpush.msra.mxu0 %v1047
    %5731 = vmatpush.msra.mxu0 %v1039
    %5732 = vmatpush.msra.mxu0 %v1031
    %5733 = vmatpush.msra.mxu0 %v1023
    %5734 = vmatpush.msra.mxu0 %v1015
    %5735 = vmatpush.msra.mxu0 %v1007
    %5736 = vmatpush.msra.mxu0 %v999
    %5737 = vmatpush.msra.mxu0 %v991
    %5738 = vmatmul.f32.gmra.mxu0 %v5678
    %v5739 = vpop.f32.mrf.mxu0
    %v5740 = vadd.f32 0.0, %v5739
    %5741 = vdwg.mxu0
    %5742 = vmatpush.msra.mxu0 %v1239
    %5743 = vmatpush.msra.mxu0 %v1231
    %5744 = vmatpush.msra.mxu0 %v1223
    %5745 = vmatpush.msra.mxu0 %v1215
    %5746 = vmatpush.msra.mxu0 %v1207
    %5747 = vmatpush.msra.mxu0 %v1199
    %5748 = vmatpush.msra.mxu0 %v1191
    %5749 = vmatpush.msra.mxu0 %v1183
    %5750 = vmatpush.msra.mxu0 %v1175
    %5751 = vmatpush.msra.mxu0 %v1167
    %5752 = vmatpush.msra.mxu0 %v1159
    %5753 = vmatpush.msra.mxu0 %v1151
    %5754 = vmatpush.msra.mxu0 %v1143
    %5755 = vmatpush.msra.mxu0 %v1135
    %5756 = vmatpush.msra.mxu0 %v1127
    %5757 = vmatpush.msra.mxu0 %v1119
    %5758 = vmatmul.f32.gmra.mxu0 %v5679
    %v5759 = vpop.f32.mrf.mxu0
    %v5760 = vadd.f32 %v5740, %v5759
    %5761 = vdwg.mxu0
    %5762 = vmatpush.msra.mxu0 %v1112
    %5763 = vmatpush.msra.mxu0 %v1104
    %5764 = vmatpush.msra.mxu0 %v1096
    %5765 = vmatpush.msra.mxu0 %v1088
    %5766 = vmatpush.msra.mxu0 %v1080
    %5767 = vmatpush.msra.mxu0 %v1072
    %5768 = vmatpush.msra.mxu0 %v1064
    %5769 = vmatpush.msra.mxu0 %v1056
    %5770 = vmatpush.msra.mxu0 %v1048
    %5771 = vmatpush.msra.mxu0 %v1040
    %5772 = vmatpush.msra.mxu0 %v1032
    %5773 = vmatpush.msra.mxu0 %v1024
    %5774 = vmatpush.msra.mxu0 %v1016
    %5775 = vmatpush.msra.mxu0 %v1008
    %5776 = vmatpush.msra.mxu0 %v1000
    %5777 = vmatpush.msra.mxu0 %v992
    %5778 = vmatmul.f32.gmra.mxu0 %v5678
    %v5779 = vpop.f32.mrf.mxu0
    %v5780 = vadd.f32 0.0, %v5779
    %5781 = vdwg.mxu0
    %5782 = vmatpush.msra.mxu0 %v1240
    %5783 = vmatpush.msra.mxu0 %v1232
    %5784 = vmatpush.msra.mxu0 %v1224
    %5785 = vmatpush.msra.mxu0 %v1216
    %5786 = vmatpush.msra.mxu0 %v1208
    %5787 = vmatpush.msra.mxu0 %v1200
    %5788 = vmatpush.msra.mxu0 %v1192
    %5789 = vmatpush.msra.mxu0 %v1184
    %5790 = vmatpush.msra.mxu0 %v1176
    %5791 = vmatpush.msra.mxu0 %v1168
    %5792 = vmatpush.msra.mxu0 %v1160
    %5793 = vmatpush.msra.mxu0 %v1152
    %5794 = vmatpush.msra.mxu0 %v1144
    %5795 = vmatpush.msra.mxu0 %v1136
    %5796 = vmatpush.msra.mxu0 %v1128
    %5797 = vmatpush.msra.mxu0 %v1120
    %5798 = vmatmul.f32.gmra.mxu0 %v5679
    %v5799 = vpop.f32.mrf.mxu0
    %v5800 = vadd.f32 %v5780, %v5799
    %5801 = vdwg.mxu0
    %5802 = vmatpush.msra.mxu0 %v1113
    %5803 = vmatpush.msra.mxu0 %v1105
    %5804 = vmatpush.msra.mxu0 %v1097
    %5805 = vmatpush.msra.mxu0 %v1089
    %5806 = vmatpush.msra.mxu0 %v1081
    %5807 = vmatpush.msra.mxu0 %v1073
    %5808 = vmatpush.msra.mxu0 %v1065
    %5809 = vmatpush.msra.mxu0 %v1057
    %5810 = vmatpush.msra.mxu0 %v1049
    %5811 = vmatpush.msra.mxu0 %v1041
    %5812 = vmatpush.msra.mxu0 %v1033
    %5813 = vmatpush.msra.mxu0 %v1025
    %5814 = vmatpush.msra.mxu0 %v1017
    %5815 = vmatpush.msra.mxu0 %v1009
    %5816 = vmatpush.msra.mxu0 %v1001
    %5817 = vmatpush.msra.mxu0 %v993
    %5818 = vmatmul.f32.gmra.mxu0 %v5678
    %v5819 = vpop.f32.mrf.mxu0
    %v5820 = vadd.f32 0.0, %v5819
    %5821 = vdwg.mxu0
    %5822 = vmatpush.msra.mxu0 %v1241
    %5823 = vmatpush.msra.mxu0 %v1233
    %5824 = vmatpush.msra.mxu0 %v1225
    %5825 = vmatpush.msra.mxu0 %v1217
    %5826 = vmatpush.msra.mxu0 %v1209
    %5827 = vmatpush.msra.mxu0 %v1201
    %5828 = vmatpush.msra.mxu0 %v1193
    %5829 = vmatpush.msra.mxu0 %v1185
    %5830 = vmatpush.msra.mxu0 %v1177
    %5831 = vmatpush.msra.mxu0 %v1169
    %5832 = vmatpush.msra.mxu0 %v1161
    %5833 = vmatpush.msra.mxu0 %v1153
    %5834 = vmatpush.msra.mxu0 %v1145
    %5835 = vmatpush.msra.mxu0 %v1137
    %5836 = vmatpush.msra.mxu0 %v1129
    %5837 = vmatpush.msra.mxu0 %v1121
    %5838 = vmatmul.f32.gmra.mxu0 %v5679
    %v5839 = vpop.f32.mrf.mxu0
    %v5840 = vadd.f32 %v5820, %v5839
    %5841 = vdwg.mxu0
    %5842 = vmatpush.msra.mxu0 %v1114
    %5843 = vmatpush.msra.mxu0 %v1106
    %5844 = vmatpush.msra.mxu0 %v1098
    %5845 = vmatpush.msra.mxu0 %v1090
    %5846 = vmatpush.msra.mxu0 %v1082
    %5847 = vmatpush.msra.mxu0 %v1074
    %5848 = vmatpush.msra.mxu0 %v1066
    %5849 = vmatpush.msra.mxu0 %v1058
    %5850 = vmatpush.msra.mxu0 %v1050
    %5851 = vmatpush.msra.mxu0 %v1042
    %5852 = vmatpush.msra.mxu0 %v1034
    %5853 = vmatpush.msra.mxu0 %v1026
    %5854 = vmatpush.msra.mxu0 %v1018
    %5855 = vmatpush.msra.mxu0 %v1010
    %5856 = vmatpush.msra.mxu0 %v1002
    %5857 = vmatpush.msra.mxu0 %v994
    %5858 = vmatmul.f32.gmra.mxu0 %v5678
    %v5859 = vpop.f32.mrf.mxu0
    %v5860 = vadd.f32 0.0, %v5859
    %5861 = vdwg.mxu0
    %5862 = vmatpush.msra.mxu0 %v1242
    %5863 = vmatpush.msra.mxu0 %v1234
    %5864 = vmatpush.msra.mxu0 %v1226
    %5865 = vmatpush.msra.mxu0 %v1218
    %5866 = vmatpush.msra.mxu0 %v1210
    %5867 = vmatpush.msra.mxu0 %v1202
    %5868 = vmatpush.msra.mxu0 %v1194
    %5869 = vmatpush.msra.mxu0 %v1186
    %5870 = vmatpush.msra.mxu0 %v1178
    %5871 = vmatpush.msra.mxu0 %v1170
    %5872 = vmatpush.msra.mxu0 %v1162
    %5873 = vmatpush.msra.mxu0 %v1154
    %5874 = vmatpush.msra.mxu0 %v1146
    %5875 = vmatpush.msra.mxu0 %v1138
    %5876 = vmatpush.msra.mxu0 %v1130
    %5877 = vmatpush.msra.mxu0 %v1122
    %5878 = vmatmul.f32.gmra.mxu0 %v5679
    %v5879 = vpop.f32.mrf.mxu0
    %v5880 = vadd.f32 %v5860, %v5879
    %5881 = vdwg.mxu0
    %5882 = vmatpush.msra.mxu0 %v1115
    %5883 = vmatpush.msra.mxu0 %v1107
    %5884 = vmatpush.msra.mxu0 %v1099
    %5885 = vmatpush.msra.mxu0 %v1091
    %5886 = vmatpush.msra.mxu0 %v1083
    %5887 = vmatpush.msra.mxu0 %v1075
    %5888 = vmatpush.msra.mxu0 %v1067
    %5889 = vmatpush.msra.mxu0 %v1059
    %5890 = vmatpush.msra.mxu0 %v1051
    %5891 = vmatpush.msra.mxu0 %v1043
    %5892 = vmatpush.msra.mxu0 %v1035
    %5893 = vmatpush.msra.mxu0 %v1027
    %5894 = vmatpush.msra.mxu0 %v1019
    %5895 = vmatpush.msra.mxu0 %v1011
    %5896 = vmatpush.msra.mxu0 %v1003
    %5897 = vmatpush.msra.mxu0 %v995
    %5898 = vmatmul.f32.gmra.mxu0 %v5678
    %v5899 = vpop.f32.mrf.mxu0
    %v5900 = vadd.f32 0.0, %v5899
    %5901 = vdwg.mxu0
    %5902 = vmatpush.msra.mxu0 %v1243
    %5903 = vmatpush.msra.mxu0 %v1235
    %5904 = vmatpush.msra.mxu0 %v1227
    %5905 = vmatpush.msra.mxu0 %v1219
    %5906 = vmatpush.msra.mxu0 %v1211
    %5907 = vmatpush.msra.mxu0 %v1203
    %5908 = vmatpush.msra.mxu0 %v1195
    %5909 = vmatpush.msra.mxu0 %v1187
    %5910 = vmatpush.msra.mxu0 %v1179
    %5911 = vmatpush.msra.mxu0 %v1171
    %5912 = vmatpush.msra.mxu0 %v1163
    %5913 = vmatpush.msra.mxu0 %v1155
    %5914 = vmatpush.msra.mxu0 %v1147
    %5915 = vmatpush.msra.mxu0 %v1139
    %5916 = vmatpush.msra.mxu0 %v1131
    %5917 = vmatpush.msra.mxu0 %v1123
    %5918 = vmatmul.f32.gmra.mxu0 %v5679
    %v5919 = vpop.f32.mrf.mxu0
    %v5920 = vadd.f32 %v5900, %v5919
    %5921 = vdwg.mxu0
    %5922 = vmatpush.msra.mxu0 %v1116
    %5923 = vmatpush.msra.mxu0 %v1108
    %5924 = vmatpush.msra.mxu0 %v1100
    %5925 = vmatpush.msra.mxu0 %v1092
    %5926 = vmatpush.msra.mxu0 %v1084
    %5927 = vmatpush.msra.mxu0 %v1076
    %5928 = vmatpush.msra.mxu0 %v1068
    %5929 = vmatpush.msra.mxu0 %v1060
    %5930 = vmatpush.msra.mxu0 %v1052
    %5931 = vmatpush.msra.mxu0 %v1044
    %5932 = vmatpush.msra.mxu0 %v1036
    %5933 = vmatpush.msra.mxu0 %v1028
    %5934 = vmatpush.msra.mxu0 %v1020
    %5935 = vmatpush.msra.mxu0 %v1012
    %5936 = vmatpush.msra.mxu0 %v1004
    %5937 = vmatpush.msra.mxu0 %v996
    %5938 = vmatmul.f32.gmra.mxu0 %v5678
    %v5939 = vpop.f32.mrf.mxu0
    %v5940 = vadd.f32 0.0, %v5939
    %5941 = vdwg.mxu0
    %5942 = vmatpush.msra.mxu0 %v1244
    %5943 = vmatpush.msra.mxu0 %v1236
    %5944 = vmatpush.msra.mxu0 %v1228
    %5945 = vmatpush.msra.mxu0 %v1220
    %5946 = vmatpush.msra.mxu0 %v1212
    %5947 = vmatpush.msra.mxu0 %v1204
    %5948 = vmatpush.msra.mxu0 %v1196
    %5949 = vmatpush.msra.mxu0 %v1188
    %5950 = vmatpush.msra.mxu0 %v1180
    %5951 = vmatpush.msra.mxu0 %v1172
    %5952 = vmatpush.msra.mxu0 %v1164
    %5953 = vmatpush.msra.mxu0 %v1156
    %5954 = vmatpush.msra.mxu0 %v1148
    %5955 = vmatpush.msra.mxu0 %v1140
    %5956 = vmatpush.msra.mxu0 %v1132
    %5957 = vmatpush.msra.mxu0 %v1124
    %5958 = vmatmul.f32.gmra.mxu0 %v5679
    %v5959 = vpop.f32.mrf.mxu0
    %v5960 = vadd.f32 %v5940, %v5959
    %5961 = vdwg.mxu0
    %5962 = vmatpush.msra.mxu0 %v1117
    %5963 = vmatpush.msra.mxu0 %v1109
    %5964 = vmatpush.msra.mxu0 %v1101
    %5965 = vmatpush.msra.mxu0 %v1093
    %5966 = vmatpush.msra.mxu0 %v1085
    %5967 = vmatpush.msra.mxu0 %v1077
    %5968 = vmatpush.msra.mxu0 %v1069
    %5969 = vmatpush.msra.mxu0 %v1061
    %5970 = vmatpush.msra.mxu0 %v1053
    %5971 = vmatpush.msra.mxu0 %v1045
    %5972 = vmatpush.msra.mxu0 %v1037
    %5973 = vmatpush.msra.mxu0 %v1029
    %5974 = vmatpush.msra.mxu0 %v1021
    %5975 = vmatpush.msra.mxu0 %v1013
    %5976 = vmatpush.msra.mxu0 %v1005
    %5977 = vmatpush.msra.mxu0 %v997
    %5978 = vmatmul.f32.gmra.mxu0 %v5678
    %v5979 = vpop.f32.mrf.mxu0
    %v5980 = vadd.f32 0.0, %v5979
    %5981 = vdwg.mxu0
    %5982 = vmatpush.msra.mxu0 %v1245
    %5983 = vmatpush.msra.mxu0 %v1237
    %5984 = vmatpush.msra.mxu0 %v1229
    %5985 = vmatpush.msra.mxu0 %v1221
    %5986 = vmatpush.msra.mxu0 %v1213
    %5987 = vmatpush.msra.mxu0 %v1205
    %5988 = vmatpush.msra.mxu0 %v1197
    %5989 = vmatpush.msra.mxu0 %v1189
    %5990 = vmatpush.msra.mxu0 %v1181
    %5991 = vmatpush.msra.mxu0 %v1173
    %5992 = vmatpush.msra.mxu0 %v1165
    %5993 = vmatpush.msra.mxu0 %v1157
    %5994 = vmatpush.msra.mxu0 %v1149
    %5995 = vmatpush.msra.mxu0 %v1141
    %5996 = vmatpush.msra.mxu0 %v1133
    %5997 = vmatpush.msra.mxu0 %v1125
    %5998 = vmatmul.f32.gmra.mxu0 %v5679
    %v5999 = vpop.f32.mrf.mxu0
    %v6000 = vadd.f32 %v5980, %v5999
    %6001 = vdwg.mxu0
    %v6010 = vrot.slane %v5720, 4
    %v6011 = vrot.slane %v5760, 4
    %v6012 = vrot.slane %v5800, 4
    %v6013 = vrot.slane %v5840, 4
    %v6014 = vrot.slane %v5880, 4
    %v6015 = vrot.slane %v5920, 4
    %v6016 = vrot.slane %v5960, 4
    %v6017 = vrot.slane %v6000, 4
    %v6026 = vadd.f32 %v513, %v6010
    %v6027 = vadd.f32 %v544, %v6011
    %v6028 = vadd.f32 %v574, %v6012
    %v6029 = vadd.f32 %v603, %v6013
    %v6030 = vadd.f32 %v633, %v6014
    %v6031 = vadd.f32 %v664, %v6015
    %v6032 = vadd.f32 %v695, %v6016
    %v6033 = vadd.f32 %v726, %v6017
    %v6034 = vmul.f32 %v6026, 0.5
    %v6035 = vmul.f32 %v6027, 0.5
    %v6036 = vtanh.pop %v6034
    %v6037 = vtanh.pop %v6035
    %v6038 = vadd.f32 %v6036, 1.0
    %v6039 = vadd.f32 %v6037, 1.0
    %v6040 = vmul.f32 %v6038, 0.5
    %v6041 = vmul.f32 %v6039, 0.5
    %v6042 = vmul.f32 %v6028, 0.5
    %v6043 = vmul.f32 %v6029, 0.5
    %v6044 = vtanh.pop %v6042
    %v6045 = vtanh.pop %v6043
    %v6046 = vadd.f32 %v6044, 1.0
    %v6047 = vadd.f32 %v6045, 1.0
    %v6048 = vmul.f32 %v6046, 0.5
    %v6049 = vmul.f32 %v6047, 0.5
    %v6050 = vtanh.pop %v6030
    %v6051 = vtanh.pop %v6031
    %v6052 = vmul.f32 %v6032, 0.5
    %v6053 = vmul.f32 %v6033, 0.5
    %v6054 = vtanh.pop %v6052
    %v6055 = vtanh.pop %v6053
    %v6056 = vadd.f32 %v6054, 1.0
    %v6057 = vadd.f32 %v6055, 1.0
    %v6058 = vmul.f32 %v6056, 0.5
    %v6059 = vmul.f32 %v6057, 0.5
    %v6062 = vrot.slane %v5670, 2
    %v6063 = vrot.slane %v5671, 2
    %v6066 = vmul.f32 %v6048, %v6062
    %v6067 = vmul.f32 %v6049, %v6063
    %v6068 = vmul.f32 %v6040, %v6050
    %v6069 = vmul.f32 %v6041, %v6051
    %v6070 = vadd.f32 %v6066, %v6068
    %v6071 = vadd.f32 %v6067, %v6069
    %v6072 = vtanh.pop %v6070
    %v6073 = vtanh.pop %v6071
    %v6074 = vmul.f32 %v6058, %v6072
    %v6075 = vmul.f32 %v6059, %v6073
    %v6078 = vrot.slane %v6074, 4
    %v6079 = vrot.slane %v6075, 4
    %6082 = vmatpush.msra.mxu0 %v1110
    %6083 = vmatpush.msra.mxu0 %v1102
    %6084 = vmatpush.msra.mxu0 %v1094
    %6085 = vmatpush.msra.mxu0 %v1086
    %6086 = vmatpush.msra.mxu0 %v1078
    %6087 = vmatpush.msra.mxu0 %v1070
    %6088 = vmatpush.msra.mxu0 %v1062
    %6089 = vmatpush.msra.mxu0 %v1054
    %6090 = vmatpush.msra.mxu0 %v1046
    %6091 = vmatpush.msra.mxu0 %v1038
    %6092 = vmatpush.msra.mxu0 %v1030
    %6093 = vmatpush.msra.mxu0 %v1022
    %6094 = vmatpush.msra.mxu0 %v1014
    %6095 = vmatpush.msra.mxu0 %v1006
    %6096 = vmatpush.msra.mxu0 %v998
    %6097 = vmatpush.msra.mxu0 %v990
    %6098 = vmatmul.f32.gmra.mxu0 %v6078
    %v6099 = vpop.f32.mrf.mxu0
    %v6100 = vadd.f32 0.0, %v6099
    %6101 = vdwg.mxu0
    %6102 = vmatpush.msra.mxu0 %v1238
    %6103 = vmatpush.msra.mxu0 %v1230
    %6104 = vmatpush.msra.mxu0 %v1222
    %6105 = vmatpush.msra.mxu0 %v1214
    %6106 = vmatpush.msra.mxu0 %v1206
    %6107 = vmatpush.msra.mxu0 %v1198
    %6108 = vmatpush.msra.mxu0 %v1190
    %6109 = vmatpush.msra.mxu0 %v1182
    %6110 = vmatpush.msra.mxu0 %v1174
    %6111 = vmatpush.msra.mxu0 %v1166
    %6112 = vmatpush.msra.mxu0 %v1158
    %6113 = vmatpush.msra.mxu0 %v1150
    %6114 = vmatpush.msra.mxu0 %v1142
    %6115 = vmatpush.msra.mxu0 %v1134
    %6116 = vmatpush.msra.mxu0 %v1126
    %6117 = vmatpush.msra.mxu0 %v1118
    %6118 = vmatmul.f32.gmra.mxu0 %v6079
    %v6119 = vpop.f32.mrf.mxu0
    %v6120 = vadd.f32 %v6100, %v6119
    %6121 = vdwg.mxu0
    %6122 = vmatpush.msra.mxu0 %v1111
    %6123 = vmatpush.msra.mxu0 %v1103
    %6124 = vmatpush.msra.mxu0 %v1095
    %6125 = vmatpush.msra.mxu0 %v1087
    %6126 = vmatpush.msra.mxu0 %v1079
    %6127 = vmatpush.msra.mxu0 %v1071
    %6128 = vmatpush.msra.mxu0 %v1063
    %6129 = vmatpush.msra.mxu0 %v1055
    %6130 = vmatpush.msra.mxu0 %v1047
    %6131 = vmatpush.msra.mxu0 %v1039
    %6132 = vmatpush.msra.mxu0 %v1031
    %6133 = vmatpush.msra.mxu0 %v1023
    %6134 = vmatpush.msra.mxu0 %v1015
    %6135 = vmatpush.msra.mxu0 %v1007
    %6136 = vmatpush.msra.mxu0 %v999
    %6137 = vmatpush.msra.mxu0 %v991
    %6138 = vmatmul.f32.gmra.mxu0 %v6078
    %v6139 = vpop.f32.mrf.mxu0
    %v6140 = vadd.f32 0.0, %v6139
    %6141 = vdwg.mxu0
    %6142 = vmatpush.msra.mxu0 %v1239
    %6143 = vmatpush.msra.mxu0 %v1231
    %6144 = vmatpush.msra.mxu0 %v1223
    %6145 = vmatpush.msra.mxu0 %v1215
    %6146 = vmatpush.msra.mxu0 %v1207
    %6147 = vmatpush.msra.mxu0 %v1199
    %6148 = vmatpush.msra.mxu0 %v1191
    %6149 = vmatpush.msra.mxu0 %v1183
    %6150 = vmatpush.msra.mxu0 %v1175
    %6151 = vmatpush.msra.mxu0 %v1167
    %6152 = vmatpush.msra.mxu0 %v1159
    %6153 = vmatpush.msra.mxu0 %v1151
    %6154 = vmatpush.msra.mxu0 %v1143
    %6155 = vmatpush.msra.mxu0 %v1135
    %6156 = vmatpush.msra.mxu0 %v1127
    %6157 = vmatpush.msra.mxu0 %v1119
    %6158 = vmatmul.f32.gmra.mxu0 %v6079
    %v6159 = vpop.f32.mrf.mxu0
    %v6160 = vadd.f32 %v6140, %v6159
    %6161 = vdwg.mxu0
    %6162 = vmatpush.msra.mxu0 %v1112
    %6163 = vmatpush.msra.mxu0 %v1104
    %6164 = vmatpush.msra.mxu0 %v1096
    %6165 = vmatpush.msra.mxu0 %v1088
    %6166 = vmatpush.msra.mxu0 %v1080
    %6167 = vmatpush.msra.mxu0 %v1072
    %6168 = vmatpush.msra.mxu0 %v1064
    %6169 = vmatpush.msra.mxu0 %v1056
    %6170 = vmatpush.msra.mxu0 %v1048
    %6171 = vmatpush.msra.mxu0 %v1040
    %6172 = vmatpush.msra.mxu0 %v1032
    %6173 = vmatpush.msra.mxu0 %v1024
    %6174 = vmatpush.msra.mxu0 %v1016
    %6175 = vmatpush.msra.mxu0 %v1008
    %6176 = vmatpush.msra.mxu0 %v1000
    %6177 = vmatpush.msra.mxu0 %v992
    %6178 = vmatmul.f32.gmra.mxu0 %v6078
    %v6179 = vpop.f32.mrf.mxu0
    %v6180 = vadd.f32 0.0, %v6179
    %6181 = vdwg.mxu0
    %6182 = vmatpush.msra.mxu0 %v1240
    %6183 = vmatpush.msra.mxu0 %v1232
    %6184 = vmatpush.msra.mxu0 %v1224
    %6185 = vmatpush.msra.mxu0 %v1216
    %6186 = vmatpush.msra.mxu0 %v1208
    %6187 = vmatpush.msra.mxu0 %v1200
    %6188 = vmatpush.msra.mxu0 %v1192
    %6189 = vmatpush.msra.mxu0 %v1184
    %6190 = vmatpush.msra.mxu0 %v1176
    %6191 = vmatpush.msra.mxu0 %v1168
    %6192 = vmatpush.msra.mxu0 %v1160
    %6193 = vmatpush.msra.mxu0 %v1152
    %6194 = vmatpush.msra.mxu0 %v1144
    %6195 = vmatpush.msra.mxu0 %v1136
    %6196 = vmatpush.msra.mxu0 %v1128
    %6197 = vmatpush.msra.mxu0 %v1120
    %6198 = vmatmul.f32.gmra.mxu0 %v6079
    %v6199 = vpop.f32.mrf.mxu0
    %v6200 = vadd.f32 %v6180, %v6199
    %6201 = vdwg.mxu0
    %6202 = vmatpush.msra.mxu0 %v1113
    %6203 = vmatpush.msra.mxu0 %v1105
    %6204 = vmatpush.msra.mxu0 %v1097
    %6205 = vmatpush.msra.mxu0 %v1089
    %6206 = vmatpush.msra.mxu0 %v1081
    %6207 = vmatpush.msra.mxu0 %v1073
    %6208 = vmatpush.msra.mxu0 %v1065
    %6209 = vmatpush.msra.mxu0 %v1057
    %6210 = vmatpush.msra.mxu0 %v1049
    %6211 = vmatpush.msra.mxu0 %v1041
    %6212 = vmatpush.msra.mxu0 %v1033
    %6213 = vmatpush.msra.mxu0 %v1025
    %6214 = vmatpush.msra.mxu0 %v1017
    %6215 = vmatpush.msra.mxu0 %v1009
    %6216 = vmatpush.msra.mxu0 %v1001
    %6217 = vmatpush.msra.mxu0 %v993
    %6218 = vmatmul.f32.gmra.mxu0 %v6078
    %v6219 = vpop.f32.mrf.mxu0
    %v6220 = vadd.f32 0.0, %v6219
    %6221 = vdwg.mxu0
    %6222 = vmatpush.msra.mxu0 %v1241
    %6223 = vmatpush.msra.mxu0 %v1233
    %6224 = vmatpush.msra.mxu0 %v1225
    %6225 = vmatpush.msra.mxu0 %v1217
    %6226 = vmatpush.msra.mxu0 %v1209
    %6227 = vmatpush.msra.mxu0 %v1201
    %6228 = vmatpush.msra.mxu0 %v1193
    %6229 = vmatpush.msra.mxu0 %v1185
    %6230 = vmatpush.msra.mxu0 %v1177
    %6231 = vmatpush.msra.mxu0 %v1169
    %6232 = vmatpush.msra.mxu0 %v1161
    %6233 = vmatpush.msra.mxu0 %v1153
    %6234 = vmatpush.msra.mxu0 %v1145
    %6235 = vmatpush.msra.mxu0 %v1137
    %6236 = vmatpush.msra.mxu0 %v1129
    %6237 = vmatpush.msra.mxu0 %v1121
    %6238 = vmatmul.f32.gmra.mxu0 %v6079
    %v6239 = vpop.f32.mrf.mxu0
    %v6240 = vadd.f32 %v6220, %v6239
    %6241 = vdwg.mxu0
    %6242 = vmatpush.msra.mxu0 %v1114
    %6243 = vmatpush.msra.mxu0 %v1106
    %6244 = vmatpush.msra.mxu0 %v1098
    %6245 = vmatpush.msra.mxu0 %v1090
    %6246 = vmatpush.msra.mxu0 %v1082
    %6247 = vmatpush.msra.mxu0 %v1074
    %6248 = vmatpush.msra.mxu0 %v1066
    %6249 = vmatpush.msra.mxu0 %v1058
    %6250 = vmatpush.msra.mxu0 %v1050
    %6251 = vmatpush.msra.mxu0 %v1042
    %6252 = vmatpush.msra.mxu0 %v1034
    %6253 = vmatpush.msra.mxu0 %v1026
    %6254 = vmatpush.msra.mxu0 %v1018
    %6255 = vmatpush.msra.mxu0 %v1010
    %6256 = vmatpush.msra.mxu0 %v1002
    %6257 = vmatpush.msra.mxu0 %v994
    %6258 = vmatmul.f32.gmra.mxu0 %v6078
    %v6259 = vpop.f32.mrf.mxu0
    %v6260 = vadd.f32 0.0, %v6259
    %6261 = vdwg.mxu0
    %6262 = vmatpush.msra.mxu0 %v1242
    %6263 = vmatpush.msra.mxu0 %v1234
    %6264 = vmatpush.msra.mxu0 %v1226
    %6265 = vmatpush.msra.mxu0 %v1218
    %6266 = vmatpush.msra.mxu0 %v1210
    %6267 = vmatpush.msra.mxu0 %v1202
    %6268 = vmatpush.msra.mxu0 %v1194
    %6269 = vmatpush.msra.mxu0 %v1186
    %6270 = vmatpush.msra.mxu0 %v1178
    %6271 = vmatpush.msra.mxu0 %v1170
    %6272 = vmatpush.msra.mxu0 %v1162
    %6273 = vmatpush.msra.mxu0 %v1154
    %6274 = vmatpush.msra.mxu0 %v1146
    %6275 = vmatpush.msra.mxu0 %v1138
    %6276 = vmatpush.msra.mxu0 %v1130
    %6277 = vmatpush.msra.mxu0 %v1122
    %6278 = vmatmul.f32.gmra.mxu0 %v6079
    %v6279 = vpop.f32.mrf.mxu0
    %v6280 = vadd.f32 %v6260, %v6279
    %6281 = vdwg.mxu0
    %6282 = vmatpush.msra.mxu0 %v1115
    %6283 = vmatpush.msra.mxu0 %v1107
    %6284 = vmatpush.msra.mxu0 %v1099
    %6285 = vmatpush.msra.mxu0 %v1091
    %6286 = vmatpush.msra.mxu0 %v1083
    %6287 = vmatpush.msra.mxu0 %v1075
    %6288 = vmatpush.msra.mxu0 %v1067
    %6289 = vmatpush.msra.mxu0 %v1059
    %6290 = vmatpush.msra.mxu0 %v1051
    %6291 = vmatpush.msra.mxu0 %v1043
    %6292 = vmatpush.msra.mxu0 %v1035
    %6293 = vmatpush.msra.mxu0 %v1027
    %6294 = vmatpush.msra.mxu0 %v1019
    %6295 = vmatpush.msra.mxu0 %v1011
    %6296 = vmatpush.msra.mxu0 %v1003
    %6297 = vmatpush.msra.mxu0 %v995
    %6298 = vmatmul.f32.gmra.mxu0 %v6078
    %v6299 = vpop.f32.mrf.mxu0
    %v6300 = vadd.f32 0.0, %v6299
    %6301 = vdwg.mxu0
    %6302 = vmatpush.msra.mxu0 %v1243
    %6303 = vmatpush.msra.mxu0 %v1235
    %6304 = vmatpush.msra.mxu0 %v1227
    %6305 = vmatpush.msra.mxu0 %v1219
    %6306 = vmatpush.msra.mxu0 %v1211
    %6307 = vmatpush.msra.mxu0 %v1203
    %6308 = vmatpush.msra.mxu0 %v1195
    %6309 = vmatpush.msra.mxu0 %v1187
    %6310 = vmatpush.msra.mxu0 %v1179
    %6311 = vmatpush.msra.mxu0 %v1171
    %6312 = vmatpush.msra.mxu0 %v1163
    %6313 = vmatpush.msra.mxu0 %v1155
    %6314 = vmatpush.msra.mxu0 %v1147
    %6315 = vmatpush.msra.mxu0 %v1139
    %6316 = vmatpush.msra.mxu0 %v1131
    %6317 = vmatpush.msra.mxu0 %v1123
    %6318 = vmatmul.f32.gmra.mxu0 %v6079
    %v6319 = vpop.f32.mrf.mxu0
    %v6320 = vadd.f32 %v6300, %v6319
    %6321 = vdwg.mxu0
    %6322 = vmatpush.msra.mxu0 %v1116
    %6323 = vmatpush.msra.mxu0 %v1108
    %6324 = vmatpush.msra.mxu0 %v1100
    %6325 = vmatpush.msra.mxu0 %v1092
    %6326 = vmatpush.msra.mxu0 %v1084
    %6327 = vmatpush.msra.mxu0 %v1076
    %6328 = vmatpush.msra.mxu0 %v1068
    %6329 = vmatpush.msra.mxu0 %v1060
    %6330 = vmatpush.msra.mxu0 %v1052
    %6331 = vmatpush.msra.mxu0 %v1044
    %6332 = vmatpush.msra.mxu0 %v1036
    %6333 = vmatpush.msra.mxu0 %v1028
    %6334 = vmatpush.msra.mxu0 %v1020
    %6335 = vmatpush.msra.mxu0 %v1012
    %6336 = vmatpush.msra.mxu0 %v1004
    %6337 = vmatpush.msra.mxu0 %v996
    %6338 = vmatmul.f32.gmra.mxu0 %v6078
    %v6339 = vpop.f32.mrf.mxu0
    %v6340 = vadd.f32 0.0, %v6339
    %6341 = vdwg.mxu0
    %6342 = vmatpush.msra.mxu0 %v1244
    %6343 = vmatpush.msra.mxu0 %v1236
    %6344 = vmatpush.msra.mxu0 %v1228
    %6345 = vmatpush.msra.mxu0 %v1220
    %6346 = vmatpush.msra.mxu0 %v1212
    %6347 = vmatpush.msra.mxu0 %v1204
    %6348 = vmatpush.msra.mxu0 %v1196
    %6349 = vmatpush.msra.mxu0 %v1188
    %6350 = vmatpush.msra.mxu0 %v1180
    %6351 = vmatpush.msra.mxu0 %v1172
    %6352 = vmatpush.msra.mxu0 %v1164
    %6353 = vmatpush.msra.mxu0 %v1156
    %6354 = vmatpush.msra.mxu0 %v1148
    %6355 = vmatpush.msra.mxu0 %v1140
    %6356 = vmatpush.msra.mxu0 %v1132
    %6357 = vmatpush.msra.mxu0 %v1124
    %6358 = vmatmul.f32.gmra.mxu0 %v6079
    %v6359 = vpop.f32.mrf.mxu0
    %v6360 = vadd.f32 %v6340, %v6359
    %6361 = vdwg.mxu0
    %6362 = vmatpush.msra.mxu0 %v1117
    %6363 = vmatpush.msra.mxu0 %v1109
    %6364 = vmatpush.msra.mxu0 %v1101
    %6365 = vmatpush.msra.mxu0 %v1093
    %6366 = vmatpush.msra.mxu0 %v1085
    %6367 = vmatpush.msra.mxu0 %v1077
    %6368 = vmatpush.msra.mxu0 %v1069
    %6369 = vmatpush.msra.mxu0 %v1061
    %6370 = vmatpush.msra.mxu0 %v1053
    %6371 = vmatpush.msra.mxu0 %v1045
    %6372 = vmatpush.msra.mxu0 %v1037
    %6373 = vmatpush.msra.mxu0 %v1029
    %6374 = vmatpush.msra.mxu0 %v1021
    %6375 = vmatpush.msra.mxu0 %v1013
    %6376 = vmatpush.msra.mxu0 %v1005
    %6377 = vmatpush.msra.mxu0 %v997
    %6378 = vmatmul.f32.gmra.mxu0 %v6078
    %v6379 = vpop.f32.mrf.mxu0
    %v6380 = vadd.f32 0.0, %v6379
    %6381 = vdwg.mxu0
    %6382 = vmatpush.msra.mxu0 %v1245
    %6383 = vmatpush.msra.mxu0 %v1237
    %6384 = vmatpush.msra.mxu0 %v1229
    %6385 = vmatpush.msra.mxu0 %v1221
    %6386 = vmatpush.msra.mxu0 %v1213
    %6387 = vmatpush.msra.mxu0 %v1205
    %6388 = vmatpush.msra.mxu0 %v1197
    %6389 = vmatpush.msra.mxu0 %v1189
    %6390 = vmatpush.msra.mxu0 %v1181
    %6391 = vmatpush.msra.mxu0 %v1173
    %6392 = vmatpush.msra.mxu0 %v1165
    %6393 = vmatpush.msra.mxu0 %v1157
    %6394 = vmatpush.msra.mxu0 %v1149
    %6395 = vmatpush.msra.mxu0 %v1141
    %6396 = vmatpush.msra.mxu0 %v1133
    %6397 = vmatpush.msra.mxu0 %v1125
    %6398 = vmatmul.f32.gmra.mxu0 %v6079
    %v6399 = vpop.f32.mrf.mxu0
    %v6400 = vadd.f32 %v6380, %v6399
    %6401 = vdwg.mxu0
    %v6410 = vrot.slane %v6120, 6
    %v6411 = vrot.slane %v6160, 6
    %v6412 = vrot.slane %v6200, 6
    %v6413 = vrot.slane %v6240, 6
    %v6414 = vrot.slane %v6280, 6
    %v6415 = vrot.slane %v6320, 6
    %v6416 = vrot.slane %v6360, 6
    %v6417 = vrot.slane %v6400, 6
    %v6426 = vadd.f32 %v513, %v6410
    %v6427 = vadd.f32 %v544, %v6411
    %v6428 = vadd.f32 %v574, %v6412
    %v6429 = vadd.f32 %v603, %v6413
    %v6430 = vadd.f32 %v633, %v6414
    %v6431 = vadd.f32 %v664, %v6415
    %v6432 = vadd.f32 %v695, %v6416
    %v6433 = vadd.f32 %v726, %v6417
    %v6434 = vmul.f32 %v6426, 0.5
    %v6435 = vmul.f32 %v6427, 0.5
    %v6436 = vtanh.pop %v6434
    %v6437 = vtanh.pop %v6435
    %v6438 = vadd.f32 %v6436, 1.0
    %v6439 = vadd.f32 %v6437, 1.0
    %v6440 = vmul.f32 %v6438, 0.5
    %v6441 = vmul.f32 %v6439, 0.5
    %v6442 = vmul.f32 %v6428, 0.5
    %v6443 = vmul.f32 %v6429, 0.5
    %v6444 = vtanh.pop %v6442
    %v6445 = vtanh.pop %v6443
    %v6446 = vadd.f32 %v6444, 1.0
    %v6447 = vadd.f32 %v6445, 1.0
    %v6448 = vmul.f32 %v6446, 0.5
    %v6449 = vmul.f32 %v6447, 0.5
    %v6450 = vtanh.pop %v6430
    %v6451 = vtanh.pop %v6431
    %v6452 = vmul.f32 %v6432, 0.5
    %v6453 = vmul.f32 %v6433, 0.5
    %v6454 = vtanh.pop %v6452
    %v6455 = vtanh.pop %v6453
    %v6456 = vadd.f32 %v6454, 1.0
    %v6457 = vadd.f32 %v6455, 1.0
    %v6458 = vmul.f32 %v6456, 0.5
    %v6459 = vmul.f32 %v6457, 0.5
    %v6462 = vrot.slane %v6070, 2
    %v6463 = vrot.slane %v6071, 2
    %v6466 = vmul.f32 %v6448, %v6462
    %v6467 = vmul.f32 %v6449, %v6463
    %v6468 = vmul.f32 %v6440, %v6450
    %v6469 = vmul.f32 %v6441, %v6451
    %v6470 = vadd.f32 %v6466, %v6468
    %v6471 = vadd.f32 %v6467, %v6469
    %v6472 = vtanh.pop %v6470
    %v6473 = vtanh.pop %v6471
    %v6474 = vmul.f32 %v6458, %v6472
    %v6475 = vmul.f32 %v6459, %v6473
    %v6478 = vrot.slane %v6474, 2
    %v6479 = vrot.slane %v6475, 2
    %6482 = vmatpush.msra.mxu0 %v1110
    %6483 = vmatpush.msra.mxu0 %v1102
    %6484 = vmatpush.msra.mxu0 %v1094
    %6485 = vmatpush.msra.mxu0 %v1086
    %6486 = vmatpush.msra.mxu0 %v1078
    %6487 = vmatpush.msra.mxu0 %v1070
    %6488 = vmatpush.msra.mxu0 %v1062
    %6489 = vmatpush.msra.mxu0 %v1054
    %6490 = vmatpush.msra.mxu0 %v1046
    %6491 = vmatpush.msra.mxu0 %v1038
    %6492 = vmatpush.msra.mxu0 %v1030
    %6493 = vmatpush.msra.mxu0 %v1022
    %6494 = vmatpush.msra.mxu0 %v1014
    %6495 = vmatpush.msra.mxu0 %v1006
    %6496 = vmatpush.msra.mxu0 %v998
    %6497 = vmatpush.msra.mxu0 %v990
    %6498 = vmatmul.f32.gmra.mxu0 %v6478
    %v6499 = vpop.f32.mrf.mxu0
    %v6500 = vadd.f32 0.0, %v6499
    %6501 = vdwg.mxu0
    %6502 = vmatpush.msra.mxu0 %v1238
    %6503 = vmatpush.msra.mxu0 %v1230
    %6504 = vmatpush.msra.mxu0 %v1222
    %6505 = vmatpush.msra.mxu0 %v1214
    %6506 = vmatpush.msra.mxu0 %v1206
    %6507 = vmatpush.msra.mxu0 %v1198
    %6508 = vmatpush.msra.mxu0 %v1190
    %6509 = vmatpush.msra.mxu0 %v1182
    %6510 = vmatpush.msra.mxu0 %v1174
    %6511 = vmatpush.msra.mxu0 %v1166
    %6512 = vmatpush.msra.mxu0 %v1158
    %6513 = vmatpush.msra.mxu0 %v1150
    %6514 = vmatpush.msra.mxu0 %v1142
    %6515 = vmatpush.msra.mxu0 %v1134
    %6516 = vmatpush.msra.mxu0 %v1126
    %6517 = vmatpush.msra.mxu0 %v1118
    %6518 = vmatmul.f32.gmra.mxu0 %v6479
    %v6519 = vpop.f32.mrf.mxu0
    %v6520 = vadd.f32 %v6500, %v6519
    %6521 = vdwg.mxu0
    %6522 = vmatpush.msra.mxu0 %v1111
    %6523 = vmatpush.msra.mxu0 %v1103
    %6524 = vmatpush.msra.mxu0 %v1095
    %6525 = vmatpush.msra.mxu0 %v1087
    %6526 = vmatpush.msra.mxu0 %v1079
    %6527 = vmatpush.msra.mxu0 %v1071
    %6528 = vmatpush.msra.mxu0 %v1063
    %6529 = vmatpush.msra.mxu0 %v1055
    %6530 = vmatpush.msra.mxu0 %v1047
    %6531 = vmatpush.msra.mxu0 %v1039
    %6532 = vmatpush.msra.mxu0 %v1031
    %6533 = vmatpush.msra.mxu0 %v1023
    %6534 = vmatpush.msra.mxu0 %v1015
    %6535 = vmatpush.msra.mxu0 %v1007
    %6536 = vmatpush.msra.mxu0 %v999
    %6537 = vmatpush.msra.mxu0 %v991
    %6538 = vmatmul.f32.gmra.mxu0 %v6478
    %v6539 = vpop.f32.mrf.mxu0
    %v6540 = vadd.f32 0.0, %v6539
    %6541 = vdwg.mxu0
    %6542 = vmatpush.msra.mxu0 %v1239
    %6543 = vmatpush.msra.mxu0 %v1231
    %6544 = vmatpush.msra.mxu0 %v1223
    %6545 = vmatpush.msra.mxu0 %v1215
    %6546 = vmatpush.msra.mxu0 %v1207
    %6547 = vmatpush.msra.mxu0 %v1199
    %6548 = vmatpush.msra.mxu0 %v1191
    %6549 = vmatpush.msra.mxu0 %v1183
    %6550 = vmatpush.msra.mxu0 %v1175
    %6551 = vmatpush.msra.mxu0 %v1167
    %6552 = vmatpush.msra.mxu0 %v1159
    %6553 = vmatpush.msra.mxu0 %v1151
    %6554 = vmatpush.msra.mxu0 %v1143
    %6555 = vmatpush.msra.mxu0 %v1135
    %6556 = vmatpush.msra.mxu0 %v1127
    %6557 = vmatpush.msra.mxu0 %v1119
    %6558 = vmatmul.f32.gmra.mxu0 %v6479
    %v6559 = vpop.f32.mrf.mxu0
    %v6560 = vadd.f32 %v6540, %v6559
    %6561 = vdwg.mxu0
    %6562 = vmatpush.msra.mxu0 %v1112
    %6563 = vmatpush.msra.mxu0 %v1104
    %6564 = vmatpush.msra.mxu0 %v1096
    %6565 = vmatpush.msra.mxu0 %v1088
    %6566 = vmatpush.msra.mxu0 %v1080
    %6567 = vmatpush.msra.mxu0 %v1072
    %6568 = vmatpush.msra.mxu0 %v1064
    %6569 = vmatpush.msra.mxu0 %v1056
    %6570 = vmatpush.msra.mxu0 %v1048
    %6571 = vmatpush.msra.mxu0 %v1040
    %6572 = vmatpush.msra.mxu0 %v1032
    %6573 = vmatpush.msra.mxu0 %v1024
    %6574 = vmatpush.msra.mxu0 %v1016
    %6575 = vmatpush.msra.mxu0 %v1008
    %6576 = vmatpush.msra.mxu0 %v1000
    %6577 = vmatpush.msra.mxu0 %v992
    %6578 = vmatmul.f32.gmra.mxu0 %v6478
    %v6579 = vpop.f32.mrf.mxu0
    %v6580 = vadd.f32 0.0, %v6579
    %6581 = vdwg.mxu0
    %6582 = vmatpush.msra.mxu0 %v1240
    %6583 = vmatpush.msra.mxu0 %v1232
    %6584 = vmatpush.msra.mxu0 %v1224
    %6585 = vmatpush.msra.mxu0 %v1216
    %6586 = vmatpush.msra.mxu0 %v1208
    %6587 = vmatpush.msra.mxu0 %v1200
    %6588 = vmatpush.msra.mxu0 %v1192
    %6589 = vmatpush.msra.mxu0 %v1184
    %6590 = vmatpush.msra.mxu0 %v1176
    %6591 = vmatpush.msra.mxu0 %v1168
    %6592 = vmatpush.msra.mxu0 %v1160
    %6593 = vmatpush.msra.mxu0 %v1152
    %6594 = vmatpush.msra.mxu0 %v1144
    %6595 = vmatpush.msra.mxu0 %v1136
    %6596 = vmatpush.msra.mxu0 %v1128
    %6597 = vmatpush.msra.mxu0 %v1120
    %6598 = vmatmul.f32.gmra.mxu0 %v6479
    %v6599 = vpop.f32.mrf.mxu0
    %v6600 = vadd.f32 %v6580, %v6599
    %6601 = vdwg.mxu0
    %6602 = vmatpush.msra.mxu0 %v1113
    %6603 = vmatpush.msra.mxu0 %v1105
    %6604 = vmatpush.msra.mxu0 %v1097
    %6605 = vmatpush.msra.mxu0 %v1089
    %6606 = vmatpush.msra.mxu0 %v1081
    %6607 = vmatpush.msra.mxu0 %v1073
    %6608 = vmatpush.msra.mxu0 %v1065
    %6609 = vmatpush.msra.mxu0 %v1057
    %6610 = vmatpush.msra.mxu0 %v1049
    %6611 = vmatpush.msra.mxu0 %v1041
    %6612 = vmatpush.msra.mxu0 %v1033
    %6613 = vmatpush.msra.mxu0 %v1025
    %6614 = vmatpush.msra.mxu0 %v1017
    %6615 = vmatpush.msra.mxu0 %v1009
    %6616 = vmatpush.msra.mxu0 %v1001
    %6617 = vmatpush.msra.mxu0 %v993
    %6618 = vmatmul.f32.gmra.mxu0 %v6478
    %v6619 = vpop.f32.mrf.mxu0
    %v6620 = vadd.f32 0.0, %v6619
    %6621 = vdwg.mxu0
    %6622 = vmatpush.msra.mxu0 %v1241
    %6623 = vmatpush.msra.mxu0 %v1233
    %6624 = vmatpush.msra.mxu0 %v1225
    %6625 = vmatpush.msra.mxu0 %v1217
    %6626 = vmatpush.msra.mxu0 %v1209
    %6627 = vmatpush.msra.mxu0 %v1201
    %6628 = vmatpush.msra.mxu0 %v1193
    %6629 = vmatpush.msra.mxu0 %v1185
    %6630 = vmatpush.msra.mxu0 %v1177
    %6631 = vmatpush.msra.mxu0 %v1169
    %6632 = vmatpush.msra.mxu0 %v1161
    %6633 = vmatpush.msra.mxu0 %v1153
    %6634 = vmatpush.msra.mxu0 %v1145
    %6635 = vmatpush.msra.mxu0 %v1137
    %6636 = vmatpush.msra.mxu0 %v1129
    %6637 = vmatpush.msra.mxu0 %v1121
    %6638 = vmatmul.f32.gmra.mxu0 %v6479
    %v6639 = vpop.f32.mrf.mxu0
    %v6640 = vadd.f32 %v6620, %v6639
    %6641 = vdwg.mxu0
    %6642 = vmatpush.msra.mxu0 %v1114
    %6643 = vmatpush.msra.mxu0 %v1106
    %6644 = vmatpush.msra.mxu0 %v1098
    %6645 = vmatpush.msra.mxu0 %v1090
    %6646 = vmatpush.msra.mxu0 %v1082
    %6647 = vmatpush.msra.mxu0 %v1074
    %6648 = vmatpush.msra.mxu0 %v1066
    %6649 = vmatpush.msra.mxu0 %v1058
    %6650 = vmatpush.msra.mxu0 %v1050
    %6651 = vmatpush.msra.mxu0 %v1042
    %6652 = vmatpush.msra.mxu0 %v1034
    %6653 = vmatpush.msra.mxu0 %v1026
    %6654 = vmatpush.msra.mxu0 %v1018
    %6655 = vmatpush.msra.mxu0 %v1010
    %6656 = vmatpush.msra.mxu0 %v1002
    %6657 = vmatpush.msra.mxu0 %v994
    %6658 = vmatmul.f32.gmra.mxu0 %v6478
    %v6659 = vpop.f32.mrf.mxu0
    %v6660 = vadd.f32 0.0, %v6659
    %6661 = vdwg.mxu0
    %6662 = vmatpush.msra.mxu0 %v1242
    %6663 = vmatpush.msra.mxu0 %v1234
    %6664 = vmatpush.msra.mxu0 %v1226
    %6665 = vmatpush.msra.mxu0 %v1218
    %6666 = vmatpush.msra.mxu0 %v1210
    %6667 = vmatpush.msra.mxu0 %v1202
    %6668 = vmatpush.msra.mxu0 %v1194
    %6669 = vmatpush.msra.mxu0 %v1186
    %6670 = vmatpush.msra.mxu0 %v1178
    %6671 = vmatpush.msra.mxu0 %v1170
    %6672 = vmatpush.msra.mxu0 %v1162
    %6673 = vmatpush.msra.mxu0 %v1154
    %6674 = vmatpush.msra.mxu0 %v1146
    %6675 = vmatpush.msra.mxu0 %v1138
    %6676 = vmatpush.msra.mxu0 %v1130
    %6677 = vmatpush.msra.mxu0 %v1122
    %6678 = vmatmul.f32.gmra.mxu0 %v6479
    %v6679 = vpop.f32.mrf.mxu0
    %v6680 = vadd.f32 %v6660, %v6679
    %6681 = vdwg.mxu0
    %6682 = vmatpush.msra.mxu0 %v1115
    %6683 = vmatpush.msra.mxu0 %v1107
    %6684 = vmatpush.msra.mxu0 %v1099
    %6685 = vmatpush.msra.mxu0 %v1091
    %6686 = vmatpush.msra.mxu0 %v1083
    %6687 = vmatpush.msra.mxu0 %v1075
    %6688 = vmatpush.msra.mxu0 %v1067
    %6689 = vmatpush.msra.mxu0 %v1059
    %6690 = vmatpush.msra.mxu0 %v1051
    %6691 = vmatpush.msra.mxu0 %v1043
    %6692 = vmatpush.msra.mxu0 %v1035
    %6693 = vmatpush.msra.mxu0 %v1027
    %6694 = vmatpush.msra.mxu0 %v1019
    %6695 = vmatpush.msra.mxu0 %v1011
    %6696 = vmatpush.msra.mxu0 %v1003
    %6697 = vmatpush.msra.mxu0 %v995
    %6698 = vmatmul.f32.gmra.mxu0 %v6478
    %v6699 = vpop.f32.mrf.mxu0
    %v6700 = vadd.f32 0.0, %v6699
    %6701 = vdwg.mxu0
    %6702 = vmatpush.msra.mxu0 %v1243
    %6703 = vmatpush.msra.mxu0 %v1235
    %6704 = vmatpush.msra.mxu0 %v1227
    %6705 = vmatpush.msra.mxu0 %v1219
    %6706 = vmatpush.msra.mxu0 %v1211
    %6707 = vmatpush.msra.mxu0 %v1203
    %6708 = vmatpush.msra.mxu0 %v1195
    %6709 = vmatpush.msra.mxu0 %v1187
    %6710 = vmatpush.msra.mxu0 %v1179
    %6711 = vmatpush.msra.mxu0 %v1171
    %6712 = vmatpush.msra.mxu0 %v1163
    %6713 = vmatpush.msra.mxu0 %v1155
    %6714 = vmatpush.msra.mxu0 %v1147
    %6715 = vmatpush.msra.mxu0 %v1139
    %6716 = vmatpush.msra.mxu0 %v1131
    %6717 = vmatpush.msra.mxu0 %v1123
    %6718 = vmatmul.f32.gmra.mxu0 %v6479
    %v6719 = vpop.f32.mrf.mxu0
    %v6720 = vadd.f32 %v6700, %v6719
    %6721 = vdwg.mxu0
    %6722 = vmatpush.msra.mxu0 %v1116
    %6723 = vmatpush.msra.mxu0 %v1108
    %6724 = vmatpush.msra.mxu0 %v1100
    %6725 = vmatpush.msra.mxu0 %v1092
    %6726 = vmatpush.msra.mxu0 %v1084
    %6727 = vmatpush.msra.mxu0 %v1076
    %6728 = vmatpush.msra.mxu0 %v1068
    %6729 = vmatpush.msra.mxu0 %v1060
    %6730 = vmatpush.msra.mxu0 %v1052
    %6731 = vmatpush.msra.mxu0 %v1044
    %6732 = vmatpush.msra.mxu0 %v1036
    %6733 = vmatpush.msra.mxu0 %v1028
    %6734 = vmatpush.msra.mxu0 %v1020
    %6735 = vmatpush.msra.mxu0 %v1012
    %6736 = vmatpush.msra.mxu0 %v1004
    %6737 = vmatpush.msra.mxu0 %v996
    %6738 = vmatmul.f32.gmra.mxu0 %v6478
    %v6739 = vpop.f32.mrf.mxu0
    %v6740 = vadd.f32 0.0, %v6739
    %6741 = vdwg.mxu0
    %6742 = vmatpush.msra.mxu0 %v1244
    %6743 = vmatpush.msra.mxu0 %v1236
    %6744 = vmatpush.msra.mxu0 %v1228
    %6745 = vmatpush.msra.mxu0 %v1220
    %6746 = vmatpush.msra.mxu0 %v1212
    %6747 = vmatpush.msra.mxu0 %v1204
    %6748 = vmatpush.msra.mxu0 %v1196
    %6749 = vmatpush.msra.mxu0 %v1188
    %6750 = vmatpush.msra.mxu0 %v1180
    %6751 = vmatpush.msra.mxu0 %v1172
    %6752 = vmatpush.msra.mxu0 %v1164
    %6753 = vmatpush.msra.mxu0 %v1156
    %6754 = vmatpush.msra.mxu0 %v1148
    %6755 = vmatpush.msra.mxu0 %v1140
    %6756 = vmatpush.msra.mxu0 %v1132
    %6757 = vmatpush.msra.mxu0 %v1124
    %6758 = vmatmul.f32.gmra.mxu0 %v6479
    %v6759 = vpop.f32.mrf.mxu0
    %v6760 = vadd.f32 %v6740, %v6759
    %6761 = vdwg.mxu0
    %6762 = vmatpush.msra.mxu0 %v1117
    %6763 = vmatpush.msra.mxu0 %v1109
    %6764 = vmatpush.msra.mxu0 %v1101
    %6765 = vmatpush.msra.mxu0 %v1093
    %6766 = vmatpush.msra.mxu0 %v1085
    %6767 = vmatpush.msra.mxu0 %v1077
    %6768 = vmatpush.msra.mxu0 %v1069
    %6769 = vmatpush.msra.mxu0 %v1061
    %6770 = vmatpush.msra.mxu0 %v1053
    %6771 = vmatpush.msra.mxu0 %v1045
    %6772 = vmatpush.msra.mxu0 %v1037
    %6773 = vmatpush.msra.mxu0 %v1029
    %6774 = vmatpush.msra.mxu0 %v1021
    %6775 = vmatpush.msra.mxu0 %v1013
    %6776 = vmatpush.msra.mxu0 %v1005
    %6777 = vmatpush.msra.mxu0 %v997
    %6778 = vmatmul.f32.gmra.mxu0 %v6478
    %v6779 = vpop.f32.mrf.mxu0
    %v6780 = vadd.f32 0.0, %v6779
    %6781 = vdwg.mxu0
    %6782 = vmatpush.msra.mxu0 %v1245
    %6783 = vmatpush.msra.mxu0 %v1237
    %6784 = vmatpush.msra.mxu0 %v1229
    %6785 = vmatpush.msra.mxu0 %v1221
    %6786 = vmatpush.msra.mxu0 %v1213
    %6787 = vmatpush.msra.mxu0 %v1205
    %6788 = vmatpush.msra.mxu0 %v1197
    %6789 = vmatpush.msra.mxu0 %v1189
    %6790 = vmatpush.msra.mxu0 %v1181
    %6791 = vmatpush.msra.mxu0 %v1173
    %6792 = vmatpush.msra.mxu0 %v1165
    %6793 = vmatpush.msra.mxu0 %v1157
    %6794 = vmatpush.msra.mxu0 %v1149
    %6795 = vmatpush.msra.mxu0 %v1141
    %6796 = vmatpush.msra.mxu0 %v1133
    %6797 = vmatpush.msra.mxu0 %v1125
    %6798 = vmatmul.f32.gmra.mxu0 %v6479
    %v6799 = vpop.f32.mrf.mxu0
    %v6800 = vadd.f32 %v6780, %v6799
    %6801 = vdwg.mxu0
    %v6802 = vadd.f32 %v513, %v6520
    %v6803 = vadd.f32 %v544, %v6560
    %v6804 = vadd.f32 %v574, %v6600
    %v6805 = vadd.f32 %v603, %v6640
    %v6806 = vadd.f32 %v633, %v6680
    %v6807 = vadd.f32 %v664, %v6720
    %v6808 = vadd.f32 %v695, %v6760
    %v6809 = vadd.f32 %v726, %v6800
    %v6810 = vmul.f32 %v6802, 0.5
    %v6811 = vmul.f32 %v6803, 0.5
    %v6812 = vtanh.pop %v6810
    %v6813 = vtanh.pop %v6811
    %v6814 = vadd.f32 %v6812, 1.0
    %v6815 = vadd.f32 %v6813, 1.0
    %v6816 = vmul.f32 %v6814, 0.5
    %v6817 = vmul.f32 %v6815, 0.5
    %v6818 = vmul.f32 %v6804, 0.5
    %v6819 = vmul.f32 %v6805, 0.5
    %v6820 = vtanh.pop %v6818
    %v6821 = vtanh.pop %v6819
    %v6822 = vadd.f32 %v6820, 1.0
    %v6823 = vadd.f32 %v6821, 1.0
    %v6824 = vmul.f32 %v6822, 0.5
    %v6825 = vmul.f32 %v6823, 0.5
    %v6826 = vtanh.pop %v6806
    %v6827 = vtanh.pop %v6807
    %v6828 = vmul.f32 %v6808, 0.5
    %v6829 = vmul.f32 %v6809, 0.5
    %v6830 = vtanh.pop %v6828
    %v6831 = vtanh.pop %v6829
    %v6832 = vadd.f32 %v6830, 1.0
    %v6833 = vadd.f32 %v6831, 1.0
    %v6834 = vmul.f32 %v6832, 0.5
    %v6835 = vmul.f32 %v6833, 0.5
    %v6838 = vrot.slane %v6470, 2
    %v6839 = vrot.slane %v6471, 2
    %v6842 = vmul.f32 %v6824, %v6838
    %v6843 = vmul.f32 %v6825, %v6839
    %v6844 = vmul.f32 %v6816, %v6826
    %v6845 = vmul.f32 %v6817, %v6827
    %v6846 = vadd.f32 %v6842, %v6844
    %v6847 = vadd.f32 %v6843, %v6845
    %v6848 = vtanh.pop %v6846
    %v6849 = vtanh.pop %v6847
    %v6850 = vmul.f32 %v6834, %v6848
    %v6851 = vmul.f32 %v6835, %v6849
    %v6852 = vmul.f32 %v273, 0.5
    %v6853 = vmul.f32 %v304, 0.5
    %v6854 = vtanh.pop %v6852
    %v6855 = vtanh.pop %v6853
    %v6856 = vadd.f32 %v6854, 1.0
    %v6857 = vadd.f32 %v6855, 1.0
    %v6858 = vmul.f32 %v6856, 0.5
    %v6859 = vmul.f32 %v6857, 0.5
    %v6860 = vtanh.pop %v395
    %v6861 = vtanh.pop %v426
    %v6862 = vmul.f32 %v457, 0.5
    %v6863 = vmul.f32 %v488, 0.5
    %v6864 = vtanh.pop %v6862
    %v6865 = vtanh.pop %v6863
    %v6866 = vadd.f32 %v6864, 1.0
    %v6867 = vadd.f32 %v6865, 1.0
    %v6868 = vmul.f32 %v6866, 0.5
    %v6869 = vmul.f32 %v6867, 0.5
    %v6870 = vmul.f32 %v6858, %v6860
    %v6871 = vmul.f32 %v6859, %v6861
    %v6872 = vtanh.pop %v6870
    %v6873 = vtanh.pop %v6871
    %v6874 = vmul.f32 %v6868, %v6872
    %v6875 = vmul.f32 %v6869, %v6873
    %6876 = vmatpush.msra.mxu0 %v854
    %6877 = vmatpush.msra.mxu0 %v846
    %6878 = vmatpush.msra.mxu0 %v838
    %6879 = vmatpush.msra.mxu0 %v830
    %6880 = vmatpush.msra.mxu0 %v822
    %6881 = vmatpush.msra.mxu0 %v814
    %6882 = vmatpush.msra.mxu0 %v806
    %6883 = vmatpush.msra.mxu0 %v798
    %6884 = vmatpush.msra.mxu0 %v790
    %6885 = vmatpush.msra.mxu0 %v782
    %6886 = vmatpush.msra.mxu0 %v774
    %6887 = vmatpush.msra.mxu0 %v766
    %6888 = vmatpush.msra.mxu0 %v758
    %6889 = vmatpush.msra.mxu0 %v750
    %6890 = vmatpush.msra.mxu0 %v742
    %6891 = vmatpush.msra.mxu0 %v734
    %6892 = vmatmul.f32.gmra.mxu0 %v6874
    %v6893 = vpop.f32.mrf.mxu0
    %v6894 = vadd.f32 0.0, %v6893
    %6895 = vdwg.mxu0
    %6896 = vmatpush.msra.mxu0 %v982
    %6897 = vmatpush.msra.mxu0 %v974
    %6898 = vmatpush.msra.mxu0 %v966
    %6899 = vmatpush.msra.mxu0 %v958
    %6900 = vmatpush.msra.mxu0 %v950
    %6901 = vmatpush.msra.mxu0 %v942
    %6902 = vmatpush.msra.mxu0 %v934
    %6903 = vmatpush.msra.mxu0 %v926
    %6904 = vmatpush.msra.mxu0 %v918
    %6905 = vmatpush.msra.mxu0 %v910
    %6906 = vmatpush.msra.mxu0 %v902
    %6907 = vmatpush.msra.mxu0 %v894
    %6908 = vmatpush.msra.mxu0 %v886
    %6909 = vmatpush.msra.mxu0 %v878
    %6910 = vmatpush.msra.mxu0 %v870
    %6911 = vmatpush.msra.mxu0 %v862
    %6912 = vmatmul.f32.gmra.mxu0 %v6875
    %v6913 = vpop.f32.mrf.mxu0
    %v6914 = vadd.f32 %v6894, %v6913
    %6915 = vdwg.mxu0
    %6916 = vmatpush.msra.mxu0 %v855
    %6917 = vmatpush.msra.mxu0 %v847
    %6918 = vmatpush.msra.mxu0 %v839
    %6919 = vmatpush.msra.mxu0 %v831
    %6920 = vmatpush.msra.mxu0 %v823
    %6921 = vmatpush.msra.mxu0 %v815
    %6922 = vmatpush.msra.mxu0 %v807
    %6923 = vmatpush.msra.mxu0 %v799
    %6924 = vmatpush.msra.mxu0 %v791
    %6925 = vmatpush.msra.mxu0 %v783
    %6926 = vmatpush.msra.mxu0 %v775
    %6927 = vmatpush.msra.mxu0 %v767
    %6928 = vmatpush.msra.mxu0 %v759
    %6929 = vmatpush.msra.mxu0 %v751
    %6930 = vmatpush.msra.mxu0 %v743
    %6931 = vmatpush.msra.mxu0 %v735
    %6932 = vmatmul.f32.gmra.mxu0 %v6874
    %v6933 = vpop.f32.mrf.mxu0
    %v6934 = vadd.f32 0.0, %v6933
    %6935 = vdwg.mxu0
    %6936 = vmatpush.msra.mxu0 %v983
    %6937 = vmatpush.msra.mxu0 %v975
    %6938 = vmatpush.msra.mxu0 %v967
    %6939 = vmatpush.msra.mxu0 %v959
    %6940 = vmatpush.msra.mxu0 %v951
    %6941 = vmatpush.msra.mxu0 %v943
    %6942 = vmatpush.msra.mxu0 %v935
    %6943 = vmatpush.msra.mxu0 %v927
    %6944 = vmatpush.msra.mxu0 %v919
    %6945 = vmatpush.msra.mxu0 %v911
    %6946 = vmatpush.msra.mxu0 %v903
    %6947 = vmatpush.msra.mxu0 %v895
    %6948 = vmatpush.msra.mxu0 %v887
    %6949 = vmatpush.msra.mxu0 %v879
    %6950 = vmatpush.msra.mxu0 %v871
    %6951 = vmatpush.msra.mxu0 %v863
    %6952 = vmatmul.f32.gmra.mxu0 %v6875
    %v6953 = vpop.f32.mrf.mxu0
    %v6954 = vadd.f32 %v6934, %v6953
    %6955 = vdwg.mxu0
    %6956 = vmatpush.msra.mxu0 %v856
    %6957 = vmatpush.msra.mxu0 %v848
    %6958 = vmatpush.msra.mxu0 %v840
    %6959 = vmatpush.msra.mxu0 %v832
    %6960 = vmatpush.msra.mxu0 %v824
    %6961 = vmatpush.msra.mxu0 %v816
    %6962 = vmatpush.msra.mxu0 %v808
    %6963 = vmatpush.msra.mxu0 %v800
    %6964 = vmatpush.msra.mxu0 %v792
    %6965 = vmatpush.msra.mxu0 %v784
    %6966 = vmatpush.msra.mxu0 %v776
    %6967 = vmatpush.msra.mxu0 %v768
    %6968 = vmatpush.msra.mxu0 %v760
    %6969 = vmatpush.msra.mxu0 %v752
    %6970 = vmatpush.msra.mxu0 %v744
    %6971 = vmatpush.msra.mxu0 %v736
    %6972 = vmatmul.f32.gmra.mxu0 %v6874
    %v6973 = vpop.f32.mrf.mxu0
    %v6974 = vadd.f32 0.0, %v6973
    %6975 = vdwg.mxu0
    %6976 = vmatpush.msra.mxu0 %v984
    %6977 = vmatpush.msra.mxu0 %v976
    %6978 = vmatpush.msra.mxu0 %v968
    %6979 = vmatpush.msra.mxu0 %v960
    %6980 = vmatpush.msra.mxu0 %v952
    %6981 = vmatpush.msra.mxu0 %v944
    %6982 = vmatpush.msra.mxu0 %v936
    %6983 = vmatpush.msra.mxu0 %v928
    %6984 = vmatpush.msra.mxu0 %v920
    %6985 = vmatpush.msra.mxu0 %v912
    %6986 = vmatpush.msra.mxu0 %v904
    %6987 = vmatpush.msra.mxu0 %v896
    %6988 = vmatpush.msra.mxu0 %v888
    %6989 = vmatpush.msra.mxu0 %v880
    %6990 = vmatpush.msra.mxu0 %v872
    %6991 = vmatpush.msra.mxu0 %v864
    %6992 = vmatmul.f32.gmra.mxu0 %v6875
    %v6993 = vpop.f32.mrf.mxu0
    %v6994 = vadd.f32 %v6974, %v6993
    %6995 = vdwg.mxu0
    %6996 = vmatpush.msra.mxu0 %v857
    %6997 = vmatpush.msra.mxu0 %v849
    %6998 = vmatpush.msra.mxu0 %v841
    %6999 = vmatpush.msra.mxu0 %v833
    %7000 = vmatpush.msra.mxu0 %v825
    %7001 = vmatpush.msra.mxu0 %v817
    %7002 = vmatpush.msra.mxu0 %v809
    %7003 = vmatpush.msra.mxu0 %v801
    %7004 = vmatpush.msra.mxu0 %v793
    %7005 = vmatpush.msra.mxu0 %v785
    %7006 = vmatpush.msra.mxu0 %v777
    %7007 = vmatpush.msra.mxu0 %v769
    %7008 = vmatpush.msra.mxu0 %v761
    %7009 = vmatpush.msra.mxu0 %v753
    %7010 = vmatpush.msra.mxu0 %v745
    %7011 = vmatpush.msra.mxu0 %v737
    %7012 = vmatmul.f32.gmra.mxu0 %v6874
    %v7013 = vpop.f32.mrf.mxu0
    %v7014 = vadd.f32 0.0, %v7013
    %7015 = vdwg.mxu0
    %7016 = vmatpush.msra.mxu0 %v985
    %7017 = vmatpush.msra.mxu0 %v977
    %7018 = vmatpush.msra.mxu0 %v969
    %7019 = vmatpush.msra.mxu0 %v961
    %7020 = vmatpush.msra.mxu0 %v953
    %7021 = vmatpush.msra.mxu0 %v945
    %7022 = vmatpush.msra.mxu0 %v937
    %7023 = vmatpush.msra.mxu0 %v929
    %7024 = vmatpush.msra.mxu0 %v921
    %7025 = vmatpush.msra.mxu0 %v913
    %7026 = vmatpush.msra.mxu0 %v905
    %7027 = vmatpush.msra.mxu0 %v897
    %7028 = vmatpush.msra.mxu0 %v889
    %7029 = vmatpush.msra.mxu0 %v881
    %7030 = vmatpush.msra.mxu0 %v873
    %7031 = vmatpush.msra.mxu0 %v865
    %7032 = vmatmul.f32.gmra.mxu0 %v6875
    %v7033 = vpop.f32.mrf.mxu0
    %v7034 = vadd.f32 %v7014, %v7033
    %7035 = vdwg.mxu0
    %7036 = vmatpush.msra.mxu0 %v858
    %7037 = vmatpush.msra.mxu0 %v850
    %7038 = vmatpush.msra.mxu0 %v842
    %7039 = vmatpush.msra.mxu0 %v834
    %7040 = vmatpush.msra.mxu0 %v826
    %7041 = vmatpush.msra.mxu0 %v818
    %7042 = vmatpush.msra.mxu0 %v810
    %7043 = vmatpush.msra.mxu0 %v802
    %7044 = vmatpush.msra.mxu0 %v794
    %7045 = vmatpush.msra.mxu0 %v786
    %7046 = vmatpush.msra.mxu0 %v778
    %7047 = vmatpush.msra.mxu0 %v770
    %7048 = vmatpush.msra.mxu0 %v762
    %7049 = vmatpush.msra.mxu0 %v754
    %7050 = vmatpush.msra.mxu0 %v746
    %7051 = vmatpush.msra.mxu0 %v738
    %7052 = vmatmul.f32.gmra.mxu0 %v6874
    %v7053 = vpop.f32.mrf.mxu0
    %v7054 = vadd.f32 0.0, %v7053
    %7055 = vdwg.mxu0
    %7056 = vmatpush.msra.mxu0 %v986
    %7057 = vmatpush.msra.mxu0 %v978
    %7058 = vmatpush.msra.mxu0 %v970
    %7059 = vmatpush.msra.mxu0 %v962
    %7060 = vmatpush.msra.mxu0 %v954
    %7061 = vmatpush.msra.mxu0 %v946
    %7062 = vmatpush.msra.mxu0 %v938
    %7063 = vmatpush.msra.mxu0 %v930
    %7064 = vmatpush.msra.mxu0 %v922
    %7065 = vmatpush.msra.mxu0 %v914
    %7066 = vmatpush.msra.mxu0 %v906
    %7067 = vmatpush.msra.mxu0 %v898
    %7068 = vmatpush.msra.mxu0 %v890
    %7069 = vmatpush.msra.mxu0 %v882
    %7070 = vmatpush.msra.mxu0 %v874
    %7071 = vmatpush.msra.mxu0 %v866
    %7072 = vmatmul.f32.gmra.mxu0 %v6875
    %v7073 = vpop.f32.mrf.mxu0
    %v7074 = vadd.f32 %v7054, %v7073
    %7075 = vdwg.mxu0
    %7076 = vmatpush.msra.mxu0 %v859
    %7077 = vmatpush.msra.mxu0 %v851
    %7078 = vmatpush.msra.mxu0 %v843
    %7079 = vmatpush.msra.mxu0 %v835
    %7080 = vmatpush.msra.mxu0 %v827
    %7081 = vmatpush.msra.mxu0 %v819
    %7082 = vmatpush.msra.mxu0 %v811
    %7083 = vmatpush.msra.mxu0 %v803
    %7084 = vmatpush.msra.mxu0 %v795
    %7085 = vmatpush.msra.mxu0 %v787
    %7086 = vmatpush.msra.mxu0 %v779
    %7087 = vmatpush.msra.mxu0 %v771
    %7088 = vmatpush.msra.mxu0 %v763
    %7089 = vmatpush.msra.mxu0 %v755
    %7090 = vmatpush.msra.mxu0 %v747
    %7091 = vmatpush.msra.mxu0 %v739
    %7092 = vmatmul.f32.gmra.mxu0 %v6874
    %v7093 = vpop.f32.mrf.mxu0
    %v7094 = vadd.f32 0.0, %v7093
    %7095 = vdwg.mxu0
    %7096 = vmatpush.msra.mxu0 %v987
    %7097 = vmatpush.msra.mxu0 %v979
    %7098 = vmatpush.msra.mxu0 %v971
    %7099 = vmatpush.msra.mxu0 %v963
    %7100 = vmatpush.msra.mxu0 %v955
    %7101 = vmatpush.msra.mxu0 %v947
    %7102 = vmatpush.msra.mxu0 %v939
    %7103 = vmatpush.msra.mxu0 %v931
    %7104 = vmatpush.msra.mxu0 %v923
    %7105 = vmatpush.msra.mxu0 %v915
    %7106 = vmatpush.msra.mxu0 %v907
    %7107 = vmatpush.msra.mxu0 %v899
    %7108 = vmatpush.msra.mxu0 %v891
    %7109 = vmatpush.msra.mxu0 %v883
    %7110 = vmatpush.msra.mxu0 %v875
    %7111 = vmatpush.msra.mxu0 %v867
    %7112 = vmatmul.f32.gmra.mxu0 %v6875
    %v7113 = vpop.f32.mrf.mxu0
    %v7114 = vadd.f32 %v7094, %v7113
    %7115 = vdwg.mxu0
    %7116 = vmatpush.msra.mxu0 %v860
    %7117 = vmatpush.msra.mxu0 %v852
    %7118 = vmatpush.msra.mxu0 %v844
    %7119 = vmatpush.msra.mxu0 %v836
    %7120 = vmatpush.msra.mxu0 %v828
    %7121 = vmatpush.msra.mxu0 %v820
    %7122 = vmatpush.msra.mxu0 %v812
    %7123 = vmatpush.msra.mxu0 %v804
    %7124 = vmatpush.msra.mxu0 %v796
    %7125 = vmatpush.msra.mxu0 %v788
    %7126 = vmatpush.msra.mxu0 %v780
    %7127 = vmatpush.msra.mxu0 %v772
    %7128 = vmatpush.msra.mxu0 %v764
    %7129 = vmatpush.msra.mxu0 %v756
    %7130 = vmatpush.msra.mxu0 %v748
    %7131 = vmatpush.msra.mxu0 %v740
    %7132 = vmatmul.f32.gmra.mxu0 %v6874
    %v7133 = vpop.f32.mrf.mxu0
    %v7134 = vadd.f32 0.0, %v7133
    %7135 = vdwg.mxu0
    %7136 = vmatpush.msra.mxu0 %v988
    %7137 = vmatpush.msra.mxu0 %v980
    %7138 = vmatpush.msra.mxu0 %v972
    %7139 = vmatpush.msra.mxu0 %v964
    %7140 = vmatpush.msra.mxu0 %v956
    %7141 = vmatpush.msra.mxu0 %v948
    %7142 = vmatpush.msra.mxu0 %v940
    %7143 = vmatpush.msra.mxu0 %v932
    %7144 = vmatpush.msra.mxu0 %v924
    %7145 = vmatpush.msra.mxu0 %v916
    %7146 = vmatpush.msra.mxu0 %v908
    %7147 = vmatpush.msra.mxu0 %v900
    %7148 = vmatpush.msra.mxu0 %v892
    %7149 = vmatpush.msra.mxu0 %v884
    %7150 = vmatpush.msra.mxu0 %v876
    %7151 = vmatpush.msra.mxu0 %v868
    %7152 = vmatmul.f32.gmra.mxu0 %v6875
    %v7153 = vpop.f32.mrf.mxu0
    %v7154 = vadd.f32 %v7134, %v7153
    %7155 = vdwg.mxu0
    %7156 = vmatpush.msra.mxu0 %v861
    %7157 = vmatpush.msra.mxu0 %v853
    %7158 = vmatpush.msra.mxu0 %v845
    %7159 = vmatpush.msra.mxu0 %v837
    %7160 = vmatpush.msra.mxu0 %v829
    %7161 = vmatpush.msra.mxu0 %v821
    %7162 = vmatpush.msra.mxu0 %v813
    %7163 = vmatpush.msra.mxu0 %v805
    %7164 = vmatpush.msra.mxu0 %v797
    %7165 = vmatpush.msra.mxu0 %v789
    %7166 = vmatpush.msra.mxu0 %v781
    %7167 = vmatpush.msra.mxu0 %v773
    %7168 = vmatpush.msra.mxu0 %v765
    %7169 = vmatpush.msra.mxu0 %v757
    %7170 = vmatpush.msra.mxu0 %v749
    %7171 = vmatpush.msra.mxu0 %v741
    %7172 = vmatmul.f32.gmra.mxu0 %v6874
    %v7173 = vpop.f32.mrf.mxu0
    %v7174 = vadd.f32 0.0, %v7173
    %7175 = vdwg.mxu0
    %7176 = vmatpush.msra.mxu0 %v989
    %7177 = vmatpush.msra.mxu0 %v981
    %7178 = vmatpush.msra.mxu0 %v973
    %7179 = vmatpush.msra.mxu0 %v965
    %7180 = vmatpush.msra.mxu0 %v957
    %7181 = vmatpush.msra.mxu0 %v949
    %7182 = vmatpush.msra.mxu0 %v941
    %7183 = vmatpush.msra.mxu0 %v933
    %7184 = vmatpush.msra.mxu0 %v925
    %7185 = vmatpush.msra.mxu0 %v917
    %7186 = vmatpush.msra.mxu0 %v909
    %7187 = vmatpush.msra.mxu0 %v901
    %7188 = vmatpush.msra.mxu0 %v893
    %7189 = vmatpush.msra.mxu0 %v885
    %7190 = vmatpush.msra.mxu0 %v877
    %7191 = vmatpush.msra.mxu0 %v869
    %7192 = vmatmul.f32.gmra.mxu0 %v6875
    %v7193 = vpop.f32.mrf.mxu0
    %v7194 = vadd.f32 %v7174, %v7193
    %7195 = vdwg.mxu0
    %v7204 = vrot.slane %v6914, 6
    %v7205 = vrot.slane %v6954, 6
    %v7206 = vrot.slane %v6994, 6
    %v7207 = vrot.slane %v7034, 6
    %v7208 = vrot.slane %v7074, 6
    %v7209 = vrot.slane %v7114, 6
    %v7210 = vrot.slane %v7154, 6
    %v7211 = vrot.slane %v7194, 6
    %v7220 = vadd.f32 %v273, %v7204
    %v7221 = vadd.f32 %v304, %v7205
    %v7222 = vadd.f32 %v334, %v7206
    %v7223 = vadd.f32 %v364, %v7207
    %v7224 = vadd.f32 %v395, %v7208
    %v7225 = vadd.f32 %v426, %v7209
    %v7226 = vadd.f32 %v457, %v7210
    %v7227 = vadd.f32 %v488, %v7211
    %v7228 = vmul.f32 %v7220, 0.5
    %v7229 = vmul.f32 %v7221, 0.5
    %v7230 = vtanh.pop %v7228
    %v7231 = vtanh.pop %v7229
    %v7232 = vadd.f32 %v7230, 1.0
    %v7233 = vadd.f32 %v7231, 1.0
    %v7234 = vmul.f32 %v7232, 0.5
    %v7235 = vmul.f32 %v7233, 0.5
    %v7236 = vmul.f32 %v7222, 0.5
    %v7237 = vmul.f32 %v7223, 0.5
    %v7238 = vtanh.pop %v7236
    %v7239 = vtanh.pop %v7237
    %v7240 = vadd.f32 %v7238, 1.0
    %v7241 = vadd.f32 %v7239, 1.0
    %v7242 = vmul.f32 %v7240, 0.5
    %v7243 = vmul.f32 %v7241, 0.5
    %v7244 = vtanh.pop %v7224
    %v7245 = vtanh.pop %v7225
    %v7246 = vmul.f32 %v7226, 0.5
    %v7247 = vmul.f32 %v7227, 0.5
    %v7248 = vtanh.pop %v7246
    %v7249 = vtanh.pop %v7247
    %v7250 = vadd.f32 %v7248, 1.0
    %v7251 = vadd.f32 %v7249, 1.0
    %v7252 = vmul.f32 %v7250, 0.5
    %v7253 = vmul.f32 %v7251, 0.5
    %v7256 = vrot.slane %v6870, 6
    %v7257 = vrot.slane %v6871, 6
    %v7260 = vmul.f32 %v7242, %v7256
    %v7261 = vmul.f32 %v7243, %v7257
    %v7262 = vmul.f32 %v7234, %v7244
    %v7263 = vmul.f32 %v7235, %v7245
    %v7264 = vadd.f32 %v7260, %v7262
    %v7265 = vadd.f32 %v7261, %v7263
    %v7266 = vtanh.pop %v7264
    %v7267 = vtanh.pop %v7265
    %v7268 = vmul.f32 %v7252, %v7266
    %v7269 = vmul.f32 %v7253, %v7267
    %v7270 = vmul.f32 %v519, 0.5
    %v7271 = vmul.f32 %v550, 0.5
    %v7272 = vtanh.pop %v7270
    %v7273 = vtanh.pop %v7271
    %v7274 = vadd.f32 %v7272, 1.0
    %v7275 = vadd.f32 %v7273, 1.0
    %v7276 = vmul.f32 %v7274, 0.5
    %v7277 = vmul.f32 %v7275, 0.5
    %v7278 = vtanh.pop %v639
    %v7279 = vtanh.pop %v670
    %v7280 = vmul.f32 %v701, 0.5
    %v7281 = vmul.f32 %v732, 0.5
    %v7282 = vtanh.pop %v7280
    %v7283 = vtanh.pop %v7281
    %v7284 = vadd.f32 %v7282, 1.0
    %v7285 = vadd.f32 %v7283, 1.0
    %v7286 = vmul.f32 %v7284, 0.5
    %v7287 = vmul.f32 %v7285, 0.5
    %v7288 = vmul.f32 %v7276, %v7278
    %v7289 = vmul.f32 %v7277, %v7279
    %v7290 = vtanh.pop %v7288
    %v7291 = vtanh.pop %v7289
    %v7292 = vmul.f32 %v7286, %v7290
    %v7293 = vmul.f32 %v7287, %v7291
    %v7296 = vrot.slane %v4080, 2
    %v7297 = vrot.slane %v4081, 2
    %v7300 = vsub.f32 %v4032, %v7296
    %v7301 = vsub.f32 %v4033, %v7297
    %v7302 = vand.u32 2147483647, %v7300
    %v7303 = vand.u32 2147483647, %v7301
    %v7306 = vrot.slane %v6850, 2
    %v7307 = vrot.slane %v6851, 2
    %v7310 = vsub.f32 %v4056, %v7306
    %v7311 = vsub.f32 %v4057, %v7307
    %v7312 = vand.u32 2147483647, %v7310
    %v7313 = vand.u32 2147483647, %v7311
    %v7316 = vrot.slane %v4032, 4
    %v7317 = vrot.slane %v4033, 4
    %v7320 = vsub.f32 %v7268, %v7316
    %v7321 = vsub.f32 %v7269, %v7317
    %v7322 = vand.u32 2147483647, %v7320
    %v7323 = vand.u32 2147483647, %v7321
    %v7326 = vrot.slane %v4056, 4
    %v7327 = vrot.slane %v4057, 4
    %v7330 = vsub.f32 %v7292, %v7326
    %v7331 = vsub.f32 %v7293, %v7327
    %v7332 = vand.u32 2147483647, %v7330
    %v7333 = vand.u32 2147483647, %v7331
    %v7334 = vld [vmem:[#allocation10] sm:$0xff]
    %v7335 = vld [vmem:[#allocation10 + $0x8] sm:$0xff]
    %v7336 = vld [vmem:[#allocation10 + $0x10] sm:$0xff]
    %v7337 = vld [vmem:[#allocation10 + $0x18] sm:$0xff]
    %v7338 = vld [vmem:[#allocation10 + $0x20] sm:$0xff]
    %v7339 = vld [vmem:[#allocation10 + $0x28] sm:$0xff]
    %v7340 = vld [vmem:[#allocation10 + $0x30] sm:$0xff]
    %v7341 = vld [vmem:[#allocation10 + $0x38] sm:$0xff]
    %v7342 = vld [vmem:[#allocation10 + $0x40] sm:$0xff]
    %v7343 = vld [vmem:[#allocation10 + $0x48] sm:$0xff]
    %v7344 = vld [vmem:[#allocation10 + $0x50] sm:$0xff]
    %v7345 = vld [vmem:[#allocation10 + $0x58] sm:$0xff]
    %v7346 = vld [vmem:[#allocation10 + $0x60] sm:$0xff]
    %v7347 = vld [vmem:[#allocation10 + $0x68] sm:$0xff]
    %v7348 = vld [vmem:[#allocation10 + $0x70] sm:$0xff]
    %v7349 = vld [vmem:[#allocation10 + $0x78] sm:$0xff]
    %v7350 = vld [vmem:[#allocation10 + $0x80] sm:$0xff]
    %v7351 = vld [vmem:[#allocation10 + $0x88] sm:$0xff]
    %v7352 = vld [vmem:[#allocation10 + $0x90] sm:$0xff]
    %v7353 = vld [vmem:[#allocation10 + $0x98] sm:$0xff]
    %v7354 = vld [vmem:[#allocation10 + $0xa0] sm:$0xff]
    %v7355 = vld [vmem:[#allocation10 + $0xa8] sm:$0xff]
    %v7356 = vld [vmem:[#allocation10 + $0xb0] sm:$0xff]
    %v7357 = vld [vmem:[#allocation10 + $0xb8] sm:$0xff]
    %v7358 = vld [vmem:[#allocation10 + $0xc0] sm:$0xff]
    %v7359 = vld [vmem:[#allocation10 + $0xc8] sm:$0xff]
    %v7360 = vld [vmem:[#allocation10 + $0xd0] sm:$0xff]
    %v7361 = vld [vmem:[#allocation10 + $0xd8] sm:$0xff]
    %v7362 = vld [vmem:[#allocation10 + $0xe0] sm:$0xff]
    %v7363 = vld [vmem:[#allocation10 + $0xe8] sm:$0xff]
    %v7364 = vld [vmem:[#allocation10 + $0xf0] sm:$0xff]
    %v7365 = vld [vmem:[#allocation10 + $0xf8] sm:$0xff]
    %v7366 = vld [vmem:[#allocation10 + $0x100] sm:$0xff]
    %v7367 = vld [vmem:[#allocation10 + $0x108] sm:$0xff]
    %v7368 = vld [vmem:[#allocation10 + $0x110] sm:$0xff]
    %v7369 = vld [vmem:[#allocation10 + $0x118] sm:$0xff]
    %v7370 = vld [vmem:[#allocation10 + $0x120] sm:$0xff]
    %v7371 = vld [vmem:[#allocation10 + $0x128] sm:$0xff]
    %v7372 = vld [vmem:[#allocation10 + $0x130] sm:$0xff]
    %v7373 = vld [vmem:[#allocation10 + $0x138] sm:$0xff]
    %v7374 = vld [vmem:[#allocation10 + $0x140] sm:$0xff]
    %v7375 = vld [vmem:[#allocation10 + $0x148] sm:$0xff]
    %v7376 = vld [vmem:[#allocation10 + $0x150] sm:$0xff]
    %v7377 = vld [vmem:[#allocation10 + $0x158] sm:$0xff]
    %v7378 = vld [vmem:[#allocation10 + $0x160] sm:$0xff]
    %v7379 = vld [vmem:[#allocation10 + $0x168] sm:$0xff]
    %v7380 = vld [vmem:[#allocation10 + $0x170] sm:$0xff]
    %v7381 = vld [vmem:[#allocation10 + $0x178] sm:$0xff]
    %v7382 = vld [vmem:[#allocation10 + $0x180] sm:$0xff]
    %v7383 = vld [vmem:[#allocation10 + $0x188] sm:$0xff]
    %v7384 = vld [vmem:[#allocation10 + $0x190] sm:$0xff]
    %v7385 = vld [vmem:[#allocation10 + $0x198] sm:$0xff]
    %v7386 = vld [vmem:[#allocation10 + $0x1a0] sm:$0xff]
    %v7387 = vld [vmem:[#allocation10 + $0x1a8] sm:$0xff]
    %v7388 = vld [vmem:[#allocation10 + $0x1b0] sm:$0xff]
    %v7389 = vld [vmem:[#allocation10 + $0x1b8] sm:$0xff]
    %v7390 = vld [vmem:[#allocation10 + $0x1c0] sm:$0xff]
    %v7391 = vld [vmem:[#allocation10 + $0x1c8] sm:$0xff]
    %v7392 = vld [vmem:[#allocation10 + $0x1d0] sm:$0xff]
    %v7393 = vld [vmem:[#allocation10 + $0x1d8] sm:$0xff]
    %v7394 = vld [vmem:[#allocation10 + $0x1e0] sm:$0xff]
    %v7395 = vld [vmem:[#allocation10 + $0x1e8] sm:$0xff]
    %v7396 = vld [vmem:[#allocation10 + $0x1f0] sm:$0xff]
    %v7397 = vld [vmem:[#allocation10 + $0x1f8] sm:$0xff]
    %v7398 = vld [vmem:[#allocation10 + $0x200] sm:$0xff]
    %v7399 = vld [vmem:[#allocation10 + $0x208] sm:$0xff]
    %v7400 = vld [vmem:[#allocation10 + $0x210] sm:$0xff]
    %v7401 = vld [vmem:[#allocation10 + $0x218] sm:$0xff]
    %v7402 = vld [vmem:[#allocation10 + $0x220] sm:$0xff]
    %v7403 = vld [vmem:[#allocation10 + $0x228] sm:$0xff]
    %v7404 = vld [vmem:[#allocation10 + $0x230] sm:$0xff]
    %v7405 = vld [vmem:[#allocation10 + $0x238] sm:$0xff]
    %v7406 = vld [vmem:[#allocation10 + $0x240] sm:$0xff]
    %v7407 = vld [vmem:[#allocation10 + $0x248] sm:$0xff]
    %v7408 = vld [vmem:[#allocation10 + $0x250] sm:$0xff]
    %v7409 = vld [vmem:[#allocation10 + $0x258] sm:$0xff]
    %v7410 = vld [vmem:[#allocation10 + $0x260] sm:$0xff]
    %v7411 = vld [vmem:[#allocation10 + $0x268] sm:$0xff]
    %v7412 = vld [vmem:[#allocation10 + $0x270] sm:$0xff]
    %v7413 = vld [vmem:[#allocation10 + $0x278] sm:$0xff]
    %v7414 = vld [vmem:[#allocation10 + $0x280] sm:$0xff]
    %v7415 = vld [vmem:[#allocation10 + $0x288] sm:$0xff]
    %v7416 = vld [vmem:[#allocation10 + $0x290] sm:$0xff]
    %v7417 = vld [vmem:[#allocation10 + $0x298] sm:$0xff]
    %v7418 = vld [vmem:[#allocation10 + $0x2a0] sm:$0xff]
    %v7419 = vld [vmem:[#allocation10 + $0x2a8] sm:$0xff]
    %v7420 = vld [vmem:[#allocation10 + $0x2b0] sm:$0xff]
    %v7421 = vld [vmem:[#allocation10 + $0x2b8] sm:$0xff]
    %v7422 = vld [vmem:[#allocation10 + $0x2c0] sm:$0xff]
    %v7423 = vld [vmem:[#allocation10 + $0x2c8] sm:$0xff]
    %v7424 = vld [vmem:[#allocation10 + $0x2d0] sm:$0xff]
    %v7425 = vld [vmem:[#allocation10 + $0x2d8] sm:$0xff]
    %v7426 = vld [vmem:[#allocation10 + $0x2e0] sm:$0xff]
    %v7427 = vld [vmem:[#allocation10 + $0x2e8] sm:$0xff]
    %v7428 = vld [vmem:[#allocation10 + $0x2f0] sm:$0xff]
    %v7429 = vld [vmem:[#allocation10 + $0x2f8] sm:$0xff]
    %v7430 = vld [vmem:[#allocation10 + $0x300] sm:$0xff]
    %v7431 = vld [vmem:[#allocation10 + $0x308] sm:$0xff]
    %v7432 = vld [vmem:[#allocation10 + $0x310] sm:$0xff]
    %v7433 = vld [vmem:[#allocation10 + $0x318] sm:$0xff]
    %v7434 = vld [vmem:[#allocation10 + $0x320] sm:$0xff]
    %v7435 = vld [vmem:[#allocation10 + $0x328] sm:$0xff]
    %v7436 = vld [vmem:[#allocation10 + $0x330] sm:$0xff]
    %v7437 = vld [vmem:[#allocation10 + $0x338] sm:$0xff]
    %v7438 = vld [vmem:[#allocation10 + $0x340] sm:$0xff]
    %v7439 = vld [vmem:[#allocation10 + $0x348] sm:$0xff]
    %v7440 = vld [vmem:[#allocation10 + $0x350] sm:$0xff]
    %v7441 = vld [vmem:[#allocation10 + $0x358] sm:$0xff]
    %v7442 = vld [vmem:[#allocation10 + $0x360] sm:$0xff]
    %v7443 = vld [vmem:[#allocation10 + $0x368] sm:$0xff]
    %v7444 = vld [vmem:[#allocation10 + $0x370] sm:$0xff]
    %v7445 = vld [vmem:[#allocation10 + $0x378] sm:$0xff]
    %v7446 = vld [vmem:[#allocation10 + $0x380] sm:$0xff]
    %v7447 = vld [vmem:[#allocation10 + $0x388] sm:$0xff]
    %v7448 = vld [vmem:[#allocation10 + $0x390] sm:$0xff]
    %v7449 = vld [vmem:[#allocation10 + $0x398] sm:$0xff]
    %v7450 = vld [vmem:[#allocation10 + $0x3a0] sm:$0xff]
    %v7451 = vld [vmem:[#allocation10 + $0x3a8] sm:$0xff]
    %v7452 = vld [vmem:[#allocation10 + $0x3b0] sm:$0xff]
    %v7453 = vld [vmem:[#allocation10 + $0x3b8] sm:$0xff]
    %v7454 = vld [vmem:[#allocation10 + $0x3c0] sm:$0xff]
    %v7455 = vld [vmem:[#allocation10 + $0x3c8] sm:$0xff]
    %v7456 = vld [vmem:[#allocation10 + $0x3d0] sm:$0xff]
    %v7457 = vld [vmem:[#allocation10 + $0x3d8] sm:$0xff]
    %v7458 = vld [vmem:[#allocation10 + $0x3e0] sm:$0xff]
    %v7459 = vld [vmem:[#allocation10 + $0x3e8] sm:$0xff]
    %v7460 = vld [vmem:[#allocation10 + $0x3f0] sm:$0xff]
    %v7461 = vld [vmem:[#allocation10 + $0x3f8] sm:$0xff]
    %v7462 = vld [vmem:[#allocation10 + $0x400] sm:$0xff]
    %v7463 = vld [vmem:[#allocation10 + $0x408] sm:$0xff]
    %v7464 = vld [vmem:[#allocation10 + $0x410] sm:$0xff]
    %v7465 = vld [vmem:[#allocation10 + $0x418] sm:$0xff]
    %v7466 = vld [vmem:[#allocation10 + $0x420] sm:$0xff]
    %v7467 = vld [vmem:[#allocation10 + $0x428] sm:$0xff]
    %v7468 = vld [vmem:[#allocation10 + $0x430] sm:$0xff]
    %v7469 = vld [vmem:[#allocation10 + $0x438] sm:$0xff]
    %v7470 = vld [vmem:[#allocation10 + $0x440] sm:$0xff]
    %v7471 = vld [vmem:[#allocation10 + $0x448] sm:$0xff]
    %v7472 = vld [vmem:[#allocation10 + $0x450] sm:$0xff]
    %v7473 = vld [vmem:[#allocation10 + $0x458] sm:$0xff]
    %v7474 = vld [vmem:[#allocation10 + $0x460] sm:$0xff]
    %v7475 = vld [vmem:[#allocation10 + $0x468] sm:$0xff]
    %v7476 = vld [vmem:[#allocation10 + $0x470] sm:$0xff]
    %v7477 = vld [vmem:[#allocation10 + $0x478] sm:$0xff]
    %v7478 = vld [vmem:[#allocation10 + $0x480] sm:$0xff]
    %v7479 = vld [vmem:[#allocation10 + $0x488] sm:$0xff]
    %v7480 = vld [vmem:[#allocation10 + $0x490] sm:$0xff]
    %v7481 = vld [vmem:[#allocation10 + $0x498] sm:$0xff]
    %v7482 = vld [vmem:[#allocation10 + $0x4a0] sm:$0xff]
    %v7483 = vld [vmem:[#allocation10 + $0x4a8] sm:$0xff]
    %v7484 = vld [vmem:[#allocation10 + $0x4b0] sm:$0xff]
    %v7485 = vld [vmem:[#allocation10 + $0x4b8] sm:$0xff]
    %v7486 = vld [vmem:[#allocation10 + $0x4c0] sm:$0xff]
    %v7487 = vld [vmem:[#allocation10 + $0x4c8] sm:$0xff]
    %v7488 = vld [vmem:[#allocation10 + $0x4d0] sm:$0xff]
    %v7489 = vld [vmem:[#allocation10 + $0x4d8] sm:$0xff]
    %v7490 = vld [vmem:[#allocation10 + $0x4e0] sm:$0xff]
    %v7491 = vld [vmem:[#allocation10 + $0x4e8] sm:$0xff]
    %v7492 = vld [vmem:[#allocation10 + $0x4f0] sm:$0xff]
    %v7493 = vld [vmem:[#allocation10 + $0x4f8] sm:$0xff]
    %v7494 = vld [vmem:[#allocation10 + $0x500] sm:$0xff]
    %v7495 = vld [vmem:[#allocation10 + $0x508] sm:$0xff]
    %v7496 = vld [vmem:[#allocation10 + $0x510] sm:$0xff]
    %v7497 = vld [vmem:[#allocation10 + $0x518] sm:$0xff]
    %v7498 = vld [vmem:[#allocation10 + $0x520] sm:$0xff]
    %v7499 = vld [vmem:[#allocation10 + $0x528] sm:$0xff]
    %v7500 = vld [vmem:[#allocation10 + $0x530] sm:$0xff]
    %v7501 = vld [vmem:[#allocation10 + $0x538] sm:$0xff]
    %v7502 = vld [vmem:[#allocation10 + $0x540] sm:$0xff]
    %v7503 = vld [vmem:[#allocation10 + $0x548] sm:$0xff]
    %v7504 = vld [vmem:[#allocation10 + $0x550] sm:$0xff]
    %v7505 = vld [vmem:[#allocation10 + $0x558] sm:$0xff]
    %v7506 = vld [vmem:[#allocation10 + $0x560] sm:$0xff]
    %v7507 = vld [vmem:[#allocation10 + $0x568] sm:$0xff]
    %v7508 = vld [vmem:[#allocation10 + $0x570] sm:$0xff]
    %v7509 = vld [vmem:[#allocation10 + $0x578] sm:$0xff]
    %v7510 = vld [vmem:[#allocation10 + $0x580] sm:$0xff]
    %v7511 = vld [vmem:[#allocation10 + $0x588] sm:$0xff]
    %v7512 = vld [vmem:[#allocation10 + $0x590] sm:$0xff]
    %v7513 = vld [vmem:[#allocation10 + $0x598] sm:$0xff]
    %v7514 = vld [vmem:[#allocation10 + $0x5a0] sm:$0xff]
    %v7515 = vld [vmem:[#allocation10 + $0x5a8] sm:$0xff]
    %v7516 = vld [vmem:[#allocation10 + $0x5b0] sm:$0xff]
    %v7517 = vld [vmem:[#allocation10 + $0x5b8] sm:$0xff]
    %v7518 = vld [vmem:[#allocation10 + $0x5c0] sm:$0xff]
    %v7519 = vld [vmem:[#allocation10 + $0x5c8] sm:$0xff]
    %v7520 = vld [vmem:[#allocation10 + $0x5d0] sm:$0xff]
    %v7521 = vld [vmem:[#allocation10 + $0x5d8] sm:$0xff]
    %v7522 = vld [vmem:[#allocation10 + $0x5e0] sm:$0xff]
    %v7523 = vld [vmem:[#allocation10 + $0x5e8] sm:$0xff]
    %v7524 = vld [vmem:[#allocation10 + $0x5f0] sm:$0xff]
    %v7525 = vld [vmem:[#allocation10 + $0x5f8] sm:$0xff]
    %v7526 = vld [vmem:[#allocation10 + $0x600] sm:$0xff]
    %v7527 = vld [vmem:[#allocation10 + $0x608] sm:$0xff]
    %v7528 = vld [vmem:[#allocation10 + $0x610] sm:$0xff]
    %v7529 = vld [vmem:[#allocation10 + $0x618] sm:$0xff]
    %v7530 = vld [vmem:[#allocation10 + $0x620] sm:$0xff]
    %v7531 = vld [vmem:[#allocation10 + $0x628] sm:$0xff]
    %v7532 = vld [vmem:[#allocation10 + $0x630] sm:$0xff]
    %v7533 = vld [vmem:[#allocation10 + $0x638] sm:$0xff]
    %v7534 = vld [vmem:[#allocation10 + $0x640] sm:$0xff]
    %v7535 = vld [vmem:[#allocation10 + $0x648] sm:$0xff]
    %v7536 = vld [vmem:[#allocation10 + $0x650] sm:$0xff]
    %v7537 = vld [vmem:[#allocation10 + $0x658] sm:$0xff]
    %v7538 = vld [vmem:[#allocation10 + $0x660] sm:$0xff]
    %v7539 = vld [vmem:[#allocation10 + $0x668] sm:$0xff]
    %v7540 = vld [vmem:[#allocation10 + $0x670] sm:$0xff]
    %v7541 = vld [vmem:[#allocation10 + $0x678] sm:$0xff]
    %v7542 = vld [vmem:[#allocation10 + $0x680] sm:$0xff]
    %v7543 = vld [vmem:[#allocation10 + $0x688] sm:$0xff]
    %v7544 = vld [vmem:[#allocation10 + $0x690] sm:$0xff]
    %v7545 = vld [vmem:[#allocation10 + $0x698] sm:$0xff]
    %v7546 = vld [vmem:[#allocation10 + $0x6a0] sm:$0xff]
    %v7547 = vld [vmem:[#allocation10 + $0x6a8] sm:$0xff]
    %v7548 = vld [vmem:[#allocation10 + $0x6b0] sm:$0xff]
    %v7549 = vld [vmem:[#allocation10 + $0x6b8] sm:$0xff]
    %v7550 = vld [vmem:[#allocation10 + $0x6c0] sm:$0xff]
    %v7551 = vld [vmem:[#allocation10 + $0x6c8] sm:$0xff]
    %v7552 = vld [vmem:[#allocation10 + $0x6d0] sm:$0xff]
    %v7553 = vld [vmem:[#allocation10 + $0x6d8] sm:$0xff]
    %v7554 = vld [vmem:[#allocation10 + $0x6e0] sm:$0xff]
    %v7555 = vld [vmem:[#allocation10 + $0x6e8] sm:$0xff]
    %v7556 = vld [vmem:[#allocation10 + $0x6f0] sm:$0xff]
    %v7557 = vld [vmem:[#allocation10 + $0x6f8] sm:$0xff]
    %v7558 = vld [vmem:[#allocation10 + $0x700] sm:$0xff]
    %v7559 = vld [vmem:[#allocation10 + $0x708] sm:$0xff]
    %v7560 = vld [vmem:[#allocation10 + $0x710] sm:$0xff]
    %v7561 = vld [vmem:[#allocation10 + $0x718] sm:$0xff]
    %v7562 = vld [vmem:[#allocation10 + $0x720] sm:$0xff]
    %v7563 = vld [vmem:[#allocation10 + $0x728] sm:$0xff]
    %v7564 = vld [vmem:[#allocation10 + $0x730] sm:$0xff]
    %v7565 = vld [vmem:[#allocation10 + $0x738] sm:$0xff]
    %v7566 = vld [vmem:[#allocation10 + $0x740] sm:$0xff]
    %v7567 = vld [vmem:[#allocation10 + $0x748] sm:$0xff]
    %v7568 = vld [vmem:[#allocation10 + $0x750] sm:$0xff]
    %v7569 = vld [vmem:[#allocation10 + $0x758] sm:$0xff]
    %v7570 = vld [vmem:[#allocation10 + $0x760] sm:$0xff]
    %v7571 = vld [vmem:[#allocation10 + $0x768] sm:$0xff]
    %v7572 = vld [vmem:[#allocation10 + $0x770] sm:$0xff]
    %v7573 = vld [vmem:[#allocation10 + $0x778] sm:$0xff]
    %v7574 = vld [vmem:[#allocation10 + $0x780] sm:$0xff]
    %v7575 = vld [vmem:[#allocation10 + $0x788] sm:$0xff]
    %v7576 = vld [vmem:[#allocation10 + $0x790] sm:$0xff]
    %v7577 = vld [vmem:[#allocation10 + $0x798] sm:$0xff]
    %v7578 = vld [vmem:[#allocation10 + $0x7a0] sm:$0xff]
    %v7579 = vld [vmem:[#allocation10 + $0x7a8] sm:$0xff]
    %v7580 = vld [vmem:[#allocation10 + $0x7b0] sm:$0xff]
    %v7581 = vld [vmem:[#allocation10 + $0x7b8] sm:$0xff]
    %v7582 = vld [vmem:[#allocation10 + $0x7c0] sm:$0xff]
    %v7583 = vld [vmem:[#allocation10 + $0x7c8] sm:$0xff]
    %v7584 = vld [vmem:[#allocation10 + $0x7d0] sm:$0xff]
    %v7585 = vld [vmem:[#allocation10 + $0x7d8] sm:$0xff]
    %v7586 = vld [vmem:[#allocation10 + $0x7e0] sm:$0xff]
    %v7587 = vld [vmem:[#allocation10 + $0x7e8] sm:$0xff]
    %v7588 = vld [vmem:[#allocation10 + $0x7f0] sm:$0xff]
    %v7589 = vld [vmem:[#allocation10 + $0x7f8] sm:$0xff]
    %v7590 = vld [vmem:[#allocation10 + $0x800] sm:$0xff]
    %v7591 = vld [vmem:[#allocation10 + $0x808] sm:$0xff]
    %v7592 = vld [vmem:[#allocation10 + $0x810] sm:$0xff]
    %v7593 = vld [vmem:[#allocation10 + $0x818] sm:$0xff]
    %v7594 = vld [vmem:[#allocation10 + $0x820] sm:$0xff]
    %v7595 = vld [vmem:[#allocation10 + $0x828] sm:$0xff]
    %v7596 = vld [vmem:[#allocation10 + $0x830] sm:$0xff]
    %v7597 = vld [vmem:[#allocation10 + $0x838] sm:$0xff]
    %v7598 = vld [vmem:[#allocation10 + $0x840] sm:$0xff]
    %v7599 = vld [vmem:[#allocation10 + $0x848] sm:$0xff]
    %v7600 = vld [vmem:[#allocation10 + $0x850] sm:$0xff]
    %v7601 = vld [vmem:[#allocation10 + $0x858] sm:$0xff]
    %v7602 = vld [vmem:[#allocation10 + $0x860] sm:$0xff]
    %v7603 = vld [vmem:[#allocation10 + $0x868] sm:$0xff]
    %v7604 = vld [vmem:[#allocation10 + $0x870] sm:$0xff]
    %v7605 = vld [vmem:[#allocation10 + $0x878] sm:$0xff]
    %v7606 = vld [vmem:[#allocation10 + $0x880] sm:$0xff]
    %v7607 = vld [vmem:[#allocation10 + $0x888] sm:$0xff]
    %v7608 = vld [vmem:[#allocation10 + $0x890] sm:$0xff]
    %v7609 = vld [vmem:[#allocation10 + $0x898] sm:$0xff]
    %v7610 = vld [vmem:[#allocation10 + $0x8a0] sm:$0xff]
    %v7611 = vld [vmem:[#allocation10 + $0x8a8] sm:$0xff]
    %v7612 = vld [vmem:[#allocation10 + $0x8b0] sm:$0xff]
    %v7613 = vld [vmem:[#allocation10 + $0x8b8] sm:$0xff]
    %v7614 = vld [vmem:[#allocation10 + $0x8c0] sm:$0xff]
    %v7615 = vld [vmem:[#allocation10 + $0x8c8] sm:$0xff]
    %v7616 = vld [vmem:[#allocation10 + $0x8d0] sm:$0xff]
    %v7617 = vld [vmem:[#allocation10 + $0x8d8] sm:$0xff]
    %v7618 = vld [vmem:[#allocation10 + $0x8e0] sm:$0xff]
    %v7619 = vld [vmem:[#allocation10 + $0x8e8] sm:$0xff]
    %v7620 = vld [vmem:[#allocation10 + $0x8f0] sm:$0xff]
    %v7621 = vld [vmem:[#allocation10 + $0x8f8] sm:$0xff]
    %v7622 = vld [vmem:[#allocation10 + $0x900] sm:$0xff]
    %v7623 = vld [vmem:[#allocation10 + $0x908] sm:$0xff]
    %v7624 = vld [vmem:[#allocation10 + $0x910] sm:$0xff]
    %v7625 = vld [vmem:[#allocation10 + $0x918] sm:$0xff]
    %v7626 = vld [vmem:[#allocation10 + $0x920] sm:$0xff]
    %v7627 = vld [vmem:[#allocation10 + $0x928] sm:$0xff]
    %v7628 = vld [vmem:[#allocation10 + $0x930] sm:$0xff]
    %v7629 = vld [vmem:[#allocation10 + $0x938] sm:$0xff]
    %v7630 = vld [vmem:[#allocation10 + $0x940] sm:$0xff]
    %v7631 = vld [vmem:[#allocation10 + $0x948] sm:$0xff]
    %v7632 = vld [vmem:[#allocation10 + $0x950] sm:$0xff]
    %v7633 = vld [vmem:[#allocation10 + $0x958] sm:$0xff]
    %v7634 = vld [vmem:[#allocation10 + $0x960] sm:$0xff]
    %v7635 = vld [vmem:[#allocation10 + $0x968] sm:$0xff]
    %v7636 = vld [vmem:[#allocation10 + $0x970] sm:$0xff]
    %v7637 = vld [vmem:[#allocation10 + $0x978] sm:$0xff]
    %v7638 = vld [vmem:[#allocation10 + $0x980] sm:$0xff]
    %v7639 = vld [vmem:[#allocation10 + $0x988] sm:$0xff]
    %v7640 = vld [vmem:[#allocation10 + $0x990] sm:$0xff]
    %v7641 = vld [vmem:[#allocation10 + $0x998] sm:$0xff]
    %v7642 = vld [vmem:[#allocation10 + $0x9a0] sm:$0xff]
    %v7643 = vld [vmem:[#allocation10 + $0x9a8] sm:$0xff]
    %v7644 = vld [vmem:[#allocation10 + $0x9b0] sm:$0xff]
    %v7645 = vld [vmem:[#allocation10 + $0x9b8] sm:$0xff]
    %v7646 = vld [vmem:[#allocation10 + $0x9c0] sm:$0xff]
    %v7647 = vld [vmem:[#allocation10 + $0x9c8] sm:$0xff]
    %v7648 = vld [vmem:[#allocation10 + $0x9d0] sm:$0xff]
    %v7649 = vld [vmem:[#allocation10 + $0x9d8] sm:$0xff]
    %v7650 = vld [vmem:[#allocation10 + $0x9e0] sm:$0xff]
    %v7651 = vld [vmem:[#allocation10 + $0x9e8] sm:$0xff]
    %v7652 = vld [vmem:[#allocation10 + $0x9f0] sm:$0xff]
    %v7653 = vld [vmem:[#allocation10 + $0x9f8] sm:$0xff]
    %v7654 = vld [vmem:[#allocation10 + $0xa00] sm:$0xff]
    %v7655 = vld [vmem:[#allocation10 + $0xa08] sm:$0xff]
    %v7656 = vld [vmem:[#allocation10 + $0xa10] sm:$0xff]
    %v7657 = vld [vmem:[#allocation10 + $0xa18] sm:$0xff]
    %v7658 = vld [vmem:[#allocation10 + $0xa20] sm:$0xff]
    %v7659 = vld [vmem:[#allocation10 + $0xa28] sm:$0xff]
    %v7660 = vld [vmem:[#allocation10 + $0xa30] sm:$0xff]
    %v7661 = vld [vmem:[#allocation10 + $0xa38] sm:$0xff]
    %v7662 = vld [vmem:[#allocation10 + $0xa40] sm:$0xff]
    %v7663 = vld [vmem:[#allocation10 + $0xa48] sm:$0xff]
    %v7664 = vld [vmem:[#allocation10 + $0xa50] sm:$0xff]
    %v7665 = vld [vmem:[#allocation10 + $0xa58] sm:$0xff]
    %v7666 = vld [vmem:[#allocation10 + $0xa60] sm:$0xff]
    %v7667 = vld [vmem:[#allocation10 + $0xa68] sm:$0xff]
    %v7668 = vld [vmem:[#allocation10 + $0xa70] sm:$0xff]
    %v7669 = vld [vmem:[#allocation10 + $0xa78] sm:$0xff]
    %v7670 = vld [vmem:[#allocation10 + $0xa80] sm:$0xff]
    %v7671 = vld [vmem:[#allocation10 + $0xa88] sm:$0xff]
    %v7672 = vld [vmem:[#allocation10 + $0xa90] sm:$0xff]
    %v7673 = vld [vmem:[#allocation10 + $0xa98] sm:$0xff]
    %v7674 = vld [vmem:[#allocation10 + $0xaa0] sm:$0xff]
    %v7675 = vld [vmem:[#allocation10 + $0xaa8] sm:$0xff]
    %v7676 = vld [vmem:[#allocation10 + $0xab0] sm:$0xff]
    %v7677 = vld [vmem:[#allocation10 + $0xab8] sm:$0xff]
    %v7678 = vld [vmem:[#allocation10 + $0xac0] sm:$0xff]
    %v7679 = vld [vmem:[#allocation10 + $0xac8] sm:$0xff]
    %v7680 = vld [vmem:[#allocation10 + $0xad0] sm:$0xff]
    %v7681 = vld [vmem:[#allocation10 + $0xad8] sm:$0xff]
    %v7682 = vld [vmem:[#allocation10 + $0xae0] sm:$0xff]
    %v7683 = vld [vmem:[#allocation10 + $0xae8] sm:$0xff]
    %v7684 = vld [vmem:[#allocation10 + $0xaf0] sm:$0xff]
    %v7685 = vld [vmem:[#allocation10 + $0xaf8] sm:$0xff]
    %v7686 = vld [vmem:[#allocation10 + $0xb00] sm:$0xff]
    %v7687 = vld [vmem:[#allocation10 + $0xb08] sm:$0xff]
    %v7688 = vld [vmem:[#allocation10 + $0xb10] sm:$0xff]
    %v7689 = vld [vmem:[#allocation10 + $0xb18] sm:$0xff]
    %v7690 = vld [vmem:[#allocation10 + $0xb20] sm:$0xff]
    %v7691 = vld [vmem:[#allocation10 + $0xb28] sm:$0xff]
    %v7692 = vld [vmem:[#allocation10 + $0xb30] sm:$0xff]
    %v7693 = vld [vmem:[#allocation10 + $0xb38] sm:$0xff]
    %v7694 = vld [vmem:[#allocation10 + $0xb40] sm:$0xff]
    %v7695 = vld [vmem:[#allocation10 + $0xb48] sm:$0xff]
    %v7696 = vld [vmem:[#allocation10 + $0xb50] sm:$0xff]
    %v7697 = vld [vmem:[#allocation10 + $0xb58] sm:$0xff]
    %v7698 = vld [vmem:[#allocation10 + $0xb60] sm:$0xff]
    %v7699 = vld [vmem:[#allocation10 + $0xb68] sm:$0xff]
    %v7700 = vld [vmem:[#allocation10 + $0xb70] sm:$0xff]
    %v7701 = vld [vmem:[#allocation10 + $0xb78] sm:$0xff]
    %v7702 = vld [vmem:[#allocation10 + $0xb80] sm:$0xff]
    %v7703 = vld [vmem:[#allocation10 + $0xb88] sm:$0xff]
    %v7704 = vld [vmem:[#allocation10 + $0xb90] sm:$0xff]
    %v7705 = vld [vmem:[#allocation10 + $0xb98] sm:$0xff]
    %v7706 = vld [vmem:[#allocation10 + $0xba0] sm:$0xff]
    %v7707 = vld [vmem:[#allocation10 + $0xba8] sm:$0xff]
    %v7708 = vld [vmem:[#allocation10 + $0xbb0] sm:$0xff]
    %v7709 = vld [vmem:[#allocation10 + $0xbb8] sm:$0xff]
    %v7710 = vld [vmem:[#allocation10 + $0xbc0] sm:$0xff]
    %v7711 = vld [vmem:[#allocation10 + $0xbc8] sm:$0xff]
    %v7712 = vld [vmem:[#allocation10 + $0xbd0] sm:$0xff]
    %v7713 = vld [vmem:[#allocation10 + $0xbd8] sm:$0xff]
    %v7714 = vld [vmem:[#allocation10 + $0xbe0] sm:$0xff]
    %v7715 = vld [vmem:[#allocation10 + $0xbe8] sm:$0xff]
    %v7716 = vld [vmem:[#allocation10 + $0xbf0] sm:$0xff]
    %v7717 = vld [vmem:[#allocation10 + $0xbf8] sm:$0xff]
    %v7718 = vld [vmem:[#allocation10 + $0xc00] sm:$0xff]
    %v7719 = vld [vmem:[#allocation10 + $0xc08] sm:$0xff]
    %v7720 = vld [vmem:[#allocation10 + $0xc10] sm:$0xff]
    %v7721 = vld [vmem:[#allocation10 + $0xc18] sm:$0xff]
    %v7722 = vld [vmem:[#allocation10 + $0xc20] sm:$0xff]
    %v7723 = vld [vmem:[#allocation10 + $0xc28] sm:$0xff]
    %v7724 = vld [vmem:[#allocation10 + $0xc30] sm:$0xff]
    %v7725 = vld [vmem:[#allocation10 + $0xc38] sm:$0xff]
    %v7726 = vld [vmem:[#allocation10 + $0xc40] sm:$0xff]
    %v7727 = vld [vmem:[#allocation10 + $0xc48] sm:$0xff]
    %v7728 = vld [vmem:[#allocation10 + $0xc50] sm:$0xff]
    %v7729 = vld [vmem:[#allocation10 + $0xc58] sm:$0xff]
    %v7730 = vld [vmem:[#allocation10 + $0xc60] sm:$0xff]
    %v7731 = vld [vmem:[#allocation10 + $0xc68] sm:$0xff]
    %v7732 = vld [vmem:[#allocation10 + $0xc70] sm:$0xff]
    %v7733 = vld [vmem:[#allocation10 + $0xc78] sm:$0xff]
    %v7734 = vld [vmem:[#allocation10 + $0xc80] sm:$0xff]
    %v7735 = vld [vmem:[#allocation10 + $0xc88] sm:$0xff]
    %v7736 = vld [vmem:[#allocation10 + $0xc90] sm:$0xff]
    %v7737 = vld [vmem:[#allocation10 + $0xc98] sm:$0xff]
    %v7738 = vld [vmem:[#allocation10 + $0xca0] sm:$0xff]
    %v7739 = vld [vmem:[#allocation10 + $0xca8] sm:$0xff]
    %v7740 = vld [vmem:[#allocation10 + $0xcb0] sm:$0xff]
    %v7741 = vld [vmem:[#allocation10 + $0xcb8] sm:$0xff]
    %v7742 = vld [vmem:[#allocation10 + $0xcc0] sm:$0xff]
    %v7743 = vld [vmem:[#allocation10 + $0xcc8] sm:$0xff]
    %v7744 = vld [vmem:[#allocation10 + $0xcd0] sm:$0xff]
    %v7745 = vld [vmem:[#allocation10 + $0xcd8] sm:$0xff]
    %v7746 = vld [vmem:[#allocation10 + $0xce0] sm:$0xff]
    %v7747 = vld [vmem:[#allocation10 + $0xce8] sm:$0xff]
    %v7748 = vld [vmem:[#allocation10 + $0xcf0] sm:$0xff]
    %v7749 = vld [vmem:[#allocation10 + $0xcf8] sm:$0xff]
    %v7750 = vld [vmem:[#allocation10 + $0xd00] sm:$0xff]
    %v7751 = vld [vmem:[#allocation10 + $0xd08] sm:$0xff]
    %v7752 = vld [vmem:[#allocation10 + $0xd10] sm:$0xff]
    %v7753 = vld [vmem:[#allocation10 + $0xd18] sm:$0xff]
    %v7754 = vld [vmem:[#allocation10 + $0xd20] sm:$0xff]
    %v7755 = vld [vmem:[#allocation10 + $0xd28] sm:$0xff]
    %v7756 = vld [vmem:[#allocation10 + $0xd30] sm:$0xff]
    %v7757 = vld [vmem:[#allocation10 + $0xd38] sm:$0xff]
    %v7758 = vld [vmem:[#allocation10 + $0xd40] sm:$0xff]
    %v7759 = vld [vmem:[#allocation10 + $0xd48] sm:$0xff]
    %v7760 = vld [vmem:[#allocation10 + $0xd50] sm:$0xff]
    %v7761 = vld [vmem:[#allocation10 + $0xd58] sm:$0xff]
    %v7762 = vld [vmem:[#allocation10 + $0xd60] sm:$0xff]
    %v7763 = vld [vmem:[#allocation10 + $0xd68] sm:$0xff]
    %v7764 = vld [vmem:[#allocation10 + $0xd70] sm:$0xff]
    %v7765 = vld [vmem:[#allocation10 + $0xd78] sm:$0xff]
    %v7766 = vld [vmem:[#allocation10 + $0xd80] sm:$0xff]
    %v7767 = vld [vmem:[#allocation10 + $0xd88] sm:$0xff]
    %v7768 = vld [vmem:[#allocation10 + $0xd90] sm:$0xff]
    %v7769 = vld [vmem:[#allocation10 + $0xd98] sm:$0xff]
    %v7770 = vld [vmem:[#allocation10 + $0xda0] sm:$0xff]
    %v7771 = vld [vmem:[#allocation10 + $0xda8] sm:$0xff]
    %v7772 = vld [vmem:[#allocation10 + $0xdb0] sm:$0xff]
    %v7773 = vld [vmem:[#allocation10 + $0xdb8] sm:$0xff]
    %v7774 = vld [vmem:[#allocation10 + $0xdc0] sm:$0xff]
    %v7775 = vld [vmem:[#allocation10 + $0xdc8] sm:$0xff]
    %v7776 = vld [vmem:[#allocation10 + $0xdd0] sm:$0xff]
    %v7777 = vld [vmem:[#allocation10 + $0xdd8] sm:$0xff]
    %v7778 = vld [vmem:[#allocation10 + $0xde0] sm:$0xff]
    %v7779 = vld [vmem:[#allocation10 + $0xde8] sm:$0xff]
    %v7780 = vld [vmem:[#allocation10 + $0xdf0] sm:$0xff]
    %v7781 = vld [vmem:[#allocation10 + $0xdf8] sm:$0xff]
    %v7782 = vld [vmem:[#allocation10 + $0xe00] sm:$0xff]
    %v7783 = vld [vmem:[#allocation10 + $0xe08] sm:$0xff]
    %v7784 = vld [vmem:[#allocation10 + $0xe10] sm:$0xff]
    %v7785 = vld [vmem:[#allocation10 + $0xe18] sm:$0xff]
    %v7786 = vld [vmem:[#allocation10 + $0xe20] sm:$0xff]
    %v7787 = vld [vmem:[#allocation10 + $0xe28] sm:$0xff]
    %v7788 = vld [vmem:[#allocation10 + $0xe30] sm:$0xff]
    %v7789 = vld [vmem:[#allocation10 + $0xe38] sm:$0xff]
    %v7790 = vld [vmem:[#allocation10 + $0xe40] sm:$0xff]
    %v7791 = vld [vmem:[#allocation10 + $0xe48] sm:$0xff]
    %v7792 = vld [vmem:[#allocation10 + $0xe50] sm:$0xff]
    %v7793 = vld [vmem:[#allocation10 + $0xe58] sm:$0xff]
    %v7794 = vld [vmem:[#allocation10 + $0xe60] sm:$0xff]
    %v7795 = vld [vmem:[#allocation10 + $0xe68] sm:$0xff]
    %v7796 = vld [vmem:[#allocation10 + $0xe70] sm:$0xff]
    %v7797 = vld [vmem:[#allocation10 + $0xe78] sm:$0xff]
    %v7798 = vld [vmem:[#allocation10 + $0xe80] sm:$0xff]
    %v7799 = vld [vmem:[#allocation10 + $0xe88] sm:$0xff]
    %v7800 = vld [vmem:[#allocation10 + $0xe90] sm:$0xff]
    %v7801 = vld [vmem:[#allocation10 + $0xe98] sm:$0xff]
    %v7802 = vld [vmem:[#allocation10 + $0xea0] sm:$0xff]
    %v7803 = vld [vmem:[#allocation10 + $0xea8] sm:$0xff]
    %v7804 = vld [vmem:[#allocation10 + $0xeb0] sm:$0xff]
    %v7805 = vld [vmem:[#allocation10 + $0xeb8] sm:$0xff]
    %v7806 = vld [vmem:[#allocation10 + $0xec0] sm:$0xff]
    %v7807 = vld [vmem:[#allocation10 + $0xec8] sm:$0xff]
    %v7808 = vld [vmem:[#allocation10 + $0xed0] sm:$0xff]
    %v7809 = vld [vmem:[#allocation10 + $0xed8] sm:$0xff]
    %v7810 = vld [vmem:[#allocation10 + $0xee0] sm:$0xff]
    %v7811 = vld [vmem:[#allocation10 + $0xee8] sm:$0xff]
    %v7812 = vld [vmem:[#allocation10 + $0xef0] sm:$0xff]
    %v7813 = vld [vmem:[#allocation10 + $0xef8] sm:$0xff]
    %v7814 = vld [vmem:[#allocation10 + $0xf00] sm:$0xff]
    %v7815 = vld [vmem:[#allocation10 + $0xf08] sm:$0xff]
    %v7816 = vld [vmem:[#allocation10 + $0xf10] sm:$0xff]
    %v7817 = vld [vmem:[#allocation10 + $0xf18] sm:$0xff]
    %v7818 = vld [vmem:[#allocation10 + $0xf20] sm:$0xff]
    %v7819 = vld [vmem:[#allocation10 + $0xf28] sm:$0xff]
    %v7820 = vld [vmem:[#allocation10 + $0xf30] sm:$0xff]
    %v7821 = vld [vmem:[#allocation10 + $0xf38] sm:$0xff]
    %v7822 = vld [vmem:[#allocation10 + $0xf40] sm:$0xff]
    %v7823 = vld [vmem:[#allocation10 + $0xf48] sm:$0xff]
    %v7824 = vld [vmem:[#allocation10 + $0xf50] sm:$0xff]
    %v7825 = vld [vmem:[#allocation10 + $0xf58] sm:$0xff]
    %v7826 = vld [vmem:[#allocation10 + $0xf60] sm:$0xff]
    %v7827 = vld [vmem:[#allocation10 + $0xf68] sm:$0xff]
    %v7828 = vld [vmem:[#allocation10 + $0xf70] sm:$0xff]
    %v7829 = vld [vmem:[#allocation10 + $0xf78] sm:$0xff]
    %v7830 = vld [vmem:[#allocation10 + $0xf80] sm:$0xff]
    %v7831 = vld [vmem:[#allocation10 + $0xf88] sm:$0xff]
    %v7832 = vld [vmem:[#allocation10 + $0xf90] sm:$0xff]
    %v7833 = vld [vmem:[#allocation10 + $0xf98] sm:$0xff]
    %v7834 = vld [vmem:[#allocation10 + $0xfa0] sm:$0xff]
    %v7835 = vld [vmem:[#allocation10 + $0xfa8] sm:$0xff]
    %v7836 = vld [vmem:[#allocation10 + $0xfb0] sm:$0xff]
    %v7837 = vld [vmem:[#allocation10 + $0xfb8] sm:$0xff]
    %v7838 = vld [vmem:[#allocation10 + $0xfc0] sm:$0xff]
    %v7839 = vld [vmem:[#allocation10 + $0xfc8] sm:$0xff]
    %v7840 = vld [vmem:[#allocation10 + $0xfd0] sm:$0xff]
    %v7841 = vld [vmem:[#allocation10 + $0xfd8] sm:$0xff]
    %v7842 = vld [vmem:[#allocation10 + $0xfe0] sm:$0xff]
    %v7843 = vld [vmem:[#allocation10 + $0xfe8] sm:$0xff]
    %v7844 = vld [vmem:[#allocation10 + $0xff0] sm:$0xff]
    %v7845 = vld [vmem:[#allocation10 + $0xff8] sm:$0xff]
    %v7848 = vrot.slane %v7312, 6
    %v7849 = vrot.slane %v7313, 6
    %7852 = vmatpush.msra.mxu0 %v7522
    %7853 = vmatpush.msra.mxu0 %v7518
    %7854 = vmatpush.msra.mxu0 %v7514
    %7855 = vmatpush.msra.mxu0 %v7510
    %7856 = vmatpush.msra.mxu0 %v7506
    %7857 = vmatpush.msra.mxu0 %v7502
    %7858 = vmatpush.msra.mxu0 %v7498
    %7859 = vmatpush.msra.mxu0 %v7494
    %7860 = vmatpush.msra.mxu0 %v7490
    %7861 = vmatpush.msra.mxu0 %v7486
    %7862 = vmatpush.msra.mxu0 %v7482
    %7863 = vmatpush.msra.mxu0 %v7478
    %7864 = vmatpush.msra.mxu0 %v7474
    %7865 = vmatpush.msra.mxu0 %v7470
    %7866 = vmatpush.msra.mxu0 %v7466
    %7867 = vmatpush.msra.mxu0 %v7462
    %7868 = vmatmul.f32.gmra.mxu0 %v7848
    %v7869 = vpop.f32.mrf.mxu0
    %v7870 = vadd.f32 0.0, %v7869
    %7871 = vdwg.mxu0
    %7872 = vmatpush.msra.mxu0 %v7586
    %7873 = vmatpush.msra.mxu0 %v7582
    %7874 = vmatpush.msra.mxu0 %v7578
    %7875 = vmatpush.msra.mxu0 %v7574
    %7876 = vmatpush.msra.mxu0 %v7570
    %7877 = vmatpush.msra.mxu0 %v7566
    %7878 = vmatpush.msra.mxu0 %v7562
    %7879 = vmatpush.msra.mxu0 %v7558
    %7880 = vmatpush.msra.mxu0 %v7554
    %7881 = vmatpush.msra.mxu0 %v7550
    %7882 = vmatpush.msra.mxu0 %v7546
    %7883 = vmatpush.msra.mxu0 %v7542
    %7884 = vmatpush.msra.mxu0 %v7538
    %7885 = vmatpush.msra.mxu0 %v7534
    %7886 = vmatpush.msra.mxu0 %v7530
    %7887 = vmatpush.msra.mxu0 %v7526
    %7888 = vmatmul.f32.gmra.mxu0 %v7849
    %v7889 = vpop.f32.mrf.mxu0
    %v7890 = vadd.f32 %v7870, %v7889
    %7891 = vdwg.mxu0
    %7892 = vmatpush.msra.mxu0 %v7523
    %7893 = vmatpush.msra.mxu0 %v7519
    %7894 = vmatpush.msra.mxu0 %v7515
    %7895 = vmatpush.msra.mxu0 %v7511
    %7896 = vmatpush.msra.mxu0 %v7507
    %7897 = vmatpush.msra.mxu0 %v7503
    %7898 = vmatpush.msra.mxu0 %v7499
    %7899 = vmatpush.msra.mxu0 %v7495
    %7900 = vmatpush.msra.mxu0 %v7491
    %7901 = vmatpush.msra.mxu0 %v7487
    %7902 = vmatpush.msra.mxu0 %v7483
    %7903 = vmatpush.msra.mxu0 %v7479
    %7904 = vmatpush.msra.mxu0 %v7475
    %7905 = vmatpush.msra.mxu0 %v7471
    %7906 = vmatpush.msra.mxu0 %v7467
    %7907 = vmatpush.msra.mxu0 %v7463
    %7908 = vmatmul.f32.gmra.mxu0 %v7848
    %v7909 = vpop.f32.mrf.mxu0
    %v7910 = vadd.f32 0.0, %v7909
    %7911 = vdwg.mxu0
    %7912 = vmatpush.msra.mxu0 %v7587
    %7913 = vmatpush.msra.mxu0 %v7583
    %7914 = vmatpush.msra.mxu0 %v7579
    %7915 = vmatpush.msra.mxu0 %v7575
    %7916 = vmatpush.msra.mxu0 %v7571
    %7917 = vmatpush.msra.mxu0 %v7567
    %7918 = vmatpush.msra.mxu0 %v7563
    %7919 = vmatpush.msra.mxu0 %v7559
    %7920 = vmatpush.msra.mxu0 %v7555
    %7921 = vmatpush.msra.mxu0 %v7551
    %7922 = vmatpush.msra.mxu0 %v7547
    %7923 = vmatpush.msra.mxu0 %v7543
    %7924 = vmatpush.msra.mxu0 %v7539
    %7925 = vmatpush.msra.mxu0 %v7535
    %7926 = vmatpush.msra.mxu0 %v7531
    %7927 = vmatpush.msra.mxu0 %v7527
    %7928 = vmatmul.f32.gmra.mxu0 %v7849
    %v7929 = vpop.f32.mrf.mxu0
    %v7930 = vadd.f32 %v7910, %v7929
    %7931 = vdwg.mxu0
    %7932 = vmatpush.msra.mxu0 %v7524
    %7933 = vmatpush.msra.mxu0 %v7520
    %7934 = vmatpush.msra.mxu0 %v7516
    %7935 = vmatpush.msra.mxu0 %v7512
    %7936 = vmatpush.msra.mxu0 %v7508
    %7937 = vmatpush.msra.mxu0 %v7504
    %7938 = vmatpush.msra.mxu0 %v7500
    %7939 = vmatpush.msra.mxu0 %v7496
    %7940 = vmatpush.msra.mxu0 %v7492
    %7941 = vmatpush.msra.mxu0 %v7488
    %7942 = vmatpush.msra.mxu0 %v7484
    %7943 = vmatpush.msra.mxu0 %v7480
    %7944 = vmatpush.msra.mxu0 %v7476
    %7945 = vmatpush.msra.mxu0 %v7472
    %7946 = vmatpush.msra.mxu0 %v7468
    %7947 = vmatpush.msra.mxu0 %v7464
    %7948 = vmatmul.f32.gmra.mxu0 %v7848
    %v7949 = vpop.f32.mrf.mxu0
    %v7950 = vadd.f32 0.0, %v7949
    %7951 = vdwg.mxu0
    %7952 = vmatpush.msra.mxu0 %v7588
    %7953 = vmatpush.msra.mxu0 %v7584
    %7954 = vmatpush.msra.mxu0 %v7580
    %7955 = vmatpush.msra.mxu0 %v7576
    %7956 = vmatpush.msra.mxu0 %v7572
    %7957 = vmatpush.msra.mxu0 %v7568
    %7958 = vmatpush.msra.mxu0 %v7564
    %7959 = vmatpush.msra.mxu0 %v7560
    %7960 = vmatpush.msra.mxu0 %v7556
    %7961 = vmatpush.msra.mxu0 %v7552
    %7962 = vmatpush.msra.mxu0 %v7548
    %7963 = vmatpush.msra.mxu0 %v7544
    %7964 = vmatpush.msra.mxu0 %v7540
    %7965 = vmatpush.msra.mxu0 %v7536
    %7966 = vmatpush.msra.mxu0 %v7532
    %7967 = vmatpush.msra.mxu0 %v7528
    %7968 = vmatmul.f32.gmra.mxu0 %v7849
    %v7969 = vpop.f32.mrf.mxu0
    %v7970 = vadd.f32 %v7950, %v7969
    %7971 = vdwg.mxu0
    %7972 = vmatpush.msra.mxu0 %v7525
    %7973 = vmatpush.msra.mxu0 %v7521
    %7974 = vmatpush.msra.mxu0 %v7517
    %7975 = vmatpush.msra.mxu0 %v7513
    %7976 = vmatpush.msra.mxu0 %v7509
    %7977 = vmatpush.msra.mxu0 %v7505
    %7978 = vmatpush.msra.mxu0 %v7501
    %7979 = vmatpush.msra.mxu0 %v7497
    %7980 = vmatpush.msra.mxu0 %v7493
    %7981 = vmatpush.msra.mxu0 %v7489
    %7982 = vmatpush.msra.mxu0 %v7485
    %7983 = vmatpush.msra.mxu0 %v7481
    %7984 = vmatpush.msra.mxu0 %v7477
    %7985 = vmatpush.msra.mxu0 %v7473
    %7986 = vmatpush.msra.mxu0 %v7469
    %7987 = vmatpush.msra.mxu0 %v7465
    %7988 = vmatmul.f32.gmra.mxu0 %v7848
    %v7989 = vpop.f32.mrf.mxu0
    %v7990 = vadd.f32 0.0, %v7989
    %7991 = vdwg.mxu0
    %7992 = vmatpush.msra.mxu0 %v7589
    %7993 = vmatpush.msra.mxu0 %v7585
    %7994 = vmatpush.msra.mxu0 %v7581
    %7995 = vmatpush.msra.mxu0 %v7577
    %7996 = vmatpush.msra.mxu0 %v7573
    %7997 = vmatpush.msra.mxu0 %v7569
    %7998 = vmatpush.msra.mxu0 %v7565
    %7999 = vmatpush.msra.mxu0 %v7561
    %8000 = vmatpush.msra.mxu0 %v7557
    %8001 = vmatpush.msra.mxu0 %v7553
    %8002 = vmatpush.msra.mxu0 %v7549
    %8003 = vmatpush.msra.mxu0 %v7545
    %8004 = vmatpush.msra.mxu0 %v7541
    %8005 = vmatpush.msra.mxu0 %v7537
    %8006 = vmatpush.msra.mxu0 %v7533
    %8007 = vmatpush.msra.mxu0 %v7529
    %8008 = vmatmul.f32.gmra.mxu0 %v7849
    %v8009 = vpop.f32.mrf.mxu0
    %v8010 = vadd.f32 %v7990, %v8009
    %8011 = vdwg.mxu0
    %v8014 = vrot.slane %v7302, 6
    %v8015 = vrot.slane %v7303, 6
    %8018 = vmatpush.msra.mxu0 %v7394
    %8019 = vmatpush.msra.mxu0 %v7390
    %8020 = vmatpush.msra.mxu0 %v7386
    %8021 = vmatpush.msra.mxu0 %v7382
    %8022 = vmatpush.msra.mxu0 %v7378
    %8023 = vmatpush.msra.mxu0 %v7374
    %8024 = vmatpush.msra.mxu0 %v7370
    %8025 = vmatpush.msra.mxu0 %v7366
    %8026 = vmatpush.msra.mxu0 %v7362
    %8027 = vmatpush.msra.mxu0 %v7358
    %8028 = vmatpush.msra.mxu0 %v7354
    %8029 = vmatpush.msra.mxu0 %v7350
    %8030 = vmatpush.msra.mxu0 %v7346
    %8031 = vmatpush.msra.mxu0 %v7342
    %8032 = vmatpush.msra.mxu0 %v7338
    %8033 = vmatpush.msra.mxu0 %v7334
    %8034 = vmatmul.f32.gmra.mxu0 %v8014
    %v8035 = vpop.f32.mrf.mxu0
    %v8036 = vadd.f32 %v7890, %v8035
    %8037 = vdwg.mxu0
    %8038 = vmatpush.msra.mxu0 %v7458
    %8039 = vmatpush.msra.mxu0 %v7454
    %8040 = vmatpush.msra.mxu0 %v7450
    %8041 = vmatpush.msra.mxu0 %v7446
    %8042 = vmatpush.msra.mxu0 %v7442
    %8043 = vmatpush.msra.mxu0 %v7438
    %8044 = vmatpush.msra.mxu0 %v7434
    %8045 = vmatpush.msra.mxu0 %v7430
    %8046 = vmatpush.msra.mxu0 %v7426
    %8047 = vmatpush.msra.mxu0 %v7422
    %8048 = vmatpush.msra.mxu0 %v7418
    %8049 = vmatpush.msra.mxu0 %v7414
    %8050 = vmatpush.msra.mxu0 %v7410
    %8051 = vmatpush.msra.mxu0 %v7406
    %8052 = vmatpush.msra.mxu0 %v7402
    %8053 = vmatpush.msra.mxu0 %v7398
    %8054 = vmatmul.f32.gmra.mxu0 %v8015
    %v8055 = vpop.f32.mrf.mxu0
    %v8056 = vadd.f32 %v8036, %v8055
    %8057 = vdwg.mxu0
    %8058 = vmatpush.msra.mxu0 %v7395
    %8059 = vmatpush.msra.mxu0 %v7391
    %8060 = vmatpush.msra.mxu0 %v7387
    %8061 = vmatpush.msra.mxu0 %v7383
    %8062 = vmatpush.msra.mxu0 %v7379
    %8063 = vmatpush.msra.mxu0 %v7375
    %8064 = vmatpush.msra.mxu0 %v7371
    %8065 = vmatpush.msra.mxu0 %v7367
    %8066 = vmatpush.msra.mxu0 %v7363
    %8067 = vmatpush.msra.mxu0 %v7359
    %8068 = vmatpush.msra.mxu0 %v7355
    %8069 = vmatpush.msra.mxu0 %v7351
    %8070 = vmatpush.msra.mxu0 %v7347
    %8071 = vmatpush.msra.mxu0 %v7343
    %8072 = vmatpush.msra.mxu0 %v7339
    %8073 = vmatpush.msra.mxu0 %v7335
    %8074 = vmatmul.f32.gmra.mxu0 %v8014
    %v8075 = vpop.f32.mrf.mxu0
    %v8076 = vadd.f32 %v7930, %v8075
    %8077 = vdwg.mxu0
    %8078 = vmatpush.msra.mxu0 %v7459
    %8079 = vmatpush.msra.mxu0 %v7455
    %8080 = vmatpush.msra.mxu0 %v7451
    %8081 = vmatpush.msra.mxu0 %v7447
    %8082 = vmatpush.msra.mxu0 %v7443
    %8083 = vmatpush.msra.mxu0 %v7439
    %8084 = vmatpush.msra.mxu0 %v7435
    %8085 = vmatpush.msra.mxu0 %v7431
    %8086 = vmatpush.msra.mxu0 %v7427
    %8087 = vmatpush.msra.mxu0 %v7423
    %8088 = vmatpush.msra.mxu0 %v7419
    %8089 = vmatpush.msra.mxu0 %v7415
    %8090 = vmatpush.msra.mxu0 %v7411
    %8091 = vmatpush.msra.mxu0 %v7407
    %8092 = vmatpush.msra.mxu0 %v7403
    %8093 = vmatpush.msra.mxu0 %v7399
    %8094 = vmatmul.f32.gmra.mxu0 %v8015
    %v8095 = vpop.f32.mrf.mxu0
    %v8096 = vadd.f32 %v8076, %v8095
    %8097 = vdwg.mxu0
    %8098 = vmatpush.msra.mxu0 %v7396
    %8099 = vmatpush.msra.mxu0 %v7392
    %8100 = vmatpush.msra.mxu0 %v7388
    %8101 = vmatpush.msra.mxu0 %v7384
    %8102 = vmatpush.msra.mxu0 %v7380
    %8103 = vmatpush.msra.mxu0 %v7376
    %8104 = vmatpush.msra.mxu0 %v7372
    %8105 = vmatpush.msra.mxu0 %v7368
    %8106 = vmatpush.msra.mxu0 %v7364
    %8107 = vmatpush.msra.mxu0 %v7360
    %8108 = vmatpush.msra.mxu0 %v7356
    %8109 = vmatpush.msra.mxu0 %v7352
    %8110 = vmatpush.msra.mxu0 %v7348
    %8111 = vmatpush.msra.mxu0 %v7344
    %8112 = vmatpush.msra.mxu0 %v7340
    %8113 = vmatpush.msra.mxu0 %v7336
    %8114 = vmatmul.f32.gmra.mxu0 %v8014
    %v8115 = vpop.f32.mrf.mxu0
    %v8116 = vadd.f32 %v7970, %v8115
    %8117 = vdwg.mxu0
    %8118 = vmatpush.msra.mxu0 %v7460
    %8119 = vmatpush.msra.mxu0 %v7456
    %8120 = vmatpush.msra.mxu0 %v7452
    %8121 = vmatpush.msra.mxu0 %v7448
    %8122 = vmatpush.msra.mxu0 %v7444
    %8123 = vmatpush.msra.mxu0 %v7440
    %8124 = vmatpush.msra.mxu0 %v7436
    %8125 = vmatpush.msra.mxu0 %v7432
    %8126 = vmatpush.msra.mxu0 %v7428
    %8127 = vmatpush.msra.mxu0 %v7424
    %8128 = vmatpush.msra.mxu0 %v7420
    %8129 = vmatpush.msra.mxu0 %v7416
    %8130 = vmatpush.msra.mxu0 %v7412
    %8131 = vmatpush.msra.mxu0 %v7408
    %8132 = vmatpush.msra.mxu0 %v7404
    %8133 = vmatpush.msra.mxu0 %v7400
    %8134 = vmatmul.f32.gmra.mxu0 %v8015
    %v8135 = vpop.f32.mrf.mxu0
    %v8136 = vadd.f32 %v8116, %v8135
    %8137 = vdwg.mxu0
    %8138 = vmatpush.msra.mxu0 %v7397
    %8139 = vmatpush.msra.mxu0 %v7393
    %8140 = vmatpush.msra.mxu0 %v7389
    %8141 = vmatpush.msra.mxu0 %v7385
    %8142 = vmatpush.msra.mxu0 %v7381
    %8143 = vmatpush.msra.mxu0 %v7377
    %8144 = vmatpush.msra.mxu0 %v7373
    %8145 = vmatpush.msra.mxu0 %v7369
    %8146 = vmatpush.msra.mxu0 %v7365
    %8147 = vmatpush.msra.mxu0 %v7361
    %8148 = vmatpush.msra.mxu0 %v7357
    %8149 = vmatpush.msra.mxu0 %v7353
    %8150 = vmatpush.msra.mxu0 %v7349
    %8151 = vmatpush.msra.mxu0 %v7345
    %8152 = vmatpush.msra.mxu0 %v7341
    %8153 = vmatpush.msra.mxu0 %v7337
    %8154 = vmatmul.f32.gmra.mxu0 %v8014
    %v8155 = vpop.f32.mrf.mxu0
    %v8156 = vadd.f32 %v8010, %v8155
    %8157 = vdwg.mxu0
    %8158 = vmatpush.msra.mxu0 %v7461
    %8159 = vmatpush.msra.mxu0 %v7457
    %8160 = vmatpush.msra.mxu0 %v7453
    %8161 = vmatpush.msra.mxu0 %v7449
    %8162 = vmatpush.msra.mxu0 %v7445
    %8163 = vmatpush.msra.mxu0 %v7441
    %8164 = vmatpush.msra.mxu0 %v7437
    %8165 = vmatpush.msra.mxu0 %v7433
    %8166 = vmatpush.msra.mxu0 %v7429
    %8167 = vmatpush.msra.mxu0 %v7425
    %8168 = vmatpush.msra.mxu0 %v7421
    %8169 = vmatpush.msra.mxu0 %v7417
    %8170 = vmatpush.msra.mxu0 %v7413
    %8171 = vmatpush.msra.mxu0 %v7409
    %8172 = vmatpush.msra.mxu0 %v7405
    %8173 = vmatpush.msra.mxu0 %v7401
    %8174 = vmatmul.f32.gmra.mxu0 %v8015
    %v8175 = vpop.f32.mrf.mxu0
    %v8176 = vadd.f32 %v8156, %v8175
    %8177 = vdwg.mxu0
    %v8180 = vrot.slane %v7322, 2
    %v8181 = vrot.slane %v7323, 2
    %8184 = vmatpush.msra.mxu0 %v7650
    %8185 = vmatpush.msra.mxu0 %v7646
    %8186 = vmatpush.msra.mxu0 %v7642
    %8187 = vmatpush.msra.mxu0 %v7638
    %8188 = vmatpush.msra.mxu0 %v7634
    %8189 = vmatpush.msra.mxu0 %v7630
    %8190 = vmatpush.msra.mxu0 %v7626
    %8191 = vmatpush.msra.mxu0 %v7622
    %8192 = vmatpush.msra.mxu0 %v7618
    %8193 = vmatpush.msra.mxu0 %v7614
    %8194 = vmatpush.msra.mxu0 %v7610
    %8195 = vmatpush.msra.mxu0 %v7606
    %8196 = vmatpush.msra.mxu0 %v7602
    %8197 = vmatpush.msra.mxu0 %v7598
    %8198 = vmatpush.msra.mxu0 %v7594
    %8199 = vmatpush.msra.mxu0 %v7590
    %8200 = vmatmul.f32.gmra.mxu0 %v8180
    %v8201 = vpop.f32.mrf.mxu0
    %v8202 = vadd.f32 0.0, %v8201
    %8203 = vdwg.mxu0
    %8204 = vmatpush.msra.mxu0 %v7714
    %8205 = vmatpush.msra.mxu0 %v7710
    %8206 = vmatpush.msra.mxu0 %v7706
    %8207 = vmatpush.msra.mxu0 %v7702
    %8208 = vmatpush.msra.mxu0 %v7698
    %8209 = vmatpush.msra.mxu0 %v7694
    %8210 = vmatpush.msra.mxu0 %v7690
    %8211 = vmatpush.msra.mxu0 %v7686
    %8212 = vmatpush.msra.mxu0 %v7682
    %8213 = vmatpush.msra.mxu0 %v7678
    %8214 = vmatpush.msra.mxu0 %v7674
    %8215 = vmatpush.msra.mxu0 %v7670
    %8216 = vmatpush.msra.mxu0 %v7666
    %8217 = vmatpush.msra.mxu0 %v7662
    %8218 = vmatpush.msra.mxu0 %v7658
    %8219 = vmatpush.msra.mxu0 %v7654
    %8220 = vmatmul.f32.gmra.mxu0 %v8181
    %v8221 = vpop.f32.mrf.mxu0
    %v8222 = vadd.f32 %v8202, %v8221
    %8223 = vdwg.mxu0
    %8224 = vmatpush.msra.mxu0 %v7651
    %8225 = vmatpush.msra.mxu0 %v7647
    %8226 = vmatpush.msra.mxu0 %v7643
    %8227 = vmatpush.msra.mxu0 %v7639
    %8228 = vmatpush.msra.mxu0 %v7635
    %8229 = vmatpush.msra.mxu0 %v7631
    %8230 = vmatpush.msra.mxu0 %v7627
    %8231 = vmatpush.msra.mxu0 %v7623
    %8232 = vmatpush.msra.mxu0 %v7619
    %8233 = vmatpush.msra.mxu0 %v7615
    %8234 = vmatpush.msra.mxu0 %v7611
    %8235 = vmatpush.msra.mxu0 %v7607
    %8236 = vmatpush.msra.mxu0 %v7603
    %8237 = vmatpush.msra.mxu0 %v7599
    %8238 = vmatpush.msra.mxu0 %v7595
    %8239 = vmatpush.msra.mxu0 %v7591
    %8240 = vmatmul.f32.gmra.mxu0 %v8180
    %v8241 = vpop.f32.mrf.mxu0
    %v8242 = vadd.f32 0.0, %v8241
    %8243 = vdwg.mxu0
    %8244 = vmatpush.msra.mxu0 %v7715
    %8245 = vmatpush.msra.mxu0 %v7711
    %8246 = vmatpush.msra.mxu0 %v7707
    %8247 = vmatpush.msra.mxu0 %v7703
    %8248 = vmatpush.msra.mxu0 %v7699
    %8249 = vmatpush.msra.mxu0 %v7695
    %8250 = vmatpush.msra.mxu0 %v7691
    %8251 = vmatpush.msra.mxu0 %v7687
    %8252 = vmatpush.msra.mxu0 %v7683
    %8253 = vmatpush.msra.mxu0 %v7679
    %8254 = vmatpush.msra.mxu0 %v7675
    %8255 = vmatpush.msra.mxu0 %v7671
    %8256 = vmatpush.msra.mxu0 %v7667
    %8257 = vmatpush.msra.mxu0 %v7663
    %8258 = vmatpush.msra.mxu0 %v7659
    %8259 = vmatpush.msra.mxu0 %v7655
    %8260 = vmatmul.f32.gmra.mxu0 %v8181
    %v8261 = vpop.f32.mrf.mxu0
    %v8262 = vadd.f32 %v8242, %v8261
    %8263 = vdwg.mxu0
    %8264 = vmatpush.msra.mxu0 %v7652
    %8265 = vmatpush.msra.mxu0 %v7648
    %8266 = vmatpush.msra.mxu0 %v7644
    %8267 = vmatpush.msra.mxu0 %v7640
    %8268 = vmatpush.msra.mxu0 %v7636
    %8269 = vmatpush.msra.mxu0 %v7632
    %8270 = vmatpush.msra.mxu0 %v7628
    %8271 = vmatpush.msra.mxu0 %v7624
    %8272 = vmatpush.msra.mxu0 %v7620
    %8273 = vmatpush.msra.mxu0 %v7616
    %8274 = vmatpush.msra.mxu0 %v7612
    %8275 = vmatpush.msra.mxu0 %v7608
    %8276 = vmatpush.msra.mxu0 %v7604
    %8277 = vmatpush.msra.mxu0 %v7600
    %8278 = vmatpush.msra.mxu0 %v7596
    %8279 = vmatpush.msra.mxu0 %v7592
    %8280 = vmatmul.f32.gmra.mxu0 %v8180
    %v8281 = vpop.f32.mrf.mxu0
    %v8282 = vadd.f32 0.0, %v8281
    %8283 = vdwg.mxu0
    %8284 = vmatpush.msra.mxu0 %v7716
    %8285 = vmatpush.msra.mxu0 %v7712
    %8286 = vmatpush.msra.mxu0 %v7708
    %8287 = vmatpush.msra.mxu0 %v7704
    %8288 = vmatpush.msra.mxu0 %v7700
    %8289 = vmatpush.msra.mxu0 %v7696
    %8290 = vmatpush.msra.mxu0 %v7692
    %8291 = vmatpush.msra.mxu0 %v7688
    %8292 = vmatpush.msra.mxu0 %v7684
    %8293 = vmatpush.msra.mxu0 %v7680
    %8294 = vmatpush.msra.mxu0 %v7676
    %8295 = vmatpush.msra.mxu0 %v7672
    %8296 = vmatpush.msra.mxu0 %v7668
    %8297 = vmatpush.msra.mxu0 %v7664
    %8298 = vmatpush.msra.mxu0 %v7660
    %8299 = vmatpush.msra.mxu0 %v7656
    %8300 = vmatmul.f32.gmra.mxu0 %v8181
    %v8301 = vpop.f32.mrf.mxu0
    %v8302 = vadd.f32 %v8282, %v8301
    %8303 = vdwg.mxu0
    %8304 = vmatpush.msra.mxu0 %v7653
    %8305 = vmatpush.msra.mxu0 %v7649
    %8306 = vmatpush.msra.mxu0 %v7645
    %8307 = vmatpush.msra.mxu0 %v7641
    %8308 = vmatpush.msra.mxu0 %v7637
    %8309 = vmatpush.msra.mxu0 %v7633
    %8310 = vmatpush.msra.mxu0 %v7629
    %8311 = vmatpush.msra.mxu0 %v7625
    %8312 = vmatpush.msra.mxu0 %v7621
    %8313 = vmatpush.msra.mxu0 %v7617
    %8314 = vmatpush.msra.mxu0 %v7613
    %8315 = vmatpush.msra.mxu0 %v7609
    %8316 = vmatpush.msra.mxu0 %v7605
    %8317 = vmatpush.msra.mxu0 %v7601
    %8318 = vmatpush.msra.mxu0 %v7597
    %8319 = vmatpush.msra.mxu0 %v7593
    %8320 = vmatmul.f32.gmra.mxu0 %v8180
    %v8321 = vpop.f32.mrf.mxu0
    %v8322 = vadd.f32 0.0, %v8321
    %8323 = vdwg.mxu0
    %8324 = vmatpush.msra.mxu0 %v7717
    %8325 = vmatpush.msra.mxu0 %v7713
    %8326 = vmatpush.msra.mxu0 %v7709
    %8327 = vmatpush.msra.mxu0 %v7705
    %8328 = vmatpush.msra.mxu0 %v7701
    %8329 = vmatpush.msra.mxu0 %v7697
    %8330 = vmatpush.msra.mxu0 %v7693
    %8331 = vmatpush.msra.mxu0 %v7689
    %8332 = vmatpush.msra.mxu0 %v7685
    %8333 = vmatpush.msra.mxu0 %v7681
    %8334 = vmatpush.msra.mxu0 %v7677
    %8335 = vmatpush.msra.mxu0 %v7673
    %8336 = vmatpush.msra.mxu0 %v7669
    %8337 = vmatpush.msra.mxu0 %v7665
    %8338 = vmatpush.msra.mxu0 %v7661
    %8339 = vmatpush.msra.mxu0 %v7657
    %8340 = vmatmul.f32.gmra.mxu0 %v8181
    %v8341 = vpop.f32.mrf.mxu0
    %v8342 = vadd.f32 %v8322, %v8341
    %8343 = vdwg.mxu0
    %v8344 = vadd.f32 %v8056, %v8222
    %v8345 = vadd.f32 %v8096, %v8262
    %v8346 = vadd.f32 %v8136, %v8302
    %v8347 = vadd.f32 %v8176, %v8342
    %v8350 = vrot.slane %v7332, 2
    %v8351 = vrot.slane %v7333, 2
    %8354 = vmatpush.msra.mxu0 %v7778
    %8355 = vmatpush.msra.mxu0 %v7774
    %8356 = vmatpush.msra.mxu0 %v7770
    %8357 = vmatpush.msra.mxu0 %v7766
    %8358 = vmatpush.msra.mxu0 %v7762
    %8359 = vmatpush.msra.mxu0 %v7758
    %8360 = vmatpush.msra.mxu0 %v7754
    %8361 = vmatpush.msra.mxu0 %v7750
    %8362 = vmatpush.msra.mxu0 %v7746
    %8363 = vmatpush.msra.mxu0 %v7742
    %8364 = vmatpush.msra.mxu0 %v7738
    %8365 = vmatpush.msra.mxu0 %v7734
    %8366 = vmatpush.msra.mxu0 %v7730
    %8367 = vmatpush.msra.mxu0 %v7726
    %8368 = vmatpush.msra.mxu0 %v7722
    %8369 = vmatpush.msra.mxu0 %v7718
    %8370 = vmatmul.f32.gmra.mxu0 %v8350
    %v8371 = vpop.f32.mrf.mxu0
    %v8372 = vadd.f32 0.0, %v8371
    %8373 = vdwg.mxu0
    %8374 = vmatpush.msra.mxu0 %v7842
    %8375 = vmatpush.msra.mxu0 %v7838
    %8376 = vmatpush.msra.mxu0 %v7834
    %8377 = vmatpush.msra.mxu0 %v7830
    %8378 = vmatpush.msra.mxu0 %v7826
    %8379 = vmatpush.msra.mxu0 %v7822
    %8380 = vmatpush.msra.mxu0 %v7818
    %8381 = vmatpush.msra.mxu0 %v7814
    %8382 = vmatpush.msra.mxu0 %v7810
    %8383 = vmatpush.msra.mxu0 %v7806
    %8384 = vmatpush.msra.mxu0 %v7802
    %8385 = vmatpush.msra.mxu0 %v7798
    %8386 = vmatpush.msra.mxu0 %v7794
    %8387 = vmatpush.msra.mxu0 %v7790
    %8388 = vmatpush.msra.mxu0 %v7786
    %8389 = vmatpush.msra.mxu0 %v7782
    %8390 = vmatmul.f32.gmra.mxu0 %v8351
    %v8391 = vpop.f32.mrf.mxu0
    %v8392 = vadd.f32 %v8372, %v8391
    %8393 = vdwg.mxu0
    %8394 = vmatpush.msra.mxu0 %v7779
    %8395 = vmatpush.msra.mxu0 %v7775
    %8396 = vmatpush.msra.mxu0 %v7771
    %8397 = vmatpush.msra.mxu0 %v7767
    %8398 = vmatpush.msra.mxu0 %v7763
    %8399 = vmatpush.msra.mxu0 %v7759
    %8400 = vmatpush.msra.mxu0 %v7755
    %8401 = vmatpush.msra.mxu0 %v7751
    %8402 = vmatpush.msra.mxu0 %v7747
    %8403 = vmatpush.msra.mxu0 %v7743
    %8404 = vmatpush.msra.mxu0 %v7739
    %8405 = vmatpush.msra.mxu0 %v7735
    %8406 = vmatpush.msra.mxu0 %v7731
    %8407 = vmatpush.msra.mxu0 %v7727
    %8408 = vmatpush.msra.mxu0 %v7723
    %8409 = vmatpush.msra.mxu0 %v7719
    %8410 = vmatmul.f32.gmra.mxu0 %v8350
    %v8411 = vpop.f32.mrf.mxu0
    %v8412 = vadd.f32 0.0, %v8411
    %8413 = vdwg.mxu0
    %8414 = vmatpush.msra.mxu0 %v7843
    %8415 = vmatpush.msra.mxu0 %v7839
    %8416 = vmatpush.msra.mxu0 %v7835
    %8417 = vmatpush.msra.mxu0 %v7831
    %8418 = vmatpush.msra.mxu0 %v7827
    %8419 = vmatpush.msra.mxu0 %v7823
    %8420 = vmatpush.msra.mxu0 %v7819
    %8421 = vmatpush.msra.mxu0 %v7815
    %8422 = vmatpush.msra.mxu0 %v7811
    %8423 = vmatpush.msra.mxu0 %v7807
    %8424 = vmatpush.msra.mxu0 %v7803
    %8425 = vmatpush.msra.mxu0 %v7799
    %8426 = vmatpush.msra.mxu0 %v7795
    %8427 = vmatpush.msra.mxu0 %v7791
    %8428 = vmatpush.msra.mxu0 %v7787
    %8429 = vmatpush.msra.mxu0 %v7783
    %8430 = vmatmul.f32.gmra.mxu0 %v8351
    %v8431 = vpop.f32.mrf.mxu0
    %v8432 = vadd.f32 %v8412, %v8431
    %8433 = vdwg.mxu0
    %8434 = vmatpush.msra.mxu0 %v7780
    %8435 = vmatpush.msra.mxu0 %v7776
    %8436 = vmatpush.msra.mxu0 %v7772
    %8437 = vmatpush.msra.mxu0 %v7768
    %8438 = vmatpush.msra.mxu0 %v7764
    %8439 = vmatpush.msra.mxu0 %v7760
    %8440 = vmatpush.msra.mxu0 %v7756
    %8441 = vmatpush.msra.mxu0 %v7752
    %8442 = vmatpush.msra.mxu0 %v7748
    %8443 = vmatpush.msra.mxu0 %v7744
    %8444 = vmatpush.msra.mxu0 %v7740
    %8445 = vmatpush.msra.mxu0 %v7736
    %8446 = vmatpush.msra.mxu0 %v7732
    %8447 = vmatpush.msra.mxu0 %v7728
    %8448 = vmatpush.msra.mxu0 %v7724
    %8449 = vmatpush.msra.mxu0 %v7720
    %8450 = vmatmul.f32.gmra.mxu0 %v8350
    %v8451 = vpop.f32.mrf.mxu0
    %v8452 = vadd.f32 0.0, %v8451
    %8453 = vdwg.mxu0
    %8454 = vmatpush.msra.mxu0 %v7844
    %8455 = vmatpush.msra.mxu0 %v7840
    %8456 = vmatpush.msra.mxu0 %v7836
    %8457 = vmatpush.msra.mxu0 %v7832
    %8458 = vmatpush.msra.mxu0 %v7828
    %8459 = vmatpush.msra.mxu0 %v7824
    %8460 = vmatpush.msra.mxu0 %v7820
    %8461 = vmatpush.msra.mxu0 %v7816
    %8462 = vmatpush.msra.mxu0 %v7812
    %8463 = vmatpush.msra.mxu0 %v7808
    %8464 = vmatpush.msra.mxu0 %v7804
    %8465 = vmatpush.msra.mxu0 %v7800
    %8466 = vmatpush.msra.mxu0 %v7796
    %8467 = vmatpush.msra.mxu0 %v7792
    %8468 = vmatpush.msra.mxu0 %v7788
    %8469 = vmatpush.msra.mxu0 %v7784
    %8470 = vmatmul.f32.gmra.mxu0 %v8351
    %v8471 = vpop.f32.mrf.mxu0
    %v8472 = vadd.f32 %v8452, %v8471
    %8473 = vdwg.mxu0
    %8474 = vmatpush.msra.mxu0 %v7781
    %8475 = vmatpush.msra.mxu0 %v7777
    %8476 = vmatpush.msra.mxu0 %v7773
    %8477 = vmatpush.msra.mxu0 %v7769
    %8478 = vmatpush.msra.mxu0 %v7765
    %8479 = vmatpush.msra.mxu0 %v7761
    %8480 = vmatpush.msra.mxu0 %v7757
    %8481 = vmatpush.msra.mxu0 %v7753
    %8482 = vmatpush.msra.mxu0 %v7749
    %8483 = vmatpush.msra.mxu0 %v7745
    %8484 = vmatpush.msra.mxu0 %v7741
    %8485 = vmatpush.msra.mxu0 %v7737
    %8486 = vmatpush.msra.mxu0 %v7733
    %8487 = vmatpush.msra.mxu0 %v7729
    %8488 = vmatpush.msra.mxu0 %v7725
    %8489 = vmatpush.msra.mxu0 %v7721
    %8490 = vmatmul.f32.gmra.mxu0 %v8350
    %v8491 = vpop.f32.mrf.mxu0
    %v8492 = vadd.f32 0.0, %v8491
    %8493 = vdwg.mxu0
    %8494 = vmatpush.msra.mxu0 %v7845
    %8495 = vmatpush.msra.mxu0 %v7841
    %8496 = vmatpush.msra.mxu0 %v7837
    %8497 = vmatpush.msra.mxu0 %v7833
    %8498 = vmatpush.msra.mxu0 %v7829
    %8499 = vmatpush.msra.mxu0 %v7825
    %8500 = vmatpush.msra.mxu0 %v7821
    %8501 = vmatpush.msra.mxu0 %v7817
    %8502 = vmatpush.msra.mxu0 %v7813
    %8503 = vmatpush.msra.mxu0 %v7809
    %8504 = vmatpush.msra.mxu0 %v7805
    %8505 = vmatpush.msra.mxu0 %v7801
    %8506 = vmatpush.msra.mxu0 %v7797
    %8507 = vmatpush.msra.mxu0 %v7793
    %8508 = vmatpush.msra.mxu0 %v7789
    %8509 = vmatpush.msra.mxu0 %v7785
    %8510 = vmatmul.f32.gmra.mxu0 %v8351
    %v8511 = vpop.f32.mrf.mxu0
    %v8512 = vadd.f32 %v8492, %v8511
    %8513 = vdwg.mxu0
    %v8514 = vadd.f32 %v8344, %v8392
    %v8515 = vadd.f32 %v8345, %v8432
    %v8516 = vadd.f32 %v8346, %v8472
    %v8517 = vadd.f32 %v8347, %v8512
    %v8518 = vld [vmem:[#allocation11] sm:$0xf]
    %v8520 = vperm.slane %v8518, 0
    %v8521 = vperm.slane %v8518, 1
    %v8522 = vperm.slane %v8518, 2
    %v8523 = vperm.slane %v8518, 3
    %v8528 = vadd.f32 %v8514, %v8520
    %v8529 = vadd.f32 %v8515, %v8521
    %v8530 = vadd.f32 %v8516, %v8522
    %v8531 = vadd.f32 %v8517, %v8523
    %v8532 = vmax.f32 %v8528, 0.0
    %v8533 = vmax.f32 %v8529, 0.0
    %v8534 = vmax.f32 %v8530, 0.0
    %v8535 = vmax.f32 %v8531, 0.0
    %v8536 = vld [vmem:[%s7] sm:$0xff]
    %v8537 = vld [vmem:[%s7 + $0x8] sm:$0xff]
    %v8538 = vld [vmem:[%s7 + $0x10] sm:$0xff]
    %v8539 = vld [vmem:[%s7 + $0x18] sm:$0xff]
    %v8540 = vld [vmem:[%s7 + $0x20] sm:$0xff]
    %v8541 = vld [vmem:[%s7 + $0x28] sm:$0xff]
    %v8542 = vld [vmem:[%s7 + $0x30] sm:$0xff]
    %v8543 = vld [vmem:[%s7 + $0x38] sm:$0xff]
    %v8544 = vld [vmem:[%s7 + $0x40] sm:$0xff]
    %v8545 = vld [vmem:[%s7 + $0x48] sm:$0xff]
    %v8546 = vld [vmem:[%s7 + $0x50] sm:$0xff]
    %v8547 = vld [vmem:[%s7 + $0x58] sm:$0xff]
    %v8548 = vld [vmem:[%s7 + $0x60] sm:$0xff]
    %v8549 = vld [vmem:[%s7 + $0x68] sm:$0xff]
    %v8550 = vld [vmem:[%s7 + $0x70] sm:$0xff]
    %v8551 = vld [vmem:[%s7 + $0x78] sm:$0xff]
    %v8552 = vld [vmem:[%s7 + $0x80] sm:$0xff]
    %v8553 = vld [vmem:[%s7 + $0x88] sm:$0xff]
    %v8554 = vld [vmem:[%s7 + $0x90] sm:$0xff]
    %v8555 = vld [vmem:[%s7 + $0x98] sm:$0xff]
    %v8556 = vld [vmem:[%s7 + $0xa0] sm:$0xff]
    %v8557 = vld [vmem:[%s7 + $0xa8] sm:$0xff]
    %v8558 = vld [vmem:[%s7 + $0xb0] sm:$0xff]
    %v8559 = vld [vmem:[%s7 + $0xb8] sm:$0xff]
    %v8560 = vld [vmem:[%s7 + $0xc0] sm:$0xff]
    %v8561 = vld [vmem:[%s7 + $0xc8] sm:$0xff]
    %v8562 = vld [vmem:[%s7 + $0xd0] sm:$0xff]
    %v8563 = vld [vmem:[%s7 + $0xd8] sm:$0xff]
    %v8564 = vld [vmem:[%s7 + $0xe0] sm:$0xff]
    %v8565 = vld [vmem:[%s7 + $0xe8] sm:$0xff]
    %v8566 = vld [vmem:[%s7 + $0xf0] sm:$0xff]
    %v8567 = vld [vmem:[%s7 + $0xf8] sm:$0xff]
    %v8568 = vld [vmem:[%s7 + $0x100] sm:$0xff]
    %v8569 = vld [vmem:[%s7 + $0x108] sm:$0xff]
    %v8570 = vld [vmem:[%s7 + $0x110] sm:$0xff]
    %v8571 = vld [vmem:[%s7 + $0x118] sm:$0xff]
    %v8572 = vld [vmem:[%s7 + $0x120] sm:$0xff]
    %v8573 = vld [vmem:[%s7 + $0x128] sm:$0xff]
    %v8574 = vld [vmem:[%s7 + $0x130] sm:$0xff]
    %v8575 = vld [vmem:[%s7 + $0x138] sm:$0xff]
    %v8576 = vld [vmem:[%s7 + $0x140] sm:$0xff]
    %v8577 = vld [vmem:[%s7 + $0x148] sm:$0xff]
    %v8578 = vld [vmem:[%s7 + $0x150] sm:$0xff]
    %v8579 = vld [vmem:[%s7 + $0x158] sm:$0xff]
    %v8580 = vld [vmem:[%s7 + $0x160] sm:$0xff]
    %v8581 = vld [vmem:[%s7 + $0x168] sm:$0xff]
    %v8582 = vld [vmem:[%s7 + $0x170] sm:$0xff]
    %v8583 = vld [vmem:[%s7 + $0x178] sm:$0xff]
    %v8584 = vld [vmem:[%s7 + $0x180] sm:$0xff]
    %v8585 = vld [vmem:[%s7 + $0x188] sm:$0xff]
    %v8586 = vld [vmem:[%s7 + $0x190] sm:$0xff]
    %v8587 = vld [vmem:[%s7 + $0x198] sm:$0xff]
    %v8588 = vld [vmem:[%s7 + $0x1a0] sm:$0xff]
    %v8589 = vld [vmem:[%s7 + $0x1a8] sm:$0xff]
    %v8590 = vld [vmem:[%s7 + $0x1b0] sm:$0xff]
    %v8591 = vld [vmem:[%s7 + $0x1b8] sm:$0xff]
    %v8592 = vld [vmem:[%s7 + $0x1c0] sm:$0xff]
    %v8593 = vld [vmem:[%s7 + $0x1c8] sm:$0xff]
    %v8594 = vld [vmem:[%s7 + $0x1d0] sm:$0xff]
    %v8595 = vld [vmem:[%s7 + $0x1d8] sm:$0xff]
    %v8596 = vld [vmem:[%s7 + $0x1e0] sm:$0xff]
    %v8597 = vld [vmem:[%s7 + $0x1e8] sm:$0xff]
    %v8598 = vld [vmem:[%s7 + $0x1f0] sm:$0xff]
    %v8599 = vld [vmem:[%s7 + $0x1f8] sm:$0xff]
    %v8600 = vld [vmem:[#allocation2] sm:$0x1]
    %v8602 = vperm.slane %v8600, 0
    %8604 = vmatpush.msra.mxu0 %v8551
    %8605 = vmatpush.msra.mxu0 %v8550
    %8606 = vmatpush.msra.mxu0 %v8549
    %8607 = vmatpush.msra.mxu0 %v8548
    %8608 = vmatpush.msra.mxu0 %v8547
    %8609 = vmatpush.msra.mxu0 %v8546
    %8610 = vmatpush.msra.mxu0 %v8545
    %8611 = vmatpush.msra.mxu0 %v8544
    %8612 = vmatpush.msra.mxu0 %v8543
    %8613 = vmatpush.msra.mxu0 %v8542
    %8614 = vmatpush.msra.mxu0 %v8541
    %8615 = vmatpush.msra.mxu0 %v8540
    %8616 = vmatpush.msra.mxu0 %v8539
    %8617 = vmatpush.msra.mxu0 %v8538
    %8618 = vmatpush.msra.mxu0 %v8537
    %8619 = vmatpush.msra.mxu0 %v8536
    %8620 = vmatmul.f32.gmra.mxu0 %v8532
    %v8621 = vpop.f32.mrf.mxu0
    %v8622 = vadd.f32 %v8602, %v8621
    %8623 = vdwg.mxu0
    %8624 = vmatpush.msra.mxu0 %v8567
    %8625 = vmatpush.msra.mxu0 %v8566
    %8626 = vmatpush.msra.mxu0 %v8565
    %8627 = vmatpush.msra.mxu0 %v8564
    %8628 = vmatpush.msra.mxu0 %v8563
    %8629 = vmatpush.msra.mxu0 %v8562
    %8630 = vmatpush.msra.mxu0 %v8561
    %8631 = vmatpush.msra.mxu0 %v8560
    %8632 = vmatpush.msra.mxu0 %v8559
    %8633 = vmatpush.msra.mxu0 %v8558
    %8634 = vmatpush.msra.mxu0 %v8557
    %8635 = vmatpush.msra.mxu0 %v8556
    %8636 = vmatpush.msra.mxu0 %v8555
    %8637 = vmatpush.msra.mxu0 %v8554
    %8638 = vmatpush.msra.mxu0 %v8553
    %8639 = vmatpush.msra.mxu0 %v8552
    %8640 = vmatmul.f32.gmra.mxu0 %v8533
    %v8641 = vpop.f32.mrf.mxu0
    %v8642 = vadd.f32 %v8622, %v8641
    %8643 = vdwg.mxu0
    %8644 = vmatpush.msra.mxu0 %v8583
    %8645 = vmatpush.msra.mxu0 %v8582
    %8646 = vmatpush.msra.mxu0 %v8581
    %8647 = vmatpush.msra.mxu0 %v8580
    %8648 = vmatpush.msra.mxu0 %v8579
    %8649 = vmatpush.msra.mxu0 %v8578
    %8650 = vmatpush.msra.mxu0 %v8577
    %8651 = vmatpush.msra.mxu0 %v8576
    %8652 = vmatpush.msra.mxu0 %v8575
    %8653 = vmatpush.msra.mxu0 %v8574
    %8654 = vmatpush.msra.mxu0 %v8573
    %8655 = vmatpush.msra.mxu0 %v8572
    %8656 = vmatpush.msra.mxu0 %v8571
    %8657 = vmatpush.msra.mxu0 %v8570
    %8658 = vmatpush.msra.mxu0 %v8569
    %8659 = vmatpush.msra.mxu0 %v8568
    %8660 = vmatmul.f32.gmra.mxu0 %v8534
    %v8661 = vpop.f32.mrf.mxu0
    %v8662 = vadd.f32 %v8642, %v8661
    %8663 = vdwg.mxu0
    %8664 = vmatpush.msra.mxu0 %v8599
    %8665 = vmatpush.msra.mxu0 %v8598
    %8666 = vmatpush.msra.mxu0 %v8597
    %8667 = vmatpush.msra.mxu0 %v8596
    %8668 = vmatpush.msra.mxu0 %v8595
    %8669 = vmatpush.msra.mxu0 %v8594
    %8670 = vmatpush.msra.mxu0 %v8593
    %8671 = vmatpush.msra.mxu0 %v8592
    %8672 = vmatpush.msra.mxu0 %v8591
    %8673 = vmatpush.msra.mxu0 %v8590
    %8674 = vmatpush.msra.mxu0 %v8589
    %8675 = vmatpush.msra.mxu0 %v8588
    %8676 = vmatpush.msra.mxu0 %v8587
    %8677 = vmatpush.msra.mxu0 %v8586
    %8678 = vmatpush.msra.mxu0 %v8585
    %8679 = vmatpush.msra.mxu0 %v8584
    %8680 = vmatmul.f32.gmra.mxu0 %v8535
    %v8681 = vpop.f32.mrf.mxu0
    %v8682 = vadd.f32 %v8662, %v8681
    %8683 = vdwg.mxu0
    %v8684 = vmul.f32 %v8682, 0.5
    %v8685 = vtanh.pop %v8684
    %v8686 = vadd.f32 %v8685, 1.0
    %v8687 = vmul.f32 %v8686, 0.5
    %vm8688 = vcmask 1024
    %8689 = vst.msk [vmem:[%s9] sm:$0x3] %vm8688, %v8687
    // Predicated region
    $region62: #{tpu_custom_call.1} parent=1 // pred_check
      _
    $region63: #{tpu_custom_call.1} parent=1 // pred_check_branch
      %8691 = sbr.rel (0) target = $region65
    $region64: #{tpu_custom_call.1} parent=1 // pred_region
      _
    $region65: #{tpu_custom_call.1} parent=1 // pred_fallthru
      _
    // Predicated region
    $region66: #{tpu_custom_call.1} parent=1 // pred_check
      _
    $region67: #{tpu_custom_call.1} parent=1 // pred_check_branch
      %8693 = sbr.rel (0) target = $region69
    $region68: #{tpu_custom_call.1} parent=1 // pred_region
      _
    $region69: #{tpu_custom_call.1} parent=1 // pred_fallthru
      _
    %8694 = vsyncpa [#allocation4], 1
    %8695 = vsyncpa [#allocation6], 1
    %8696 = vsyncpa [#allocation9], 1
    %8697 = vsyncpa [#allocation12], 1

</llo_original>
